<compile_context>
chip_gen: v7x
topology: tpu7x:2x2x1
jax: 0.10.0
libtpu: 0.0.40
codegen_flags: <defaults>
</compile_context>

<pallas_src>
import numpy as np
import jax
import jax.numpy as jnp
from jax.experimental import pallas as pl
from jax.experimental.pallas import tpu as pltpu

ACT_BITS = 2
WEIGHT_BITS = 2

_HW = 1024        # 32*32 pixels per image (lane axis)
_XQW = 1280       # quantized-input canvas width (>= 1024 + max conv1 tap offset 132)
_Y1W = 1152       # conv1-output canvas width  (>= 1024 + max pool tap offset 99)
_CW = _HW + 96    # separable-pool column-max width (row taps reach +96 lanes)
_W2 = 384         # lane span needed by conv2 / final gather (max valid read lane 911)


# ----------------------------- fake quantizers ------------------------------
def _act_quant(x, bits=ACT_BITS):
    # signed symmetric, scale 1/2^(b-1): 2-bit levels {-1, -0.5, 0, 0.5}
    n = float(2 ** (bits - 1))
    return jnp.clip(jnp.round(x * n), -n, n - 1.0) * (1.0 / n)


def _weight_quant(w, bits=WEIGHT_BITS):
    # narrow-range signed symmetric: 2-bit -> ternary {-1, 0, 1}
    n = float(2 ** (bits - 1) - 1)
    return jnp.clip(jnp.round(w * n), -n, n) * (1.0 / n)


def _bn_fold(gamma, beta, mean, var, eps=1e-5):
    scale = gamma * jax.lax.rsqrt(var + eps)
    return scale, beta - mean * scale


# ------------------------------ Pallas kernels -------------------------------
def _conv_trunk_kernel(x_ref, w1_ref, s1_ref, b1_ref, w2_ref, s2_ref, b2_ref,
                       sel_ref, out_ref, xq_s, y1_s, m_s):
    bsz = x_ref.shape[0]

    # keep canvas pad lanes finite; cheap once-per-step (amortized over bsz images)
    xq_s[:, _HW:] = jnp.zeros((8, _XQW - _HW), jnp.bfloat16)
    y1_s[:, _HW:] = jnp.zeros((8, _Y1W - _HW), jnp.float32)

    @pl.loop(0, bsz)
    def _(b):
        # ---- input activation quant (QuantIdentity); pad channels 3->8 in VMEM ----
        x8 = jnp.concatenate([x_ref[b], jnp.zeros((5, _HW), jnp.float32)], axis=0)
        xq_s[:, :_HW] = _act_quant(x8).astype(jnp.bfloat16)

        # ---- conv1 (3->6, k=5): 25 shifted-slice bf16 matmuls, f32 accumulate ----
        acc = jnp.zeros((8, _HW), jnp.float32)
        for t in range(25):
            di, dj = divmod(t, 5)
            off = di * 32 + dj
            acc = acc + jnp.dot(w1_ref[t], xq_s[:, pl.ds(off, _HW)],
                                preferred_element_type=jnp.float32)
        y1_s[:, :_HW] = _act_quant(acc * s1_ref[...] + b1_ref[...])   # BN2d folded + quant

        # ---- MaxPool2d(4), separable: col-max over 4 taps, then row-max over 4 ----
        cmax = y1_s[:, pl.ds(0, _CW)]
        for db in range(1, 4):
            cmax = jnp.maximum(cmax, y1_s[:, pl.ds(db, _CW)])
        pooled = cmax[:, 0:_HW]
        for da in range(1, 4):
            pooled = jnp.maximum(pooled, cmax[:, da * 32: da * 32 + _HW])
        m_s[...] = pooled.astype(jnp.bfloat16)   # results at lanes 128*pi + 4*pj

        # ---- conv2 (6->16, k=5) on the dilated pooled grid (strides 128 / 4) ----
        acc2 = jnp.zeros((16, _W2), jnp.float32)
        for t in range(25):
            di, dj = divmod(t, 5)
            off = di * 128 + dj * 4
            acc2 = acc2 + jnp.dot(w2_ref[t], m_s[:, pl.ds(off, _W2)],
                                  preferred_element_type=jnp.float32)
        y2 = _act_quant(acc2 * s2_ref[...] + b2_ref[...]).astype(jnp.bfloat16)

        # ---- compact the 9 valid conv2 pixels (torch NCHW flatten order) ----
        out_ref[b] = jnp.dot(y2, sel_ref[...],
                             preferred_element_type=jnp.float32).astype(out_ref.dtype)


def _fc_head_kernel(f_ref, w1_ref, s1_ref, b1_ref, w2_ref, s2_ref, b2_ref,
                    tns_ref, tnb_ref, o_ref):
    # fc1 -> BN1d -> quant      (all FC lanes padded to 128: unmasked, lane-dense)
    h = jnp.dot(f_ref[...], w1_ref[...], preferred_element_type=jnp.float32)
    h = _act_quant(h * s1_ref[...] + b1_ref[...]).astype(jnp.bfloat16)
    # fc2 -> BN1d -> quant
    o = jnp.dot(h, w2_ref[...], preferred_element_type=jnp.float32)
    o = _act_quant(o * s2_ref[...] + b2_ref[...])
    # TensorNorm (inference: running_mean=0, running_var=1, eps=1e-4 folded into scale)
    o_ref[...] = (o * tns_ref[...] + tnb_ref[...]).astype(o_ref.dtype)


# ------------------------------ Pallas wrappers -------------------------------
def conv_trunk(x, w1, s1, b1, w2, s2, b2, sel, block_b=None):
    n = x.shape[0]
    if block_b is None:
        # amortize the ~0.35us/step overhead but keep >=2 grid steps (v7x dual-TC)
        block_b = max(1, min(32, (n + 1) // 2))
    n_pad = ((n + block_b - 1) // block_b) * block_b
    if n_pad != n:
        x = jnp.pad(x, ((0, n_pad - n), (0, 0), (0, 0)))
    out = pl.pallas_call(
        _conv_trunk_kernel,
        out_shape=jax.ShapeDtypeStruct((n_pad, 16, 9), jnp.bfloat16),
        grid=(n_pad // block_b,),
        in_specs=[
            pl.BlockSpec((block_b, 3, _HW), lambda i: (i, 0, 0)),
            pl.BlockSpec((25, 8, 8), lambda i: (0, 0, 0)),
            pl.BlockSpec((8, 1), lambda i: (0, 0)),
            pl.BlockSpec((8, 1), lambda i: (0, 0)),
            pl.BlockSpec((25, 16, 8), lambda i: (0, 0, 0)),
            pl.BlockSpec((16, 1), lambda i: (0, 0)),
            pl.BlockSpec((16, 1), lambda i: (0, 0)),
            pl.BlockSpec((_W2, 9), lambda i: (0, 0)),
        ],
        out_specs=pl.BlockSpec((block_b, 16, 9), lambda i: (i, 0, 0)),
        scratch_shapes=[
            pltpu.VMEM((8, _XQW), jnp.bfloat16),   # quantized input canvas (conv1 operand)
            pltpu.VMEM((8, _Y1W), jnp.float32),    # conv1+BN+quant canvas (pool source)
            pltpu.VMEM((8, _HW), jnp.bfloat16),    # pooled canvas (conv2 operand)
        ],
        compiler_params=pltpu.CompilerParams(
            dimension_semantics=("parallel",),
            vmem_limit_bytes=32 * 1024 * 1024),
    )(x, w1, s1, b1, w2, s2, b2, sel)
    return out[:n]


def fc_head(f, w1, s1, b1, w2, s2, b2, tns, tnb):
    n = f.shape[0]
    if n <= 1024:
        tm, n_pad = n, n
    else:
        tm = 1024
        n_pad = ((n + tm - 1) // tm) * tm
        f = jnp.pad(f, ((0, n_pad - n), (0, 0)))
    out = pl.pallas_call(
        _fc_head_kernel,
        out_shape=jax.ShapeDtypeStruct((n_pad, 128), jnp.float32),
        grid=(n_pad // tm,),
        in_specs=[
            pl.BlockSpec((tm, 144), lambda i: (i, 0)),
            pl.BlockSpec((144, 128), lambda i: (0, 0)),
            pl.BlockSpec((1, 128), lambda i: (0, 0)),
            pl.BlockSpec((1, 128), lambda i: (0, 0)),
            pl.BlockSpec((128, 128), lambda i: (0, 0)),
            pl.BlockSpec((1, 128), lambda i: (0, 0)),
            pl.BlockSpec((1, 128), lambda i: (0, 0)),
            pl.BlockSpec((1, 1), lambda i: (0, 0)),
            pl.BlockSpec((1, 1), lambda i: (0, 0)),
        ],
        out_specs=pl.BlockSpec((tm, 128), lambda i: (i, 0)),
        compiler_params=pltpu.CompilerParams(
            dimension_semantics=("parallel",),
            vmem_limit_bytes=32 * 1024 * 1024),
    )(f, w1, s1, b1, w2, s2, b2, tns, tnb)
    return out[:n, :10]


# --------------------------------- JAX glue ----------------------------------
def _conv2_sel():
    # one-hot selector: conv2 output pixel (qi, qj) lives at lane 128*qi + 4*qj;
    # column order qi*3+qj matches torch .view(N, -1) on NCHW.
    s = np.zeros((_W2, 9), np.float32)
    for qi in range(3):
        for qj in range(3):
            s[128 * qi + 4 * qj, qi * 3 + qj] = 1.0
    return jnp.asarray(s, dtype=jnp.bfloat16)


def init_params(key):
    ks = jax.random.split(key, 10)
    u = lambda k, s: jax.random.uniform(k, s, jnp.float32, -1.0, 1.0)

    def bn(k, nfeat):
        k0, k1, k2, k3 = jax.random.split(k, 4)
        return (jax.random.uniform(k0, (nfeat,), jnp.float32, 0.5, 1.5),
                jax.random.uniform(k1, (nfeat,), jnp.float32, -0.5, 0.5),
                jax.random.uniform(k2, (nfeat,), jnp.float32, -0.1, 0.1),
                jax.random.uniform(k3, (nfeat,), jnp.float32, 0.5, 1.5))

    return {
        # uniform init + 2-bit (ternary) weight fake-quant
        "conv1_w": _weight_quant(u(ks[0], (6, 3, 5, 5))),
        "conv2_w": _weight_quant(u(ks[1], (16, 6, 5, 5))),
        "fc1_w": _weight_quant(u(ks[2], (120, 144))),
        "fc2_w": _weight_quant(u(ks[3], (10, 120))),
        "bn1": bn(ks[4], 6),
        "bn2": bn(ks[5], 16),
        "bn3": bn(ks[6], 120),
        "bn4": bn(ks[7], 10),
        # TensorNorm: weight, bias ~ U[0,1); running_mean=0, running_var=1, eps=1e-4
        "tn": (jax.random.uniform(ks[8], (), jnp.float32),
               jax.random.uniform(ks[9], (), jnp.float32)),
    }


def forward(x_nchw, p):
    n = x_nchw.shape[0]
    # NCHW -> (N, C, H*W) is a free reshape; all channel/lane padding is done in VMEM
    # inside the trunk kernel (no padded HBM copy).
    x = x_nchw.astype(jnp.float32).reshape(n, 3, _HW)

    # conv weights: (Cout, Cin, kh, kw) -> (tap = di*5+dj, Cout_pad, Cin_pad), bf16 exact
    w1 = jnp.transpose(p["conv1_w"], (2, 3, 0, 1)).reshape(25, 6, 3)
    w1 = jnp.pad(w1, ((0, 0), (0, 2), (0, 5))).astype(jnp.bfloat16)
    w2 = jnp.transpose(p["conv2_w"], (2, 3, 0, 1)).reshape(25, 16, 6)
    w2 = jnp.pad(w2, ((0, 0), (0, 0), (0, 2))).astype(jnp.bfloat16)

    s1, b1 = _bn_fold(*p["bn1"])
    s1 = jnp.pad(s1, (0, 2)).reshape(8, 1)
    b1 = jnp.pad(b1, (0, 2)).reshape(8, 1)
    s2, b2 = _bn_fold(*p["bn2"])
    s2 = s2.reshape(16, 1)
    b2 = b2.reshape(16, 1)

    feats = conv_trunk(x, w1, s1, b1, w2, s2, b2, _conv2_sel())      # (N, 16, 9) bf16
    f = feats.reshape(n, 144)                 # == torch .view(N, -1) on (N,16,3,3)

    # FC head: pad all feature lanes to 128 (lane-dense output; zeros are inert)
    s3, b3 = _bn_fold(*p["bn3"])
    s4, b4 = _bn_fold(*p["bn4"])
    tn_w, tn_b = p["tn"]
    fc1 = jnp.pad(p["fc1_w"].T, ((0, 0), (0, 8))).astype(jnp.bfloat16)       # (144,128)
    fc2 = jnp.pad(p["fc2_w"].T, ((0, 8), (0, 118))).astype(jnp.bfloat16)     # (128,128)
    s3p = jnp.pad(s3, (0, 8)).reshape(1, 128)
    b3p = jnp.pad(b3, (0, 8)).reshape(1, 128)
    s4p = jnp.pad(s4, (0, 118)).reshape(1, 128)
    b4p = jnp.pad(b4, (0, 118)).reshape(1, 128)
    return fc_head(
        f, fc1, s3p, b3p, fc2, s4p, b4p,
        (tn_w / jnp.sqrt(jnp.float32(1.0 + 1e-4))).reshape(1, 1),
        tn_b.reshape(1, 1),
    )                                                                 # (N, 10) f32


if __name__ == "__main__":
    key = jax.random.PRNGKey(0)
    pkey, xkey = jax.random.split(key)
    params = init_params(pkey)
    x = jax.random.uniform(xkey, (2, 3, 32, 32), jnp.float32)         # CIFAR-like input
    out = jax.jit(forward)(x, params)
    jax.block_until_ready(out)
    assert out.shape == (2, 10) and out.dtype == jnp.float32
    print("KERNEL_OK")
</pallas_src>

<mosaic_0001>
module attributes {stable_mosaic.version = 11 : i64} {
  func.func @_conv_trunk_kernel(%arg0: i32, %arg1: memref<1x3x1024xf32, #tpu.memory_space<vmem>>, %arg2: memref<25x8x8xbf16, #tpu.memory_space<vmem>>, %arg3: memref<8x1xf32, #tpu.memory_space<vmem>>, %arg4: memref<8x1xf32, #tpu.memory_space<vmem>>, %arg5: memref<25x16x8xbf16, #tpu.memory_space<vmem>>, %arg6: memref<16x1xf32, #tpu.memory_space<vmem>>, %arg7: memref<16x1xf32, #tpu.memory_space<vmem>>, %arg8: memref<384x9xbf16, #tpu.memory_space<vmem>>, %arg9: memref<1x16x9xbf16, #tpu.memory_space<vmem>>, %arg10: memref<8x1280xbf16, #tpu.memory_space<vmem>>, %arg11: memref<8x1152xf32, #tpu.memory_space<vmem>>, %arg12: memref<8x1024xbf16, #tpu.memory_space<vmem>>) attributes {dimension_semantics = [#tpu.dimension_semantics<parallel>], iteration_bounds = array<i64: 2>, scalar_prefetch = 0 : i64, scratch_operands = 3 : i64, tpu.core_type = #tpu.core_type<tc>, window_params = [{transform_indices = @transform_0, window_bounds = array<i64: 1, 3, 1024>}, {pipeline_mode = #tpu.pipeline_mode<synchronous>, transform_indices = @transform_1, window_bounds = array<i64: 25, 8, 8>}, {pipeline_mode = #tpu.pipeline_mode<synchronous>, transform_indices = @transform_2, window_bounds = array<i64: 8, 1>}, {pipeline_mode = #tpu.pipeline_mode<synchronous>, transform_indices = @transform_3, window_bounds = array<i64: 8, 1>}, {pipeline_mode = #tpu.pipeline_mode<synchronous>, transform_indices = @transform_4, window_bounds = array<i64: 25, 16, 8>}, {pipeline_mode = #tpu.pipeline_mode<synchronous>, transform_indices = @transform_5, window_bounds = array<i64: 16, 1>}, {pipeline_mode = #tpu.pipeline_mode<synchronous>, transform_indices = @transform_6, window_bounds = array<i64: 16, 1>}, {pipeline_mode = #tpu.pipeline_mode<synchronous>, transform_indices = @transform_7, window_bounds = array<i64: 384, 9>}, {transform_indices = @transform_8, window_bounds = array<i64: 1, 16, 9>}]} {
    %cst = arith.constant 0.000000e+00 : bf16
    %0 = vector.broadcast %cst : bf16 to vector<8x256xbf16>
    %c0 = arith.constant 0 : index
    %c1024 = arith.constant 1024 : index
    %1 = vector.load %arg10[%c0, %c1024] : memref<8x1280xbf16, #tpu.memory_space<vmem>>, vector<8x256xbf16>
    tpu.vector_store %arg10[%c0, %c1024], %0 {strides = array<i32>} : memref<8x1280xbf16, #tpu.memory_space<vmem>>, vector<8x256xbf16>,
    %cst_0 = arith.constant 0.000000e+00 : f32
    %2 = vector.broadcast %cst_0 : f32 to vector<8x128xf32>
    %c0_1 = arith.constant 0 : index
    %c1024_2 = arith.constant 1024 : index
    %3 = vector.load %arg11[%c0_1, %c1024_2] : memref<8x1152xf32, #tpu.memory_space<vmem>>, vector<8x128xf32>
    tpu.vector_store %arg11[%c0_1, %c1024_2], %2 {strides = array<i32>} : memref<8x1152xf32, #tpu.memory_space<vmem>>, vector<8x128xf32>,
    %c0_i32 = arith.constant 0 : i32
    %c1_i32 = arith.constant 1 : i32
    %4 = arith.muli %c0_i32, %c1_i32 : i32
    %c0_i32_3 = arith.constant 0 : i32
    %5 = arith.addi %c0_i32_3, %4 : i32
    %6 = arith.index_cast %5 : i32 to index
    %c0_4 = arith.constant 0 : index
    %c0_5 = arith.constant 0 : index
    %7 = vector.load %arg1[%6, %c0_4, %c0_5] : memref<1x3x1024xf32, #tpu.memory_space<vmem>>, vector<1x3x1024xf32>
    %8 = vector.shape_cast %7 : vector<1x3x1024xf32> to vector<3x1024xf32>
    %cst_6 = arith.constant 0.000000e+00 : f32
    %9 = vector.broadcast %cst_6 : f32 to vector<5x1024xf32>
    %10 = tpu.concatenate %8, %9 in 0 : vector<3x1024xf32>, vector<5x1024xf32> -> vector<8x1024xf32>
    %cst_7 = arith.constant 2.000000e+00 : f32
    %11 = vector.broadcast %cst_7 : f32 to vector<8x1024xf32>
    %12 = arith.mulf %10, %11 : vector<8x1024xf32>
    %13 = math.roundeven %12 : vector<8x1024xf32>
    %cst_8 = arith.constant -2.000000e+00 : f32
    %cst_9 = arith.constant 1.000000e+00 : f32
    %14 = vector.broadcast %cst_8 : f32 to vector<8x1024xf32>
    %15 = arith.maximumf %14, %13 : vector<8x1024xf32>
    %16 = vector.broadcast %cst_9 : f32 to vector<8x1024xf32>
    %17 = arith.minimumf %16, %15 : vector<8x1024xf32>
    %cst_10 = arith.constant 5.000000e-01 : f32
    %18 = vector.broadcast %cst_10 : f32 to vector<8x1024xf32>
    %19 = arith.mulf %17, %18 : vector<8x1024xf32>
    %20 = arith.truncf %19 : vector<8x1024xf32> to vector<8x1024xbf16>
    %c0_11 = arith.constant 0 : index
    %c0_12 = arith.constant 0 : index
    %21 = vector.load %arg10[%c0_11, %c0_12] : memref<8x1280xbf16, #tpu.memory_space<vmem>>, vector<8x1024xbf16>
    tpu.vector_store %arg10[%c0_11, %c0_12], %20 {strides = array<i32>} : memref<8x1280xbf16, #tpu.memory_space<vmem>>, vector<8x1024xbf16>,
    %cst_13 = arith.constant 0.000000e+00 : f32
    %22 = vector.broadcast %cst_13 : f32 to vector<8x1024xf32>
    %c0_14 = arith.constant 0 : index
    %c0_15 = arith.constant 0 : index
    %c0_16 = arith.constant 0 : index
    %23 = vector.load %arg2[%c0_14, %c0_15, %c0_16] : memref<25x8x8xbf16, #tpu.memory_space<vmem>>, vector<1x8x8xbf16>
    %24 = vector.shape_cast %23 : vector<1x8x8xbf16> to vector<8x8xbf16>
    %c0_17 = arith.constant 0 : index
    %c0_18 = arith.constant 0 : index
    %25 = vector.load %arg10[%c0_17, %c0_18] : memref<8x1280xbf16, #tpu.memory_space<vmem>>, vector<8x1024xbf16>
    %cst_19 = arith.constant dense<0.000000e+00> : vector<8x1024xf32>
    %26 = tpu.matmul %24, %25, %cst_19 {dimension_numbers = #tpu.dot_dimension_numbers<[1], [0], [0], [1], [0, 0, 1, 1], [], []>} : vector<8x8xbf16>, vector<8x1024xbf16>, vector<8x1024xf32> -> vector<8x1024xf32>
    %27 = arith.addf %22, %26 : vector<8x1024xf32>
    %c1 = arith.constant 1 : index
    %c0_20 = arith.constant 0 : index
    %c0_21 = arith.constant 0 : index
    %28 = vector.load %arg2[%c1, %c0_20, %c0_21] : memref<25x8x8xbf16, #tpu.memory_space<vmem>>, vector<1x8x8xbf16>
    %29 = vector.shape_cast %28 : vector<1x8x8xbf16> to vector<8x8xbf16>
    %c0_22 = arith.constant 0 : index
    %c1_23 = arith.constant 1 : index
    %30 = vector.load %arg10[%c0_22, %c1_23] : memref<8x1280xbf16, #tpu.memory_space<vmem>>, vector<8x1024xbf16>
    %cst_24 = arith.constant dense<0.000000e+00> : vector<8x1024xf32>
    %31 = tpu.matmul %29, %30, %cst_24 {dimension_numbers = #tpu.dot_dimension_numbers<[1], [0], [0], [1], [0, 0, 1, 1], [], []>} : vector<8x8xbf16>, vector<8x1024xbf16>, vector<8x1024xf32> -> vector<8x1024xf32>
    %32 = arith.addf %27, %31 : vector<8x1024xf32>
    %c2 = arith.constant 2 : index
    %c0_25 = arith.constant 0 : index
    %c0_26 = arith.constant 0 : index
    %33 = vector.load %arg2[%c2, %c0_25, %c0_26] : memref<25x8x8xbf16, #tpu.memory_space<vmem>>, vector<1x8x8xbf16>
    %34 = vector.shape_cast %33 : vector<1x8x8xbf16> to vector<8x8xbf16>
    %c0_27 = arith.constant 0 : index
    %c2_28 = arith.constant 2 : index
    %35 = vector.load %arg10[%c0_27, %c2_28] : memref<8x1280xbf16, #tpu.memory_space<vmem>>, vector<8x1024xbf16>
    %cst_29 = arith.constant dense<0.000000e+00> : vector<8x1024xf32>
    %36 = tpu.matmul %34, %35, %cst_29 {dimension_numbers = #tpu.dot_dimension_numbers<[1], [0], [0], [1], [0, 0, 1, 1], [], []>} : vector<8x8xbf16>, vector<8x1024xbf16>, vector<8x1024xf32> -> vector<8x1024xf32>
    %37 = arith.addf %32, %36 : vector<8x1024xf32>
    %c3 = arith.constant 3 : index
    %c0_30 = arith.constant 0 : index
    %c0_31 = arith.constant 0 : index
    %38 = vector.load %arg2[%c3, %c0_30, %c0_31] : memref<25x8x8xbf16, #tpu.memory_space<vmem>>, vector<1x8x8xbf16>
    %39 = vector.shape_cast %38 : vector<1x8x8xbf16> to vector<8x8xbf16>
    %c0_32 = arith.constant 0 : index
    %c3_33 = arith.constant 3 : index
    %40 = vector.load %arg10[%c0_32, %c3_33] : memref<8x1280xbf16, #tpu.memory_space<vmem>>, vector<8x1024xbf16>
    %cst_34 = arith.constant dense<0.000000e+00> : vector<8x1024xf32>
    %41 = tpu.matmul %39, %40, %cst_34 {dimension_numbers = #tpu.dot_dimension_numbers<[1], [0], [0], [1], [0, 0, 1, 1], [], []>} : vector<8x8xbf16>, vector<8x1024xbf16>, vector<8x1024xf32> -> vector<8x1024xf32>
    %42 = arith.addf %37, %41 : vector<8x1024xf32>
    %c4 = arith.constant 4 : index
    %c0_35 = arith.constant 0 : index
    %c0_36 = arith.constant 0 : index
    %43 = vector.load %arg2[%c4, %c0_35, %c0_36] : memref<25x8x8xbf16, #tpu.memory_space<vmem>>, vector<1x8x8xbf16>
    %44 = vector.shape_cast %43 : vector<1x8x8xbf16> to vector<8x8xbf16>
    %c0_37 = arith.constant 0 : index
    %c4_38 = arith.constant 4 : index
    %45 = vector.load %arg10[%c0_37, %c4_38] : memref<8x1280xbf16, #tpu.memory_space<vmem>>, vector<8x1024xbf16>
    %cst_39 = arith.constant dense<0.000000e+00> : vector<8x1024xf32>
    %46 = tpu.matmul %44, %45, %cst_39 {dimension_numbers = #tpu.dot_dimension_numbers<[1], [0], [0], [1], [0, 0, 1, 1], [], []>} : vector<8x8xbf16>, vector<8x1024xbf16>, vector<8x1024xf32> -> vector<8x1024xf32>
    %47 = arith.addf %42, %46 : vector<8x1024xf32>
    %c5 = arith.constant 5 : index
    %c0_40 = arith.constant 0 : index
    %c0_41 = arith.constant 0 : index
    %48 = vector.load %arg2[%c5, %c0_40, %c0_41] : memref<25x8x8xbf16, #tpu.memory_space<vmem>>, vector<1x8x8xbf16>
    %49 = vector.shape_cast %48 : vector<1x8x8xbf16> to vector<8x8xbf16>
    %c0_42 = arith.constant 0 : index
    %c32 = arith.constant 32 : index
    %50 = vector.load %arg10[%c0_42, %c32] : memref<8x1280xbf16, #tpu.memory_space<vmem>>, vector<8x1024xbf16>
    %cst_43 = arith.constant dense<0.000000e+00> : vector<8x1024xf32>
    %51 = tpu.matmul %49, %50, %cst_43 {dimension_numbers = #tpu.dot_dimension_numbers<[1], [0], [0], [1], [0, 0, 1, 1], [], []>} : vector<8x8xbf16>, vector<8x1024xbf16>, vector<8x1024xf32> -> vector<8x1024xf32>
    %52 = arith.addf %47, %51 : vector<8x1024xf32>
    %c6 = arith.constant 6 : index
    %c0_44 = arith.constant 0 : index
    %c0_45 = arith.constant 0 : index
    %53 = vector.load %arg2[%c6, %c0_44, %c0_45] : memref<25x8x8xbf16, #tpu.memory_space<vmem>>, vector<1x8x8xbf16>
    %54 = vector.shape_cast %53 : vector<1x8x8xbf16> to vector<8x8xbf16>
    %c0_46 = arith.constant 0 : index
    %c33 = arith.constant 33 : index
    %55 = vector.load %arg10[%c0_46, %c33] : memref<8x1280xbf16, #tpu.memory_space<vmem>>, vector<8x1024xbf16>
    %cst_47 = arith.constant dense<0.000000e+00> : vector<8x1024xf32>
    %56 = tpu.matmul %54, %55, %cst_47 {dimension_numbers = #tpu.dot_dimension_numbers<[1], [0], [0], [1], [0, 0, 1, 1], [], []>} : vector<8x8xbf16>, vector<8x1024xbf16>, vector<8x1024xf32> -> vector<8x1024xf32>
    %57 = arith.addf %52, %56 : vector<8x1024xf32>
    %c7 = arith.constant 7 : index
    %c0_48 = arith.constant 0 : index
    %c0_49 = arith.constant 0 : index
    %58 = vector.load %arg2[%c7, %c0_48, %c0_49] : memref<25x8x8xbf16, #tpu.memory_space<vmem>>, vector<1x8x8xbf16>
    %59 = vector.shape_cast %58 : vector<1x8x8xbf16> to vector<8x8xbf16>
    %c0_50 = arith.constant 0 : index
    %c34 = arith.constant 34 : index
    %60 = vector.load %arg10[%c0_50, %c34] : memref<8x1280xbf16, #tpu.memory_space<vmem>>, vector<8x1024xbf16>
    %cst_51 = arith.constant dense<0.000000e+00> : vector<8x1024xf32>
    %61 = tpu.matmul %59, %60, %cst_51 {dimension_numbers = #tpu.dot_dimension_numbers<[1], [0], [0], [1], [0, 0, 1, 1], [], []>} : vector<8x8xbf16>, vector<8x1024xbf16>, vector<8x1024xf32> -> vector<8x1024xf32>
    %62 = arith.addf %57, %61 : vector<8x1024xf32>
    %c8 = arith.constant 8 : index
    %c0_52 = arith.constant 0 : index
    %c0_53 = arith.constant 0 : index
    %63 = vector.load %arg2[%c8, %c0_52, %c0_53] : memref<25x8x8xbf16, #tpu.memory_space<vmem>>, vector<1x8x8xbf16>
    %64 = vector.shape_cast %63 : vector<1x8x8xbf16> to vector<8x8xbf16>
    %c0_54 = arith.constant 0 : index
    %c35 = arith.constant 35 : index
    %65 = vector.load %arg10[%c0_54, %c35] : memref<8x1280xbf16, #tpu.memory_space<vmem>>, vector<8x1024xbf16>
    %cst_55 = arith.constant dense<0.000000e+00> : vector<8x1024xf32>
    %66 = tpu.matmul %64, %65, %cst_55 {dimension_numbers = #tpu.dot_dimension_numbers<[1], [0], [0], [1], [0, 0, 1, 1], [], []>} : vector<8x8xbf16>, vector<8x1024xbf16>, vector<8x1024xf32> -> vector<8x1024xf32>
    %67 = arith.addf %62, %66 : vector<8x1024xf32>
    %c9 = arith.constant 9 : index
    %c0_56 = arith.constant 0 : index
    %c0_57 = arith.constant 0 : index
    %68 = vector.load %arg2[%c9, %c0_56, %c0_57] : memref<25x8x8xbf16, #tpu.memory_space<vmem>>, vector<1x8x8xbf16>
    %69 = vector.shape_cast %68 : vector<1x8x8xbf16> to vector<8x8xbf16>
    %c0_58 = arith.constant 0 : index
    %c36 = arith.constant 36 : index
    %70 = vector.load %arg10[%c0_58, %c36] : memref<8x1280xbf16, #tpu.memory_space<vmem>>, vector<8x1024xbf16>
    %cst_59 = arith.constant dense<0.000000e+00> : vector<8x1024xf32>
    %71 = tpu.matmul %69, %70, %cst_59 {dimension_numbers = #tpu.dot_dimension_numbers<[1], [0], [0], [1], [0, 0, 1, 1], [], []>} : vector<8x8xbf16>, vector<8x1024xbf16>, vector<8x1024xf32> -> vector<8x1024xf32>
    %72 = arith.addf %67, %71 : vector<8x1024xf32>
    %c10 = arith.constant 10 : index
    %c0_60 = arith.constant 0 : index
    %c0_61 = arith.constant 0 : index
    %73 = vector.load %arg2[%c10, %c0_60, %c0_61] : memref<25x8x8xbf16, #tpu.memory_space<vmem>>, vector<1x8x8xbf16>
    %74 = vector.shape_cast %73 : vector<1x8x8xbf16> to vector<8x8xbf16>
    %c0_62 = arith.constant 0 : index
    %c64 = arith.constant 64 : index
    %75 = vector.load %arg10[%c0_62, %c64] : memref<8x1280xbf16, #tpu.memory_space<vmem>>, vector<8x1024xbf16>
    %cst_63 = arith.constant dense<0.000000e+00> : vector<8x1024xf32>
    %76 = tpu.matmul %74, %75, %cst_63 {dimension_numbers = #tpu.dot_dimension_numbers<[1], [0], [0], [1], [0, 0, 1, 1], [], []>} : vector<8x8xbf16>, vector<8x1024xbf16>, vector<8x1024xf32> -> vector<8x1024xf32>
    %77 = arith.addf %72, %76 : vector<8x1024xf32>
    %c11 = arith.constant 11 : index
    %c0_64 = arith.constant 0 : index
    %c0_65 = arith.constant 0 : index
    %78 = vector.load %arg2[%c11, %c0_64, %c0_65] : memref<25x8x8xbf16, #tpu.memory_space<vmem>>, vector<1x8x8xbf16>
    %79 = vector.shape_cast %78 : vector<1x8x8xbf16> to vector<8x8xbf16>
    %c0_66 = arith.constant 0 : index
    %c65 = arith.constant 65 : index
    %80 = vector.load %arg10[%c0_66, %c65] : memref<8x1280xbf16, #tpu.memory_space<vmem>>, vector<8x1024xbf16>
    %cst_67 = arith.constant dense<0.000000e+00> : vector<8x1024xf32>
    %81 = tpu.matmul %79, %80, %cst_67 {dimension_numbers = #tpu.dot_dimension_numbers<[1], [0], [0], [1], [0, 0, 1, 1], [], []>} : vector<8x8xbf16>, vector<8x1024xbf16>, vector<8x1024xf32> -> vector<8x1024xf32>
    %82 = arith.addf %77, %81 : vector<8x1024xf32>
    %c12 = arith.constant 12 : index
    %c0_68 = arith.constant 0 : index
    %c0_69 = arith.constant 0 : index
    %83 = vector.load %arg2[%c12, %c0_68, %c0_69] : memref<25x8x8xbf16, #tpu.memory_space<vmem>>, vector<1x8x8xbf16>
    %84 = vector.shape_cast %83 : vector<1x8x8xbf16> to vector<8x8xbf16>
    %c0_70 = arith.constant 0 : index
    %c66 = arith.constant 66 : index
    %85 = vector.load %arg10[%c0_70, %c66] : memref<8x1280xbf16, #tpu.memory_space<vmem>>, vector<8x1024xbf16>
    %cst_71 = arith.constant dense<0.000000e+00> : vector<8x1024xf32>
    %86 = tpu.matmul %84, %85, %cst_71 {dimension_numbers = #tpu.dot_dimension_numbers<[1], [0], [0], [1], [0, 0, 1, 1], [], []>} : vector<8x8xbf16>, vector<8x1024xbf16>, vector<8x1024xf32> -> vector<8x1024xf32>
    %87 = arith.addf %82, %86 : vector<8x1024xf32>
    %c13 = arith.constant 13 : index
    %c0_72 = arith.constant 0 : index
    %c0_73 = arith.constant 0 : index
    %88 = vector.load %arg2[%c13, %c0_72, %c0_73] : memref<25x8x8xbf16, #tpu.memory_space<vmem>>, vector<1x8x8xbf16>
    %89 = vector.shape_cast %88 : vector<1x8x8xbf16> to vector<8x8xbf16>
    %c0_74 = arith.constant 0 : index
    %c67 = arith.constant 67 : index
    %90 = vector.load %arg10[%c0_74, %c67] : memref<8x1280xbf16, #tpu.memory_space<vmem>>, vector<8x1024xbf16>
    %cst_75 = arith.constant dense<0.000000e+00> : vector<8x1024xf32>
    %91 = tpu.matmul %89, %90, %cst_75 {dimension_numbers = #tpu.dot_dimension_numbers<[1], [0], [0], [1], [0, 0, 1, 1], [], []>} : vector<8x8xbf16>, vector<8x1024xbf16>, vector<8x1024xf32> -> vector<8x1024xf32>
    %92 = arith.addf %87, %91 : vector<8x1024xf32>
    %c14 = arith.constant 14 : index
    %c0_76 = arith.constant 0 : index
    %c0_77 = arith.constant 0 : index
    %93 = vector.load %arg2[%c14, %c0_76, %c0_77] : memref<25x8x8xbf16, #tpu.memory_space<vmem>>, vector<1x8x8xbf16>
    %94 = vector.shape_cast %93 : vector<1x8x8xbf16> to vector<8x8xbf16>
    %c0_78 = arith.constant 0 : index
    %c68 = arith.constant 68 : index
    %95 = vector.load %arg10[%c0_78, %c68] : memref<8x1280xbf16, #tpu.memory_space<vmem>>, vector<8x1024xbf16>
    %cst_79 = arith.constant dense<0.000000e+00> : vector<8x1024xf32>
    %96 = tpu.matmul %94, %95, %cst_79 {dimension_numbers = #tpu.dot_dimension_numbers<[1], [0], [0], [1], [0, 0, 1, 1], [], []>} : vector<8x8xbf16>, vector<8x1024xbf16>, vector<8x1024xf32> -> vector<8x1024xf32>
    %97 = arith.addf %92, %96 : vector<8x1024xf32>
    %c15 = arith.constant 15 : index
    %c0_80 = arith.constant 0 : index
    %c0_81 = arith.constant 0 : index
    %98 = vector.load %arg2[%c15, %c0_80, %c0_81] : memref<25x8x8xbf16, #tpu.memory_space<vmem>>, vector<1x8x8xbf16>
    %99 = vector.shape_cast %98 : vector<1x8x8xbf16> to vector<8x8xbf16>
    %c0_82 = arith.constant 0 : index
    %c96 = arith.constant 96 : index
    %100 = vector.load %arg10[%c0_82, %c96] : memref<8x1280xbf16, #tpu.memory_space<vmem>>, vector<8x1024xbf16>
    %cst_83 = arith.constant dense<0.000000e+00> : vector<8x1024xf32>
    %101 = tpu.matmul %99, %100, %cst_83 {dimension_numbers = #tpu.dot_dimension_numbers<[1], [0], [0], [1], [0, 0, 1, 1], [], []>} : vector<8x8xbf16>, vector<8x1024xbf16>, vector<8x1024xf32> -> vector<8x1024xf32>
    %102 = arith.addf %97, %101 : vector<8x1024xf32>
    %c16 = arith.constant 16 : index
    %c0_84 = arith.constant 0 : index
    %c0_85 = arith.constant 0 : index
    %103 = vector.load %arg2[%c16, %c0_84, %c0_85] : memref<25x8x8xbf16, #tpu.memory_space<vmem>>, vector<1x8x8xbf16>
    %104 = vector.shape_cast %103 : vector<1x8x8xbf16> to vector<8x8xbf16>
    %c0_86 = arith.constant 0 : index
    %c97 = arith.constant 97 : index
    %105 = vector.load %arg10[%c0_86, %c97] : memref<8x1280xbf16, #tpu.memory_space<vmem>>, vector<8x1024xbf16>
    %cst_87 = arith.constant dense<0.000000e+00> : vector<8x1024xf32>
    %106 = tpu.matmul %104, %105, %cst_87 {dimension_numbers = #tpu.dot_dimension_numbers<[1], [0], [0], [1], [0, 0, 1, 1], [], []>} : vector<8x8xbf16>, vector<8x1024xbf16>, vector<8x1024xf32> -> vector<8x1024xf32>
    %107 = arith.addf %102, %106 : vector<8x1024xf32>
    %c17 = arith.constant 17 : index
    %c0_88 = arith.constant 0 : index
    %c0_89 = arith.constant 0 : index
    %108 = vector.load %arg2[%c17, %c0_88, %c0_89] : memref<25x8x8xbf16, #tpu.memory_space<vmem>>, vector<1x8x8xbf16>
    %109 = vector.shape_cast %108 : vector<1x8x8xbf16> to vector<8x8xbf16>
    %c0_90 = arith.constant 0 : index
    %c98 = arith.constant 98 : index
    %110 = vector.load %arg10[%c0_90, %c98] : memref<8x1280xbf16, #tpu.memory_space<vmem>>, vector<8x1024xbf16>
    %cst_91 = arith.constant dense<0.000000e+00> : vector<8x1024xf32>
    %111 = tpu.matmul %109, %110, %cst_91 {dimension_numbers = #tpu.dot_dimension_numbers<[1], [0], [0], [1], [0, 0, 1, 1], [], []>} : vector<8x8xbf16>, vector<8x1024xbf16>, vector<8x1024xf32> -> vector<8x1024xf32>
    %112 = arith.addf %107, %111 : vector<8x1024xf32>
    %c18 = arith.constant 18 : index
    %c0_92 = arith.constant 0 : index
    %c0_93 = arith.constant 0 : index
    %113 = vector.load %arg2[%c18, %c0_92, %c0_93] : memref<25x8x8xbf16, #tpu.memory_space<vmem>>, vector<1x8x8xbf16>
    %114 = vector.shape_cast %113 : vector<1x8x8xbf16> to vector<8x8xbf16>
    %c0_94 = arith.constant 0 : index
    %c99 = arith.constant 99 : index
    %115 = vector.load %arg10[%c0_94, %c99] : memref<8x1280xbf16, #tpu.memory_space<vmem>>, vector<8x1024xbf16>
    %cst_95 = arith.constant dense<0.000000e+00> : vector<8x1024xf32>
    %116 = tpu.matmul %114, %115, %cst_95 {dimension_numbers = #tpu.dot_dimension_numbers<[1], [0], [0], [1], [0, 0, 1, 1], [], []>} : vector<8x8xbf16>, vector<8x1024xbf16>, vector<8x1024xf32> -> vector<8x1024xf32>
    %117 = arith.addf %112, %116 : vector<8x1024xf32>
    %c19 = arith.constant 19 : index
    %c0_96 = arith.constant 0 : index
    %c0_97 = arith.constant 0 : index
    %118 = vector.load %arg2[%c19, %c0_96, %c0_97] : memref<25x8x8xbf16, #tpu.memory_space<vmem>>, vector<1x8x8xbf16>
    %119 = vector.shape_cast %118 : vector<1x8x8xbf16> to vector<8x8xbf16>
    %c0_98 = arith.constant 0 : index
    %c100 = arith.constant 100 : index
    %120 = vector.load %arg10[%c0_98, %c100] : memref<8x1280xbf16, #tpu.memory_space<vmem>>, vector<8x1024xbf16>
    %cst_99 = arith.constant dense<0.000000e+00> : vector<8x1024xf32>
    %121 = tpu.matmul %119, %120, %cst_99 {dimension_numbers = #tpu.dot_dimension_numbers<[1], [0], [0], [1], [0, 0, 1, 1], [], []>} : vector<8x8xbf16>, vector<8x1024xbf16>, vector<8x1024xf32> -> vector<8x1024xf32>
    %122 = arith.addf %117, %121 : vector<8x1024xf32>
    %c20 = arith.constant 20 : index
    %c0_100 = arith.constant 0 : index
    %c0_101 = arith.constant 0 : index
    %123 = vector.load %arg2[%c20, %c0_100, %c0_101] : memref<25x8x8xbf16, #tpu.memory_space<vmem>>, vector<1x8x8xbf16>
    %124 = vector.shape_cast %123 : vector<1x8x8xbf16> to vector<8x8xbf16>
    %c0_102 = arith.constant 0 : index
    %c128 = arith.constant 128 : index
    %125 = vector.load %arg10[%c0_102, %c128] : memref<8x1280xbf16, #tpu.memory_space<vmem>>, vector<8x1024xbf16>
    %cst_103 = arith.constant dense<0.000000e+00> : vector<8x1024xf32>
    %126 = tpu.matmul %124, %125, %cst_103 {dimension_numbers = #tpu.dot_dimension_numbers<[1], [0], [0], [1], [0, 0, 1, 1], [], []>} : vector<8x8xbf16>, vector<8x1024xbf16>, vector<8x1024xf32> -> vector<8x1024xf32>
    %127 = arith.addf %122, %126 : vector<8x1024xf32>
    %c21 = arith.constant 21 : index
    %c0_104 = arith.constant 0 : index
    %c0_105 = arith.constant 0 : index
    %128 = vector.load %arg2[%c21, %c0_104, %c0_105] : memref<25x8x8xbf16, #tpu.memory_space<vmem>>, vector<1x8x8xbf16>
    %129 = vector.shape_cast %128 : vector<1x8x8xbf16> to vector<8x8xbf16>
    %c0_106 = arith.constant 0 : index
    %c129 = arith.constant 129 : index
    %130 = vector.load %arg10[%c0_106, %c129] : memref<8x1280xbf16, #tpu.memory_space<vmem>>, vector<8x1024xbf16>
    %cst_107 = arith.constant dense<0.000000e+00> : vector<8x1024xf32>
    %131 = tpu.matmul %129, %130, %cst_107 {dimension_numbers = #tpu.dot_dimension_numbers<[1], [0], [0], [1], [0, 0, 1, 1], [], []>} : vector<8x8xbf16>, vector<8x1024xbf16>, vector<8x1024xf32> -> vector<8x1024xf32>
    %132 = arith.addf %127, %131 : vector<8x1024xf32>
    %c22 = arith.constant 22 : index
    %c0_108 = arith.constant 0 : index
    %c0_109 = arith.constant 0 : index
    %133 = vector.load %arg2[%c22, %c0_108, %c0_109] : memref<25x8x8xbf16, #tpu.memory_space<vmem>>, vector<1x8x8xbf16>
    %134 = vector.shape_cast %133 : vector<1x8x8xbf16> to vector<8x8xbf16>
    %c0_110 = arith.constant 0 : index
    %c130 = arith.constant 130 : index
    %135 = vector.load %arg10[%c0_110, %c130] : memref<8x1280xbf16, #tpu.memory_space<vmem>>, vector<8x1024xbf16>
    %cst_111 = arith.constant dense<0.000000e+00> : vector<8x1024xf32>
    %136 = tpu.matmul %134, %135, %cst_111 {dimension_numbers = #tpu.dot_dimension_numbers<[1], [0], [0], [1], [0, 0, 1, 1], [], []>} : vector<8x8xbf16>, vector<8x1024xbf16>, vector<8x1024xf32> -> vector<8x1024xf32>
    %137 = arith.addf %132, %136 : vector<8x1024xf32>
    %c23 = arith.constant 23 : index
    %c0_112 = arith.constant 0 : index
    %c0_113 = arith.constant 0 : index
    %138 = vector.load %arg2[%c23, %c0_112, %c0_113] : memref<25x8x8xbf16, #tpu.memory_space<vmem>>, vector<1x8x8xbf16>
    %139 = vector.shape_cast %138 : vector<1x8x8xbf16> to vector<8x8xbf16>
    %c0_114 = arith.constant 0 : index
    %c131 = arith.constant 131 : index
    %140 = vector.load %arg10[%c0_114, %c131] : memref<8x1280xbf16, #tpu.memory_space<vmem>>, vector<8x1024xbf16>
    %cst_115 = arith.constant dense<0.000000e+00> : vector<8x1024xf32>
    %141 = tpu.matmul %139, %140, %cst_115 {dimension_numbers = #tpu.dot_dimension_numbers<[1], [0], [0], [1], [0, 0, 1, 1], [], []>} : vector<8x8xbf16>, vector<8x1024xbf16>, vector<8x1024xf32> -> vector<8x1024xf32>
    %142 = arith.addf %137, %141 : vector<8x1024xf32>
    %c24 = arith.constant 24 : index
    %c0_116 = arith.constant 0 : index
    %c0_117 = arith.constant 0 : index
    %143 = vector.load %arg2[%c24, %c0_116, %c0_117] : memref<25x8x8xbf16, #tpu.memory_space<vmem>>, vector<1x8x8xbf16>
    %144 = vector.shape_cast %143 : vector<1x8x8xbf16> to vector<8x8xbf16>
    %c0_118 = arith.constant 0 : index
    %c132 = arith.constant 132 : index
    %145 = vector.load %arg10[%c0_118, %c132] : memref<8x1280xbf16, #tpu.memory_space<vmem>>, vector<8x1024xbf16>
    %cst_119 = arith.constant dense<0.000000e+00> : vector<8x1024xf32>
    %146 = tpu.matmul %144, %145, %cst_119 {dimension_numbers = #tpu.dot_dimension_numbers<[1], [0], [0], [1], [0, 0, 1, 1], [], []>} : vector<8x8xbf16>, vector<8x1024xbf16>, vector<8x1024xf32> -> vector<8x1024xf32>
    %147 = arith.addf %142, %146 : vector<8x1024xf32>
    %c0_120 = arith.constant 0 : index
    %c0_121 = arith.constant 0 : index
    %148 = vector.load %arg3[%c0_120, %c0_121] : memref<8x1xf32, #tpu.memory_space<vmem>>, vector<8x1xf32>
    %149 = vector.broadcast %148 : vector<8x1xf32> to vector<8x1024xf32>
    %150 = arith.mulf %147, %149 : vector<8x1024xf32>
    %c0_122 = arith.constant 0 : index
    %c0_123 = arith.constant 0 : index
    %151 = vector.load %arg4[%c0_122, %c0_123] : memref<8x1xf32, #tpu.memory_space<vmem>>, vector<8x1xf32>
    %152 = vector.broadcast %151 : vector<8x1xf32> to vector<8x1024xf32>
    %153 = arith.addf %150, %152 : vector<8x1024xf32>
    %cst_124 = arith.constant 2.000000e+00 : f32
    %154 = vector.broadcast %cst_124 : f32 to vector<8x1024xf32>
    %155 = arith.mulf %153, %154 : vector<8x1024xf32>
    %156 = math.roundeven %155 : vector<8x1024xf32>
    %cst_125 = arith.constant -2.000000e+00 : f32
    %cst_126 = arith.constant 1.000000e+00 : f32
    %157 = vector.broadcast %cst_125 : f32 to vector<8x1024xf32>
    %158 = arith.maximumf %157, %156 : vector<8x1024xf32>
    %159 = vector.broadcast %cst_126 : f32 to vector<8x1024xf32>
    %160 = arith.minimumf %159, %158 : vector<8x1024xf32>
    %cst_127 = arith.constant 5.000000e-01 : f32
    %161 = vector.broadcast %cst_127 : f32 to vector<8x1024xf32>
    %162 = arith.mulf %160, %161 : vector<8x1024xf32>
    %c0_128 = arith.constant 0 : index
    %c0_129 = arith.constant 0 : index
    %163 = vector.load %arg11[%c0_128, %c0_129] : memref<8x1152xf32, #tpu.memory_space<vmem>>, vector<8x1024xf32>
    tpu.vector_store %arg11[%c0_128, %c0_129], %162 {strides = array<i32>} : memref<8x1152xf32, #tpu.memory_space<vmem>>, vector<8x1024xf32>,
    %c0_130 = arith.constant 0 : index
    %c0_131 = arith.constant 0 : index
    %164 = vector.load %arg11[%c0_130, %c0_131] : memref<8x1152xf32, #tpu.memory_space<vmem>>, vector<8x1120xf32>
    %c0_132 = arith.constant 0 : index
    %c1_133 = arith.constant 1 : index
    %165 = vector.load %arg11[%c0_132, %c1_133] : memref<8x1152xf32, #tpu.memory_space<vmem>>, vector<8x1120xf32>
    %166 = arith.maximumf %164, %165 : vector<8x1120xf32>
    %c0_134 = arith.constant 0 : index
    %c2_135 = arith.constant 2 : index
    %167 = vector.load %arg11[%c0_134, %c2_135] : memref<8x1152xf32, #tpu.memory_space<vmem>>, vector<8x1120xf32>
    %168 = arith.maximumf %166, %167 : vector<8x1120xf32>
    %c0_136 = arith.constant 0 : index
    %c3_137 = arith.constant 3 : index
    %169 = vector.load %arg11[%c0_136, %c3_137] : memref<8x1152xf32, #tpu.memory_space<vmem>>, vector<8x1120xf32>
    %170 = arith.maximumf %168, %169 : vector<8x1120xf32>
    %171 = vector.extract_strided_slice %170 {offsets = [0, 0], sizes = [8, 1024], strides = [1, 1]} : vector<8x1120xf32> to vector<8x1024xf32>
    %172 = vector.extract_strided_slice %170 {offsets = [0, 32], sizes = [8, 1024], strides = [1, 1]} : vector<8x1120xf32> to vector<8x1024xf32>
    %173 = arith.maximumf %171, %172 : vector<8x1024xf32>
    %174 = vector.extract_strided_slice %170 {offsets = [0, 64], sizes = [8, 1024], strides = [1, 1]} : vector<8x1120xf32> to vector<8x1024xf32>
    %175 = arith.maximumf %173, %174 : vector<8x1024xf32>
    %176 = vector.extract_strided_slice %170 {offsets = [0, 96], sizes = [8, 1024], strides = [1, 1]} : vector<8x1120xf32> to vector<8x1024xf32>
    %177 = arith.maximumf %175, %176 : vector<8x1024xf32>
    %178 = arith.truncf %177 : vector<8x1024xf32> to vector<8x1024xbf16>
    %c0_138 = arith.constant 0 : index
    %c0_139 = arith.constant 0 : index
    %179 = vector.load %arg12[%c0_138, %c0_139] : memref<8x1024xbf16, #tpu.memory_space<vmem>>, vector<8x1024xbf16>
    tpu.vector_store %arg12[%c0_138, %c0_139], %178 {strides = array<i32>} : memref<8x1024xbf16, #tpu.memory_space<vmem>>, vector<8x1024xbf16>,
    %cst_140 = arith.constant 0.000000e+00 : f32
    %180 = vector.broadcast %cst_140 : f32 to vector<16x384xf32>
    %c0_141 = arith.constant 0 : index
    %c0_142 = arith.constant 0 : index
    %c0_143 = arith.constant 0 : index
    %181 = vector.load %arg5[%c0_141, %c0_142, %c0_143] : memref<25x16x8xbf16, #tpu.memory_space<vmem>>, vector<1x16x8xbf16>
    %182 = vector.shape_cast %181 : vector<1x16x8xbf16> to vector<16x8xbf16>
    %c0_144 = arith.constant 0 : index
    %c0_145 = arith.constant 0 : index
    %183 = vector.load %arg12[%c0_144, %c0_145] : memref<8x1024xbf16, #tpu.memory_space<vmem>>, vector<8x384xbf16>
    %cst_146 = arith.constant dense<0.000000e+00> : vector<16x384xf32>
    %184 = tpu.matmul %182, %183, %cst_146 {dimension_numbers = #tpu.dot_dimension_numbers<[1], [0], [0], [1], [0, 0, 1, 1], [], []>} : vector<16x8xbf16>, vector<8x384xbf16>, vector<16x384xf32> -> vector<16x384xf32>
    %185 = arith.addf %180, %184 : vector<16x384xf32>
    %c1_147 = arith.constant 1 : index
    %c0_148 = arith.constant 0 : index
    %c0_149 = arith.constant 0 : index
    %186 = vector.load %arg5[%c1_147, %c0_148, %c0_149] : memref<25x16x8xbf16, #tpu.memory_space<vmem>>, vector<1x16x8xbf16>
    %187 = vector.shape_cast %186 : vector<1x16x8xbf16> to vector<16x8xbf16>
    %c0_150 = arith.constant 0 : index
    %c4_151 = arith.constant 4 : index
    %188 = vector.load %arg12[%c0_150, %c4_151] : memref<8x1024xbf16, #tpu.memory_space<vmem>>, vector<8x384xbf16>
    %cst_152 = arith.constant dense<0.000000e+00> : vector<16x384xf32>
    %189 = tpu.matmul %187, %188, %cst_152 {dimension_numbers = #tpu.dot_dimension_numbers<[1], [0], [0], [1], [0, 0, 1, 1], [], []>} : vector<16x8xbf16>, vector<8x384xbf16>, vector<16x384xf32> -> vector<16x384xf32>
    %190 = arith.addf %185, %189 : vector<16x384xf32>
    %c2_153 = arith.constant 2 : index
    %c0_154 = arith.constant 0 : index
    %c0_155 = arith.constant 0 : index
    %191 = vector.load %arg5[%c2_153, %c0_154, %c0_155] : memref<25x16x8xbf16, #tpu.memory_space<vmem>>, vector<1x16x8xbf16>
    %192 = vector.shape_cast %191 : vector<1x16x8xbf16> to vector<16x8xbf16>
    %c0_156 = arith.constant 0 : index
    %c8_157 = arith.constant 8 : index
    %193 = vector.load %arg12[%c0_156, %c8_157] : memref<8x1024xbf16, #tpu.memory_space<vmem>>, vector<8x384xbf16>
    %cst_158 = arith.constant dense<0.000000e+00> : vector<16x384xf32>
    %194 = tpu.matmul %192, %193, %cst_158 {dimension_numbers = #tpu.dot_dimension_numbers<[1], [0], [0], [1], [0, 0, 1, 1], [], []>} : vector<16x8xbf16>, vector<8x384xbf16>, vector<16x384xf32> -> vector<16x384xf32>
    %195 = arith.addf %190, %194 : vector<16x384xf32>
    %c3_159 = arith.constant 3 : index
    %c0_160 = arith.constant 0 : index
    %c0_161 = arith.constant 0 : index
    %196 = vector.load %arg5[%c3_159, %c0_160, %c0_161] : memref<25x16x8xbf16, #tpu.memory_space<vmem>>, vector<1x16x8xbf16>
    %197 = vector.shape_cast %196 : vector<1x16x8xbf16> to vector<16x8xbf16>
    %c0_162 = arith.constant 0 : index
    %c12_163 = arith.constant 12 : index
    %198 = vector.load %arg12[%c0_162, %c12_163] : memref<8x1024xbf16, #tpu.memory_space<vmem>>, vector<8x384xbf16>
    %cst_164 = arith.constant dense<0.000000e+00> : vector<16x384xf32>
    %199 = tpu.matmul %197, %198, %cst_164 {dimension_numbers = #tpu.dot_dimension_numbers<[1], [0], [0], [1], [0, 0, 1, 1], [], []>} : vector<16x8xbf16>, vector<8x384xbf16>, vector<16x384xf32> -> vector<16x384xf32>
    %200 = arith.addf %195, %199 : vector<16x384xf32>
    %c4_165 = arith.constant 4 : index
    %c0_166 = arith.constant 0 : index
    %c0_167 = arith.constant 0 : index
    %201 = vector.load %arg5[%c4_165, %c0_166, %c0_167] : memref<25x16x8xbf16, #tpu.memory_space<vmem>>, vector<1x16x8xbf16>
    %202 = vector.shape_cast %201 : vector<1x16x8xbf16> to vector<16x8xbf16>
    %c0_168 = arith.constant 0 : index
    %c16_169 = arith.constant 16 : index
    %203 = vector.load %arg12[%c0_168, %c16_169] : memref<8x1024xbf16, #tpu.memory_space<vmem>>, vector<8x384xbf16>
    %cst_170 = arith.constant dense<0.000000e+00> : vector<16x384xf32>
    %204 = tpu.matmul %202, %203, %cst_170 {dimension_numbers = #tpu.dot_dimension_numbers<[1], [0], [0], [1], [0, 0, 1, 1], [], []>} : vector<16x8xbf16>, vector<8x384xbf16>, vector<16x384xf32> -> vector<16x384xf32>
    %205 = arith.addf %200, %204 : vector<16x384xf32>
    %c5_171 = arith.constant 5 : index
    %c0_172 = arith.constant 0 : index
    %c0_173 = arith.constant 0 : index
    %206 = vector.load %arg5[%c5_171, %c0_172, %c0_173] : memref<25x16x8xbf16, #tpu.memory_space<vmem>>, vector<1x16x8xbf16>
    %207 = vector.shape_cast %206 : vector<1x16x8xbf16> to vector<16x8xbf16>
    %c0_174 = arith.constant 0 : index
    %c128_175 = arith.constant 128 : index
    %208 = vector.load %arg12[%c0_174, %c128_175] : memref<8x1024xbf16, #tpu.memory_space<vmem>>, vector<8x384xbf16>
    %cst_176 = arith.constant dense<0.000000e+00> : vector<16x384xf32>
    %209 = tpu.matmul %207, %208, %cst_176 {dimension_numbers = #tpu.dot_dimension_numbers<[1], [0], [0], [1], [0, 0, 1, 1], [], []>} : vector<16x8xbf16>, vector<8x384xbf16>, vector<16x384xf32> -> vector<16x384xf32>
    %210 = arith.addf %205, %209 : vector<16x384xf32>
    %c6_177 = arith.constant 6 : index
    %c0_178 = arith.constant 0 : index
    %c0_179 = arith.constant 0 : index
    %211 = vector.load %arg5[%c6_177, %c0_178, %c0_179] : memref<25x16x8xbf16, #tpu.memory_space<vmem>>, vector<1x16x8xbf16>
    %212 = vector.shape_cast %211 : vector<1x16x8xbf16> to vector<16x8xbf16>
    %c0_180 = arith.constant 0 : index
    %c132_181 = arith.constant 132 : index
    %213 = vector.load %arg12[%c0_180, %c132_181] : memref<8x1024xbf16, #tpu.memory_space<vmem>>, vector<8x384xbf16>
    %cst_182 = arith.constant dense<0.000000e+00> : vector<16x384xf32>
    %214 = tpu.matmul %212, %213, %cst_182 {dimension_numbers = #tpu.dot_dimension_numbers<[1], [0], [0], [1], [0, 0, 1, 1], [], []>} : vector<16x8xbf16>, vector<8x384xbf16>, vector<16x384xf32> -> vector<16x384xf32>
    %215 = arith.addf %210, %214 : vector<16x384xf32>
    %c7_183 = arith.constant 7 : index
    %c0_184 = arith.constant 0 : index
    %c0_185 = arith.constant 0 : index
    %216 = vector.load %arg5[%c7_183, %c0_184, %c0_185] : memref<25x16x8xbf16, #tpu.memory_space<vmem>>, vector<1x16x8xbf16>
    %217 = vector.shape_cast %216 : vector<1x16x8xbf16> to vector<16x8xbf16>
    %c0_186 = arith.constant 0 : index
    %c136 = arith.constant 136 : index
    %218 = vector.load %arg12[%c0_186, %c136] : memref<8x1024xbf16, #tpu.memory_space<vmem>>, vector<8x384xbf16>
    %cst_187 = arith.constant dense<0.000000e+00> : vector<16x384xf32>
    %219 = tpu.matmul %217, %218, %cst_187 {dimension_numbers = #tpu.dot_dimension_numbers<[1], [0], [0], [1], [0, 0, 1, 1], [], []>} : vector<16x8xbf16>, vector<8x384xbf16>, vector<16x384xf32> -> vector<16x384xf32>
    %220 = arith.addf %215, %219 : vector<16x384xf32>
    %c8_188 = arith.constant 8 : index
    %c0_189 = arith.constant 0 : index
    %c0_190 = arith.constant 0 : index
    %221 = vector.load %arg5[%c8_188, %c0_189, %c0_190] : memref<25x16x8xbf16, #tpu.memory_space<vmem>>, vector<1x16x8xbf16>
    %222 = vector.shape_cast %221 : vector<1x16x8xbf16> to vector<16x8xbf16>
    %c0_191 = arith.constant 0 : index
    %c140 = arith.constant 140 : index
    %223 = vector.load %arg12[%c0_191, %c140] : memref<8x1024xbf16, #tpu.memory_space<vmem>>, vector<8x384xbf16>
    %cst_192 = arith.constant dense<0.000000e+00> : vector<16x384xf32>
    %224 = tpu.matmul %222, %223, %cst_192 {dimension_numbers = #tpu.dot_dimension_numbers<[1], [0], [0], [1], [0, 0, 1, 1], [], []>} : vector<16x8xbf16>, vector<8x384xbf16>, vector<16x384xf32> -> vector<16x384xf32>
    %225 = arith.addf %220, %224 : vector<16x384xf32>
    %c9_193 = arith.constant 9 : index
    %c0_194 = arith.constant 0 : index
    %c0_195 = arith.constant 0 : index
    %226 = vector.load %arg5[%c9_193, %c0_194, %c0_195] : memref<25x16x8xbf16, #tpu.memory_space<vmem>>, vector<1x16x8xbf16>
    %227 = vector.shape_cast %226 : vector<1x16x8xbf16> to vector<16x8xbf16>
    %c0_196 = arith.constant 0 : index
    %c144 = arith.constant 144 : index
    %228 = vector.load %arg12[%c0_196, %c144] : memref<8x1024xbf16, #tpu.memory_space<vmem>>, vector<8x384xbf16>
    %cst_197 = arith.constant dense<0.000000e+00> : vector<16x384xf32>
    %229 = tpu.matmul %227, %228, %cst_197 {dimension_numbers = #tpu.dot_dimension_numbers<[1], [0], [0], [1], [0, 0, 1, 1], [], []>} : vector<16x8xbf16>, vector<8x384xbf16>, vector<16x384xf32> -> vector<16x384xf32>
    %230 = arith.addf %225, %229 : vector<16x384xf32>
    %c10_198 = arith.constant 10 : index
    %c0_199 = arith.constant 0 : index
    %c0_200 = arith.constant 0 : index
    %231 = vector.load %arg5[%c10_198, %c0_199, %c0_200] : memref<25x16x8xbf16, #tpu.memory_space<vmem>>, vector<1x16x8xbf16>
    %232 = vector.shape_cast %231 : vector<1x16x8xbf16> to vector<16x8xbf16>
    %c0_201 = arith.constant 0 : index
    %c256 = arith.constant 256 : index
    %233 = vector.load %arg12[%c0_201, %c256] : memref<8x1024xbf16, #tpu.memory_space<vmem>>, vector<8x384xbf16>
    %cst_202 = arith.constant dense<0.000000e+00> : vector<16x384xf32>
    %234 = tpu.matmul %232, %233, %cst_202 {dimension_numbers = #tpu.dot_dimension_numbers<[1], [0], [0], [1], [0, 0, 1, 1], [], []>} : vector<16x8xbf16>, vector<8x384xbf16>, vector<16x384xf32> -> vector<16x384xf32>
    %235 = arith.addf %230, %234 : vector<16x384xf32>
    %c11_203 = arith.constant 11 : index
    %c0_204 = arith.constant 0 : index
    %c0_205 = arith.constant 0 : index
    %236 = vector.load %arg5[%c11_203, %c0_204, %c0_205] : memref<25x16x8xbf16, #tpu.memory_space<vmem>>, vector<1x16x8xbf16>
    %237 = vector.shape_cast %236 : vector<1x16x8xbf16> to vector<16x8xbf16>
    %c0_206 = arith.constant 0 : index
    %c260 = arith.constant 260 : index
    %238 = vector.load %arg12[%c0_206, %c260] : memref<8x1024xbf16, #tpu.memory_space<vmem>>, vector<8x384xbf16>
    %cst_207 = arith.constant dense<0.000000e+00> : vector<16x384xf32>
    %239 = tpu.matmul %237, %238, %cst_207 {dimension_numbers = #tpu.dot_dimension_numbers<[1], [0], [0], [1], [0, 0, 1, 1], [], []>} : vector<16x8xbf16>, vector<8x384xbf16>, vector<16x384xf32> -> vector<16x384xf32>
    %240 = arith.addf %235, %239 : vector<16x384xf32>
    %c12_208 = arith.constant 12 : index
    %c0_209 = arith.constant 0 : index
    %c0_210 = arith.constant 0 : index
    %241 = vector.load %arg5[%c12_208, %c0_209, %c0_210] : memref<25x16x8xbf16, #tpu.memory_space<vmem>>, vector<1x16x8xbf16>
    %242 = vector.shape_cast %241 : vector<1x16x8xbf16> to vector<16x8xbf16>
    %c0_211 = arith.constant 0 : index
    %c264 = arith.constant 264 : index
    %243 = vector.load %arg12[%c0_211, %c264] : memref<8x1024xbf16, #tpu.memory_space<vmem>>, vector<8x384xbf16>
    %cst_212 = arith.constant dense<0.000000e+00> : vector<16x384xf32>
    %244 = tpu.matmul %242, %243, %cst_212 {dimension_numbers = #tpu.dot_dimension_numbers<[1], [0], [0], [1], [0, 0, 1, 1], [], []>} : vector<16x8xbf16>, vector<8x384xbf16>, vector<16x384xf32> -> vector<16x384xf32>
    %245 = arith.addf %240, %244 : vector<16x384xf32>
    %c13_213 = arith.constant 13 : index
    %c0_214 = arith.constant 0 : index
    %c0_215 = arith.constant 0 : index
    %246 = vector.load %arg5[%c13_213, %c0_214, %c0_215] : memref<25x16x8xbf16, #tpu.memory_space<vmem>>, vector<1x16x8xbf16>
    %247 = vector.shape_cast %246 : vector<1x16x8xbf16> to vector<16x8xbf16>
    %c0_216 = arith.constant 0 : index
    %c268 = arith.constant 268 : index
    %248 = vector.load %arg12[%c0_216, %c268] : memref<8x1024xbf16, #tpu.memory_space<vmem>>, vector<8x384xbf16>
    %cst_217 = arith.constant dense<0.000000e+00> : vector<16x384xf32>
    %249 = tpu.matmul %247, %248, %cst_217 {dimension_numbers = #tpu.dot_dimension_numbers<[1], [0], [0], [1], [0, 0, 1, 1], [], []>} : vector<16x8xbf16>, vector<8x384xbf16>, vector<16x384xf32> -> vector<16x384xf32>
    %250 = arith.addf %245, %249 : vector<16x384xf32>
    %c14_218 = arith.constant 14 : index
    %c0_219 = arith.constant 0 : index
    %c0_220 = arith.constant 0 : index
    %251 = vector.load %arg5[%c14_218, %c0_219, %c0_220] : memref<25x16x8xbf16, #tpu.memory_space<vmem>>, vector<1x16x8xbf16>
    %252 = vector.shape_cast %251 : vector<1x16x8xbf16> to vector<16x8xbf16>
    %c0_221 = arith.constant 0 : index
    %c272 = arith.constant 272 : index
    %253 = vector.load %arg12[%c0_221, %c272] : memref<8x1024xbf16, #tpu.memory_space<vmem>>, vector<8x384xbf16>
    %cst_222 = arith.constant dense<0.000000e+00> : vector<16x384xf32>
    %254 = tpu.matmul %252, %253, %cst_222 {dimension_numbers = #tpu.dot_dimension_numbers<[1], [0], [0], [1], [0, 0, 1, 1], [], []>} : vector<16x8xbf16>, vector<8x384xbf16>, vector<16x384xf32> -> vector<16x384xf32>
    %255 = arith.addf %250, %254 : vector<16x384xf32>
    %c15_223 = arith.constant 15 : index
    %c0_224 = arith.constant 0 : index
    %c0_225 = arith.constant 0 : index
    %256 = vector.load %arg5[%c15_223, %c0_224, %c0_225] : memref<25x16x8xbf16, #tpu.memory_space<vmem>>, vector<1x16x8xbf16>
    %257 = vector.shape_cast %256 : vector<1x16x8xbf16> to vector<16x8xbf16>
    %c0_226 = arith.constant 0 : index
    %c384 = arith.constant 384 : index
    %258 = vector.load %arg12[%c0_226, %c384] : memref<8x1024xbf16, #tpu.memory_space<vmem>>, vector<8x384xbf16>
    %cst_227 = arith.constant dense<0.000000e+00> : vector<16x384xf32>
    %259 = tpu.matmul %257, %258, %cst_227 {dimension_numbers = #tpu.dot_dimension_numbers<[1], [0], [0], [1], [0, 0, 1, 1], [], []>} : vector<16x8xbf16>, vector<8x384xbf16>, vector<16x384xf32> -> vector<16x384xf32>
    %260 = arith.addf %255, %259 : vector<16x384xf32>
    %c16_228 = arith.constant 16 : index
    %c0_229 = arith.constant 0 : index
    %c0_230 = arith.constant 0 : index
    %261 = vector.load %arg5[%c16_228, %c0_229, %c0_230] : memref<25x16x8xbf16, #tpu.memory_space<vmem>>, vector<1x16x8xbf16>
    %262 = vector.shape_cast %261 : vector<1x16x8xbf16> to vector<16x8xbf16>
    %c0_231 = arith.constant 0 : index
    %c388 = arith.constant 388 : index
    %263 = vector.load %arg12[%c0_231, %c388] : memref<8x1024xbf16, #tpu.memory_space<vmem>>, vector<8x384xbf16>
    %cst_232 = arith.constant dense<0.000000e+00> : vector<16x384xf32>
    %264 = tpu.matmul %262, %263, %cst_232 {dimension_numbers = #tpu.dot_dimension_numbers<[1], [0], [0], [1], [0, 0, 1, 1], [], []>} : vector<16x8xbf16>, vector<8x384xbf16>, vector<16x384xf32> -> vector<16x384xf32>
    %265 = arith.addf %260, %264 : vector<16x384xf32>
    %c17_233 = arith.constant 17 : index
    %c0_234 = arith.constant 0 : index
    %c0_235 = arith.constant 0 : index
    %266 = vector.load %arg5[%c17_233, %c0_234, %c0_235] : memref<25x16x8xbf16, #tpu.memory_space<vmem>>, vector<1x16x8xbf16>
    %267 = vector.shape_cast %266 : vector<1x16x8xbf16> to vector<16x8xbf16>
    %c0_236 = arith.constant 0 : index
    %c392 = arith.constant 392 : index
    %268 = vector.load %arg12[%c0_236, %c392] : memref<8x1024xbf16, #tpu.memory_space<vmem>>, vector<8x384xbf16>
    %cst_237 = arith.constant dense<0.000000e+00> : vector<16x384xf32>
    %269 = tpu.matmul %267, %268, %cst_237 {dimension_numbers = #tpu.dot_dimension_numbers<[1], [0], [0], [1], [0, 0, 1, 1], [], []>} : vector<16x8xbf16>, vector<8x384xbf16>, vector<16x384xf32> -> vector<16x384xf32>
    %270 = arith.addf %265, %269 : vector<16x384xf32>
    %c18_238 = arith.constant 18 : index
    %c0_239 = arith.constant 0 : index
    %c0_240 = arith.constant 0 : index
    %271 = vector.load %arg5[%c18_238, %c0_239, %c0_240] : memref<25x16x8xbf16, #tpu.memory_space<vmem>>, vector<1x16x8xbf16>
    %272 = vector.shape_cast %271 : vector<1x16x8xbf16> to vector<16x8xbf16>
    %c0_241 = arith.constant 0 : index
    %c396 = arith.constant 396 : index
    %273 = vector.load %arg12[%c0_241, %c396] : memref<8x1024xbf16, #tpu.memory_space<vmem>>, vector<8x384xbf16>
    %cst_242 = arith.constant dense<0.000000e+00> : vector<16x384xf32>
    %274 = tpu.matmul %272, %273, %cst_242 {dimension_numbers = #tpu.dot_dimension_numbers<[1], [0], [0], [1], [0, 0, 1, 1], [], []>} : vector<16x8xbf16>, vector<8x384xbf16>, vector<16x384xf32> -> vector<16x384xf32>
    %275 = arith.addf %270, %274 : vector<16x384xf32>
    %c19_243 = arith.constant 19 : index
    %c0_244 = arith.constant 0 : index
    %c0_245 = arith.constant 0 : index
    %276 = vector.load %arg5[%c19_243, %c0_244, %c0_245] : memref<25x16x8xbf16, #tpu.memory_space<vmem>>, vector<1x16x8xbf16>
    %277 = vector.shape_cast %276 : vector<1x16x8xbf16> to vector<16x8xbf16>
    %c0_246 = arith.constant 0 : index
    %c400 = arith.constant 400 : index
    %278 = vector.load %arg12[%c0_246, %c400] : memref<8x1024xbf16, #tpu.memory_space<vmem>>, vector<8x384xbf16>
    %cst_247 = arith.constant dense<0.000000e+00> : vector<16x384xf32>
    %279 = tpu.matmul %277, %278, %cst_247 {dimension_numbers = #tpu.dot_dimension_numbers<[1], [0], [0], [1], [0, 0, 1, 1], [], []>} : vector<16x8xbf16>, vector<8x384xbf16>, vector<16x384xf32> -> vector<16x384xf32>
    %280 = arith.addf %275, %279 : vector<16x384xf32>
    %c20_248 = arith.constant 20 : index
    %c0_249 = arith.constant 0 : index
    %c0_250 = arith.constant 0 : index
    %281 = vector.load %arg5[%c20_248, %c0_249, %c0_250] : memref<25x16x8xbf16, #tpu.memory_space<vmem>>, vector<1x16x8xbf16>
    %282 = vector.shape_cast %281 : vector<1x16x8xbf16> to vector<16x8xbf16>
    %c0_251 = arith.constant 0 : index
    %c512 = arith.constant 512 : index
    %283 = vector.load %arg12[%c0_251, %c512] : memref<8x1024xbf16, #tpu.memory_space<vmem>>, vector<8x384xbf16>
    %cst_252 = arith.constant dense<0.000000e+00> : vector<16x384xf32>
    %284 = tpu.matmul %282, %283, %cst_252 {dimension_numbers = #tpu.dot_dimension_numbers<[1], [0], [0], [1], [0, 0, 1, 1], [], []>} : vector<16x8xbf16>, vector<8x384xbf16>, vector<16x384xf32> -> vector<16x384xf32>
    %285 = arith.addf %280, %284 : vector<16x384xf32>
    %c21_253 = arith.constant 21 : index
    %c0_254 = arith.constant 0 : index
    %c0_255 = arith.constant 0 : index
    %286 = vector.load %arg5[%c21_253, %c0_254, %c0_255] : memref<25x16x8xbf16, #tpu.memory_space<vmem>>, vector<1x16x8xbf16>
    %287 = vector.shape_cast %286 : vector<1x16x8xbf16> to vector<16x8xbf16>
    %c0_256 = arith.constant 0 : index
    %c516 = arith.constant 516 : index
    %288 = vector.load %arg12[%c0_256, %c516] : memref<8x1024xbf16, #tpu.memory_space<vmem>>, vector<8x384xbf16>
    %cst_257 = arith.constant dense<0.000000e+00> : vector<16x384xf32>
    %289 = tpu.matmul %287, %288, %cst_257 {dimension_numbers = #tpu.dot_dimension_numbers<[1], [0], [0], [1], [0, 0, 1, 1], [], []>} : vector<16x8xbf16>, vector<8x384xbf16>, vector<16x384xf32> -> vector<16x384xf32>
    %290 = arith.addf %285, %289 : vector<16x384xf32>
    %c22_258 = arith.constant 22 : index
    %c0_259 = arith.constant 0 : index
    %c0_260 = arith.constant 0 : index
    %291 = vector.load %arg5[%c22_258, %c0_259, %c0_260] : memref<25x16x8xbf16, #tpu.memory_space<vmem>>, vector<1x16x8xbf16>
    %292 = vector.shape_cast %291 : vector<1x16x8xbf16> to vector<16x8xbf16>
    %c0_261 = arith.constant 0 : index
    %c520 = arith.constant 520 : index
    %293 = vector.load %arg12[%c0_261, %c520] : memref<8x1024xbf16, #tpu.memory_space<vmem>>, vector<8x384xbf16>
    %cst_262 = arith.constant dense<0.000000e+00> : vector<16x384xf32>
    %294 = tpu.matmul %292, %293, %cst_262 {dimension_numbers = #tpu.dot_dimension_numbers<[1], [0], [0], [1], [0, 0, 1, 1], [], []>} : vector<16x8xbf16>, vector<8x384xbf16>, vector<16x384xf32> -> vector<16x384xf32>
    %295 = arith.addf %290, %294 : vector<16x384xf32>
    %c23_263 = arith.constant 23 : index
    %c0_264 = arith.constant 0 : index
    %c0_265 = arith.constant 0 : index
    %296 = vector.load %arg5[%c23_263, %c0_264, %c0_265] : memref<25x16x8xbf16, #tpu.memory_space<vmem>>, vector<1x16x8xbf16>
    %297 = vector.shape_cast %296 : vector<1x16x8xbf16> to vector<16x8xbf16>
    %c0_266 = arith.constant 0 : index
    %c524 = arith.constant 524 : index
    %298 = vector.load %arg12[%c0_266, %c524] : memref<8x1024xbf16, #tpu.memory_space<vmem>>, vector<8x384xbf16>
    %cst_267 = arith.constant dense<0.000000e+00> : vector<16x384xf32>
    %299 = tpu.matmul %297, %298, %cst_267 {dimension_numbers = #tpu.dot_dimension_numbers<[1], [0], [0], [1], [0, 0, 1, 1], [], []>} : vector<16x8xbf16>, vector<8x384xbf16>, vector<16x384xf32> -> vector<16x384xf32>
    %300 = arith.addf %295, %299 : vector<16x384xf32>
    %c24_268 = arith.constant 24 : index
    %c0_269 = arith.constant 0 : index
    %c0_270 = arith.constant 0 : index
    %301 = vector.load %arg5[%c24_268, %c0_269, %c0_270] : memref<25x16x8xbf16, #tpu.memory_space<vmem>>, vector<1x16x8xbf16>
    %302 = vector.shape_cast %301 : vector<1x16x8xbf16> to vector<16x8xbf16>
    %c0_271 = arith.constant 0 : index
    %c528 = arith.constant 528 : index
    %303 = vector.load %arg12[%c0_271, %c528] : memref<8x1024xbf16, #tpu.memory_space<vmem>>, vector<8x384xbf16>
    %cst_272 = arith.constant dense<0.000000e+00> : vector<16x384xf32>
    %304 = tpu.matmul %302, %303, %cst_272 {dimension_numbers = #tpu.dot_dimension_numbers<[1], [0], [0], [1], [0, 0, 1, 1], [], []>} : vector<16x8xbf16>, vector<8x384xbf16>, vector<16x384xf32> -> vector<16x384xf32>
    %305 = arith.addf %300, %304 : vector<16x384xf32>
    %c0_273 = arith.constant 0 : index
    %c0_274 = arith.constant 0 : index
    %306 = vector.load %arg6[%c0_273, %c0_274] : memref<16x1xf32, #tpu.memory_space<vmem>>, vector<16x1xf32>
    %307 = vector.broadcast %306 : vector<16x1xf32> to vector<16x384xf32>
    %308 = arith.mulf %305, %307 : vector<16x384xf32>
    %c0_275 = arith.constant 0 : index
    %c0_276 = arith.constant 0 : index
    %309 = vector.load %arg7[%c0_275, %c0_276] : memref<16x1xf32, #tpu.memory_space<vmem>>, vector<16x1xf32>
    %310 = vector.broadcast %309 : vector<16x1xf32> to vector<16x384xf32>
    %311 = arith.addf %308, %310 : vector<16x384xf32>
    %cst_277 = arith.constant 2.000000e+00 : f32
    %312 = vector.broadcast %cst_277 : f32 to vector<16x384xf32>
    %313 = arith.mulf %311, %312 : vector<16x384xf32>
    %314 = math.roundeven %313 : vector<16x384xf32>
    %cst_278 = arith.constant -2.000000e+00 : f32
    %cst_279 = arith.constant 1.000000e+00 : f32
    %315 = vector.broadcast %cst_278 : f32 to vector<16x384xf32>
    %316 = arith.maximumf %315, %314 : vector<16x384xf32>
    %317 = vector.broadcast %cst_279 : f32 to vector<16x384xf32>
    %318 = arith.minimumf %317, %316 : vector<16x384xf32>
    %cst_280 = arith.constant 5.000000e-01 : f32
    %319 = vector.broadcast %cst_280 : f32 to vector<16x384xf32>
    %320 = arith.mulf %318, %319 : vector<16x384xf32>
    %321 = arith.truncf %320 : vector<16x384xf32> to vector<16x384xbf16>
    %c0_281 = arith.constant 0 : index
    %c0_282 = arith.constant 0 : index
    %322 = vector.load %arg8[%c0_281, %c0_282] : memref<384x9xbf16, #tpu.memory_space<vmem>>, vector<384x9xbf16>
    %cst_283 = arith.constant dense<0.000000e+00> : vector<16x9xf32>
    %323 = tpu.matmul %321, %322, %cst_283 {dimension_numbers = #tpu.dot_dimension_numbers<[1], [0], [0], [1], [0, 0, 1, 1], [], []>} : vector<16x384xbf16>, vector<384x9xbf16>, vector<16x9xf32> -> vector<16x9xf32>
    %324 = arith.truncf %323 : vector<16x9xf32> to vector<16x9xbf16>
    %325 = arith.index_cast %5 : i32 to index
    %c0_284 = arith.constant 0 : index
    %c0_285 = arith.constant 0 : index
    %326 = vector.load %arg9[%325, %c0_284, %c0_285] : memref<1x16x9xbf16, #tpu.memory_space<vmem>>, vector<1x16x9xbf16>
    %327 = vector.shape_cast %326 : vector<1x16x9xbf16> to vector<16x9xbf16>
    %328 = vector.shape_cast %324 : vector<16x9xbf16> to vector<1x16x9xbf16>
    tpu.vector_store %arg9[%325, %c0_284, %c0_285], %328 {strides = array<i32>} : memref<1x16x9xbf16, #tpu.memory_space<vmem>>, vector<1x16x9xbf16>,
    %c1_i32_286 = arith.constant 1 : i32
    return
  }
  func.func @transform_0(%arg0: i32) -> (i32, i32, i32) {
    %c0_i32 = arith.constant 0 : i32
    %c0_i32_0 = arith.constant 0 : i32
    %c0_i32_1 = arith.constant 0 : i32
    return %arg0, %c0_i32, %c0_i32_0 : i32, i32, i32
  }
  func.func @transform_1(%arg0: i32) -> (i32, i32, i32) {
    %c0_i32 = arith.constant 0 : i32
    %c0_i32_0 = arith.constant 0 : i32
    %c0_i32_1 = arith.constant 0 : i32
    %c0_i32_2 = arith.constant 0 : i32
    return %c0_i32, %c0_i32_0, %c0_i32_1 : i32, i32, i32
  }
  func.func @transform_2(%arg0: i32) -> (i32, i32) {
    %c0_i32 = arith.constant 0 : i32
    %c0_i32_0 = arith.constant 0 : i32
    %c0_i32_1 = arith.constant 0 : i32
    return %c0_i32, %c0_i32_0 : i32, i32
  }
  func.func @transform_3(%arg0: i32) -> (i32, i32) {
    %c0_i32 = arith.constant 0 : i32
    %c0_i32_0 = arith.constant 0 : i32
    %c0_i32_1 = arith.constant 0 : i32
    return %c0_i32, %c0_i32_0 : i32, i32
  }
  func.func @transform_4(%arg0: i32) -> (i32, i32, i32) {
    %c0_i32 = arith.constant 0 : i32
    %c0_i32_0 = arith.constant 0 : i32
    %c0_i32_1 = arith.constant 0 : i32
    %c0_i32_2 = arith.constant 0 : i32
    return %c0_i32, %c0_i32_0, %c0_i32_1 : i32, i32, i32
  }
  func.func @transform_5(%arg0: i32) -> (i32, i32) {
    %c0_i32 = arith.constant 0 : i32
    %c0_i32_0 = arith.constant 0 : i32
    %c0_i32_1 = arith.constant 0 : i32
    return %c0_i32, %c0_i32_0 : i32, i32
  }
  func.func @transform_6(%arg0: i32) -> (i32, i32) {
    %c0_i32 = arith.constant 0 : i32
    %c0_i32_0 = arith.constant 0 : i32
    %c0_i32_1 = arith.constant 0 : i32
    return %c0_i32, %c0_i32_0 : i32, i32
  }
  func.func @transform_7(%arg0: i32) -> (i32, i32) {
    %c0_i32 = arith.constant 0 : i32
    %c0_i32_0 = arith.constant 0 : i32
    %c0_i32_1 = arith.constant 0 : i32
    return %c0_i32, %c0_i32_0 : i32, i32
  }
  func.func @transform_8(%arg0: i32) -> (i32, i32, i32) {
    %c0_i32 = arith.constant 0 : i32
    %c0_i32_0 = arith.constant 0 : i32
    %c0_i32_1 = arith.constant 0 : i32
    return %arg0, %c0_i32, %c0_i32_0 : i32, i32, i32
  }
}

module attributes {stable_mosaic.version = 11 : i64} {
  func.func @_fc_head_kernel(%arg0: i32, %arg1: memref<2x144xbf16, #tpu.memory_space<vmem>>, %arg2: memref<144x128xbf16, #tpu.memory_space<vmem>>, %arg3: memref<1x128xf32, #tpu.memory_space<vmem>>, %arg4: memref<1x128xf32, #tpu.memory_space<vmem>>, %arg5: memref<128x128xbf16, #tpu.memory_space<vmem>>, %arg6: memref<1x128xf32, #tpu.memory_space<vmem>>, %arg7: memref<1x128xf32, #tpu.memory_space<vmem>>, %arg8: memref<1x1xf32, #tpu.memory_space<vmem>>, %arg9: memref<1x1xf32, #tpu.memory_space<vmem>>, %arg10: memref<2x128xf32, #tpu.memory_space<vmem>>) attributes {dimension_semantics = [#tpu.dimension_semantics<parallel>], iteration_bounds = array<i64: 1>, scalar_prefetch = 0 : i64, scratch_operands = 0 : i64, tpu.core_type = #tpu.core_type<tc>, window_params = [{transform_indices = @transform_0, window_bounds = array<i64: 2, 144>}, {pipeline_mode = #tpu.pipeline_mode<synchronous>, transform_indices = @transform_1, window_bounds = array<i64: 144, 128>}, {pipeline_mode = #tpu.pipeline_mode<synchronous>, transform_indices = @transform_2, window_bounds = array<i64: 1, 128>}, {pipeline_mode = #tpu.pipeline_mode<synchronous>, transform_indices = @transform_3, window_bounds = array<i64: 1, 128>}, {pipeline_mode = #tpu.pipeline_mode<synchronous>, transform_indices = @transform_4, window_bounds = array<i64: 128, 128>}, {pipeline_mode = #tpu.pipeline_mode<synchronous>, transform_indices = @transform_5, window_bounds = array<i64: 1, 128>}, {pipeline_mode = #tpu.pipeline_mode<synchronous>, transform_indices = @transform_6, window_bounds = array<i64: 1, 128>}, {pipeline_mode = #tpu.pipeline_mode<synchronous>, transform_indices = @transform_7, window_bounds = array<i64: 1, 1>}, {pipeline_mode = #tpu.pipeline_mode<synchronous>, transform_indices = @transform_8, window_bounds = array<i64: 1, 1>}, {transform_indices = @transform_9, window_bounds = array<i64: 2, 128>}]} {
    %c0 = arith.constant 0 : index
    %c0_0 = arith.constant 0 : index
    %0 = vector.load %arg1[%c0, %c0_0] : memref<2x144xbf16, #tpu.memory_space<vmem>>, vector<2x144xbf16>
    %c0_1 = arith.constant 0 : index
    %c0_2 = arith.constant 0 : index
    %1 = vector.load %arg2[%c0_1, %c0_2] : memref<144x128xbf16, #tpu.memory_space<vmem>>, vector<144x128xbf16>
    %cst = arith.constant dense<0.000000e+00> : vector<2x128xf32>
    %2 = tpu.matmul %0, %1, %cst {dimension_numbers = #tpu.dot_dimension_numbers<[1], [0], [0], [1], [0, 0, 1, 1], [], []>} : vector<2x144xbf16>, vector<144x128xbf16>, vector<2x128xf32> -> vector<2x128xf32>
    %c0_3 = arith.constant 0 : index
    %c0_4 = arith.constant 0 : index
    %3 = vector.load %arg3[%c0_3, %c0_4] : memref<1x128xf32, #tpu.memory_space<vmem>>, vector<1x128xf32>
    %4 = vector.broadcast %3 : vector<1x128xf32> to vector<2x128xf32>
    %5 = arith.mulf %2, %4 : vector<2x128xf32>
    %c0_5 = arith.constant 0 : index
    %c0_6 = arith.constant 0 : index
    %6 = vector.load %arg4[%c0_5, %c0_6] : memref<1x128xf32, #tpu.memory_space<vmem>>, vector<1x128xf32>
    %7 = vector.broadcast %6 : vector<1x128xf32> to vector<2x128xf32>
    %8 = arith.addf %5, %7 : vector<2x128xf32>
    %cst_7 = arith.constant 2.000000e+00 : f32
    %9 = vector.broadcast %cst_7 : f32 to vector<2x128xf32>
    %10 = arith.mulf %8, %9 : vector<2x128xf32>
    %11 = math.roundeven %10 : vector<2x128xf32>
    %cst_8 = arith.constant -2.000000e+00 : f32
    %cst_9 = arith.constant 1.000000e+00 : f32
    %12 = vector.broadcast %cst_8 : f32 to vector<2x128xf32>
    %13 = arith.maximumf %12, %11 : vector<2x128xf32>
    %14 = vector.broadcast %cst_9 : f32 to vector<2x128xf32>
    %15 = arith.minimumf %14, %13 : vector<2x128xf32>
    %cst_10 = arith.constant 5.000000e-01 : f32
    %16 = vector.broadcast %cst_10 : f32 to vector<2x128xf32>
    %17 = arith.mulf %15, %16 : vector<2x128xf32>
    %18 = arith.truncf %17 : vector<2x128xf32> to vector<2x128xbf16>
    %c0_11 = arith.constant 0 : index
    %c0_12 = arith.constant 0 : index
    %19 = vector.load %arg5[%c0_11, %c0_12] : memref<128x128xbf16, #tpu.memory_space<vmem>>, vector<128x128xbf16>
    %cst_13 = arith.constant dense<0.000000e+00> : vector<2x128xf32>
    %20 = tpu.matmul %18, %19, %cst_13 {dimension_numbers = #tpu.dot_dimension_numbers<[1], [0], [0], [1], [0, 0, 1, 1], [], []>} : vector<2x128xbf16>, vector<128x128xbf16>, vector<2x128xf32> -> vector<2x128xf32>
    %c0_14 = arith.constant 0 : index
    %c0_15 = arith.constant 0 : index
    %21 = vector.load %arg6[%c0_14, %c0_15] : memref<1x128xf32, #tpu.memory_space<vmem>>, vector<1x128xf32>
    %22 = vector.broadcast %21 : vector<1x128xf32> to vector<2x128xf32>
    %23 = arith.mulf %20, %22 : vector<2x128xf32>
    %c0_16 = arith.constant 0 : index
    %c0_17 = arith.constant 0 : index
    %24 = vector.load %arg7[%c0_16, %c0_17] : memref<1x128xf32, #tpu.memory_space<vmem>>, vector<1x128xf32>
    %25 = vector.broadcast %24 : vector<1x128xf32> to vector<2x128xf32>
    %26 = arith.addf %23, %25 : vector<2x128xf32>
    %cst_18 = arith.constant 2.000000e+00 : f32
    %27 = vector.broadcast %cst_18 : f32 to vector<2x128xf32>
    %28 = arith.mulf %26, %27 : vector<2x128xf32>
    %29 = math.roundeven %28 : vector<2x128xf32>
    %cst_19 = arith.constant -2.000000e+00 : f32
    %cst_20 = arith.constant 1.000000e+00 : f32
    %30 = vector.broadcast %cst_19 : f32 to vector<2x128xf32>
    %31 = arith.maximumf %30, %29 : vector<2x128xf32>
    %32 = vector.broadcast %cst_20 : f32 to vector<2x128xf32>
    %33 = arith.minimumf %32, %31 : vector<2x128xf32>
    %cst_21 = arith.constant 5.000000e-01 : f32
    %34 = vector.broadcast %cst_21 : f32 to vector<2x128xf32>
    %35 = arith.mulf %33, %34 : vector<2x128xf32>
    %c0_22 = arith.constant 0 : index
    %c0_23 = arith.constant 0 : index
    %36 = vector.load %arg8[%c0_22, %c0_23] : memref<1x1xf32, #tpu.memory_space<vmem>>, vector<1x1xf32>
    %37 = vector.broadcast %36 : vector<1x1xf32> to vector<2x128xf32>
    %38 = arith.mulf %35, %37 : vector<2x128xf32>
    %c0_24 = arith.constant 0 : index
    %c0_25 = arith.constant 0 : index
    %39 = vector.load %arg9[%c0_24, %c0_25] : memref<1x1xf32, #tpu.memory_space<vmem>>, vector<1x1xf32>
    %40 = vector.broadcast %39 : vector<1x1xf32> to vector<2x128xf32>
    %41 = arith.addf %38, %40 : vector<2x128xf32>
    %c0_26 = arith.constant 0 : index
    %c0_27 = arith.constant 0 : index
    %42 = vector.load %arg10[%c0_26, %c0_27] : memref<2x128xf32, #tpu.memory_space<vmem>>, vector<2x128xf32>
    tpu.vector_store %arg10[%c0_26, %c0_27], %41 {strides = array<i32>} : memref<2x128xf32, #tpu.memory_space<vmem>>, vector<2x128xf32>,
    return
  }
  func.func @transform_0(%arg0: i32) -> (i32, i32) {
    %c0_i32 = arith.constant 0 : i32
    %c0_i32_0 = arith.constant 0 : i32
    return %arg0, %c0_i32 : i32, i32
  }
  func.func @transform_1(%arg0: i32) -> (i32, i32) {
    %c0_i32 = arith.constant 0 : i32
    %c0_i32_0 = arith.constant 0 : i32
    %c0_i32_1 = arith.constant 0 : i32
    return %c0_i32, %c0_i32_0 : i32, i32
  }
  func.func @transform_2(%arg0: i32) -> (i32, i32) {
    %c0_i32 = arith.constant 0 : i32
    %c0_i32_0 = arith.constant 0 : i32
    %c0_i32_1 = arith.constant 0 : i32
    return %c0_i32, %c0_i32_0 : i32, i32
  }
  func.func @transform_3(%arg0: i32) -> (i32, i32) {
    %c0_i32 = arith.constant 0 : i32
    %c0_i32_0 = arith.constant 0 : i32
    %c0_i32_1 = arith.constant 0 : i32
    return %c0_i32, %c0_i32_0 : i32, i32
  }
  func.func @transform_4(%arg0: i32) -> (i32, i32) {
    %c0_i32 = arith.constant 0 : i32
    %c0_i32_0 = arith.constant 0 : i32
    %c0_i32_1 = arith.constant 0 : i32
    return %c0_i32, %c0_i32_0 : i32, i32
  }
  func.func @transform_5(%arg0: i32) -> (i32, i32) {
    %c0_i32 = arith.constant 0 : i32
    %c0_i32_0 = arith.constant 0 : i32
    %c0_i32_1 = arith.constant 0 : i32
    return %c0_i32, %c0_i32_0 : i32, i32
  }
  func.func @transform_6(%arg0: i32) -> (i32, i32) {
    %c0_i32 = arith.constant 0 : i32
    %c0_i32_0 = arith.constant 0 : i32
    %c0_i32_1 = arith.constant 0 : i32
    return %c0_i32, %c0_i32_0 : i32, i32
  }
  func.func @transform_7(%arg0: i32) -> (i32, i32) {
    %c0_i32 = arith.constant 0 : i32
    %c0_i32_0 = arith.constant 0 : i32
    %c0_i32_1 = arith.constant 0 : i32
    return %c0_i32, %c0_i32_0 : i32, i32
  }
  func.func @transform_8(%arg0: i32) -> (i32, i32) {
    %c0_i32 = arith.constant 0 : i32
    %c0_i32_0 = arith.constant 0 : i32
    %c0_i32_1 = arith.constant 0 : i32
    return %c0_i32, %c0_i32_0 : i32, i32
  }
  func.func @transform_9(%arg0: i32) -> (i32, i32) {
    %c0_i32 = arith.constant 0 : i32
    %c0_i32_0 = arith.constant 0 : i32
    return %arg0, %c0_i32 : i32, i32
  }
}

</mosaic_0001>

<llo_original>
// kernel: forward.3
$region0: #{forward.3}
  #allocation0 [shape = 'u32[]', space=smem, size = 0x4, offset = 0x4, fixed_abs, tag = 'smem constant byte address 0x4 - core index']
  #allocation1 [shape = 'u32[144,128]{1,0:T(1,128)}', space=vmem, size = 0x12000, scoped, tag = 'internal scratch']
  #allocation2 [shape = 'f32[1,1]{1,0:T(1,128)S(1)}', space=vmem, size = 0x200, scoped, tag = 'scoped memory for forward.3']
  #allocation3 [shape = 'f32[1,1]{1,0:T(1,128)S(1)}', space=vmem, size = 0x200, scoped, tag = 'scoped memory for forward.3']
  %s0 = inlined_call_operand.vmem [shape: bf16[2,144], index: 0, kind: input, shape index: {}]
  %s1 = inlined_call_operand.vmem [shape: bf16[144,128], index: 1, kind: input, shape index: {}]
  %s2 = inlined_call_operand.vmem [shape: f32[1,128], index: 2, kind: input, shape index: {}]
  %s3 = inlined_call_operand.vmem [shape: f32[1,128], index: 3, kind: input, shape index: {}]
  %s4 = inlined_call_operand.vmem [shape: bf16[128,128], index: 4, kind: input, shape index: {}]
  %s5 = inlined_call_operand.vmem [shape: f32[1,128], index: 5, kind: input, shape index: {}]
  %s6 = inlined_call_operand.vmem [shape: f32[1,128], index: 6, kind: input, shape index: {}]
  %s7 = inlined_call_operand.<no memory space> [shape: f32[1,1], index: 7, kind: input, shape index: {}]
  %s8 = inlined_call_operand.<no memory space> [shape: f32[1,1], index: 8, kind: input, shape index: {}]
  %s9 = inlined_call_operand.hbm [shape: f32[2,128], index: 9, kind: output, shape index: {}]
  %s10 = sld [smem:[#allocation0]]
  $region46: #{forward.3} parent=0
    _
  %s12 = ssub.s32 1, %s10
  %s13 = scalar_select 0, %s12, %s10
  %v14 = vstv %s7
  %15 = vst [vmem:[#allocation2] sm:$0x1] %v14
  %v16 = vstv %s8
  %17 = vst [vmem:[#allocation3] sm:$0x1] %v16
  $region1: #{forward.3} parent=0
    #allocation4 [shape = 'u8[1024]{0}', space=vmem, size = 0x400, scoped, tag = 'output window, operand 0, single buffered']
    #allocation5 [shape = 's32[1]{0}', space=sflag, size = 0x4, scoped, tag = 'scoped memory for forward.3']
    %18 = vsyncpa [#allocation5], 0
    // Predicated region
    $region2: #{forward.3} parent=1 // pred_check
      _
    $region3: #{forward.3} parent=1 // pred_check_branch
      %20 = sbr.rel (0) target = $region5
    $region4: #{forward.3} parent=1 // pred_region
      _
    $region5: #{forward.3} parent=1 // pred_fallthru
      _
    // Predicated region
    $region6: #{forward.3} parent=1 // pred_check
      _
    $region7: #{forward.3} parent=1 // pred_check_branch
      %22 = sbr.rel (0) target = $region9
    $region8: #{forward.3} parent=1 // pred_region
      _
    $region9: #{forward.3} parent=1 // pred_fallthru
      _
    // Predicated region
    $region10: #{forward.3} parent=1 // pred_check
      _
    $region11: #{forward.3} parent=1 // pred_check_branch
      %24 = sbr.rel (0) target = $region13
    $region12: #{forward.3} parent=1 // pred_region
      _
    $region13: #{forward.3} parent=1 // pred_fallthru
      _
    // Predicated region
    $region14: #{forward.3} parent=1 // pred_check
      _
    $region15: #{forward.3} parent=1 // pred_check_branch
      %26 = sbr.rel (0) target = $region17
    $region16: #{forward.3} parent=1 // pred_region
      _
    $region17: #{forward.3} parent=1 // pred_fallthru
      _
    // Predicated region
    $region18: #{forward.3} parent=1 // pred_check
      _
    $region19: #{forward.3} parent=1 // pred_check_branch
      %28 = sbr.rel (0) target = $region21
    $region20: #{forward.3} parent=1 // pred_region
      _
    $region21: #{forward.3} parent=1 // pred_fallthru
      _
    // Predicated region
    $region22: #{forward.3} parent=1 // pred_check
      _
    $region23: #{forward.3} parent=1 // pred_check_branch
      %30 = sbr.rel (0) target = $region25
    $region24: #{forward.3} parent=1 // pred_region
      _
    $region25: #{forward.3} parent=1 // pred_fallthru
      _
    // Predicated region
    $region26: #{forward.3} parent=1 // pred_check
      _
    $region27: #{forward.3} parent=1 // pred_check_branch
      %32 = sbr.rel (0) target = $region29
    $region28: #{forward.3} parent=1 // pred_region
      _
    $region29: #{forward.3} parent=1 // pred_fallthru
      _
    // Predicated region
    $region30: #{forward.3} parent=1 // pred_check
      _
    $region31: #{forward.3} parent=1 // pred_check_branch
      %34 = sbr.rel (0) target = $region33
    $region32: #{forward.3} parent=1 // pred_region
      _
    $region33: #{forward.3} parent=1 // pred_fallthru
      _
    // Predicated region
    $region34: #{forward.3} parent=1 // pred_check
      _
    $region35: #{forward.3} parent=1 // pred_check_branch
      %36 = sbr.rel (0) target = $region37
    $region36: #{forward.3} parent=1 // pred_region
      _
    $region37: #{forward.3} parent=1 // pred_fallthru
      _
    %v38 = vld [vmem:[%s0] sm:$0x3]
    %v39 = vld [vmem:[%s1] sm:$0xf]
    %v40 = vld [vmem:[%s1 + $0x4] sm:$0xf]
    %v41 = vld [vmem:[%s1 + $0x8] sm:$0xf]
    %v42 = vld [vmem:[%s1 + $0xc] sm:$0xf]
    %v43 = vld [vmem:[%s1 + $0x10] sm:$0xf]
    %v44 = vld [vmem:[%s1 + $0x14] sm:$0xf]
    %v45 = vld [vmem:[%s1 + $0x18] sm:$0xf]
    %v46 = vld [vmem:[%s1 + $0x1c] sm:$0xf]
    %v47 = vld [vmem:[%s1 + $0x20] sm:$0xf]
    %v48 = vld [vmem:[%s1 + $0x24] sm:$0xf]
    %v49 = vld [vmem:[%s1 + $0x28] sm:$0xf]
    %v50 = vld [vmem:[%s1 + $0x2c] sm:$0xf]
    %v51 = vld [vmem:[%s1 + $0x30] sm:$0xf]
    %v52 = vld [vmem:[%s1 + $0x34] sm:$0xf]
    %v53 = vld [vmem:[%s1 + $0x38] sm:$0xf]
    %v54 = vld [vmem:[%s1 + $0x3c] sm:$0xf]
    %v55 = vld [vmem:[%s1 + $0x40] sm:$0xf]
    %v56 = vld [vmem:[%s1 + $0x44] sm:$0xf]
    %v59 = vunpack.c.l.s4 1966171168
    %v60 = vunpack.c.0.s8 %v59
    %v61 = vlaneseq
    %v62 = vshrl.u32 %v61, 7
    %v63 = vsub.s32 %v60, %v62
    %v64 = vrot.slane %v38, %v63
    %v65 = vcombine.high %v64, %v64
    %v67 = vunpack.c.l.s4 1966171168
    %v68 = vunpack.c.0.s8 %v67
    %v69 = vlaneseq
    %v70 = vshrl.u32 %v69, 7
    %v71 = vsub.s32 %v68, %v70
    %v72 = vrot.slane %v64, %v71
    %v74 = vunpack.c.l.s4 1966171168
    %v75 = vunpack.c.0.s8 %v74
    %v76 = vlaneseq
    %v77 = vshrl.u32 %v76, 7
    %v78 = vsub.s32 %v75, %v77
    %v79 = vrot.slane %v65, %v78
    %v99 = vunpack.c.l.b16 %v39
    %v100 = vunpack.c.l.b16 %v40
    %v101 = vunpack.c.l.b16 %v41
    %v102 = vunpack.c.l.b16 %v42
    %v103 = vunpack.c.l.b16 %v43
    %v104 = vunpack.c.l.b16 %v44
    %v105 = vunpack.c.l.b16 %v45
    %v106 = vunpack.c.l.b16 %v46
    %v107 = vunpack.c.l.b16 %v47
    %v108 = vunpack.c.l.b16 %v48
    %v109 = vunpack.c.l.b16 %v49
    %v110 = vunpack.c.l.b16 %v50
    %v111 = vunpack.c.l.b16 %v51
    %v112 = vunpack.c.l.b16 %v52
    %v113 = vunpack.c.l.b16 %v53
    %v114 = vunpack.c.l.b16 %v54
    %v115 = vunpack.c.l.b16 %v55
    %v116 = vunpack.c.l.b16 %v56
    %v117 = vpack.c.b16 %v100, %v99
    %v118 = vpack.c.b16 %v102, %v101
    %v119 = vpack.c.b16 %v104, %v103
    %v120 = vpack.c.b16 %v106, %v105
    %v121 = vpack.c.b16 %v108, %v107
    %v122 = vpack.c.b16 %v110, %v109
    %v123 = vpack.c.b16 %v112, %v111
    %v124 = vpack.c.b16 %v114, %v113
    %v125 = vpack.c.b16 %v116, %v115
    %vm135 = vcmask 130048
    %v137 = vsel %vm135, %v79, 0
    %139 = vmatprep.subr.bf16.mxu0 0
    %140 = vmatpush1.bf16.msra.mxu0 %v117
    %141 = vmatprep.subr.bf16.mxu0 0
    %142 = vmatpush1.bf16.msra.mxu0 %v118
    %143 = vmatprep.subr.bf16.mxu0 0
    %144 = vmatpush1.bf16.msra.mxu0 %v119
    %145 = vmatprep.subr.bf16.mxu0 0
    %146 = vmatpush1.bf16.msra.mxu0 %v120
    %147 = vmatprep.subr.bf16.mxu0 0
    %148 = vmatpush1.bf16.msra.mxu0 %v121
    %149 = vmatprep.subr.bf16.mxu0 0
    %150 = vmatpush1.bf16.msra.mxu0 %v122
    %151 = vmatprep.subr.bf16.mxu0 0
    %152 = vmatpush1.bf16.msra.mxu0 %v123
    %153 = vmatprep.subr.bf16.mxu0 0
    %154 = vmatpush1.bf16.msra.mxu0 %v124
    %155 = vmatprep.subr.bf16.mxu0 0
    %156 = vmatpush1.bf16.msra.mxu0 %v125
    %157 = vmatprep.subr.bf16.mxu0 0
    %158 = vmatpush1.bf16.msra.mxu0 0
    %159 = vmatprep.subr.bf16.mxu0 0
    %160 = vmatpush1.bf16.msra.mxu0 0
    %161 = vmatprep.subr.bf16.mxu0 0
    %162 = vmatpush1.bf16.msra.mxu0 0
    %163 = vmatprep.subr.bf16.mxu0 0
    %164 = vmatpush1.bf16.msra.mxu0 0
    %165 = vmatprep.subr.bf16.mxu0 0
    %166 = vmatpush1.bf16.msra.mxu0 0
    %167 = vmatprep.subr.bf16.mxu0 0
    %168 = vmatpush1.bf16.msra.mxu0 0
    %169 = vmatprep.subr.bf16.mxu0 0
    %170 = vmatpush1.bf16.msra.mxu0 0
    %171 = vmatprep.mubr.bf16.mxu0 %v137
    %172 = vmatmul.mubr.bf16.gmra.mrb[0].mxu0 %v72
    %v173 = vpop.f32.mrb[0].mxu0
    %v174 = vadd.f32 0.0, %v173
    %v175 = vpop.f32.mrb[0].mxu0
    %v176 = vpop.f32.mrb[0].mxu0
    %v177 = vpop.f32.mrb[0].mxu0
    %178 = vdwg.mxu0
    %v179 = vld [vmem:[%s2] sm:$0x1]
    %v181 = vlaneseq
    %v182 = vshrl.u32 %v181, 7
    %v183 = vsub.s32 0, %v182
    %v184 = vrot.slane %v179, %v183
    %v186 = vmul.f32 %v174, %v184
    %v187 = vld [vmem:[%s3] sm:$0x1]
    %v189 = vlaneseq
    %v190 = vshrl.u32 %v189, 7
    %v191 = vsub.s32 0, %v190
    %v192 = vrot.slane %v187, %v191
    %v194 = vadd.f32 %v186, %v192
    %v195 = vmul.f32 %v194, 2.0
    %v196 = vround.ne.pseudo %v195
    %v197 = vmax.f32 %v196, -2.0
    %v198 = vmin.f32 %v197, 1.0
    %v199 = vmul.f32 %v198, 0.5
    %v200 = vpack.c.bf16 %v199, %v199
    %v201 = vld [vmem:[%s4] sm:$0xf]
    %v202 = vld [vmem:[%s4 + $0x4] sm:$0xf]
    %v203 = vld [vmem:[%s4 + $0x8] sm:$0xf]
    %v204 = vld [vmem:[%s4 + $0xc] sm:$0xf]
    %v205 = vld [vmem:[%s4 + $0x10] sm:$0xf]
    %v206 = vld [vmem:[%s4 + $0x14] sm:$0xf]
    %v207 = vld [vmem:[%s4 + $0x18] sm:$0xf]
    %v208 = vld [vmem:[%s4 + $0x1c] sm:$0xf]
    %v209 = vld [vmem:[%s4 + $0x20] sm:$0xf]
    %v210 = vld [vmem:[%s4 + $0x24] sm:$0xf]
    %v211 = vld [vmem:[%s4 + $0x28] sm:$0xf]
    %v212 = vld [vmem:[%s4 + $0x2c] sm:$0xf]
    %v213 = vld [vmem:[%s4 + $0x30] sm:$0xf]
    %v214 = vld [vmem:[%s4 + $0x34] sm:$0xf]
    %v215 = vld [vmem:[%s4 + $0x38] sm:$0xf]
    %v216 = vld [vmem:[%s4 + $0x3c] sm:$0xf]
    %v233 = vunpack.c.l.b16 %v201
    %v234 = vunpack.c.l.b16 %v202
    %v235 = vunpack.c.l.b16 %v203
    %v236 = vunpack.c.l.b16 %v204
    %v237 = vunpack.c.l.b16 %v205
    %v238 = vunpack.c.l.b16 %v206
    %v239 = vunpack.c.l.b16 %v207
    %v240 = vunpack.c.l.b16 %v208
    %v241 = vunpack.c.l.b16 %v209
    %v242 = vunpack.c.l.b16 %v210
    %v243 = vunpack.c.l.b16 %v211
    %v244 = vunpack.c.l.b16 %v212
    %v245 = vunpack.c.l.b16 %v213
    %v246 = vunpack.c.l.b16 %v214
    %v247 = vunpack.c.l.b16 %v215
    %v248 = vunpack.c.l.b16 %v216
    %v249 = vpack.c.b16 %v234, %v233
    %v250 = vpack.c.b16 %v236, %v235
    %v251 = vpack.c.b16 %v238, %v237
    %v252 = vpack.c.b16 %v240, %v239
    %v253 = vpack.c.b16 %v242, %v241
    %v254 = vpack.c.b16 %v244, %v243
    %v255 = vpack.c.b16 %v246, %v245
    %v256 = vpack.c.b16 %v248, %v247
    %265 = vmatprep.subr.bf16.mxu0 0
    %266 = vmatpush1.bf16.msra.mxu0 %v249
    %267 = vmatprep.subr.bf16.mxu0 0
    %268 = vmatpush1.bf16.msra.mxu0 %v250
    %269 = vmatprep.subr.bf16.mxu0 0
    %270 = vmatpush1.bf16.msra.mxu0 %v251
    %271 = vmatprep.subr.bf16.mxu0 0
    %272 = vmatpush1.bf16.msra.mxu0 %v252
    %273 = vmatprep.subr.bf16.mxu0 0
    %274 = vmatpush1.bf16.msra.mxu0 %v253
    %275 = vmatprep.subr.bf16.mxu0 0
    %276 = vmatpush1.bf16.msra.mxu0 %v254
    %277 = vmatprep.subr.bf16.mxu0 0
    %278 = vmatpush1.bf16.msra.mxu0 %v255
    %279 = vmatprep.subr.bf16.mxu0 0
    %280 = vmatpush1.bf16.msra.mxu0 %v256
    %281 = vmatprep.subr.bf16.mxu0 0
    %282 = vmatpush1.bf16.msra.mxu0 0
    %283 = vmatprep.subr.bf16.mxu0 0
    %284 = vmatpush1.bf16.msra.mxu0 0
    %285 = vmatprep.subr.bf16.mxu0 0
    %286 = vmatpush1.bf16.msra.mxu0 0
    %287 = vmatprep.subr.bf16.mxu0 0
    %288 = vmatpush1.bf16.msra.mxu0 0
    %289 = vmatprep.subr.bf16.mxu0 0
    %290 = vmatpush1.bf16.msra.mxu0 0
    %291 = vmatprep.subr.bf16.mxu0 0
    %292 = vmatpush1.bf16.msra.mxu0 0
    %293 = vmatprep.subr.bf16.mxu0 0
    %294 = vmatpush1.bf16.msra.mxu0 0
    %295 = vmatprep.subr.bf16.mxu0 0
    %296 = vmatpush1.bf16.msra.mxu0 0
    %297 = vmatprep.mubr.bf16.mxu0 0
    %298 = vmatmul.mubr.bf16.gmra.mrb[0].mxu0 %v200
    %v299 = vpop.f32.mrb[0].mxu0
    %v300 = vadd.f32 0.0, %v299
    %v301 = vpop.f32.mrb[0].mxu0
    %v302 = vpop.f32.mrb[0].mxu0
    %v303 = vpop.f32.mrb[0].mxu0
    %304 = vdwg.mxu0
    %v305 = vld [vmem:[%s5] sm:$0x1]
    %v307 = vlaneseq
    %v308 = vshrl.u32 %v307, 7
    %v309 = vsub.s32 0, %v308
    %v310 = vrot.slane %v305, %v309
    %v312 = vmul.f32 %v300, %v310
    %v313 = vld [vmem:[%s6] sm:$0x1]
    %v315 = vlaneseq
    %v316 = vshrl.u32 %v315, 7
    %v317 = vsub.s32 0, %v316
    %v318 = vrot.slane %v313, %v317
    %v320 = vadd.f32 %v312, %v318
    %v321 = vmul.f32 %v320, 2.0
    %v322 = vround.ne.pseudo %v321
    %v323 = vmax.f32 %v322, -2.0
    %v324 = vmin.f32 %v323, 1.0
    %v325 = vmul.f32 %v324, 0.5
    %v326 = vld [vmem:[#allocation2] sm:$0x1]
    %v328 = vlaneseq
    %v329 = vshrl.u32 %v328, 7
    %v330 = vsub.s32 0, %v329
    %v331 = vrot.slane %v326, %v330
    %332 = vset.pattern.permute.xlu0 0
    %333 = vperm.xlu0 %332, %v331
    %v334 = vpop.permute.xlu0 %333
    %v336 = vmul.f32 %v325, %v334
    %v337 = vld [vmem:[#allocation3] sm:$0x1]
    %v339 = vlaneseq
    %v340 = vshrl.u32 %v339, 7
    %v341 = vsub.s32 0, %v340
    %v342 = vrot.slane %v337, %v341
    %343 = vset.pattern.permute.xlu0 0
    %344 = vperm.xlu0 %343, %v342
    %v345 = vpop.permute.xlu0 %344
    %v347 = vadd.f32 %v336, %v345
    %348 = vst [vmem:[#allocation4] sm:$0x3] %v347
    // Predicated region
    $region38: #{forward.3} parent=1 // pred_check
      _
    $region39: #{forward.3} parent=1 // pred_check_branch
      %350 = sbr.rel (0) target = $region41
    $region40: #{forward.3} parent=1 // pred_region
      %s352 = ssub.s32 32, 32
      %353 = vsyncadd [#allocation5], %s352
      %s355 = sshll.u32 [#allocation4], 4
      %s356 = int_to_ptr.vmem [resolvable:$true] %s355
      %358 = dma.vmem_to_hbm [thread:$0]  %s356, 32, %s9, [#allocation5]
    $region41: #{forward.3} parent=1 // pred_fallthru
      _
    // Predicated region
    $region42: #{forward.3} parent=1 // pred_check
      _
    $region43: #{forward.3} parent=1 // pred_check_branch
      %360 = sbr.rel (0) target = $region45
    $region44: #{forward.3} parent=1 // pred_region
      %361 = dma.done [#allocation5], 32
    $region45: #{forward.3} parent=1 // pred_fallthru
      _
    %362 = vsyncpa [#allocation5], 1

// kernel: forward.2
$region0: #{forward.2}
  #allocation0 [shape = 'u32[]', space=smem, size = 0x4, offset = 0x4, fixed_abs, tag = 'smem constant byte address 0x4 - core index']
  #allocation1 [shape = 'u32[144,128]{1,0:T(1,128)}', space=vmem, size = 0x12000, scoped, tag = 'internal scratch']
  #allocation2 [shape = 'bf16[8,1280]{1,0:T(8,128)(2,1)}', space=vmem, size = 0x5000, scoped, tag = 'scratch operand']
  #allocation3 [shape = 'f32[8,1152]{1,0:T(8,128)}', space=vmem, size = 0x9000, scoped, tag = 'scratch operand']
  #allocation4 [shape = 'bf16[8,1024]{1,0:T(8,128)(2,1)}', space=vmem, size = 0x4000, scoped, tag = 'scratch operand']
  %s0 = inlined_call_operand.vmem [shape: f32[2,3,1024], index: 0, kind: input, shape index: {}]
  %s1 = inlined_call_operand.vmem [shape: bf16[25,8,8], index: 1, kind: input, shape index: {}]
  %s2 = inlined_call_operand.vmem [shape: f32[8,1], index: 2, kind: input, shape index: {}]
  %s3 = inlined_call_operand.vmem [shape: f32[8,1], index: 3, kind: input, shape index: {}]
  %s4 = inlined_call_operand.vmem [shape: bf16[25,16,8], index: 4, kind: input, shape index: {}]
  %s5 = inlined_call_operand.vmem [shape: f32[16,1], index: 5, kind: input, shape index: {}]
  %s6 = inlined_call_operand.vmem [shape: f32[16,1], index: 6, kind: input, shape index: {}]
  %s7 = inlined_call_operand.vmem [shape: bf16[384,9], index: 7, kind: input, shape index: {}]
  %s8 = inlined_call_operand.vmem [shape: bf16[2,16,9], index: 8, kind: output, shape index: {}]
  %s9 = sld [smem:[#allocation0]]
  $region65: #{forward.2} parent=0
    _
  %s11 = ssub.s32 1, %s9
  %s12 = scalar_select 0, %s11, %s9
  loop: start=0, step=1, limit=4
  $region2: #{forward.2} parent=0 // loop_pre_header
    _
  $region3: #{forward.2} parent=0 // loop_header
    %s14 = sphi 0, %s18
    %p15 = scmp.ge.s32.totalorder %s14, 4
    %s24 = sphi 0, %s26
    %s27 = sphi 0, %s24
    %s28 = sphi 0, %s27
    %s44 = sphi 0, %s28
    %s48 = sphi 0, %s48
    %s50 = sphi 0, %s48
    %s51 = sphi 0, %s50
    %s65 = sphi 0, %s51
    %s69 = sphi 0, %s69
    %s71 = sphi 0, %s69
    %s72 = sphi 0, %s71
    %s86 = sphi 0, %s72
    %s90 = sphi 0, %s90
    %s92 = sphi 0, %s90
    %s93 = sphi 0, %s92
    %s107 = sphi 0, %s93
    %s111 = sphi 0, %s111
    %s113 = sphi 0, %s111
    %s114 = sphi 0, %s113
    %s128 = sphi 0, %s114
    %s132 = sphi 0, %s132
    %s134 = sphi 0, %s132
    %s135 = sphi 0, %s134
    %s149 = sphi 0, %s135
    %s153 = sphi 0, %s153
    %s155 = sphi 0, %s153
    %s156 = sphi 0, %s155
    %s170 = sphi 0, %s156
    %s174 = sphi 0, %s174
    %s176 = sphi 0, %s174
    %s177 = sphi 0, %s176
    %s191 = sphi 0, %s177
    %s197 = sphi 0, %s199
    %s200 = sphi 0, %s197
    %s201 = sphi 0, %s200
    %s217 = sphi 0, %s201
  $region4: #{forward.2} parent=0 // loop_header_branch
    %17 = sbr.rel (%p15) target = $region8
  $region5: #{forward.2} parent=0 // loop_body
    %s19 = ssub.s32 %s14, 1
    %s20 = ssub.s32 %s14, 2
    %s21 = sadd.s32 %s14, 1
    %s22 = ssub.s32 %s14, %s21
    %p23 = scmp.eq.s32.totalorder %s22, 0
    %s25 = sadd.s32 %s24, 1
    %s26 = scalar_select %p23, %s24, %s25
    %p29 = pneg %p23
    %p30 = scmp.eq.s32.totalorder %s14, 1
    %p31 = por %p29, %p30
    %p32 = scmp.ne.s32.totalorder %s24, %s27
    %p33 = scmp.eq.s32.totalorder %s14, 0
    %p34 = por %p32, %p33
    %p35 = scmp.ne.s32.totalorder %s24, %s27
    %p36 = scmp.eq.s32.totalorder %s19, 1
    %p37 = por %p35, %p36
    %p38 = scmp.ne.s32.totalorder %s27, %s28
    %p39 = scmp.eq.s32.totalorder %s19, 0
    %p40 = por %p38, %p39
    %p41 = scmp.ne.s32.totalorder %s27, %s28
    %p42 = scmp.eq.s32.totalorder %s20, 1
    %p43 = por %p41, %p42
    %p45 = scmp.ne.s32.totalorder %s28, %s44
    %p46 = scmp.eq.s32.totalorder %s20, 0
    %p47 = por %p45, %p46
    %s49 = sadd.s32 %s48, 1
    %p52 = scmp.eq.s32.totalorder %s14, 1
    %p53 = scmp.ne.s32.totalorder %s48, %s50
    %p54 = scmp.eq.s32.totalorder %s14, 0
    %p55 = por %p53, %p54
    %p56 = scmp.ne.s32.totalorder %s48, %s50
    %p57 = scmp.eq.s32.totalorder %s19, 1
    %p58 = por %p56, %p57
    %p59 = scmp.ne.s32.totalorder %s50, %s51
    %p60 = scmp.eq.s32.totalorder %s19, 0
    %p61 = por %p59, %p60
    %p62 = scmp.ne.s32.totalorder %s50, %s51
    %p63 = scmp.eq.s32.totalorder %s20, 1
    %p64 = por %p62, %p63
    %p66 = scmp.ne.s32.totalorder %s51, %s65
    %p67 = scmp.eq.s32.totalorder %s20, 0
    %p68 = por %p66, %p67
    %s70 = sadd.s32 %s69, 1
    %p73 = scmp.eq.s32.totalorder %s14, 1
    %p74 = scmp.ne.s32.totalorder %s69, %s71
    %p75 = scmp.eq.s32.totalorder %s14, 0
    %p76 = por %p74, %p75
    %p77 = scmp.ne.s32.totalorder %s69, %s71
    %p78 = scmp.eq.s32.totalorder %s19, 1
    %p79 = por %p77, %p78
    %p80 = scmp.ne.s32.totalorder %s71, %s72
    %p81 = scmp.eq.s32.totalorder %s19, 0
    %p82 = por %p80, %p81
    %p83 = scmp.ne.s32.totalorder %s71, %s72
    %p84 = scmp.eq.s32.totalorder %s20, 1
    %p85 = por %p83, %p84
    %p87 = scmp.ne.s32.totalorder %s72, %s86
    %p88 = scmp.eq.s32.totalorder %s20, 0
    %p89 = por %p87, %p88
    %s91 = sadd.s32 %s90, 1
    %p94 = scmp.eq.s32.totalorder %s14, 1
    %p95 = scmp.ne.s32.totalorder %s90, %s92
    %p96 = scmp.eq.s32.totalorder %s14, 0
    %p97 = por %p95, %p96
    %p98 = scmp.ne.s32.totalorder %s90, %s92
    %p99 = scmp.eq.s32.totalorder %s19, 1
    %p100 = por %p98, %p99
    %p101 = scmp.ne.s32.totalorder %s92, %s93
    %p102 = scmp.eq.s32.totalorder %s19, 0
    %p103 = por %p101, %p102
    %p104 = scmp.ne.s32.totalorder %s92, %s93
    %p105 = scmp.eq.s32.totalorder %s20, 1
    %p106 = por %p104, %p105
    %p108 = scmp.ne.s32.totalorder %s93, %s107
    %p109 = scmp.eq.s32.totalorder %s20, 0
    %p110 = por %p108, %p109
    %s112 = sadd.s32 %s111, 1
    %p115 = scmp.eq.s32.totalorder %s14, 1
    %p116 = scmp.ne.s32.totalorder %s111, %s113
    %p117 = scmp.eq.s32.totalorder %s14, 0
    %p118 = por %p116, %p117
    %p119 = scmp.ne.s32.totalorder %s111, %s113
    %p120 = scmp.eq.s32.totalorder %s19, 1
    %p121 = por %p119, %p120
    %p122 = scmp.ne.s32.totalorder %s113, %s114
    %p123 = scmp.eq.s32.totalorder %s19, 0
    %p124 = por %p122, %p123
    %p125 = scmp.ne.s32.totalorder %s113, %s114
    %p126 = scmp.eq.s32.totalorder %s20, 1
    %p127 = por %p125, %p126
    %p129 = scmp.ne.s32.totalorder %s114, %s128
    %p130 = scmp.eq.s32.totalorder %s20, 0
    %p131 = por %p129, %p130
    %s133 = sadd.s32 %s132, 1
    %p136 = scmp.eq.s32.totalorder %s14, 1
    %p137 = scmp.ne.s32.totalorder %s132, %s134
    %p138 = scmp.eq.s32.totalorder %s14, 0
    %p139 = por %p137, %p138
    %p140 = scmp.ne.s32.totalorder %s132, %s134
    %p141 = scmp.eq.s32.totalorder %s19, 1
    %p142 = por %p140, %p141
    %p143 = scmp.ne.s32.totalorder %s134, %s135
    %p144 = scmp.eq.s32.totalorder %s19, 0
    %p145 = por %p143, %p144
    %p146 = scmp.ne.s32.totalorder %s134, %s135
    %p147 = scmp.eq.s32.totalorder %s20, 1
    %p148 = por %p146, %p147
    %p150 = scmp.ne.s32.totalorder %s135, %s149
    %p151 = scmp.eq.s32.totalorder %s20, 0
    %p152 = por %p150, %p151
    %s154 = sadd.s32 %s153, 1
    %p157 = scmp.eq.s32.totalorder %s14, 1
    %p158 = scmp.ne.s32.totalorder %s153, %s155
    %p159 = scmp.eq.s32.totalorder %s14, 0
    %p160 = por %p158, %p159
    %p161 = scmp.ne.s32.totalorder %s153, %s155
    %p162 = scmp.eq.s32.totalorder %s19, 1
    %p163 = por %p161, %p162
    %p164 = scmp.ne.s32.totalorder %s155, %s156
    %p165 = scmp.eq.s32.totalorder %s19, 0
    %p166 = por %p164, %p165
    %p167 = scmp.ne.s32.totalorder %s155, %s156
    %p168 = scmp.eq.s32.totalorder %s20, 1
    %p169 = por %p167, %p168
    %p171 = scmp.ne.s32.totalorder %s156, %s170
    %p172 = scmp.eq.s32.totalorder %s20, 0
    %p173 = por %p171, %p172
    %s175 = sadd.s32 %s174, 1
    %p178 = scmp.eq.s32.totalorder %s14, 1
    %p179 = scmp.ne.s32.totalorder %s174, %s176
    %p180 = scmp.eq.s32.totalorder %s14, 0
    %p181 = por %p179, %p180
    %p182 = scmp.ne.s32.totalorder %s174, %s176
    %p183 = scmp.eq.s32.totalorder %s19, 1
    %p184 = por %p182, %p183
    %p185 = scmp.ne.s32.totalorder %s176, %s177
    %p186 = scmp.eq.s32.totalorder %s19, 0
    %p187 = por %p185, %p186
    %p188 = scmp.ne.s32.totalorder %s176, %s177
    %p189 = scmp.eq.s32.totalorder %s20, 1
    %p190 = por %p188, %p189
    %p192 = scmp.ne.s32.totalorder %s177, %s191
    %p193 = scmp.eq.s32.totalorder %s20, 0
    %p194 = por %p192, %p193
    %s195 = ssub.s32 %s14, %s21
    %p196 = scmp.eq.s32.totalorder %s195, 0
    %s198 = sadd.s32 %s197, 1
    %s199 = scalar_select %p196, %s197, %s198
    %p202 = pneg %p196
    %p203 = scmp.eq.s32.totalorder %s14, 1
    %p204 = por %p202, %p203
    %p205 = scmp.ne.s32.totalorder %s197, %s200
    %p206 = scmp.eq.s32.totalorder %s14, 0
    %p207 = por %p205, %p206
    %p208 = scmp.ne.s32.totalorder %s197, %s200
    %p209 = scmp.eq.s32.totalorder %s19, 1
    %p210 = por %p208, %p209
    %p211 = scmp.ne.s32.totalorder %s200, %s201
    %p212 = scmp.eq.s32.totalorder %s19, 0
    %p213 = por %p211, %p212
    %p214 = scmp.ne.s32.totalorder %s200, %s201
    %p215 = scmp.eq.s32.totalorder %s20, 1
    %p216 = por %p214, %p215
    %p218 = scmp.ne.s32.totalorder %s201, %s217
    %p219 = scmp.eq.s32.totalorder %s20, 0
    %p220 = por %p218, %p219
    %p221 = scmp.le.s32.totalorder 1, %s14
    %p222 = scmp.lt.s32.totalorder %s14, 3
    %p223 = pnand %p221, %p222
    %p224 = pneg %p223
    // Predicated region
    $region9: #{forward.2} parent=5 // pred_check
      _
    $region10: #{forward.2} parent=5 // pred_check_branch
      %226 = sbr.rel (%p223) target = $region12
    $region11: #{forward.2} parent=5 // pred_region
      %s227 = ssub.s32 %s14, 1
      // Predicated region
      $region13: #{forward.2} parent=11 // pred_check
        %p228 = pneg %p61
      $region14: #{forward.2} parent=11 // pred_check_branch
        %230 = sbr.rel (%p228) target = $region16
      $region15: #{forward.2} parent=11 // pred_region
        _
      $region16: #{forward.2} parent=11 // pred_fallthru
        _
      // Predicated region
      $region17: #{forward.2} parent=11 // pred_check
        %p231 = pneg %p82
      $region18: #{forward.2} parent=11 // pred_check_branch
        %233 = sbr.rel (%p231) target = $region20
      $region19: #{forward.2} parent=11 // pred_region
        _
      $region20: #{forward.2} parent=11 // pred_fallthru
        _
      // Predicated region
      $region21: #{forward.2} parent=11 // pred_check
        %p234 = pneg %p103
      $region22: #{forward.2} parent=11 // pred_check_branch
        %236 = sbr.rel (%p234) target = $region24
      $region23: #{forward.2} parent=11 // pred_region
        _
      $region24: #{forward.2} parent=11 // pred_fallthru
        _
      // Predicated region
      $region25: #{forward.2} parent=11 // pred_check
        %p237 = pneg %p124
      $region26: #{forward.2} parent=11 // pred_check_branch
        %239 = sbr.rel (%p237) target = $region28
      $region27: #{forward.2} parent=11 // pred_region
        _
      $region28: #{forward.2} parent=11 // pred_fallthru
        _
      // Predicated region
      $region29: #{forward.2} parent=11 // pred_check
        %p240 = pneg %p145
      $region30: #{forward.2} parent=11 // pred_check_branch
        %242 = sbr.rel (%p240) target = $region32
      $region31: #{forward.2} parent=11 // pred_region
        _
      $region32: #{forward.2} parent=11 // pred_fallthru
        _
      // Predicated region
      $region33: #{forward.2} parent=11 // pred_check
        %p243 = pneg %p166
      $region34: #{forward.2} parent=11 // pred_check_branch
        %245 = sbr.rel (%p243) target = $region36
      $region35: #{forward.2} parent=11 // pred_region
        _
      $region36: #{forward.2} parent=11 // pred_fallthru
        _
      // Predicated region
      $region37: #{forward.2} parent=11 // pred_check
        %p246 = pneg %p187
      $region38: #{forward.2} parent=11 // pred_check_branch
        %248 = sbr.rel (%p246) target = $region40
      $region39: #{forward.2} parent=11 // pred_region
        _
      $region40: #{forward.2} parent=11 // pred_fallthru
        _
    $region12: #{forward.2} parent=5 // pred_fallthru
      _
    %p249 = scmp.lt.s32.totalorder %s14, 2
    // Predicated region
    $region41: #{forward.2} parent=5 // pred_check
      %p250 = pneg %p249
    $region42: #{forward.2} parent=5 // pred_check_branch
      %252 = sbr.rel (%p250) target = $region44
    $region43: #{forward.2} parent=5 // pred_region
      // Predicated region
      $region45: #{forward.2} parent=43 // pred_check
        %p253 = pneg %p34
      $region46: #{forward.2} parent=43 // pred_check_branch
        %255 = sbr.rel (%p253) target = $region48
      $region47: #{forward.2} parent=43 // pred_region
        %p256 = scmp.lt.s32.totalorder %s14, 1
        %s257 = scalar_select %p256, %s14, 1
        %s258 = smul.addr %s257, 8
        %s259 = smul.addr %s258, 4
        %s260 = scalar_lea.vmem %s0, %s259
      $region48: #{forward.2} parent=43 // pred_fallthru
        _
    $region44: #{forward.2} parent=5 // pred_fallthru
      _
    %p261 = scmp.le.s32.totalorder 1, %s14
    %p262 = scmp.lt.s32.totalorder %s14, 3
    %p263 = pnand %p261, %p262
    %p264 = pneg %p263
    // Predicated region
    $region49: #{forward.2} parent=5 // pred_check
      _
    $region50: #{forward.2} parent=5 // pred_check_branch
      %266 = sbr.rel (%p263) target = $region52
    $region51: #{forward.2} parent=5 // pred_region
      %s267 = ssub.s32 %s14, 1
      %p268 = scmp.lt.s32.totalorder %s19, 1
      %s269 = scalar_select %p268, %s19, 1
      %s270 = smul.addr %s269, 8
      %s271 = smul.addr %s270, 4
      %s272 = scalar_lea.vmem %s0, %s271
      %p273 = pneg %p40
      %p274 = pneg %p37
      %p275 = pneg %p61
      %p276 = pneg %p58
      %p277 = pneg %p82
      %p278 = pneg %p79
      %p279 = pneg %p103
      %p280 = pneg %p100
      %p281 = pneg %p124
      %p282 = pneg %p121
      %p283 = pneg %p145
      %p284 = pneg %p142
      %p285 = pneg %p166
      %p286 = pneg %p163
      %p287 = pneg %p187
      %p288 = pneg %p184
      %p289 = pneg %p213
      %p290 = pneg %p210
      %p291 = scmp.lt.s32.totalorder %s19, 1
      %s292 = scalar_select %p291, %s19, 1
      %s293 = smul.addr %s292, 2
      %s294 = smul.addr %s293, 4
      %s295 = scalar_lea.vmem %s8, %s294
      %p296 = scmp.lt.s32.totalorder %s19, 1
      %s297 = scalar_select %p296, %s19, 1
      %s298 = smul.addr %s297, 8
      %s299 = smul.addr %s298, 4
      %s300 = scalar_lea.vmem %s0, %s299
      %p301 = scmp.lt.s32.totalorder %s19, 1
      %s302 = scalar_select %p301, %s19, 1
      %s303 = smul.addr %s302, 2
      %s304 = smul.addr %s303, 4
      %s305 = scalar_lea.vmem %s8, %s304
      %307 = vst [vmem:[#allocation2 + $0x20] sm:$0xff] 0
      %308 = vst [vmem:[#allocation3 + $0x40] sm:$0xff] 0.0
      %v309 = vld [vmem:[%s300] sm:$0x77]
      %v310 = vld [vmem:[%s300 + $0x8] sm:$0x77]
      %v311 = vld [vmem:[%s300 + $0x10] sm:$0x77]
      %v312 = vld [vmem:[%s300 + $0x18] sm:$0x77]
      %v317 = vcombine.high %v309, %v309
      %v318 = vcombine.high %v310, %v310
      %v319 = vcombine.high %v311, %v311
      %v320 = vcombine.high %v312, %v312
      %vm325 = vcmask 1042432
      %v326 = vsel %vm325, %v309, 0.0
      %v327 = vsel %vm325, %v317, 0.0
      %v328 = vsel %vm325, %v310, 0.0
      %v329 = vsel %vm325, %v318, 0.0
      %v330 = vsel %vm325, %v311, 0.0
      %v331 = vsel %vm325, %v319, 0.0
      %v332 = vsel %vm325, %v312, 0.0
      %v333 = vsel %vm325, %v320, 0.0
      %v334 = vmul.f32 %v326, 2.0
      %v335 = vmul.f32 %v327, 2.0
      %v336 = vmul.f32 %v328, 2.0
      %v337 = vmul.f32 %v329, 2.0
      %v338 = vmul.f32 %v330, 2.0
      %v339 = vmul.f32 %v331, 2.0
      %v340 = vmul.f32 %v332, 2.0
      %v341 = vmul.f32 %v333, 2.0
      %v342 = vround.ne.pseudo %v334
      %v343 = vround.ne.pseudo %v335
      %v344 = vround.ne.pseudo %v336
      %v345 = vround.ne.pseudo %v337
      %v346 = vround.ne.pseudo %v338
      %v347 = vround.ne.pseudo %v339
      %v348 = vround.ne.pseudo %v340
      %v349 = vround.ne.pseudo %v341
      %v350 = vmax.f32 %v342, -2.0
      %v351 = vmax.f32 %v343, -2.0
      %v352 = vmax.f32 %v344, -2.0
      %v353 = vmax.f32 %v345, -2.0
      %v354 = vmax.f32 %v346, -2.0
      %v355 = vmax.f32 %v347, -2.0
      %v356 = vmax.f32 %v348, -2.0
      %v357 = vmax.f32 %v349, -2.0
      %v358 = vmin.f32 %v350, 1.0
      %v359 = vmin.f32 %v351, 1.0
      %v360 = vmin.f32 %v352, 1.0
      %v361 = vmin.f32 %v353, 1.0
      %v362 = vmin.f32 %v354, 1.0
      %v363 = vmin.f32 %v355, 1.0
      %v364 = vmin.f32 %v356, 1.0
      %v365 = vmin.f32 %v357, 1.0
      %v366 = vmul.f32 %v358, 0.5
      %v367 = vmul.f32 %v359, 0.5
      %v368 = vmul.f32 %v360, 0.5
      %v369 = vmul.f32 %v361, 0.5
      %v370 = vmul.f32 %v362, 0.5
      %v371 = vmul.f32 %v363, 0.5
      %v372 = vmul.f32 %v364, 0.5
      %v373 = vmul.f32 %v365, 0.5
      %v374 = vpack.c.bf16 %v366, %v366
      %v375 = vpack.c.bf16 %v367, %v367
      %v376 = vpack.c.bf16 %v368, %v368
      %v377 = vpack.c.bf16 %v369, %v369
      %v378 = vpack.c.bf16 %v370, %v370
      %v379 = vpack.c.bf16 %v371, %v371
      %v380 = vpack.c.bf16 %v372, %v372
      %v381 = vpack.c.bf16 %v373, %v373
      %v390 = vunpack.c.l.b16 %v374
      %v391 = vunpack.c.l.b16 %v375
      %v392 = vunpack.c.l.b16 %v376
      %v393 = vunpack.c.l.b16 %v377
      %v394 = vunpack.c.l.b16 %v378
      %v395 = vunpack.c.l.b16 %v379
      %v396 = vunpack.c.l.b16 %v380
      %v397 = vunpack.c.l.b16 %v381
      %v398 = vpack.c.b16 %v391, %v390
      %v399 = vpack.c.b16 %v393, %v392
      %v400 = vpack.c.b16 %v395, %v394
      %v401 = vpack.c.b16 %v397, %v396
      %406 = vst [vmem:[#allocation2] sm:$0xff] %v398
      %407 = vst [vmem:[#allocation2 + $0x8] sm:$0xff] %v399
      %408 = vst [vmem:[#allocation2 + $0x10] sm:$0xff] %v400
      %409 = vst [vmem:[#allocation2 + $0x18] sm:$0xff] %v401
      %v410 = vld [vmem:[%s1] sm:$0xf]
      %v411 = vld [vmem:[#allocation2] sm:$0xff]
      %v412 = vld [vmem:[#allocation2 + $0x8] sm:$0xff]
      %v413 = vld [vmem:[#allocation2 + $0x10] sm:$0xff]
      %v414 = vld [vmem:[#allocation2 + $0x18] sm:$0xff]
      %s415 = scalar_lea.vmem %s1, 4
      %v416 = vld [vmem:[%s415] sm:$0xf]
      %v417 = vld [vmem:[#allocation2 + $0x20] sm:$0xf]
      %v423 = vunpack.c.l.b16 %v411
      %v424 = vunpack.c.h.b16 %v411
      %v425 = vunpack.c.l.b16 %v412
      %v426 = vunpack.c.h.b16 %v412
      %v427 = vunpack.c.l.b16 %v413
      %v428 = vunpack.c.h.b16 %v413
      %v429 = vunpack.c.l.b16 %v414
      %v430 = vunpack.c.h.b16 %v414
      %v431 = vunpack.c.l.b16 %v417
      %v432 = vpack.c.b16 %v423, %v423
      %v433 = vpack.c.b16 %v424, %v424
      %v434 = vpack.c.b16 %v425, %v425
      %v435 = vpack.c.b16 %v426, %v426
      %v436 = vpack.c.b16 %v427, %v427
      %v437 = vpack.c.b16 %v428, %v428
      %v438 = vpack.c.b16 %v429, %v429
      %v439 = vpack.c.b16 %v430, %v430
      %v440 = vpack.c.b16 %v431, %v431
      %441 = vrot.lane.b32.xlu0 %v432, 127
      %v442 = vpop.permute.xlu0 %441
      %443 = vrot.lane.b32.xlu0 %v433, 127
      %v444 = vpop.permute.xlu0 %443
      %445 = vrot.lane.b32.xlu0 %v434, 127
      %v446 = vpop.permute.xlu0 %445
      %447 = vrot.lane.b32.xlu0 %v435, 127
      %v448 = vpop.permute.xlu0 %447
      %449 = vrot.lane.b32.xlu0 %v436, 127
      %v450 = vpop.permute.xlu0 %449
      %451 = vrot.lane.b32.xlu0 %v437, 127
      %v452 = vpop.permute.xlu0 %451
      %453 = vrot.lane.b32.xlu0 %v438, 127
      %v454 = vpop.permute.xlu0 %453
      %455 = vrot.lane.b32.xlu0 %v439, 127
      %v456 = vpop.permute.xlu0 %455
      %457 = vrot.lane.b32.xlu0 %v440, 127
      %v458 = vpop.permute.xlu0 %457
      %vm459 = vcmask 1039360
      %v460 = vsel %vm459, %v442, %v444
      %v461 = vsel %vm459, %v444, %v446
      %v462 = vsel %vm459, %v446, %v448
      %v463 = vsel %vm459, %v448, %v450
      %v464 = vsel %vm459, %v450, %v452
      %v465 = vsel %vm459, %v452, %v454
      %v466 = vsel %vm459, %v454, %v456
      %v467 = vsel %vm459, %v456, %v458
      %vm468 = vcmask 64512
      %v470 = vsel %vm468, %v416, 0
      %vm472 = vcmask 1043456
      %v474 = vsel %vm472, %v460, 0
      %v477 = vsel %vm472, %v461, 0
      %v480 = vsel %vm472, %v462, 0
      %v483 = vsel %vm472, %v463, 0
      %v486 = vsel %vm472, %v464, 0
      %v489 = vsel %vm472, %v465, 0
      %v492 = vsel %vm472, %v466, 0
      %v495 = vsel %vm472, %v467, 0
      %497 = vmatprep.subr.bf16.mxu0 %v477
      %498 = vmatpush1.bf16.msra.mxu0 %v474
      %499 = vmatprep.subr.bf16.mxu0 0
      %500 = vmatpush1.bf16.msra.mxu0 0
      %501 = vmatprep.subr.bf16.mxu0 0
      %502 = vmatpush1.bf16.msra.mxu0 0
      %503 = vmatprep.subr.bf16.mxu0 0
      %504 = vmatpush1.bf16.msra.mxu0 0
      %505 = vmatprep.subr.bf16.mxu0 0
      %506 = vmatpush1.bf16.msra.mxu0 0
      %507 = vmatprep.subr.bf16.mxu0 0
      %508 = vmatpush1.bf16.msra.mxu0 0
      %509 = vmatprep.subr.bf16.mxu0 0
      %510 = vmatpush1.bf16.msra.mxu0 0
      %511 = vmatprep.subr.bf16.mxu0 0
      %512 = vmatpush1.bf16.msra.mxu0 0
      %513 = vmatprep.subr.bf16.mxu0 0
      %514 = vmatpush1.bf16.msra.mxu0 0
      %515 = vmatprep.subr.bf16.mxu0 0
      %516 = vmatpush1.bf16.msra.mxu0 0
      %517 = vmatprep.subr.bf16.mxu0 0
      %518 = vmatpush1.bf16.msra.mxu0 0
      %519 = vmatprep.subr.bf16.mxu0 0
      %520 = vmatpush1.bf16.msra.mxu0 0
      %521 = vmatprep.subr.bf16.mxu0 0
      %522 = vmatpush1.bf16.msra.mxu0 0
      %523 = vmatprep.subr.bf16.mxu0 0
      %524 = vmatpush1.bf16.msra.mxu0 0
      %525 = vmatprep.subr.bf16.mxu0 0
      %526 = vmatpush1.bf16.msra.mxu0 0
      %527 = vmatprep.subr.bf16.mxu0 0
      %528 = vmatpush1.bf16.msra.mxu0 0
      %529 = vmatprep.mubr.bf16.mxu0 0
      %530 = vmatmul.mubr.bf16.gmra.mrb[0].mxu0 %v470
      %v531 = vpop.f32.mrb[0].mxu0
      %v532 = vadd.f32 0.0, %v531
      %v533 = vpop.f32.mrb[0].mxu0
      %v534 = vadd.f32 0.0, %v533
      %v535 = vpop.f32.mrb[0].mxu0
      %v536 = vpop.f32.mrb[0].mxu0
      %537 = vdwg.mxu0
      %538 = vmatprep.subr.bf16.mxu0 %v483
      %539 = vmatpush1.bf16.msra.mxu0 %v480
      %540 = vmatprep.subr.bf16.mxu0 0
      %541 = vmatpush1.bf16.msra.mxu0 0
      %542 = vmatprep.subr.bf16.mxu0 0
      %543 = vmatpush1.bf16.msra.mxu0 0
      %544 = vmatprep.subr.bf16.mxu0 0
      %545 = vmatpush1.bf16.msra.mxu0 0
      %546 = vmatprep.subr.bf16.mxu0 0
      %547 = vmatpush1.bf16.msra.mxu0 0
      %548 = vmatprep.subr.bf16.mxu0 0
      %549 = vmatpush1.bf16.msra.mxu0 0
      %550 = vmatprep.subr.bf16.mxu0 0
      %551 = vmatpush1.bf16.msra.mxu0 0
      %552 = vmatprep.subr.bf16.mxu0 0
      %553 = vmatpush1.bf16.msra.mxu0 0
      %554 = vmatprep.subr.bf16.mxu0 0
      %555 = vmatpush1.bf16.msra.mxu0 0
      %556 = vmatprep.subr.bf16.mxu0 0
      %557 = vmatpush1.bf16.msra.mxu0 0
      %558 = vmatprep.subr.bf16.mxu0 0
      %559 = vmatpush1.bf16.msra.mxu0 0
      %560 = vmatprep.subr.bf16.mxu0 0
      %561 = vmatpush1.bf16.msra.mxu0 0
      %562 = vmatprep.subr.bf16.mxu0 0
      %563 = vmatpush1.bf16.msra.mxu0 0
      %564 = vmatprep.subr.bf16.mxu0 0
      %565 = vmatpush1.bf16.msra.mxu0 0
      %566 = vmatprep.subr.bf16.mxu0 0
      %567 = vmatpush1.bf16.msra.mxu0 0
      %568 = vmatprep.subr.bf16.mxu0 0
      %569 = vmatpush1.bf16.msra.mxu0 0
      %570 = vmatprep.mubr.bf16.mxu0 0
      %571 = vmatmul.mubr.bf16.gmra.mrb[0].mxu0 %v470
      %v572 = vpop.f32.mrb[0].mxu0
      %v573 = vadd.f32 0.0, %v572
      %v574 = vpop.f32.mrb[0].mxu0
      %v575 = vadd.f32 0.0, %v574
      %v576 = vpop.f32.mrb[0].mxu0
      %v577 = vpop.f32.mrb[0].mxu0
      %578 = vdwg.mxu0
      %579 = vmatprep.subr.bf16.mxu0 %v489
      %580 = vmatpush1.bf16.msra.mxu0 %v486
      %581 = vmatprep.subr.bf16.mxu0 0
      %582 = vmatpush1.bf16.msra.mxu0 0
      %583 = vmatprep.subr.bf16.mxu0 0
      %584 = vmatpush1.bf16.msra.mxu0 0
      %585 = vmatprep.subr.bf16.mxu0 0
      %586 = vmatpush1.bf16.msra.mxu0 0
      %587 = vmatprep.subr.bf16.mxu0 0
      %588 = vmatpush1.bf16.msra.mxu0 0
      %589 = vmatprep.subr.bf16.mxu0 0
      %590 = vmatpush1.bf16.msra.mxu0 0
      %591 = vmatprep.subr.bf16.mxu0 0
      %592 = vmatpush1.bf16.msra.mxu0 0
      %593 = vmatprep.subr.bf16.mxu0 0
      %594 = vmatpush1.bf16.msra.mxu0 0
      %595 = vmatprep.subr.bf16.mxu0 0
      %596 = vmatpush1.bf16.msra.mxu0 0
      %597 = vmatprep.subr.bf16.mxu0 0
      %598 = vmatpush1.bf16.msra.mxu0 0
      %599 = vmatprep.subr.bf16.mxu0 0
      %600 = vmatpush1.bf16.msra.mxu0 0
      %601 = vmatprep.subr.bf16.mxu0 0
      %602 = vmatpush1.bf16.msra.mxu0 0
      %603 = vmatprep.subr.bf16.mxu0 0
      %604 = vmatpush1.bf16.msra.mxu0 0
      %605 = vmatprep.subr.bf16.mxu0 0
      %606 = vmatpush1.bf16.msra.mxu0 0
      %607 = vmatprep.subr.bf16.mxu0 0
      %608 = vmatpush1.bf16.msra.mxu0 0
      %609 = vmatprep.subr.bf16.mxu0 0
      %610 = vmatpush1.bf16.msra.mxu0 0
      %611 = vmatprep.mubr.bf16.mxu0 0
      %612 = vmatmul.mubr.bf16.gmra.mrb[0].mxu0 %v470
      %v613 = vpop.f32.mrb[0].mxu0
      %v614 = vadd.f32 0.0, %v613
      %v615 = vpop.f32.mrb[0].mxu0
      %v616 = vadd.f32 0.0, %v615
      %v617 = vpop.f32.mrb[0].mxu0
      %v618 = vpop.f32.mrb[0].mxu0
      %619 = vdwg.mxu0
      %620 = vmatprep.subr.bf16.mxu0 %v495
      %621 = vmatpush1.bf16.msra.mxu0 %v492
      %622 = vmatprep.subr.bf16.mxu0 0
      %623 = vmatpush1.bf16.msra.mxu0 0
      %624 = vmatprep.subr.bf16.mxu0 0
      %625 = vmatpush1.bf16.msra.mxu0 0
      %626 = vmatprep.subr.bf16.mxu0 0
      %627 = vmatpush1.bf16.msra.mxu0 0
      %628 = vmatprep.subr.bf16.mxu0 0
      %629 = vmatpush1.bf16.msra.mxu0 0
      %630 = vmatprep.subr.bf16.mxu0 0
      %631 = vmatpush1.bf16.msra.mxu0 0
      %632 = vmatprep.subr.bf16.mxu0 0
      %633 = vmatpush1.bf16.msra.mxu0 0
      %634 = vmatprep.subr.bf16.mxu0 0
      %635 = vmatpush1.bf16.msra.mxu0 0
      %636 = vmatprep.subr.bf16.mxu0 0
      %637 = vmatpush1.bf16.msra.mxu0 0
      %638 = vmatprep.subr.bf16.mxu0 0
      %639 = vmatpush1.bf16.msra.mxu0 0
      %640 = vmatprep.subr.bf16.mxu0 0
      %641 = vmatpush1.bf16.msra.mxu0 0
      %642 = vmatprep.subr.bf16.mxu0 0
      %643 = vmatpush1.bf16.msra.mxu0 0
      %644 = vmatprep.subr.bf16.mxu0 0
      %645 = vmatpush1.bf16.msra.mxu0 0
      %646 = vmatprep.subr.bf16.mxu0 0
      %647 = vmatpush1.bf16.msra.mxu0 0
      %648 = vmatprep.subr.bf16.mxu0 0
      %649 = vmatpush1.bf16.msra.mxu0 0
      %650 = vmatprep.subr.bf16.mxu0 0
      %651 = vmatpush1.bf16.msra.mxu0 0
      %652 = vmatprep.mubr.bf16.mxu0 0
      %653 = vmatmul.mubr.bf16.gmra.mrb[0].mxu0 %v470
      %v654 = vpop.f32.mrb[0].mxu0
      %v655 = vadd.f32 0.0, %v654
      %v656 = vpop.f32.mrb[0].mxu0
      %v657 = vadd.f32 0.0, %v656
      %v658 = vpop.f32.mrb[0].mxu0
      %v659 = vpop.f32.mrb[0].mxu0
      %660 = vdwg.mxu0
      %v662 = vsel %vm468, %v410, 0
      %v665 = vsel %vm472, %v432, 0
      %v668 = vsel %vm472, %v433, 0
      %v671 = vsel %vm472, %v434, 0
      %v674 = vsel %vm472, %v435, 0
      %v677 = vsel %vm472, %v436, 0
      %v680 = vsel %vm472, %v437, 0
      %v683 = vsel %vm472, %v438, 0
      %v686 = vsel %vm472, %v439, 0
      %688 = vmatprep.subr.bf16.mxu0 %v668
      %689 = vmatpush1.bf16.msra.mxu0 %v665
      %690 = vmatprep.subr.bf16.mxu0 0
      %691 = vmatpush1.bf16.msra.mxu0 0
      %692 = vmatprep.subr.bf16.mxu0 0
      %693 = vmatpush1.bf16.msra.mxu0 0
      %694 = vmatprep.subr.bf16.mxu0 0
      %695 = vmatpush1.bf16.msra.mxu0 0
      %696 = vmatprep.subr.bf16.mxu0 0
      %697 = vmatpush1.bf16.msra.mxu0 0
      %698 = vmatprep.subr.bf16.mxu0 0
      %699 = vmatpush1.bf16.msra.mxu0 0
      %700 = vmatprep.subr.bf16.mxu0 0
      %701 = vmatpush1.bf16.msra.mxu0 0
      %702 = vmatprep.subr.bf16.mxu0 0
      %703 = vmatpush1.bf16.msra.mxu0 0
      %704 = vmatprep.subr.bf16.mxu0 0
      %705 = vmatpush1.bf16.msra.mxu0 0
      %706 = vmatprep.subr.bf16.mxu0 0
      %707 = vmatpush1.bf16.msra.mxu0 0
      %708 = vmatprep.subr.bf16.mxu0 0
      %709 = vmatpush1.bf16.msra.mxu0 0
      %710 = vmatprep.subr.bf16.mxu0 0
      %711 = vmatpush1.bf16.msra.mxu0 0
      %712 = vmatprep.subr.bf16.mxu0 0
      %713 = vmatpush1.bf16.msra.mxu0 0
      %714 = vmatprep.subr.bf16.mxu0 0
      %715 = vmatpush1.bf16.msra.mxu0 0
      %716 = vmatprep.subr.bf16.mxu0 0
      %717 = vmatpush1.bf16.msra.mxu0 0
      %718 = vmatprep.subr.bf16.mxu0 0
      %719 = vmatpush1.bf16.msra.mxu0 0
      %720 = vmatprep.mubr.bf16.mxu0 0
      %721 = vmatmul.mubr.bf16.gmra.mrb[0].mxu0 %v662
      %v722 = vpop.f32.mrb[0].mxu0
      %v723 = vadd.f32 %v532, %v722
      %v724 = vpop.f32.mrb[0].mxu0
      %v725 = vadd.f32 %v534, %v724
      %v726 = vpop.f32.mrb[0].mxu0
      %v727 = vpop.f32.mrb[0].mxu0
      %728 = vdwg.mxu0
      %729 = vmatprep.subr.bf16.mxu0 %v674
      %730 = vmatpush1.bf16.msra.mxu0 %v671
      %731 = vmatprep.subr.bf16.mxu0 0
      %732 = vmatpush1.bf16.msra.mxu0 0
      %733 = vmatprep.subr.bf16.mxu0 0
      %734 = vmatpush1.bf16.msra.mxu0 0
      %735 = vmatprep.subr.bf16.mxu0 0
      %736 = vmatpush1.bf16.msra.mxu0 0
      %737 = vmatprep.subr.bf16.mxu0 0
      %738 = vmatpush1.bf16.msra.mxu0 0
      %739 = vmatprep.subr.bf16.mxu0 0
      %740 = vmatpush1.bf16.msra.mxu0 0
      %741 = vmatprep.subr.bf16.mxu0 0
      %742 = vmatpush1.bf16.msra.mxu0 0
      %743 = vmatprep.subr.bf16.mxu0 0
      %744 = vmatpush1.bf16.msra.mxu0 0
      %745 = vmatprep.subr.bf16.mxu0 0
      %746 = vmatpush1.bf16.msra.mxu0 0
      %747 = vmatprep.subr.bf16.mxu0 0
      %748 = vmatpush1.bf16.msra.mxu0 0
      %749 = vmatprep.subr.bf16.mxu0 0
      %750 = vmatpush1.bf16.msra.mxu0 0
      %751 = vmatprep.subr.bf16.mxu0 0
      %752 = vmatpush1.bf16.msra.mxu0 0
      %753 = vmatprep.subr.bf16.mxu0 0
      %754 = vmatpush1.bf16.msra.mxu0 0
      %755 = vmatprep.subr.bf16.mxu0 0
      %756 = vmatpush1.bf16.msra.mxu0 0
      %757 = vmatprep.subr.bf16.mxu0 0
      %758 = vmatpush1.bf16.msra.mxu0 0
      %759 = vmatprep.subr.bf16.mxu0 0
      %760 = vmatpush1.bf16.msra.mxu0 0
      %761 = vmatprep.mubr.bf16.mxu0 0
      %762 = vmatmul.mubr.bf16.gmra.mrb[0].mxu0 %v662
      %v763 = vpop.f32.mrb[0].mxu0
      %v764 = vadd.f32 %v573, %v763
      %v765 = vpop.f32.mrb[0].mxu0
      %v766 = vadd.f32 %v575, %v765
      %v767 = vpop.f32.mrb[0].mxu0
      %v768 = vpop.f32.mrb[0].mxu0
      %769 = vdwg.mxu0
      %770 = vmatprep.subr.bf16.mxu0 %v680
      %771 = vmatpush1.bf16.msra.mxu0 %v677
      %772 = vmatprep.subr.bf16.mxu0 0
      %773 = vmatpush1.bf16.msra.mxu0 0
      %774 = vmatprep.subr.bf16.mxu0 0
      %775 = vmatpush1.bf16.msra.mxu0 0
      %776 = vmatprep.subr.bf16.mxu0 0
      %777 = vmatpush1.bf16.msra.mxu0 0
      %778 = vmatprep.subr.bf16.mxu0 0
      %779 = vmatpush1.bf16.msra.mxu0 0
      %780 = vmatprep.subr.bf16.mxu0 0
      %781 = vmatpush1.bf16.msra.mxu0 0
      %782 = vmatprep.subr.bf16.mxu0 0
      %783 = vmatpush1.bf16.msra.mxu0 0
      %784 = vmatprep.subr.bf16.mxu0 0
      %785 = vmatpush1.bf16.msra.mxu0 0
      %786 = vmatprep.subr.bf16.mxu0 0
      %787 = vmatpush1.bf16.msra.mxu0 0
      %788 = vmatprep.subr.bf16.mxu0 0
      %789 = vmatpush1.bf16.msra.mxu0 0
      %790 = vmatprep.subr.bf16.mxu0 0
      %791 = vmatpush1.bf16.msra.mxu0 0
      %792 = vmatprep.subr.bf16.mxu0 0
      %793 = vmatpush1.bf16.msra.mxu0 0
      %794 = vmatprep.subr.bf16.mxu0 0
      %795 = vmatpush1.bf16.msra.mxu0 0
      %796 = vmatprep.subr.bf16.mxu0 0
      %797 = vmatpush1.bf16.msra.mxu0 0
      %798 = vmatprep.subr.bf16.mxu0 0
      %799 = vmatpush1.bf16.msra.mxu0 0
      %800 = vmatprep.subr.bf16.mxu0 0
      %801 = vmatpush1.bf16.msra.mxu0 0
      %802 = vmatprep.mubr.bf16.mxu0 0
      %803 = vmatmul.mubr.bf16.gmra.mrb[0].mxu0 %v662
      %v804 = vpop.f32.mrb[0].mxu0
      %v805 = vadd.f32 %v614, %v804
      %v806 = vpop.f32.mrb[0].mxu0
      %v807 = vadd.f32 %v616, %v806
      %v808 = vpop.f32.mrb[0].mxu0
      %v809 = vpop.f32.mrb[0].mxu0
      %810 = vdwg.mxu0
      %811 = vmatprep.subr.bf16.mxu0 %v686
      %812 = vmatpush1.bf16.msra.mxu0 %v683
      %813 = vmatprep.subr.bf16.mxu0 0
      %814 = vmatpush1.bf16.msra.mxu0 0
      %815 = vmatprep.subr.bf16.mxu0 0
      %816 = vmatpush1.bf16.msra.mxu0 0
      %817 = vmatprep.subr.bf16.mxu0 0
      %818 = vmatpush1.bf16.msra.mxu0 0
      %819 = vmatprep.subr.bf16.mxu0 0
      %820 = vmatpush1.bf16.msra.mxu0 0
      %821 = vmatprep.subr.bf16.mxu0 0
      %822 = vmatpush1.bf16.msra.mxu0 0
      %823 = vmatprep.subr.bf16.mxu0 0
      %824 = vmatpush1.bf16.msra.mxu0 0
      %825 = vmatprep.subr.bf16.mxu0 0
      %826 = vmatpush1.bf16.msra.mxu0 0
      %827 = vmatprep.subr.bf16.mxu0 0
      %828 = vmatpush1.bf16.msra.mxu0 0
      %829 = vmatprep.subr.bf16.mxu0 0
      %830 = vmatpush1.bf16.msra.mxu0 0
      %831 = vmatprep.subr.bf16.mxu0 0
      %832 = vmatpush1.bf16.msra.mxu0 0
      %833 = vmatprep.subr.bf16.mxu0 0
      %834 = vmatpush1.bf16.msra.mxu0 0
      %835 = vmatprep.subr.bf16.mxu0 0
      %836 = vmatpush1.bf16.msra.mxu0 0
      %837 = vmatprep.subr.bf16.mxu0 0
      %838 = vmatpush1.bf16.msra.mxu0 0
      %839 = vmatprep.subr.bf16.mxu0 0
      %840 = vmatpush1.bf16.msra.mxu0 0
      %841 = vmatprep.subr.bf16.mxu0 0
      %842 = vmatpush1.bf16.msra.mxu0 0
      %843 = vmatprep.mubr.bf16.mxu0 0
      %844 = vmatmul.mubr.bf16.gmra.mrb[0].mxu0 %v662
      %v845 = vpop.f32.mrb[0].mxu0
      %v846 = vadd.f32 %v655, %v845
      %v847 = vpop.f32.mrb[0].mxu0
      %v848 = vadd.f32 %v657, %v847
      %v849 = vpop.f32.mrb[0].mxu0
      %v850 = vpop.f32.mrb[0].mxu0
      %851 = vdwg.mxu0
      %s852 = scalar_lea.vmem %s1, 8
      %v853 = vld [vmem:[%s852] sm:$0xf]
      %854 = vrot.lane.b32.xlu0 %v432, 126
      %v855 = vpop.permute.xlu0 %854
      %856 = vrot.lane.b32.xlu0 %v433, 126
      %v857 = vpop.permute.xlu0 %856
      %858 = vrot.lane.b32.xlu0 %v434, 126
      %v859 = vpop.permute.xlu0 %858
      %860 = vrot.lane.b32.xlu0 %v435, 126
      %v861 = vpop.permute.xlu0 %860
      %862 = vrot.lane.b32.xlu0 %v436, 126
      %v863 = vpop.permute.xlu0 %862
      %864 = vrot.lane.b32.xlu0 %v437, 126
      %v865 = vpop.permute.xlu0 %864
      %866 = vrot.lane.b32.xlu0 %v438, 126
      %v867 = vpop.permute.xlu0 %866
      %868 = vrot.lane.b32.xlu0 %v439, 126
      %v869 = vpop.permute.xlu0 %868
      %870 = vrot.lane.b32.xlu0 %v440, 126
      %v871 = vpop.permute.xlu0 %870
      %vm872 = vcmask 1031168
      %v873 = vsel %vm872, %v855, %v857
      %v874 = vsel %vm872, %v857, %v859
      %v875 = vsel %vm872, %v859, %v861
      %v876 = vsel %vm872, %v861, %v863
      %v877 = vsel %vm872, %v863, %v865
      %v878 = vsel %vm872, %v865, %v867
      %v879 = vsel %vm872, %v867, %v869
      %v880 = vsel %vm872, %v869, %v871
      %v882 = vsel %vm468, %v853, 0
      %v885 = vsel %vm472, %v873, 0
      %v888 = vsel %vm472, %v874, 0
      %v891 = vsel %vm472, %v875, 0
      %v894 = vsel %vm472, %v876, 0
      %v897 = vsel %vm472, %v877, 0
      %v900 = vsel %vm472, %v878, 0
      %v903 = vsel %vm472, %v879, 0
      %v906 = vsel %vm472, %v880, 0
      %908 = vmatprep.subr.bf16.mxu0 %v888
      %909 = vmatpush1.bf16.msra.mxu0 %v885
      %910 = vmatprep.subr.bf16.mxu0 0
      %911 = vmatpush1.bf16.msra.mxu0 0
      %912 = vmatprep.subr.bf16.mxu0 0
      %913 = vmatpush1.bf16.msra.mxu0 0
      %914 = vmatprep.subr.bf16.mxu0 0
      %915 = vmatpush1.bf16.msra.mxu0 0
      %916 = vmatprep.subr.bf16.mxu0 0
      %917 = vmatpush1.bf16.msra.mxu0 0
      %918 = vmatprep.subr.bf16.mxu0 0
      %919 = vmatpush1.bf16.msra.mxu0 0
      %920 = vmatprep.subr.bf16.mxu0 0
      %921 = vmatpush1.bf16.msra.mxu0 0
      %922 = vmatprep.subr.bf16.mxu0 0
      %923 = vmatpush1.bf16.msra.mxu0 0
      %924 = vmatprep.subr.bf16.mxu0 0
      %925 = vmatpush1.bf16.msra.mxu0 0
      %926 = vmatprep.subr.bf16.mxu0 0
      %927 = vmatpush1.bf16.msra.mxu0 0
      %928 = vmatprep.subr.bf16.mxu0 0
      %929 = vmatpush1.bf16.msra.mxu0 0
      %930 = vmatprep.subr.bf16.mxu0 0
      %931 = vmatpush1.bf16.msra.mxu0 0
      %932 = vmatprep.subr.bf16.mxu0 0
      %933 = vmatpush1.bf16.msra.mxu0 0
      %934 = vmatprep.subr.bf16.mxu0 0
      %935 = vmatpush1.bf16.msra.mxu0 0
      %936 = vmatprep.subr.bf16.mxu0 0
      %937 = vmatpush1.bf16.msra.mxu0 0
      %938 = vmatprep.subr.bf16.mxu0 0
      %939 = vmatpush1.bf16.msra.mxu0 0
      %940 = vmatprep.mubr.bf16.mxu0 0
      %941 = vmatmul.mubr.bf16.gmra.mrb[0].mxu0 %v882
      %v942 = vpop.f32.mrb[0].mxu0
      %v943 = vadd.f32 0.0, %v942
      %v944 = vpop.f32.mrb[0].mxu0
      %v945 = vadd.f32 0.0, %v944
      %v946 = vpop.f32.mrb[0].mxu0
      %v947 = vpop.f32.mrb[0].mxu0
      %948 = vdwg.mxu0
      %949 = vmatprep.subr.bf16.mxu0 %v894
      %950 = vmatpush1.bf16.msra.mxu0 %v891
      %951 = vmatprep.subr.bf16.mxu0 0
      %952 = vmatpush1.bf16.msra.mxu0 0
      %953 = vmatprep.subr.bf16.mxu0 0
      %954 = vmatpush1.bf16.msra.mxu0 0
      %955 = vmatprep.subr.bf16.mxu0 0
      %956 = vmatpush1.bf16.msra.mxu0 0
      %957 = vmatprep.subr.bf16.mxu0 0
      %958 = vmatpush1.bf16.msra.mxu0 0
      %959 = vmatprep.subr.bf16.mxu0 0
      %960 = vmatpush1.bf16.msra.mxu0 0
      %961 = vmatprep.subr.bf16.mxu0 0
      %962 = vmatpush1.bf16.msra.mxu0 0
      %963 = vmatprep.subr.bf16.mxu0 0
      %964 = vmatpush1.bf16.msra.mxu0 0
      %965 = vmatprep.subr.bf16.mxu0 0
      %966 = vmatpush1.bf16.msra.mxu0 0
      %967 = vmatprep.subr.bf16.mxu0 0
      %968 = vmatpush1.bf16.msra.mxu0 0
      %969 = vmatprep.subr.bf16.mxu0 0
      %970 = vmatpush1.bf16.msra.mxu0 0
      %971 = vmatprep.subr.bf16.mxu0 0
      %972 = vmatpush1.bf16.msra.mxu0 0
      %973 = vmatprep.subr.bf16.mxu0 0
      %974 = vmatpush1.bf16.msra.mxu0 0
      %975 = vmatprep.subr.bf16.mxu0 0
      %976 = vmatpush1.bf16.msra.mxu0 0
      %977 = vmatprep.subr.bf16.mxu0 0
      %978 = vmatpush1.bf16.msra.mxu0 0
      %979 = vmatprep.subr.bf16.mxu0 0
      %980 = vmatpush1.bf16.msra.mxu0 0
      %981 = vmatprep.mubr.bf16.mxu0 0
      %982 = vmatmul.mubr.bf16.gmra.mrb[0].mxu0 %v882
      %v983 = vpop.f32.mrb[0].mxu0
      %v984 = vadd.f32 0.0, %v983
      %v985 = vpop.f32.mrb[0].mxu0
      %v986 = vadd.f32 0.0, %v985
      %v987 = vpop.f32.mrb[0].mxu0
      %v988 = vpop.f32.mrb[0].mxu0
      %989 = vdwg.mxu0
      %990 = vmatprep.subr.bf16.mxu0 %v900
      %991 = vmatpush1.bf16.msra.mxu0 %v897
      %992 = vmatprep.subr.bf16.mxu0 0
      %993 = vmatpush1.bf16.msra.mxu0 0
      %994 = vmatprep.subr.bf16.mxu0 0
      %995 = vmatpush1.bf16.msra.mxu0 0
      %996 = vmatprep.subr.bf16.mxu0 0
      %997 = vmatpush1.bf16.msra.mxu0 0
      %998 = vmatprep.subr.bf16.mxu0 0
      %999 = vmatpush1.bf16.msra.mxu0 0
      %1000 = vmatprep.subr.bf16.mxu0 0
      %1001 = vmatpush1.bf16.msra.mxu0 0
      %1002 = vmatprep.subr.bf16.mxu0 0
      %1003 = vmatpush1.bf16.msra.mxu0 0
      %1004 = vmatprep.subr.bf16.mxu0 0
      %1005 = vmatpush1.bf16.msra.mxu0 0
      %1006 = vmatprep.subr.bf16.mxu0 0
      %1007 = vmatpush1.bf16.msra.mxu0 0
      %1008 = vmatprep.subr.bf16.mxu0 0
      %1009 = vmatpush1.bf16.msra.mxu0 0
      %1010 = vmatprep.subr.bf16.mxu0 0
      %1011 = vmatpush1.bf16.msra.mxu0 0
      %1012 = vmatprep.subr.bf16.mxu0 0
      %1013 = vmatpush1.bf16.msra.mxu0 0
      %1014 = vmatprep.subr.bf16.mxu0 0
      %1015 = vmatpush1.bf16.msra.mxu0 0
      %1016 = vmatprep.subr.bf16.mxu0 0
      %1017 = vmatpush1.bf16.msra.mxu0 0
      %1018 = vmatprep.subr.bf16.mxu0 0
      %1019 = vmatpush1.bf16.msra.mxu0 0
      %1020 = vmatprep.subr.bf16.mxu0 0
      %1021 = vmatpush1.bf16.msra.mxu0 0
      %1022 = vmatprep.mubr.bf16.mxu0 0
      %1023 = vmatmul.mubr.bf16.gmra.mrb[0].mxu0 %v882
      %v1024 = vpop.f32.mrb[0].mxu0
      %v1025 = vadd.f32 0.0, %v1024
      %v1026 = vpop.f32.mrb[0].mxu0
      %v1027 = vadd.f32 0.0, %v1026
      %v1028 = vpop.f32.mrb[0].mxu0
      %v1029 = vpop.f32.mrb[0].mxu0
      %1030 = vdwg.mxu0
      %1031 = vmatprep.subr.bf16.mxu0 %v906
      %1032 = vmatpush1.bf16.msra.mxu0 %v903
      %1033 = vmatprep.subr.bf16.mxu0 0
      %1034 = vmatpush1.bf16.msra.mxu0 0
      %1035 = vmatprep.subr.bf16.mxu0 0
      %1036 = vmatpush1.bf16.msra.mxu0 0
      %1037 = vmatprep.subr.bf16.mxu0 0
      %1038 = vmatpush1.bf16.msra.mxu0 0
      %1039 = vmatprep.subr.bf16.mxu0 0
      %1040 = vmatpush1.bf16.msra.mxu0 0
      %1041 = vmatprep.subr.bf16.mxu0 0
      %1042 = vmatpush1.bf16.msra.mxu0 0
      %1043 = vmatprep.subr.bf16.mxu0 0
      %1044 = vmatpush1.bf16.msra.mxu0 0
      %1045 = vmatprep.subr.bf16.mxu0 0
      %1046 = vmatpush1.bf16.msra.mxu0 0
      %1047 = vmatprep.subr.bf16.mxu0 0
      %1048 = vmatpush1.bf16.msra.mxu0 0
      %1049 = vmatprep.subr.bf16.mxu0 0
      %1050 = vmatpush1.bf16.msra.mxu0 0
      %1051 = vmatprep.subr.bf16.mxu0 0
      %1052 = vmatpush1.bf16.msra.mxu0 0
      %1053 = vmatprep.subr.bf16.mxu0 0
      %1054 = vmatpush1.bf16.msra.mxu0 0
      %1055 = vmatprep.subr.bf16.mxu0 0
      %1056 = vmatpush1.bf16.msra.mxu0 0
      %1057 = vmatprep.subr.bf16.mxu0 0
      %1058 = vmatpush1.bf16.msra.mxu0 0
      %1059 = vmatprep.subr.bf16.mxu0 0
      %1060 = vmatpush1.bf16.msra.mxu0 0
      %1061 = vmatprep.subr.bf16.mxu0 0
      %1062 = vmatpush1.bf16.msra.mxu0 0
      %1063 = vmatprep.mubr.bf16.mxu0 0
      %1064 = vmatmul.mubr.bf16.gmra.mrb[0].mxu0 %v882
      %v1065 = vpop.f32.mrb[0].mxu0
      %v1066 = vadd.f32 0.0, %v1065
      %v1067 = vpop.f32.mrb[0].mxu0
      %v1068 = vadd.f32 0.0, %v1067
      %v1069 = vpop.f32.mrb[0].mxu0
      %v1070 = vpop.f32.mrb[0].mxu0
      %1071 = vdwg.mxu0
      %v1072 = vadd.f32 %v723, %v943
      %v1073 = vadd.f32 %v725, %v945
      %v1074 = vadd.f32 %v764, %v984
      %v1075 = vadd.f32 %v766, %v986
      %v1076 = vadd.f32 %v805, %v1025
      %v1077 = vadd.f32 %v807, %v1027
      %v1078 = vadd.f32 %v846, %v1066
      %v1079 = vadd.f32 %v848, %v1068
      %s1080 = scalar_lea.vmem %s1, 12
      %v1081 = vld [vmem:[%s1080] sm:$0xf]
      %1082 = vrot.lane.b32.xlu0 %v432, 125
      %v1083 = vpop.permute.xlu0 %1082
      %1084 = vrot.lane.b32.xlu0 %v433, 125
      %v1085 = vpop.permute.xlu0 %1084
      %1086 = vrot.lane.b32.xlu0 %v434, 125
      %v1087 = vpop.permute.xlu0 %1086
      %1088 = vrot.lane.b32.xlu0 %v435, 125
      %v1089 = vpop.permute.xlu0 %1088
      %1090 = vrot.lane.b32.xlu0 %v436, 125
      %v1091 = vpop.permute.xlu0 %1090
      %1092 = vrot.lane.b32.xlu0 %v437, 125
      %v1093 = vpop.permute.xlu0 %1092
      %1094 = vrot.lane.b32.xlu0 %v438, 125
      %v1095 = vpop.permute.xlu0 %1094
      %1096 = vrot.lane.b32.xlu0 %v439, 125
      %v1097 = vpop.permute.xlu0 %1096
      %1098 = vrot.lane.b32.xlu0 %v440, 125
      %v1099 = vpop.permute.xlu0 %1098
      %vm1100 = vcmask 1022976
      %v1101 = vsel %vm1100, %v1083, %v1085
      %v1102 = vsel %vm1100, %v1085, %v1087
      %v1103 = vsel %vm1100, %v1087, %v1089
      %v1104 = vsel %vm1100, %v1089, %v1091
      %v1105 = vsel %vm1100, %v1091, %v1093
      %v1106 = vsel %vm1100, %v1093, %v1095
      %v1107 = vsel %vm1100, %v1095, %v1097
      %v1108 = vsel %vm1100, %v1097, %v1099
      %v1110 = vsel %vm468, %v1081, 0
      %v1113 = vsel %vm472, %v1101, 0
      %v1116 = vsel %vm472, %v1102, 0
      %v1119 = vsel %vm472, %v1103, 0
      %v1122 = vsel %vm472, %v1104, 0
      %v1125 = vsel %vm472, %v1105, 0
      %v1128 = vsel %vm472, %v1106, 0
      %v1131 = vsel %vm472, %v1107, 0
      %v1134 = vsel %vm472, %v1108, 0
      %1136 = vmatprep.subr.bf16.mxu0 %v1116
      %1137 = vmatpush1.bf16.msra.mxu0 %v1113
      %1138 = vmatprep.subr.bf16.mxu0 0
      %1139 = vmatpush1.bf16.msra.mxu0 0
      %1140 = vmatprep.subr.bf16.mxu0 0
      %1141 = vmatpush1.bf16.msra.mxu0 0
      %1142 = vmatprep.subr.bf16.mxu0 0
      %1143 = vmatpush1.bf16.msra.mxu0 0
      %1144 = vmatprep.subr.bf16.mxu0 0
      %1145 = vmatpush1.bf16.msra.mxu0 0
      %1146 = vmatprep.subr.bf16.mxu0 0
      %1147 = vmatpush1.bf16.msra.mxu0 0
      %1148 = vmatprep.subr.bf16.mxu0 0
      %1149 = vmatpush1.bf16.msra.mxu0 0
      %1150 = vmatprep.subr.bf16.mxu0 0
      %1151 = vmatpush1.bf16.msra.mxu0 0
      %1152 = vmatprep.subr.bf16.mxu0 0
      %1153 = vmatpush1.bf16.msra.mxu0 0
      %1154 = vmatprep.subr.bf16.mxu0 0
      %1155 = vmatpush1.bf16.msra.mxu0 0
      %1156 = vmatprep.subr.bf16.mxu0 0
      %1157 = vmatpush1.bf16.msra.mxu0 0
      %1158 = vmatprep.subr.bf16.mxu0 0
      %1159 = vmatpush1.bf16.msra.mxu0 0
      %1160 = vmatprep.subr.bf16.mxu0 0
      %1161 = vmatpush1.bf16.msra.mxu0 0
      %1162 = vmatprep.subr.bf16.mxu0 0
      %1163 = vmatpush1.bf16.msra.mxu0 0
      %1164 = vmatprep.subr.bf16.mxu0 0
      %1165 = vmatpush1.bf16.msra.mxu0 0
      %1166 = vmatprep.subr.bf16.mxu0 0
      %1167 = vmatpush1.bf16.msra.mxu0 0
      %1168 = vmatprep.mubr.bf16.mxu0 0
      %1169 = vmatmul.mubr.bf16.gmra.mrb[0].mxu0 %v1110
      %v1170 = vpop.f32.mrb[0].mxu0
      %v1171 = vadd.f32 0.0, %v1170
      %v1172 = vpop.f32.mrb[0].mxu0
      %v1173 = vadd.f32 0.0, %v1172
      %v1174 = vpop.f32.mrb[0].mxu0
      %v1175 = vpop.f32.mrb[0].mxu0
      %1176 = vdwg.mxu0
      %1177 = vmatprep.subr.bf16.mxu0 %v1122
      %1178 = vmatpush1.bf16.msra.mxu0 %v1119
      %1179 = vmatprep.subr.bf16.mxu0 0
      %1180 = vmatpush1.bf16.msra.mxu0 0
      %1181 = vmatprep.subr.bf16.mxu0 0
      %1182 = vmatpush1.bf16.msra.mxu0 0
      %1183 = vmatprep.subr.bf16.mxu0 0
      %1184 = vmatpush1.bf16.msra.mxu0 0
      %1185 = vmatprep.subr.bf16.mxu0 0
      %1186 = vmatpush1.bf16.msra.mxu0 0
      %1187 = vmatprep.subr.bf16.mxu0 0
      %1188 = vmatpush1.bf16.msra.mxu0 0
      %1189 = vmatprep.subr.bf16.mxu0 0
      %1190 = vmatpush1.bf16.msra.mxu0 0
      %1191 = vmatprep.subr.bf16.mxu0 0
      %1192 = vmatpush1.bf16.msra.mxu0 0
      %1193 = vmatprep.subr.bf16.mxu0 0
      %1194 = vmatpush1.bf16.msra.mxu0 0
      %1195 = vmatprep.subr.bf16.mxu0 0
      %1196 = vmatpush1.bf16.msra.mxu0 0
      %1197 = vmatprep.subr.bf16.mxu0 0
      %1198 = vmatpush1.bf16.msra.mxu0 0
      %1199 = vmatprep.subr.bf16.mxu0 0
      %1200 = vmatpush1.bf16.msra.mxu0 0
      %1201 = vmatprep.subr.bf16.mxu0 0
      %1202 = vmatpush1.bf16.msra.mxu0 0
      %1203 = vmatprep.subr.bf16.mxu0 0
      %1204 = vmatpush1.bf16.msra.mxu0 0
      %1205 = vmatprep.subr.bf16.mxu0 0
      %1206 = vmatpush1.bf16.msra.mxu0 0
      %1207 = vmatprep.subr.bf16.mxu0 0
      %1208 = vmatpush1.bf16.msra.mxu0 0
      %1209 = vmatprep.mubr.bf16.mxu0 0
      %1210 = vmatmul.mubr.bf16.gmra.mrb[0].mxu0 %v1110
      %v1211 = vpop.f32.mrb[0].mxu0
      %v1212 = vadd.f32 0.0, %v1211
      %v1213 = vpop.f32.mrb[0].mxu0
      %v1214 = vadd.f32 0.0, %v1213
      %v1215 = vpop.f32.mrb[0].mxu0
      %v1216 = vpop.f32.mrb[0].mxu0
      %1217 = vdwg.mxu0
      %1218 = vmatprep.subr.bf16.mxu0 %v1128
      %1219 = vmatpush1.bf16.msra.mxu0 %v1125
      %1220 = vmatprep.subr.bf16.mxu0 0
      %1221 = vmatpush1.bf16.msra.mxu0 0
      %1222 = vmatprep.subr.bf16.mxu0 0
      %1223 = vmatpush1.bf16.msra.mxu0 0
      %1224 = vmatprep.subr.bf16.mxu0 0
      %1225 = vmatpush1.bf16.msra.mxu0 0
      %1226 = vmatprep.subr.bf16.mxu0 0
      %1227 = vmatpush1.bf16.msra.mxu0 0
      %1228 = vmatprep.subr.bf16.mxu0 0
      %1229 = vmatpush1.bf16.msra.mxu0 0
      %1230 = vmatprep.subr.bf16.mxu0 0
      %1231 = vmatpush1.bf16.msra.mxu0 0
      %1232 = vmatprep.subr.bf16.mxu0 0
      %1233 = vmatpush1.bf16.msra.mxu0 0
      %1234 = vmatprep.subr.bf16.mxu0 0
      %1235 = vmatpush1.bf16.msra.mxu0 0
      %1236 = vmatprep.subr.bf16.mxu0 0
      %1237 = vmatpush1.bf16.msra.mxu0 0
      %1238 = vmatprep.subr.bf16.mxu0 0
      %1239 = vmatpush1.bf16.msra.mxu0 0
      %1240 = vmatprep.subr.bf16.mxu0 0
      %1241 = vmatpush1.bf16.msra.mxu0 0
      %1242 = vmatprep.subr.bf16.mxu0 0
      %1243 = vmatpush1.bf16.msra.mxu0 0
      %1244 = vmatprep.subr.bf16.mxu0 0
      %1245 = vmatpush1.bf16.msra.mxu0 0
      %1246 = vmatprep.subr.bf16.mxu0 0
      %1247 = vmatpush1.bf16.msra.mxu0 0
      %1248 = vmatprep.subr.bf16.mxu0 0
      %1249 = vmatpush1.bf16.msra.mxu0 0
      %1250 = vmatprep.mubr.bf16.mxu0 0
      %1251 = vmatmul.mubr.bf16.gmra.mrb[0].mxu0 %v1110
      %v1252 = vpop.f32.mrb[0].mxu0
      %v1253 = vadd.f32 0.0, %v1252
      %v1254 = vpop.f32.mrb[0].mxu0
      %v1255 = vadd.f32 0.0, %v1254
      %v1256 = vpop.f32.mrb[0].mxu0
      %v1257 = vpop.f32.mrb[0].mxu0
      %1258 = vdwg.mxu0
      %1259 = vmatprep.subr.bf16.mxu0 %v1134
      %1260 = vmatpush1.bf16.msra.mxu0 %v1131
      %1261 = vmatprep.subr.bf16.mxu0 0
      %1262 = vmatpush1.bf16.msra.mxu0 0
      %1263 = vmatprep.subr.bf16.mxu0 0
      %1264 = vmatpush1.bf16.msra.mxu0 0
      %1265 = vmatprep.subr.bf16.mxu0 0
      %1266 = vmatpush1.bf16.msra.mxu0 0
      %1267 = vmatprep.subr.bf16.mxu0 0
      %1268 = vmatpush1.bf16.msra.mxu0 0
      %1269 = vmatprep.subr.bf16.mxu0 0
      %1270 = vmatpush1.bf16.msra.mxu0 0
      %1271 = vmatprep.subr.bf16.mxu0 0
      %1272 = vmatpush1.bf16.msra.mxu0 0
      %1273 = vmatprep.subr.bf16.mxu0 0
      %1274 = vmatpush1.bf16.msra.mxu0 0
      %1275 = vmatprep.subr.bf16.mxu0 0
      %1276 = vmatpush1.bf16.msra.mxu0 0
      %1277 = vmatprep.subr.bf16.mxu0 0
      %1278 = vmatpush1.bf16.msra.mxu0 0
      %1279 = vmatprep.subr.bf16.mxu0 0
      %1280 = vmatpush1.bf16.msra.mxu0 0
      %1281 = vmatprep.subr.bf16.mxu0 0
      %1282 = vmatpush1.bf16.msra.mxu0 0
      %1283 = vmatprep.subr.bf16.mxu0 0
      %1284 = vmatpush1.bf16.msra.mxu0 0
      %1285 = vmatprep.subr.bf16.mxu0 0
      %1286 = vmatpush1.bf16.msra.mxu0 0
      %1287 = vmatprep.subr.bf16.mxu0 0
      %1288 = vmatpush1.bf16.msra.mxu0 0
      %1289 = vmatprep.subr.bf16.mxu0 0
      %1290 = vmatpush1.bf16.msra.mxu0 0
      %1291 = vmatprep.mubr.bf16.mxu0 0
      %1292 = vmatmul.mubr.bf16.gmra.mrb[0].mxu0 %v1110
      %v1293 = vpop.f32.mrb[0].mxu0
      %v1294 = vadd.f32 0.0, %v1293
      %v1295 = vpop.f32.mrb[0].mxu0
      %v1296 = vadd.f32 0.0, %v1295
      %v1297 = vpop.f32.mrb[0].mxu0
      %v1298 = vpop.f32.mrb[0].mxu0
      %1299 = vdwg.mxu0
      %v1300 = vadd.f32 %v1072, %v1171
      %v1301 = vadd.f32 %v1073, %v1173
      %v1302 = vadd.f32 %v1074, %v1212
      %v1303 = vadd.f32 %v1075, %v1214
      %v1304 = vadd.f32 %v1076, %v1253
      %v1305 = vadd.f32 %v1077, %v1255
      %v1306 = vadd.f32 %v1078, %v1294
      %v1307 = vadd.f32 %v1079, %v1296
      %s1308 = scalar_lea.vmem %s1, 16
      %v1309 = vld [vmem:[%s1308] sm:$0xf]
      %1310 = vrot.lane.b32.xlu0 %v432, 124
      %v1311 = vpop.permute.xlu0 %1310
      %1312 = vrot.lane.b32.xlu0 %v433, 124
      %v1313 = vpop.permute.xlu0 %1312
      %1314 = vrot.lane.b32.xlu0 %v434, 124
      %v1315 = vpop.permute.xlu0 %1314
      %1316 = vrot.lane.b32.xlu0 %v435, 124
      %v1317 = vpop.permute.xlu0 %1316
      %1318 = vrot.lane.b32.xlu0 %v436, 124
      %v1319 = vpop.permute.xlu0 %1318
      %1320 = vrot.lane.b32.xlu0 %v437, 124
      %v1321 = vpop.permute.xlu0 %1320
      %1322 = vrot.lane.b32.xlu0 %v438, 124
      %v1323 = vpop.permute.xlu0 %1322
      %1324 = vrot.lane.b32.xlu0 %v439, 124
      %v1325 = vpop.permute.xlu0 %1324
      %1326 = vrot.lane.b32.xlu0 %v440, 124
      %v1327 = vpop.permute.xlu0 %1326
      %vm1328 = vcmask 1014784
      %v1329 = vsel %vm1328, %v1311, %v1313
      %v1330 = vsel %vm1328, %v1313, %v1315
      %v1331 = vsel %vm1328, %v1315, %v1317
      %v1332 = vsel %vm1328, %v1317, %v1319
      %v1333 = vsel %vm1328, %v1319, %v1321
      %v1334 = vsel %vm1328, %v1321, %v1323
      %v1335 = vsel %vm1328, %v1323, %v1325
      %v1336 = vsel %vm1328, %v1325, %v1327
      %v1338 = vsel %vm468, %v1309, 0
      %v1341 = vsel %vm472, %v1329, 0
      %v1344 = vsel %vm472, %v1330, 0
      %v1347 = vsel %vm472, %v1331, 0
      %v1350 = vsel %vm472, %v1332, 0
      %v1353 = vsel %vm472, %v1333, 0
      %v1356 = vsel %vm472, %v1334, 0
      %v1359 = vsel %vm472, %v1335, 0
      %v1362 = vsel %vm472, %v1336, 0
      %1364 = vmatprep.subr.bf16.mxu0 %v1344
      %1365 = vmatpush1.bf16.msra.mxu0 %v1341
      %1366 = vmatprep.subr.bf16.mxu0 0
      %1367 = vmatpush1.bf16.msra.mxu0 0
      %1368 = vmatprep.subr.bf16.mxu0 0
      %1369 = vmatpush1.bf16.msra.mxu0 0
      %1370 = vmatprep.subr.bf16.mxu0 0
      %1371 = vmatpush1.bf16.msra.mxu0 0
      %1372 = vmatprep.subr.bf16.mxu0 0
      %1373 = vmatpush1.bf16.msra.mxu0 0
      %1374 = vmatprep.subr.bf16.mxu0 0
      %1375 = vmatpush1.bf16.msra.mxu0 0
      %1376 = vmatprep.subr.bf16.mxu0 0
      %1377 = vmatpush1.bf16.msra.mxu0 0
      %1378 = vmatprep.subr.bf16.mxu0 0
      %1379 = vmatpush1.bf16.msra.mxu0 0
      %1380 = vmatprep.subr.bf16.mxu0 0
      %1381 = vmatpush1.bf16.msra.mxu0 0
      %1382 = vmatprep.subr.bf16.mxu0 0
      %1383 = vmatpush1.bf16.msra.mxu0 0
      %1384 = vmatprep.subr.bf16.mxu0 0
      %1385 = vmatpush1.bf16.msra.mxu0 0
      %1386 = vmatprep.subr.bf16.mxu0 0
      %1387 = vmatpush1.bf16.msra.mxu0 0
      %1388 = vmatprep.subr.bf16.mxu0 0
      %1389 = vmatpush1.bf16.msra.mxu0 0
      %1390 = vmatprep.subr.bf16.mxu0 0
      %1391 = vmatpush1.bf16.msra.mxu0 0
      %1392 = vmatprep.subr.bf16.mxu0 0
      %1393 = vmatpush1.bf16.msra.mxu0 0
      %1394 = vmatprep.subr.bf16.mxu0 0
      %1395 = vmatpush1.bf16.msra.mxu0 0
      %1396 = vmatprep.mubr.bf16.mxu0 0
      %1397 = vmatmul.mubr.bf16.gmra.mrb[0].mxu0 %v1338
      %v1398 = vpop.f32.mrb[0].mxu0
      %v1399 = vadd.f32 0.0, %v1398
      %v1400 = vpop.f32.mrb[0].mxu0
      %v1401 = vadd.f32 0.0, %v1400
      %v1402 = vpop.f32.mrb[0].mxu0
      %v1403 = vpop.f32.mrb[0].mxu0
      %1404 = vdwg.mxu0
      %1405 = vmatprep.subr.bf16.mxu0 %v1350
      %1406 = vmatpush1.bf16.msra.mxu0 %v1347
      %1407 = vmatprep.subr.bf16.mxu0 0
      %1408 = vmatpush1.bf16.msra.mxu0 0
      %1409 = vmatprep.subr.bf16.mxu0 0
      %1410 = vmatpush1.bf16.msra.mxu0 0
      %1411 = vmatprep.subr.bf16.mxu0 0
      %1412 = vmatpush1.bf16.msra.mxu0 0
      %1413 = vmatprep.subr.bf16.mxu0 0
      %1414 = vmatpush1.bf16.msra.mxu0 0
      %1415 = vmatprep.subr.bf16.mxu0 0
      %1416 = vmatpush1.bf16.msra.mxu0 0
      %1417 = vmatprep.subr.bf16.mxu0 0
      %1418 = vmatpush1.bf16.msra.mxu0 0
      %1419 = vmatprep.subr.bf16.mxu0 0
      %1420 = vmatpush1.bf16.msra.mxu0 0
      %1421 = vmatprep.subr.bf16.mxu0 0
      %1422 = vmatpush1.bf16.msra.mxu0 0
      %1423 = vmatprep.subr.bf16.mxu0 0
      %1424 = vmatpush1.bf16.msra.mxu0 0
      %1425 = vmatprep.subr.bf16.mxu0 0
      %1426 = vmatpush1.bf16.msra.mxu0 0
      %1427 = vmatprep.subr.bf16.mxu0 0
      %1428 = vmatpush1.bf16.msra.mxu0 0
      %1429 = vmatprep.subr.bf16.mxu0 0
      %1430 = vmatpush1.bf16.msra.mxu0 0
      %1431 = vmatprep.subr.bf16.mxu0 0
      %1432 = vmatpush1.bf16.msra.mxu0 0
      %1433 = vmatprep.subr.bf16.mxu0 0
      %1434 = vmatpush1.bf16.msra.mxu0 0
      %1435 = vmatprep.subr.bf16.mxu0 0
      %1436 = vmatpush1.bf16.msra.mxu0 0
      %1437 = vmatprep.mubr.bf16.mxu0 0
      %1438 = vmatmul.mubr.bf16.gmra.mrb[0].mxu0 %v1338
      %v1439 = vpop.f32.mrb[0].mxu0
      %v1440 = vadd.f32 0.0, %v1439
      %v1441 = vpop.f32.mrb[0].mxu0
      %v1442 = vadd.f32 0.0, %v1441
      %v1443 = vpop.f32.mrb[0].mxu0
      %v1444 = vpop.f32.mrb[0].mxu0
      %1445 = vdwg.mxu0
      %1446 = vmatprep.subr.bf16.mxu0 %v1356
      %1447 = vmatpush1.bf16.msra.mxu0 %v1353
      %1448 = vmatprep.subr.bf16.mxu0 0
      %1449 = vmatpush1.bf16.msra.mxu0 0
      %1450 = vmatprep.subr.bf16.mxu0 0
      %1451 = vmatpush1.bf16.msra.mxu0 0
      %1452 = vmatprep.subr.bf16.mxu0 0
      %1453 = vmatpush1.bf16.msra.mxu0 0
      %1454 = vmatprep.subr.bf16.mxu0 0
      %1455 = vmatpush1.bf16.msra.mxu0 0
      %1456 = vmatprep.subr.bf16.mxu0 0
      %1457 = vmatpush1.bf16.msra.mxu0 0
      %1458 = vmatprep.subr.bf16.mxu0 0
      %1459 = vmatpush1.bf16.msra.mxu0 0
      %1460 = vmatprep.subr.bf16.mxu0 0
      %1461 = vmatpush1.bf16.msra.mxu0 0
      %1462 = vmatprep.subr.bf16.mxu0 0
      %1463 = vmatpush1.bf16.msra.mxu0 0
      %1464 = vmatprep.subr.bf16.mxu0 0
      %1465 = vmatpush1.bf16.msra.mxu0 0
      %1466 = vmatprep.subr.bf16.mxu0 0
      %1467 = vmatpush1.bf16.msra.mxu0 0
      %1468 = vmatprep.subr.bf16.mxu0 0
      %1469 = vmatpush1.bf16.msra.mxu0 0
      %1470 = vmatprep.subr.bf16.mxu0 0
      %1471 = vmatpush1.bf16.msra.mxu0 0
      %1472 = vmatprep.subr.bf16.mxu0 0
      %1473 = vmatpush1.bf16.msra.mxu0 0
      %1474 = vmatprep.subr.bf16.mxu0 0
      %1475 = vmatpush1.bf16.msra.mxu0 0
      %1476 = vmatprep.subr.bf16.mxu0 0
      %1477 = vmatpush1.bf16.msra.mxu0 0
      %1478 = vmatprep.mubr.bf16.mxu0 0
      %1479 = vmatmul.mubr.bf16.gmra.mrb[0].mxu0 %v1338
      %v1480 = vpop.f32.mrb[0].mxu0
      %v1481 = vadd.f32 0.0, %v1480
      %v1482 = vpop.f32.mrb[0].mxu0
      %v1483 = vadd.f32 0.0, %v1482
      %v1484 = vpop.f32.mrb[0].mxu0
      %v1485 = vpop.f32.mrb[0].mxu0
      %1486 = vdwg.mxu0
      %1487 = vmatprep.subr.bf16.mxu0 %v1362
      %1488 = vmatpush1.bf16.msra.mxu0 %v1359
      %1489 = vmatprep.subr.bf16.mxu0 0
      %1490 = vmatpush1.bf16.msra.mxu0 0
      %1491 = vmatprep.subr.bf16.mxu0 0
      %1492 = vmatpush1.bf16.msra.mxu0 0
      %1493 = vmatprep.subr.bf16.mxu0 0
      %1494 = vmatpush1.bf16.msra.mxu0 0
      %1495 = vmatprep.subr.bf16.mxu0 0
      %1496 = vmatpush1.bf16.msra.mxu0 0
      %1497 = vmatprep.subr.bf16.mxu0 0
      %1498 = vmatpush1.bf16.msra.mxu0 0
      %1499 = vmatprep.subr.bf16.mxu0 0
      %1500 = vmatpush1.bf16.msra.mxu0 0
      %1501 = vmatprep.subr.bf16.mxu0 0
      %1502 = vmatpush1.bf16.msra.mxu0 0
      %1503 = vmatprep.subr.bf16.mxu0 0
      %1504 = vmatpush1.bf16.msra.mxu0 0
      %1505 = vmatprep.subr.bf16.mxu0 0
      %1506 = vmatpush1.bf16.msra.mxu0 0
      %1507 = vmatprep.subr.bf16.mxu0 0
      %1508 = vmatpush1.bf16.msra.mxu0 0
      %1509 = vmatprep.subr.bf16.mxu0 0
      %1510 = vmatpush1.bf16.msra.mxu0 0
      %1511 = vmatprep.subr.bf16.mxu0 0
      %1512 = vmatpush1.bf16.msra.mxu0 0
      %1513 = vmatprep.subr.bf16.mxu0 0
      %1514 = vmatpush1.bf16.msra.mxu0 0
      %1515 = vmatprep.subr.bf16.mxu0 0
      %1516 = vmatpush1.bf16.msra.mxu0 0
      %1517 = vmatprep.subr.bf16.mxu0 0
      %1518 = vmatpush1.bf16.msra.mxu0 0
      %1519 = vmatprep.mubr.bf16.mxu0 0
      %1520 = vmatmul.mubr.bf16.gmra.mrb[0].mxu0 %v1338
      %v1521 = vpop.f32.mrb[0].mxu0
      %v1522 = vadd.f32 0.0, %v1521
      %v1523 = vpop.f32.mrb[0].mxu0
      %v1524 = vadd.f32 0.0, %v1523
      %v1525 = vpop.f32.mrb[0].mxu0
      %v1526 = vpop.f32.mrb[0].mxu0
      %1527 = vdwg.mxu0
      %v1528 = vadd.f32 %v1300, %v1399
      %v1529 = vadd.f32 %v1301, %v1401
      %v1530 = vadd.f32 %v1302, %v1440
      %v1531 = vadd.f32 %v1303, %v1442
      %v1532 = vadd.f32 %v1304, %v1481
      %v1533 = vadd.f32 %v1305, %v1483
      %v1534 = vadd.f32 %v1306, %v1522
      %v1535 = vadd.f32 %v1307, %v1524
      %s1536 = scalar_lea.vmem %s1, 20
      %v1537 = vld [vmem:[%s1536] sm:$0xf]
      %1538 = vrot.lane.b32.xlu0 %v432, 96
      %v1539 = vpop.permute.xlu0 %1538
      %1540 = vrot.lane.b32.xlu0 %v433, 96
      %v1541 = vpop.permute.xlu0 %1540
      %1542 = vrot.lane.b32.xlu0 %v434, 96
      %v1543 = vpop.permute.xlu0 %1542
      %1544 = vrot.lane.b32.xlu0 %v435, 96
      %v1545 = vpop.permute.xlu0 %1544
      %1546 = vrot.lane.b32.xlu0 %v436, 96
      %v1547 = vpop.permute.xlu0 %1546
      %1548 = vrot.lane.b32.xlu0 %v437, 96
      %v1549 = vpop.permute.xlu0 %1548
      %1550 = vrot.lane.b32.xlu0 %v438, 96
      %v1551 = vpop.permute.xlu0 %1550
      %1552 = vrot.lane.b32.xlu0 %v439, 96
      %v1553 = vpop.permute.xlu0 %1552
      %1554 = vrot.lane.b32.xlu0 %v440, 96
      %v1555 = vpop.permute.xlu0 %1554
      %vm1556 = vcmask 785408
      %v1557 = vsel %vm1556, %v1539, %v1541
      %v1558 = vsel %vm1556, %v1541, %v1543
      %v1559 = vsel %vm1556, %v1543, %v1545
      %v1560 = vsel %vm1556, %v1545, %v1547
      %v1561 = vsel %vm1556, %v1547, %v1549
      %v1562 = vsel %vm1556, %v1549, %v1551
      %v1563 = vsel %vm1556, %v1551, %v1553
      %v1564 = vsel %vm1556, %v1553, %v1555
      %v1566 = vsel %vm468, %v1537, 0
      %v1569 = vsel %vm472, %v1557, 0
      %v1572 = vsel %vm472, %v1558, 0
      %v1575 = vsel %vm472, %v1559, 0
      %v1578 = vsel %vm472, %v1560, 0
      %v1581 = vsel %vm472, %v1561, 0
      %v1584 = vsel %vm472, %v1562, 0
      %v1587 = vsel %vm472, %v1563, 0
      %v1590 = vsel %vm472, %v1564, 0
      %1592 = vmatprep.subr.bf16.mxu0 %v1572
      %1593 = vmatpush1.bf16.msra.mxu0 %v1569
      %1594 = vmatprep.subr.bf16.mxu0 0
      %1595 = vmatpush1.bf16.msra.mxu0 0
      %1596 = vmatprep.subr.bf16.mxu0 0
      %1597 = vmatpush1.bf16.msra.mxu0 0
      %1598 = vmatprep.subr.bf16.mxu0 0
      %1599 = vmatpush1.bf16.msra.mxu0 0
      %1600 = vmatprep.subr.bf16.mxu0 0
      %1601 = vmatpush1.bf16.msra.mxu0 0
      %1602 = vmatprep.subr.bf16.mxu0 0
      %1603 = vmatpush1.bf16.msra.mxu0 0
      %1604 = vmatprep.subr.bf16.mxu0 0
      %1605 = vmatpush1.bf16.msra.mxu0 0
      %1606 = vmatprep.subr.bf16.mxu0 0
      %1607 = vmatpush1.bf16.msra.mxu0 0
      %1608 = vmatprep.subr.bf16.mxu0 0
      %1609 = vmatpush1.bf16.msra.mxu0 0
      %1610 = vmatprep.subr.bf16.mxu0 0
      %1611 = vmatpush1.bf16.msra.mxu0 0
      %1612 = vmatprep.subr.bf16.mxu0 0
      %1613 = vmatpush1.bf16.msra.mxu0 0
      %1614 = vmatprep.subr.bf16.mxu0 0
      %1615 = vmatpush1.bf16.msra.mxu0 0
      %1616 = vmatprep.subr.bf16.mxu0 0
      %1617 = vmatpush1.bf16.msra.mxu0 0
      %1618 = vmatprep.subr.bf16.mxu0 0
      %1619 = vmatpush1.bf16.msra.mxu0 0
      %1620 = vmatprep.subr.bf16.mxu0 0
      %1621 = vmatpush1.bf16.msra.mxu0 0
      %1622 = vmatprep.subr.bf16.mxu0 0
      %1623 = vmatpush1.bf16.msra.mxu0 0
      %1624 = vmatprep.mubr.bf16.mxu0 0
      %1625 = vmatmul.mubr.bf16.gmra.mrb[0].mxu0 %v1566
      %v1626 = vpop.f32.mrb[0].mxu0
      %v1627 = vadd.f32 0.0, %v1626
      %v1628 = vpop.f32.mrb[0].mxu0
      %v1629 = vadd.f32 0.0, %v1628
      %v1630 = vpop.f32.mrb[0].mxu0
      %v1631 = vpop.f32.mrb[0].mxu0
      %1632 = vdwg.mxu0
      %1633 = vmatprep.subr.bf16.mxu0 %v1578
      %1634 = vmatpush1.bf16.msra.mxu0 %v1575
      %1635 = vmatprep.subr.bf16.mxu0 0
      %1636 = vmatpush1.bf16.msra.mxu0 0
      %1637 = vmatprep.subr.bf16.mxu0 0
      %1638 = vmatpush1.bf16.msra.mxu0 0
      %1639 = vmatprep.subr.bf16.mxu0 0
      %1640 = vmatpush1.bf16.msra.mxu0 0
      %1641 = vmatprep.subr.bf16.mxu0 0
      %1642 = vmatpush1.bf16.msra.mxu0 0
      %1643 = vmatprep.subr.bf16.mxu0 0
      %1644 = vmatpush1.bf16.msra.mxu0 0
      %1645 = vmatprep.subr.bf16.mxu0 0
      %1646 = vmatpush1.bf16.msra.mxu0 0
      %1647 = vmatprep.subr.bf16.mxu0 0
      %1648 = vmatpush1.bf16.msra.mxu0 0
      %1649 = vmatprep.subr.bf16.mxu0 0
      %1650 = vmatpush1.bf16.msra.mxu0 0
      %1651 = vmatprep.subr.bf16.mxu0 0
      %1652 = vmatpush1.bf16.msra.mxu0 0
      %1653 = vmatprep.subr.bf16.mxu0 0
      %1654 = vmatpush1.bf16.msra.mxu0 0
      %1655 = vmatprep.subr.bf16.mxu0 0
      %1656 = vmatpush1.bf16.msra.mxu0 0
      %1657 = vmatprep.subr.bf16.mxu0 0
      %1658 = vmatpush1.bf16.msra.mxu0 0
      %1659 = vmatprep.subr.bf16.mxu0 0
      %1660 = vmatpush1.bf16.msra.mxu0 0
      %1661 = vmatprep.subr.bf16.mxu0 0
      %1662 = vmatpush1.bf16.msra.mxu0 0
      %1663 = vmatprep.subr.bf16.mxu0 0
      %1664 = vmatpush1.bf16.msra.mxu0 0
      %1665 = vmatprep.mubr.bf16.mxu0 0
      %1666 = vmatmul.mubr.bf16.gmra.mrb[0].mxu0 %v1566
      %v1667 = vpop.f32.mrb[0].mxu0
      %v1668 = vadd.f32 0.0, %v1667
      %v1669 = vpop.f32.mrb[0].mxu0
      %v1670 = vadd.f32 0.0, %v1669
      %v1671 = vpop.f32.mrb[0].mxu0
      %v1672 = vpop.f32.mrb[0].mxu0
      %1673 = vdwg.mxu0
      %1674 = vmatprep.subr.bf16.mxu0 %v1584
      %1675 = vmatpush1.bf16.msra.mxu0 %v1581
      %1676 = vmatprep.subr.bf16.mxu0 0
      %1677 = vmatpush1.bf16.msra.mxu0 0
      %1678 = vmatprep.subr.bf16.mxu0 0
      %1679 = vmatpush1.bf16.msra.mxu0 0
      %1680 = vmatprep.subr.bf16.mxu0 0
      %1681 = vmatpush1.bf16.msra.mxu0 0
      %1682 = vmatprep.subr.bf16.mxu0 0
      %1683 = vmatpush1.bf16.msra.mxu0 0
      %1684 = vmatprep.subr.bf16.mxu0 0
      %1685 = vmatpush1.bf16.msra.mxu0 0
      %1686 = vmatprep.subr.bf16.mxu0 0
      %1687 = vmatpush1.bf16.msra.mxu0 0
      %1688 = vmatprep.subr.bf16.mxu0 0
      %1689 = vmatpush1.bf16.msra.mxu0 0
      %1690 = vmatprep.subr.bf16.mxu0 0
      %1691 = vmatpush1.bf16.msra.mxu0 0
      %1692 = vmatprep.subr.bf16.mxu0 0
      %1693 = vmatpush1.bf16.msra.mxu0 0
      %1694 = vmatprep.subr.bf16.mxu0 0
      %1695 = vmatpush1.bf16.msra.mxu0 0
      %1696 = vmatprep.subr.bf16.mxu0 0
      %1697 = vmatpush1.bf16.msra.mxu0 0
      %1698 = vmatprep.subr.bf16.mxu0 0
      %1699 = vmatpush1.bf16.msra.mxu0 0
      %1700 = vmatprep.subr.bf16.mxu0 0
      %1701 = vmatpush1.bf16.msra.mxu0 0
      %1702 = vmatprep.subr.bf16.mxu0 0
      %1703 = vmatpush1.bf16.msra.mxu0 0
      %1704 = vmatprep.subr.bf16.mxu0 0
      %1705 = vmatpush1.bf16.msra.mxu0 0
      %1706 = vmatprep.mubr.bf16.mxu0 0
      %1707 = vmatmul.mubr.bf16.gmra.mrb[0].mxu0 %v1566
      %v1708 = vpop.f32.mrb[0].mxu0
      %v1709 = vadd.f32 0.0, %v1708
      %v1710 = vpop.f32.mrb[0].mxu0
      %v1711 = vadd.f32 0.0, %v1710
      %v1712 = vpop.f32.mrb[0].mxu0
      %v1713 = vpop.f32.mrb[0].mxu0
      %1714 = vdwg.mxu0
      %1715 = vmatprep.subr.bf16.mxu0 %v1590
      %1716 = vmatpush1.bf16.msra.mxu0 %v1587
      %1717 = vmatprep.subr.bf16.mxu0 0
      %1718 = vmatpush1.bf16.msra.mxu0 0
      %1719 = vmatprep.subr.bf16.mxu0 0
      %1720 = vmatpush1.bf16.msra.mxu0 0
      %1721 = vmatprep.subr.bf16.mxu0 0
      %1722 = vmatpush1.bf16.msra.mxu0 0
      %1723 = vmatprep.subr.bf16.mxu0 0
      %1724 = vmatpush1.bf16.msra.mxu0 0
      %1725 = vmatprep.subr.bf16.mxu0 0
      %1726 = vmatpush1.bf16.msra.mxu0 0
      %1727 = vmatprep.subr.bf16.mxu0 0
      %1728 = vmatpush1.bf16.msra.mxu0 0
      %1729 = vmatprep.subr.bf16.mxu0 0
      %1730 = vmatpush1.bf16.msra.mxu0 0
      %1731 = vmatprep.subr.bf16.mxu0 0
      %1732 = vmatpush1.bf16.msra.mxu0 0
      %1733 = vmatprep.subr.bf16.mxu0 0
      %1734 = vmatpush1.bf16.msra.mxu0 0
      %1735 = vmatprep.subr.bf16.mxu0 0
      %1736 = vmatpush1.bf16.msra.mxu0 0
      %1737 = vmatprep.subr.bf16.mxu0 0
      %1738 = vmatpush1.bf16.msra.mxu0 0
      %1739 = vmatprep.subr.bf16.mxu0 0
      %1740 = vmatpush1.bf16.msra.mxu0 0
      %1741 = vmatprep.subr.bf16.mxu0 0
      %1742 = vmatpush1.bf16.msra.mxu0 0
      %1743 = vmatprep.subr.bf16.mxu0 0
      %1744 = vmatpush1.bf16.msra.mxu0 0
      %1745 = vmatprep.subr.bf16.mxu0 0
      %1746 = vmatpush1.bf16.msra.mxu0 0
      %1747 = vmatprep.mubr.bf16.mxu0 0
      %1748 = vmatmul.mubr.bf16.gmra.mrb[0].mxu0 %v1566
      %v1749 = vpop.f32.mrb[0].mxu0
      %v1750 = vadd.f32 0.0, %v1749
      %v1751 = vpop.f32.mrb[0].mxu0
      %v1752 = vadd.f32 0.0, %v1751
      %v1753 = vpop.f32.mrb[0].mxu0
      %v1754 = vpop.f32.mrb[0].mxu0
      %1755 = vdwg.mxu0
      %v1756 = vadd.f32 %v1528, %v1627
      %v1757 = vadd.f32 %v1529, %v1629
      %v1758 = vadd.f32 %v1530, %v1668
      %v1759 = vadd.f32 %v1531, %v1670
      %v1760 = vadd.f32 %v1532, %v1709
      %v1761 = vadd.f32 %v1533, %v1711
      %v1762 = vadd.f32 %v1534, %v1750
      %v1763 = vadd.f32 %v1535, %v1752
      %s1764 = scalar_lea.vmem %s1, 24
      %v1765 = vld [vmem:[%s1764] sm:$0xf]
      %1766 = vrot.lane.b32.xlu0 %v432, 95
      %v1767 = vpop.permute.xlu0 %1766
      %1768 = vrot.lane.b32.xlu0 %v433, 95
      %v1769 = vpop.permute.xlu0 %1768
      %1770 = vrot.lane.b32.xlu0 %v434, 95
      %v1771 = vpop.permute.xlu0 %1770
      %1772 = vrot.lane.b32.xlu0 %v435, 95
      %v1773 = vpop.permute.xlu0 %1772
      %1774 = vrot.lane.b32.xlu0 %v436, 95
      %v1775 = vpop.permute.xlu0 %1774
      %1776 = vrot.lane.b32.xlu0 %v437, 95
      %v1777 = vpop.permute.xlu0 %1776
      %1778 = vrot.lane.b32.xlu0 %v438, 95
      %v1779 = vpop.permute.xlu0 %1778
      %1780 = vrot.lane.b32.xlu0 %v439, 95
      %v1781 = vpop.permute.xlu0 %1780
      %1782 = vrot.lane.b32.xlu0 %v440, 95
      %v1783 = vpop.permute.xlu0 %1782
      %vm1784 = vcmask 777216
      %v1785 = vsel %vm1784, %v1767, %v1769
      %v1786 = vsel %vm1784, %v1769, %v1771
      %v1787 = vsel %vm1784, %v1771, %v1773
      %v1788 = vsel %vm1784, %v1773, %v1775
      %v1789 = vsel %vm1784, %v1775, %v1777
      %v1790 = vsel %vm1784, %v1777, %v1779
      %v1791 = vsel %vm1784, %v1779, %v1781
      %v1792 = vsel %vm1784, %v1781, %v1783
      %v1794 = vsel %vm468, %v1765, 0
      %v1797 = vsel %vm472, %v1785, 0
      %v1800 = vsel %vm472, %v1786, 0
      %v1803 = vsel %vm472, %v1787, 0
      %v1806 = vsel %vm472, %v1788, 0
      %v1809 = vsel %vm472, %v1789, 0
      %v1812 = vsel %vm472, %v1790, 0
      %v1815 = vsel %vm472, %v1791, 0
      %v1818 = vsel %vm472, %v1792, 0
      %1820 = vmatprep.subr.bf16.mxu0 %v1800
      %1821 = vmatpush1.bf16.msra.mxu0 %v1797
      %1822 = vmatprep.subr.bf16.mxu0 0
      %1823 = vmatpush1.bf16.msra.mxu0 0
      %1824 = vmatprep.subr.bf16.mxu0 0
      %1825 = vmatpush1.bf16.msra.mxu0 0
      %1826 = vmatprep.subr.bf16.mxu0 0
      %1827 = vmatpush1.bf16.msra.mxu0 0
      %1828 = vmatprep.subr.bf16.mxu0 0
      %1829 = vmatpush1.bf16.msra.mxu0 0
      %1830 = vmatprep.subr.bf16.mxu0 0
      %1831 = vmatpush1.bf16.msra.mxu0 0
      %1832 = vmatprep.subr.bf16.mxu0 0
      %1833 = vmatpush1.bf16.msra.mxu0 0
      %1834 = vmatprep.subr.bf16.mxu0 0
      %1835 = vmatpush1.bf16.msra.mxu0 0
      %1836 = vmatprep.subr.bf16.mxu0 0
      %1837 = vmatpush1.bf16.msra.mxu0 0
      %1838 = vmatprep.subr.bf16.mxu0 0
      %1839 = vmatpush1.bf16.msra.mxu0 0
      %1840 = vmatprep.subr.bf16.mxu0 0
      %1841 = vmatpush1.bf16.msra.mxu0 0
      %1842 = vmatprep.subr.bf16.mxu0 0
      %1843 = vmatpush1.bf16.msra.mxu0 0
      %1844 = vmatprep.subr.bf16.mxu0 0
      %1845 = vmatpush1.bf16.msra.mxu0 0
      %1846 = vmatprep.subr.bf16.mxu0 0
      %1847 = vmatpush1.bf16.msra.mxu0 0
      %1848 = vmatprep.subr.bf16.mxu0 0
      %1849 = vmatpush1.bf16.msra.mxu0 0
      %1850 = vmatprep.subr.bf16.mxu0 0
      %1851 = vmatpush1.bf16.msra.mxu0 0
      %1852 = vmatprep.mubr.bf16.mxu0 0
      %1853 = vmatmul.mubr.bf16.gmra.mrb[0].mxu0 %v1794
      %v1854 = vpop.f32.mrb[0].mxu0
      %v1855 = vadd.f32 0.0, %v1854
      %v1856 = vpop.f32.mrb[0].mxu0
      %v1857 = vadd.f32 0.0, %v1856
      %v1858 = vpop.f32.mrb[0].mxu0
      %v1859 = vpop.f32.mrb[0].mxu0
      %1860 = vdwg.mxu0
      %1861 = vmatprep.subr.bf16.mxu0 %v1806
      %1862 = vmatpush1.bf16.msra.mxu0 %v1803
      %1863 = vmatprep.subr.bf16.mxu0 0
      %1864 = vmatpush1.bf16.msra.mxu0 0
      %1865 = vmatprep.subr.bf16.mxu0 0
      %1866 = vmatpush1.bf16.msra.mxu0 0
      %1867 = vmatprep.subr.bf16.mxu0 0
      %1868 = vmatpush1.bf16.msra.mxu0 0
      %1869 = vmatprep.subr.bf16.mxu0 0
      %1870 = vmatpush1.bf16.msra.mxu0 0
      %1871 = vmatprep.subr.bf16.mxu0 0
      %1872 = vmatpush1.bf16.msra.mxu0 0
      %1873 = vmatprep.subr.bf16.mxu0 0
      %1874 = vmatpush1.bf16.msra.mxu0 0
      %1875 = vmatprep.subr.bf16.mxu0 0
      %1876 = vmatpush1.bf16.msra.mxu0 0
      %1877 = vmatprep.subr.bf16.mxu0 0
      %1878 = vmatpush1.bf16.msra.mxu0 0
      %1879 = vmatprep.subr.bf16.mxu0 0
      %1880 = vmatpush1.bf16.msra.mxu0 0
      %1881 = vmatprep.subr.bf16.mxu0 0
      %1882 = vmatpush1.bf16.msra.mxu0 0
      %1883 = vmatprep.subr.bf16.mxu0 0
      %1884 = vmatpush1.bf16.msra.mxu0 0
      %1885 = vmatprep.subr.bf16.mxu0 0
      %1886 = vmatpush1.bf16.msra.mxu0 0
      %1887 = vmatprep.subr.bf16.mxu0 0
      %1888 = vmatpush1.bf16.msra.mxu0 0
      %1889 = vmatprep.subr.bf16.mxu0 0
      %1890 = vmatpush1.bf16.msra.mxu0 0
      %1891 = vmatprep.subr.bf16.mxu0 0
      %1892 = vmatpush1.bf16.msra.mxu0 0
      %1893 = vmatprep.mubr.bf16.mxu0 0
      %1894 = vmatmul.mubr.bf16.gmra.mrb[0].mxu0 %v1794
      %v1895 = vpop.f32.mrb[0].mxu0
      %v1896 = vadd.f32 0.0, %v1895
      %v1897 = vpop.f32.mrb[0].mxu0
      %v1898 = vadd.f32 0.0, %v1897
      %v1899 = vpop.f32.mrb[0].mxu0
      %v1900 = vpop.f32.mrb[0].mxu0
      %1901 = vdwg.mxu0
      %1902 = vmatprep.subr.bf16.mxu0 %v1812
      %1903 = vmatpush1.bf16.msra.mxu0 %v1809
      %1904 = vmatprep.subr.bf16.mxu0 0
      %1905 = vmatpush1.bf16.msra.mxu0 0
      %1906 = vmatprep.subr.bf16.mxu0 0
      %1907 = vmatpush1.bf16.msra.mxu0 0
      %1908 = vmatprep.subr.bf16.mxu0 0
      %1909 = vmatpush1.bf16.msra.mxu0 0
      %1910 = vmatprep.subr.bf16.mxu0 0
      %1911 = vmatpush1.bf16.msra.mxu0 0
      %1912 = vmatprep.subr.bf16.mxu0 0
      %1913 = vmatpush1.bf16.msra.mxu0 0
      %1914 = vmatprep.subr.bf16.mxu0 0
      %1915 = vmatpush1.bf16.msra.mxu0 0
      %1916 = vmatprep.subr.bf16.mxu0 0
      %1917 = vmatpush1.bf16.msra.mxu0 0
      %1918 = vmatprep.subr.bf16.mxu0 0
      %1919 = vmatpush1.bf16.msra.mxu0 0
      %1920 = vmatprep.subr.bf16.mxu0 0
      %1921 = vmatpush1.bf16.msra.mxu0 0
      %1922 = vmatprep.subr.bf16.mxu0 0
      %1923 = vmatpush1.bf16.msra.mxu0 0
      %1924 = vmatprep.subr.bf16.mxu0 0
      %1925 = vmatpush1.bf16.msra.mxu0 0
      %1926 = vmatprep.subr.bf16.mxu0 0
      %1927 = vmatpush1.bf16.msra.mxu0 0
      %1928 = vmatprep.subr.bf16.mxu0 0
      %1929 = vmatpush1.bf16.msra.mxu0 0
      %1930 = vmatprep.subr.bf16.mxu0 0
      %1931 = vmatpush1.bf16.msra.mxu0 0
      %1932 = vmatprep.subr.bf16.mxu0 0
      %1933 = vmatpush1.bf16.msra.mxu0 0
      %1934 = vmatprep.mubr.bf16.mxu0 0
      %1935 = vmatmul.mubr.bf16.gmra.mrb[0].mxu0 %v1794
      %v1936 = vpop.f32.mrb[0].mxu0
      %v1937 = vadd.f32 0.0, %v1936
      %v1938 = vpop.f32.mrb[0].mxu0
      %v1939 = vadd.f32 0.0, %v1938
      %v1940 = vpop.f32.mrb[0].mxu0
      %v1941 = vpop.f32.mrb[0].mxu0
      %1942 = vdwg.mxu0
      %1943 = vmatprep.subr.bf16.mxu0 %v1818
      %1944 = vmatpush1.bf16.msra.mxu0 %v1815
      %1945 = vmatprep.subr.bf16.mxu0 0
      %1946 = vmatpush1.bf16.msra.mxu0 0
      %1947 = vmatprep.subr.bf16.mxu0 0
      %1948 = vmatpush1.bf16.msra.mxu0 0
      %1949 = vmatprep.subr.bf16.mxu0 0
      %1950 = vmatpush1.bf16.msra.mxu0 0
      %1951 = vmatprep.subr.bf16.mxu0 0
      %1952 = vmatpush1.bf16.msra.mxu0 0
      %1953 = vmatprep.subr.bf16.mxu0 0
      %1954 = vmatpush1.bf16.msra.mxu0 0
      %1955 = vmatprep.subr.bf16.mxu0 0
      %1956 = vmatpush1.bf16.msra.mxu0 0
      %1957 = vmatprep.subr.bf16.mxu0 0
      %1958 = vmatpush1.bf16.msra.mxu0 0
      %1959 = vmatprep.subr.bf16.mxu0 0
      %1960 = vmatpush1.bf16.msra.mxu0 0
      %1961 = vmatprep.subr.bf16.mxu0 0
      %1962 = vmatpush1.bf16.msra.mxu0 0
      %1963 = vmatprep.subr.bf16.mxu0 0
      %1964 = vmatpush1.bf16.msra.mxu0 0
      %1965 = vmatprep.subr.bf16.mxu0 0
      %1966 = vmatpush1.bf16.msra.mxu0 0
      %1967 = vmatprep.subr.bf16.mxu0 0
      %1968 = vmatpush1.bf16.msra.mxu0 0
      %1969 = vmatprep.subr.bf16.mxu0 0
      %1970 = vmatpush1.bf16.msra.mxu0 0
      %1971 = vmatprep.subr.bf16.mxu0 0
      %1972 = vmatpush1.bf16.msra.mxu0 0
      %1973 = vmatprep.subr.bf16.mxu0 0
      %1974 = vmatpush1.bf16.msra.mxu0 0
      %1975 = vmatprep.mubr.bf16.mxu0 0
      %1976 = vmatmul.mubr.bf16.gmra.mrb[0].mxu0 %v1794
      %v1977 = vpop.f32.mrb[0].mxu0
      %v1978 = vadd.f32 0.0, %v1977
      %v1979 = vpop.f32.mrb[0].mxu0
      %v1980 = vadd.f32 0.0, %v1979
      %v1981 = vpop.f32.mrb[0].mxu0
      %v1982 = vpop.f32.mrb[0].mxu0
      %1983 = vdwg.mxu0
      %v1984 = vadd.f32 %v1756, %v1855
      %v1985 = vadd.f32 %v1757, %v1857
      %v1986 = vadd.f32 %v1758, %v1896
      %v1987 = vadd.f32 %v1759, %v1898
      %v1988 = vadd.f32 %v1760, %v1937
      %v1989 = vadd.f32 %v1761, %v1939
      %v1990 = vadd.f32 %v1762, %v1978
      %v1991 = vadd.f32 %v1763, %v1980
      %s1992 = scalar_lea.vmem %s1, 28
      %v1993 = vld [vmem:[%s1992] sm:$0xf]
      %1994 = vrot.lane.b32.xlu0 %v432, 94
      %v1995 = vpop.permute.xlu0 %1994
      %1996 = vrot.lane.b32.xlu0 %v433, 94
      %v1997 = vpop.permute.xlu0 %1996
      %1998 = vrot.lane.b32.xlu0 %v434, 94
      %v1999 = vpop.permute.xlu0 %1998
      %2000 = vrot.lane.b32.xlu0 %v435, 94
      %v2001 = vpop.permute.xlu0 %2000
      %2002 = vrot.lane.b32.xlu0 %v436, 94
      %v2003 = vpop.permute.xlu0 %2002
      %2004 = vrot.lane.b32.xlu0 %v437, 94
      %v2005 = vpop.permute.xlu0 %2004
      %2006 = vrot.lane.b32.xlu0 %v438, 94
      %v2007 = vpop.permute.xlu0 %2006
      %2008 = vrot.lane.b32.xlu0 %v439, 94
      %v2009 = vpop.permute.xlu0 %2008
      %2010 = vrot.lane.b32.xlu0 %v440, 94
      %v2011 = vpop.permute.xlu0 %2010
      %vm2012 = vcmask 769024
      %v2013 = vsel %vm2012, %v1995, %v1997
      %v2014 = vsel %vm2012, %v1997, %v1999
      %v2015 = vsel %vm2012, %v1999, %v2001
      %v2016 = vsel %vm2012, %v2001, %v2003
      %v2017 = vsel %vm2012, %v2003, %v2005
      %v2018 = vsel %vm2012, %v2005, %v2007
      %v2019 = vsel %vm2012, %v2007, %v2009
      %v2020 = vsel %vm2012, %v2009, %v2011
      %v2022 = vsel %vm468, %v1993, 0
      %v2025 = vsel %vm472, %v2013, 0
      %v2028 = vsel %vm472, %v2014, 0
      %v2031 = vsel %vm472, %v2015, 0
      %v2034 = vsel %vm472, %v2016, 0
      %v2037 = vsel %vm472, %v2017, 0
      %v2040 = vsel %vm472, %v2018, 0
      %v2043 = vsel %vm472, %v2019, 0
      %v2046 = vsel %vm472, %v2020, 0
      %2048 = vmatprep.subr.bf16.mxu0 %v2028
      %2049 = vmatpush1.bf16.msra.mxu0 %v2025
      %2050 = vmatprep.subr.bf16.mxu0 0
      %2051 = vmatpush1.bf16.msra.mxu0 0
      %2052 = vmatprep.subr.bf16.mxu0 0
      %2053 = vmatpush1.bf16.msra.mxu0 0
      %2054 = vmatprep.subr.bf16.mxu0 0
      %2055 = vmatpush1.bf16.msra.mxu0 0
      %2056 = vmatprep.subr.bf16.mxu0 0
      %2057 = vmatpush1.bf16.msra.mxu0 0
      %2058 = vmatprep.subr.bf16.mxu0 0
      %2059 = vmatpush1.bf16.msra.mxu0 0
      %2060 = vmatprep.subr.bf16.mxu0 0
      %2061 = vmatpush1.bf16.msra.mxu0 0
      %2062 = vmatprep.subr.bf16.mxu0 0
      %2063 = vmatpush1.bf16.msra.mxu0 0
      %2064 = vmatprep.subr.bf16.mxu0 0
      %2065 = vmatpush1.bf16.msra.mxu0 0
      %2066 = vmatprep.subr.bf16.mxu0 0
      %2067 = vmatpush1.bf16.msra.mxu0 0
      %2068 = vmatprep.subr.bf16.mxu0 0
      %2069 = vmatpush1.bf16.msra.mxu0 0
      %2070 = vmatprep.subr.bf16.mxu0 0
      %2071 = vmatpush1.bf16.msra.mxu0 0
      %2072 = vmatprep.subr.bf16.mxu0 0
      %2073 = vmatpush1.bf16.msra.mxu0 0
      %2074 = vmatprep.subr.bf16.mxu0 0
      %2075 = vmatpush1.bf16.msra.mxu0 0
      %2076 = vmatprep.subr.bf16.mxu0 0
      %2077 = vmatpush1.bf16.msra.mxu0 0
      %2078 = vmatprep.subr.bf16.mxu0 0
      %2079 = vmatpush1.bf16.msra.mxu0 0
      %2080 = vmatprep.mubr.bf16.mxu0 0
      %2081 = vmatmul.mubr.bf16.gmra.mrb[0].mxu0 %v2022
      %v2082 = vpop.f32.mrb[0].mxu0
      %v2083 = vadd.f32 0.0, %v2082
      %v2084 = vpop.f32.mrb[0].mxu0
      %v2085 = vadd.f32 0.0, %v2084
      %v2086 = vpop.f32.mrb[0].mxu0
      %v2087 = vpop.f32.mrb[0].mxu0
      %2088 = vdwg.mxu0
      %2089 = vmatprep.subr.bf16.mxu0 %v2034
      %2090 = vmatpush1.bf16.msra.mxu0 %v2031
      %2091 = vmatprep.subr.bf16.mxu0 0
      %2092 = vmatpush1.bf16.msra.mxu0 0
      %2093 = vmatprep.subr.bf16.mxu0 0
      %2094 = vmatpush1.bf16.msra.mxu0 0
      %2095 = vmatprep.subr.bf16.mxu0 0
      %2096 = vmatpush1.bf16.msra.mxu0 0
      %2097 = vmatprep.subr.bf16.mxu0 0
      %2098 = vmatpush1.bf16.msra.mxu0 0
      %2099 = vmatprep.subr.bf16.mxu0 0
      %2100 = vmatpush1.bf16.msra.mxu0 0
      %2101 = vmatprep.subr.bf16.mxu0 0
      %2102 = vmatpush1.bf16.msra.mxu0 0
      %2103 = vmatprep.subr.bf16.mxu0 0
      %2104 = vmatpush1.bf16.msra.mxu0 0
      %2105 = vmatprep.subr.bf16.mxu0 0
      %2106 = vmatpush1.bf16.msra.mxu0 0
      %2107 = vmatprep.subr.bf16.mxu0 0
      %2108 = vmatpush1.bf16.msra.mxu0 0
      %2109 = vmatprep.subr.bf16.mxu0 0
      %2110 = vmatpush1.bf16.msra.mxu0 0
      %2111 = vmatprep.subr.bf16.mxu0 0
      %2112 = vmatpush1.bf16.msra.mxu0 0
      %2113 = vmatprep.subr.bf16.mxu0 0
      %2114 = vmatpush1.bf16.msra.mxu0 0
      %2115 = vmatprep.subr.bf16.mxu0 0
      %2116 = vmatpush1.bf16.msra.mxu0 0
      %2117 = vmatprep.subr.bf16.mxu0 0
      %2118 = vmatpush1.bf16.msra.mxu0 0
      %2119 = vmatprep.subr.bf16.mxu0 0
      %2120 = vmatpush1.bf16.msra.mxu0 0
      %2121 = vmatprep.mubr.bf16.mxu0 0
      %2122 = vmatmul.mubr.bf16.gmra.mrb[0].mxu0 %v2022
      %v2123 = vpop.f32.mrb[0].mxu0
      %v2124 = vadd.f32 0.0, %v2123
      %v2125 = vpop.f32.mrb[0].mxu0
      %v2126 = vadd.f32 0.0, %v2125
      %v2127 = vpop.f32.mrb[0].mxu0
      %v2128 = vpop.f32.mrb[0].mxu0
      %2129 = vdwg.mxu0
      %2130 = vmatprep.subr.bf16.mxu0 %v2040
      %2131 = vmatpush1.bf16.msra.mxu0 %v2037
      %2132 = vmatprep.subr.bf16.mxu0 0
      %2133 = vmatpush1.bf16.msra.mxu0 0
      %2134 = vmatprep.subr.bf16.mxu0 0
      %2135 = vmatpush1.bf16.msra.mxu0 0
      %2136 = vmatprep.subr.bf16.mxu0 0
      %2137 = vmatpush1.bf16.msra.mxu0 0
      %2138 = vmatprep.subr.bf16.mxu0 0
      %2139 = vmatpush1.bf16.msra.mxu0 0
      %2140 = vmatprep.subr.bf16.mxu0 0
      %2141 = vmatpush1.bf16.msra.mxu0 0
      %2142 = vmatprep.subr.bf16.mxu0 0
      %2143 = vmatpush1.bf16.msra.mxu0 0
      %2144 = vmatprep.subr.bf16.mxu0 0
      %2145 = vmatpush1.bf16.msra.mxu0 0
      %2146 = vmatprep.subr.bf16.mxu0 0
      %2147 = vmatpush1.bf16.msra.mxu0 0
      %2148 = vmatprep.subr.bf16.mxu0 0
      %2149 = vmatpush1.bf16.msra.mxu0 0
      %2150 = vmatprep.subr.bf16.mxu0 0
      %2151 = vmatpush1.bf16.msra.mxu0 0
      %2152 = vmatprep.subr.bf16.mxu0 0
      %2153 = vmatpush1.bf16.msra.mxu0 0
      %2154 = vmatprep.subr.bf16.mxu0 0
      %2155 = vmatpush1.bf16.msra.mxu0 0
      %2156 = vmatprep.subr.bf16.mxu0 0
      %2157 = vmatpush1.bf16.msra.mxu0 0
      %2158 = vmatprep.subr.bf16.mxu0 0
      %2159 = vmatpush1.bf16.msra.mxu0 0
      %2160 = vmatprep.subr.bf16.mxu0 0
      %2161 = vmatpush1.bf16.msra.mxu0 0
      %2162 = vmatprep.mubr.bf16.mxu0 0
      %2163 = vmatmul.mubr.bf16.gmra.mrb[0].mxu0 %v2022
      %v2164 = vpop.f32.mrb[0].mxu0
      %v2165 = vadd.f32 0.0, %v2164
      %v2166 = vpop.f32.mrb[0].mxu0
      %v2167 = vadd.f32 0.0, %v2166
      %v2168 = vpop.f32.mrb[0].mxu0
      %v2169 = vpop.f32.mrb[0].mxu0
      %2170 = vdwg.mxu0
      %2171 = vmatprep.subr.bf16.mxu0 %v2046
      %2172 = vmatpush1.bf16.msra.mxu0 %v2043
      %2173 = vmatprep.subr.bf16.mxu0 0
      %2174 = vmatpush1.bf16.msra.mxu0 0
      %2175 = vmatprep.subr.bf16.mxu0 0
      %2176 = vmatpush1.bf16.msra.mxu0 0
      %2177 = vmatprep.subr.bf16.mxu0 0
      %2178 = vmatpush1.bf16.msra.mxu0 0
      %2179 = vmatprep.subr.bf16.mxu0 0
      %2180 = vmatpush1.bf16.msra.mxu0 0
      %2181 = vmatprep.subr.bf16.mxu0 0
      %2182 = vmatpush1.bf16.msra.mxu0 0
      %2183 = vmatprep.subr.bf16.mxu0 0
      %2184 = vmatpush1.bf16.msra.mxu0 0
      %2185 = vmatprep.subr.bf16.mxu0 0
      %2186 = vmatpush1.bf16.msra.mxu0 0
      %2187 = vmatprep.subr.bf16.mxu0 0
      %2188 = vmatpush1.bf16.msra.mxu0 0
      %2189 = vmatprep.subr.bf16.mxu0 0
      %2190 = vmatpush1.bf16.msra.mxu0 0
      %2191 = vmatprep.subr.bf16.mxu0 0
      %2192 = vmatpush1.bf16.msra.mxu0 0
      %2193 = vmatprep.subr.bf16.mxu0 0
      %2194 = vmatpush1.bf16.msra.mxu0 0
      %2195 = vmatprep.subr.bf16.mxu0 0
      %2196 = vmatpush1.bf16.msra.mxu0 0
      %2197 = vmatprep.subr.bf16.mxu0 0
      %2198 = vmatpush1.bf16.msra.mxu0 0
      %2199 = vmatprep.subr.bf16.mxu0 0
      %2200 = vmatpush1.bf16.msra.mxu0 0
      %2201 = vmatprep.subr.bf16.mxu0 0
      %2202 = vmatpush1.bf16.msra.mxu0 0
      %2203 = vmatprep.mubr.bf16.mxu0 0
      %2204 = vmatmul.mubr.bf16.gmra.mrb[0].mxu0 %v2022
      %v2205 = vpop.f32.mrb[0].mxu0
      %v2206 = vadd.f32 0.0, %v2205
      %v2207 = vpop.f32.mrb[0].mxu0
      %v2208 = vadd.f32 0.0, %v2207
      %v2209 = vpop.f32.mrb[0].mxu0
      %v2210 = vpop.f32.mrb[0].mxu0
      %2211 = vdwg.mxu0
      %v2212 = vadd.f32 %v1984, %v2083
      %v2213 = vadd.f32 %v1985, %v2085
      %v2214 = vadd.f32 %v1986, %v2124
      %v2215 = vadd.f32 %v1987, %v2126
      %v2216 = vadd.f32 %v1988, %v2165
      %v2217 = vadd.f32 %v1989, %v2167
      %v2218 = vadd.f32 %v1990, %v2206
      %v2219 = vadd.f32 %v1991, %v2208
      %s2220 = scalar_lea.vmem %s1, 32
      %v2221 = vld [vmem:[%s2220] sm:$0xf]
      %2222 = vrot.lane.b32.xlu0 %v432, 93
      %v2223 = vpop.permute.xlu0 %2222
      %2224 = vrot.lane.b32.xlu0 %v433, 93
      %v2225 = vpop.permute.xlu0 %2224
      %2226 = vrot.lane.b32.xlu0 %v434, 93
      %v2227 = vpop.permute.xlu0 %2226
      %2228 = vrot.lane.b32.xlu0 %v435, 93
      %v2229 = vpop.permute.xlu0 %2228
      %2230 = vrot.lane.b32.xlu0 %v436, 93
      %v2231 = vpop.permute.xlu0 %2230
      %2232 = vrot.lane.b32.xlu0 %v437, 93
      %v2233 = vpop.permute.xlu0 %2232
      %2234 = vrot.lane.b32.xlu0 %v438, 93
      %v2235 = vpop.permute.xlu0 %2234
      %2236 = vrot.lane.b32.xlu0 %v439, 93
      %v2237 = vpop.permute.xlu0 %2236
      %2238 = vrot.lane.b32.xlu0 %v440, 93
      %v2239 = vpop.permute.xlu0 %2238
      %vm2240 = vcmask 760832
      %v2241 = vsel %vm2240, %v2223, %v2225
      %v2242 = vsel %vm2240, %v2225, %v2227
      %v2243 = vsel %vm2240, %v2227, %v2229
      %v2244 = vsel %vm2240, %v2229, %v2231
      %v2245 = vsel %vm2240, %v2231, %v2233
      %v2246 = vsel %vm2240, %v2233, %v2235
      %v2247 = vsel %vm2240, %v2235, %v2237
      %v2248 = vsel %vm2240, %v2237, %v2239
      %v2250 = vsel %vm468, %v2221, 0
      %v2253 = vsel %vm472, %v2241, 0
      %v2256 = vsel %vm472, %v2242, 0
      %v2259 = vsel %vm472, %v2243, 0
      %v2262 = vsel %vm472, %v2244, 0
      %v2265 = vsel %vm472, %v2245, 0
      %v2268 = vsel %vm472, %v2246, 0
      %v2271 = vsel %vm472, %v2247, 0
      %v2274 = vsel %vm472, %v2248, 0
      %2276 = vmatprep.subr.bf16.mxu0 %v2256
      %2277 = vmatpush1.bf16.msra.mxu0 %v2253
      %2278 = vmatprep.subr.bf16.mxu0 0
      %2279 = vmatpush1.bf16.msra.mxu0 0
      %2280 = vmatprep.subr.bf16.mxu0 0
      %2281 = vmatpush1.bf16.msra.mxu0 0
      %2282 = vmatprep.subr.bf16.mxu0 0
      %2283 = vmatpush1.bf16.msra.mxu0 0
      %2284 = vmatprep.subr.bf16.mxu0 0
      %2285 = vmatpush1.bf16.msra.mxu0 0
      %2286 = vmatprep.subr.bf16.mxu0 0
      %2287 = vmatpush1.bf16.msra.mxu0 0
      %2288 = vmatprep.subr.bf16.mxu0 0
      %2289 = vmatpush1.bf16.msra.mxu0 0
      %2290 = vmatprep.subr.bf16.mxu0 0
      %2291 = vmatpush1.bf16.msra.mxu0 0
      %2292 = vmatprep.subr.bf16.mxu0 0
      %2293 = vmatpush1.bf16.msra.mxu0 0
      %2294 = vmatprep.subr.bf16.mxu0 0
      %2295 = vmatpush1.bf16.msra.mxu0 0
      %2296 = vmatprep.subr.bf16.mxu0 0
      %2297 = vmatpush1.bf16.msra.mxu0 0
      %2298 = vmatprep.subr.bf16.mxu0 0
      %2299 = vmatpush1.bf16.msra.mxu0 0
      %2300 = vmatprep.subr.bf16.mxu0 0
      %2301 = vmatpush1.bf16.msra.mxu0 0
      %2302 = vmatprep.subr.bf16.mxu0 0
      %2303 = vmatpush1.bf16.msra.mxu0 0
      %2304 = vmatprep.subr.bf16.mxu0 0
      %2305 = vmatpush1.bf16.msra.mxu0 0
      %2306 = vmatprep.subr.bf16.mxu0 0
      %2307 = vmatpush1.bf16.msra.mxu0 0
      %2308 = vmatprep.mubr.bf16.mxu0 0
      %2309 = vmatmul.mubr.bf16.gmra.mrb[0].mxu0 %v2250
      %v2310 = vpop.f32.mrb[0].mxu0
      %v2311 = vadd.f32 0.0, %v2310
      %v2312 = vpop.f32.mrb[0].mxu0
      %v2313 = vadd.f32 0.0, %v2312
      %v2314 = vpop.f32.mrb[0].mxu0
      %v2315 = vpop.f32.mrb[0].mxu0
      %2316 = vdwg.mxu0
      %2317 = vmatprep.subr.bf16.mxu0 %v2262
      %2318 = vmatpush1.bf16.msra.mxu0 %v2259
      %2319 = vmatprep.subr.bf16.mxu0 0
      %2320 = vmatpush1.bf16.msra.mxu0 0
      %2321 = vmatprep.subr.bf16.mxu0 0
      %2322 = vmatpush1.bf16.msra.mxu0 0
      %2323 = vmatprep.subr.bf16.mxu0 0
      %2324 = vmatpush1.bf16.msra.mxu0 0
      %2325 = vmatprep.subr.bf16.mxu0 0
      %2326 = vmatpush1.bf16.msra.mxu0 0
      %2327 = vmatprep.subr.bf16.mxu0 0
      %2328 = vmatpush1.bf16.msra.mxu0 0
      %2329 = vmatprep.subr.bf16.mxu0 0
      %2330 = vmatpush1.bf16.msra.mxu0 0
      %2331 = vmatprep.subr.bf16.mxu0 0
      %2332 = vmatpush1.bf16.msra.mxu0 0
      %2333 = vmatprep.subr.bf16.mxu0 0
      %2334 = vmatpush1.bf16.msra.mxu0 0
      %2335 = vmatprep.subr.bf16.mxu0 0
      %2336 = vmatpush1.bf16.msra.mxu0 0
      %2337 = vmatprep.subr.bf16.mxu0 0
      %2338 = vmatpush1.bf16.msra.mxu0 0
      %2339 = vmatprep.subr.bf16.mxu0 0
      %2340 = vmatpush1.bf16.msra.mxu0 0
      %2341 = vmatprep.subr.bf16.mxu0 0
      %2342 = vmatpush1.bf16.msra.mxu0 0
      %2343 = vmatprep.subr.bf16.mxu0 0
      %2344 = vmatpush1.bf16.msra.mxu0 0
      %2345 = vmatprep.subr.bf16.mxu0 0
      %2346 = vmatpush1.bf16.msra.mxu0 0
      %2347 = vmatprep.subr.bf16.mxu0 0
      %2348 = vmatpush1.bf16.msra.mxu0 0
      %2349 = vmatprep.mubr.bf16.mxu0 0
      %2350 = vmatmul.mubr.bf16.gmra.mrb[0].mxu0 %v2250
      %v2351 = vpop.f32.mrb[0].mxu0
      %v2352 = vadd.f32 0.0, %v2351
      %v2353 = vpop.f32.mrb[0].mxu0
      %v2354 = vadd.f32 0.0, %v2353
      %v2355 = vpop.f32.mrb[0].mxu0
      %v2356 = vpop.f32.mrb[0].mxu0
      %2357 = vdwg.mxu0
      %2358 = vmatprep.subr.bf16.mxu0 %v2268
      %2359 = vmatpush1.bf16.msra.mxu0 %v2265
      %2360 = vmatprep.subr.bf16.mxu0 0
      %2361 = vmatpush1.bf16.msra.mxu0 0
      %2362 = vmatprep.subr.bf16.mxu0 0
      %2363 = vmatpush1.bf16.msra.mxu0 0
      %2364 = vmatprep.subr.bf16.mxu0 0
      %2365 = vmatpush1.bf16.msra.mxu0 0
      %2366 = vmatprep.subr.bf16.mxu0 0
      %2367 = vmatpush1.bf16.msra.mxu0 0
      %2368 = vmatprep.subr.bf16.mxu0 0
      %2369 = vmatpush1.bf16.msra.mxu0 0
      %2370 = vmatprep.subr.bf16.mxu0 0
      %2371 = vmatpush1.bf16.msra.mxu0 0
      %2372 = vmatprep.subr.bf16.mxu0 0
      %2373 = vmatpush1.bf16.msra.mxu0 0
      %2374 = vmatprep.subr.bf16.mxu0 0
      %2375 = vmatpush1.bf16.msra.mxu0 0
      %2376 = vmatprep.subr.bf16.mxu0 0
      %2377 = vmatpush1.bf16.msra.mxu0 0
      %2378 = vmatprep.subr.bf16.mxu0 0
      %2379 = vmatpush1.bf16.msra.mxu0 0
      %2380 = vmatprep.subr.bf16.mxu0 0
      %2381 = vmatpush1.bf16.msra.mxu0 0
      %2382 = vmatprep.subr.bf16.mxu0 0
      %2383 = vmatpush1.bf16.msra.mxu0 0
      %2384 = vmatprep.subr.bf16.mxu0 0
      %2385 = vmatpush1.bf16.msra.mxu0 0
      %2386 = vmatprep.subr.bf16.mxu0 0
      %2387 = vmatpush1.bf16.msra.mxu0 0
      %2388 = vmatprep.subr.bf16.mxu0 0
      %2389 = vmatpush1.bf16.msra.mxu0 0
      %2390 = vmatprep.mubr.bf16.mxu0 0
      %2391 = vmatmul.mubr.bf16.gmra.mrb[0].mxu0 %v2250
      %v2392 = vpop.f32.mrb[0].mxu0
      %v2393 = vadd.f32 0.0, %v2392
      %v2394 = vpop.f32.mrb[0].mxu0
      %v2395 = vadd.f32 0.0, %v2394
      %v2396 = vpop.f32.mrb[0].mxu0
      %v2397 = vpop.f32.mrb[0].mxu0
      %2398 = vdwg.mxu0
      %2399 = vmatprep.subr.bf16.mxu0 %v2274
      %2400 = vmatpush1.bf16.msra.mxu0 %v2271
      %2401 = vmatprep.subr.bf16.mxu0 0
      %2402 = vmatpush1.bf16.msra.mxu0 0
      %2403 = vmatprep.subr.bf16.mxu0 0
      %2404 = vmatpush1.bf16.msra.mxu0 0
      %2405 = vmatprep.subr.bf16.mxu0 0
      %2406 = vmatpush1.bf16.msra.mxu0 0
      %2407 = vmatprep.subr.bf16.mxu0 0
      %2408 = vmatpush1.bf16.msra.mxu0 0
      %2409 = vmatprep.subr.bf16.mxu0 0
      %2410 = vmatpush1.bf16.msra.mxu0 0
      %2411 = vmatprep.subr.bf16.mxu0 0
      %2412 = vmatpush1.bf16.msra.mxu0 0
      %2413 = vmatprep.subr.bf16.mxu0 0
      %2414 = vmatpush1.bf16.msra.mxu0 0
      %2415 = vmatprep.subr.bf16.mxu0 0
      %2416 = vmatpush1.bf16.msra.mxu0 0
      %2417 = vmatprep.subr.bf16.mxu0 0
      %2418 = vmatpush1.bf16.msra.mxu0 0
      %2419 = vmatprep.subr.bf16.mxu0 0
      %2420 = vmatpush1.bf16.msra.mxu0 0
      %2421 = vmatprep.subr.bf16.mxu0 0
      %2422 = vmatpush1.bf16.msra.mxu0 0
      %2423 = vmatprep.subr.bf16.mxu0 0
      %2424 = vmatpush1.bf16.msra.mxu0 0
      %2425 = vmatprep.subr.bf16.mxu0 0
      %2426 = vmatpush1.bf16.msra.mxu0 0
      %2427 = vmatprep.subr.bf16.mxu0 0
      %2428 = vmatpush1.bf16.msra.mxu0 0
      %2429 = vmatprep.subr.bf16.mxu0 0
      %2430 = vmatpush1.bf16.msra.mxu0 0
      %2431 = vmatprep.mubr.bf16.mxu0 0
      %2432 = vmatmul.mubr.bf16.gmra.mrb[0].mxu0 %v2250
      %v2433 = vpop.f32.mrb[0].mxu0
      %v2434 = vadd.f32 0.0, %v2433
      %v2435 = vpop.f32.mrb[0].mxu0
      %v2436 = vadd.f32 0.0, %v2435
      %v2437 = vpop.f32.mrb[0].mxu0
      %v2438 = vpop.f32.mrb[0].mxu0
      %2439 = vdwg.mxu0
      %v2440 = vadd.f32 %v2212, %v2311
      %v2441 = vadd.f32 %v2213, %v2313
      %v2442 = vadd.f32 %v2214, %v2352
      %v2443 = vadd.f32 %v2215, %v2354
      %v2444 = vadd.f32 %v2216, %v2393
      %v2445 = vadd.f32 %v2217, %v2395
      %v2446 = vadd.f32 %v2218, %v2434
      %v2447 = vadd.f32 %v2219, %v2436
      %s2448 = scalar_lea.vmem %s1, 36
      %v2449 = vld [vmem:[%s2448] sm:$0xf]
      %2450 = vrot.lane.b32.xlu0 %v432, 92
      %v2451 = vpop.permute.xlu0 %2450
      %2452 = vrot.lane.b32.xlu0 %v433, 92
      %v2453 = vpop.permute.xlu0 %2452
      %2454 = vrot.lane.b32.xlu0 %v434, 92
      %v2455 = vpop.permute.xlu0 %2454
      %2456 = vrot.lane.b32.xlu0 %v435, 92
      %v2457 = vpop.permute.xlu0 %2456
      %2458 = vrot.lane.b32.xlu0 %v436, 92
      %v2459 = vpop.permute.xlu0 %2458
      %2460 = vrot.lane.b32.xlu0 %v437, 92
      %v2461 = vpop.permute.xlu0 %2460
      %2462 = vrot.lane.b32.xlu0 %v438, 92
      %v2463 = vpop.permute.xlu0 %2462
      %2464 = vrot.lane.b32.xlu0 %v439, 92
      %v2465 = vpop.permute.xlu0 %2464
      %2466 = vrot.lane.b32.xlu0 %v440, 92
      %v2467 = vpop.permute.xlu0 %2466
      %vm2468 = vcmask 752640
      %v2469 = vsel %vm2468, %v2451, %v2453
      %v2470 = vsel %vm2468, %v2453, %v2455
      %v2471 = vsel %vm2468, %v2455, %v2457
      %v2472 = vsel %vm2468, %v2457, %v2459
      %v2473 = vsel %vm2468, %v2459, %v2461
      %v2474 = vsel %vm2468, %v2461, %v2463
      %v2475 = vsel %vm2468, %v2463, %v2465
      %v2476 = vsel %vm2468, %v2465, %v2467
      %v2478 = vsel %vm468, %v2449, 0
      %v2481 = vsel %vm472, %v2469, 0
      %v2484 = vsel %vm472, %v2470, 0
      %v2487 = vsel %vm472, %v2471, 0
      %v2490 = vsel %vm472, %v2472, 0
      %v2493 = vsel %vm472, %v2473, 0
      %v2496 = vsel %vm472, %v2474, 0
      %v2499 = vsel %vm472, %v2475, 0
      %v2502 = vsel %vm472, %v2476, 0
      %2504 = vmatprep.subr.bf16.mxu0 %v2484
      %2505 = vmatpush1.bf16.msra.mxu0 %v2481
      %2506 = vmatprep.subr.bf16.mxu0 0
      %2507 = vmatpush1.bf16.msra.mxu0 0
      %2508 = vmatprep.subr.bf16.mxu0 0
      %2509 = vmatpush1.bf16.msra.mxu0 0
      %2510 = vmatprep.subr.bf16.mxu0 0
      %2511 = vmatpush1.bf16.msra.mxu0 0
      %2512 = vmatprep.subr.bf16.mxu0 0
      %2513 = vmatpush1.bf16.msra.mxu0 0
      %2514 = vmatprep.subr.bf16.mxu0 0
      %2515 = vmatpush1.bf16.msra.mxu0 0
      %2516 = vmatprep.subr.bf16.mxu0 0
      %2517 = vmatpush1.bf16.msra.mxu0 0
      %2518 = vmatprep.subr.bf16.mxu0 0
      %2519 = vmatpush1.bf16.msra.mxu0 0
      %2520 = vmatprep.subr.bf16.mxu0 0
      %2521 = vmatpush1.bf16.msra.mxu0 0
      %2522 = vmatprep.subr.bf16.mxu0 0
      %2523 = vmatpush1.bf16.msra.mxu0 0
      %2524 = vmatprep.subr.bf16.mxu0 0
      %2525 = vmatpush1.bf16.msra.mxu0 0
      %2526 = vmatprep.subr.bf16.mxu0 0
      %2527 = vmatpush1.bf16.msra.mxu0 0
      %2528 = vmatprep.subr.bf16.mxu0 0
      %2529 = vmatpush1.bf16.msra.mxu0 0
      %2530 = vmatprep.subr.bf16.mxu0 0
      %2531 = vmatpush1.bf16.msra.mxu0 0
      %2532 = vmatprep.subr.bf16.mxu0 0
      %2533 = vmatpush1.bf16.msra.mxu0 0
      %2534 = vmatprep.subr.bf16.mxu0 0
      %2535 = vmatpush1.bf16.msra.mxu0 0
      %2536 = vmatprep.mubr.bf16.mxu0 0
      %2537 = vmatmul.mubr.bf16.gmra.mrb[0].mxu0 %v2478
      %v2538 = vpop.f32.mrb[0].mxu0
      %v2539 = vadd.f32 0.0, %v2538
      %v2540 = vpop.f32.mrb[0].mxu0
      %v2541 = vadd.f32 0.0, %v2540
      %v2542 = vpop.f32.mrb[0].mxu0
      %v2543 = vpop.f32.mrb[0].mxu0
      %2544 = vdwg.mxu0
      %2545 = vmatprep.subr.bf16.mxu0 %v2490
      %2546 = vmatpush1.bf16.msra.mxu0 %v2487
      %2547 = vmatprep.subr.bf16.mxu0 0
      %2548 = vmatpush1.bf16.msra.mxu0 0
      %2549 = vmatprep.subr.bf16.mxu0 0
      %2550 = vmatpush1.bf16.msra.mxu0 0
      %2551 = vmatprep.subr.bf16.mxu0 0
      %2552 = vmatpush1.bf16.msra.mxu0 0
      %2553 = vmatprep.subr.bf16.mxu0 0
      %2554 = vmatpush1.bf16.msra.mxu0 0
      %2555 = vmatprep.subr.bf16.mxu0 0
      %2556 = vmatpush1.bf16.msra.mxu0 0
      %2557 = vmatprep.subr.bf16.mxu0 0
      %2558 = vmatpush1.bf16.msra.mxu0 0
      %2559 = vmatprep.subr.bf16.mxu0 0
      %2560 = vmatpush1.bf16.msra.mxu0 0
      %2561 = vmatprep.subr.bf16.mxu0 0
      %2562 = vmatpush1.bf16.msra.mxu0 0
      %2563 = vmatprep.subr.bf16.mxu0 0
      %2564 = vmatpush1.bf16.msra.mxu0 0
      %2565 = vmatprep.subr.bf16.mxu0 0
      %2566 = vmatpush1.bf16.msra.mxu0 0
      %2567 = vmatprep.subr.bf16.mxu0 0
      %2568 = vmatpush1.bf16.msra.mxu0 0
      %2569 = vmatprep.subr.bf16.mxu0 0
      %2570 = vmatpush1.bf16.msra.mxu0 0
      %2571 = vmatprep.subr.bf16.mxu0 0
      %2572 = vmatpush1.bf16.msra.mxu0 0
      %2573 = vmatprep.subr.bf16.mxu0 0
      %2574 = vmatpush1.bf16.msra.mxu0 0
      %2575 = vmatprep.subr.bf16.mxu0 0
      %2576 = vmatpush1.bf16.msra.mxu0 0
      %2577 = vmatprep.mubr.bf16.mxu0 0
      %2578 = vmatmul.mubr.bf16.gmra.mrb[0].mxu0 %v2478
      %v2579 = vpop.f32.mrb[0].mxu0
      %v2580 = vadd.f32 0.0, %v2579
      %v2581 = vpop.f32.mrb[0].mxu0
      %v2582 = vadd.f32 0.0, %v2581
      %v2583 = vpop.f32.mrb[0].mxu0
      %v2584 = vpop.f32.mrb[0].mxu0
      %2585 = vdwg.mxu0
      %2586 = vmatprep.subr.bf16.mxu0 %v2496
      %2587 = vmatpush1.bf16.msra.mxu0 %v2493
      %2588 = vmatprep.subr.bf16.mxu0 0
      %2589 = vmatpush1.bf16.msra.mxu0 0
      %2590 = vmatprep.subr.bf16.mxu0 0
      %2591 = vmatpush1.bf16.msra.mxu0 0
      %2592 = vmatprep.subr.bf16.mxu0 0
      %2593 = vmatpush1.bf16.msra.mxu0 0
      %2594 = vmatprep.subr.bf16.mxu0 0
      %2595 = vmatpush1.bf16.msra.mxu0 0
      %2596 = vmatprep.subr.bf16.mxu0 0
      %2597 = vmatpush1.bf16.msra.mxu0 0
      %2598 = vmatprep.subr.bf16.mxu0 0
      %2599 = vmatpush1.bf16.msra.mxu0 0
      %2600 = vmatprep.subr.bf16.mxu0 0
      %2601 = vmatpush1.bf16.msra.mxu0 0
      %2602 = vmatprep.subr.bf16.mxu0 0
      %2603 = vmatpush1.bf16.msra.mxu0 0
      %2604 = vmatprep.subr.bf16.mxu0 0
      %2605 = vmatpush1.bf16.msra.mxu0 0
      %2606 = vmatprep.subr.bf16.mxu0 0
      %2607 = vmatpush1.bf16.msra.mxu0 0
      %2608 = vmatprep.subr.bf16.mxu0 0
      %2609 = vmatpush1.bf16.msra.mxu0 0
      %2610 = vmatprep.subr.bf16.mxu0 0
      %2611 = vmatpush1.bf16.msra.mxu0 0
      %2612 = vmatprep.subr.bf16.mxu0 0
      %2613 = vmatpush1.bf16.msra.mxu0 0
      %2614 = vmatprep.subr.bf16.mxu0 0
      %2615 = vmatpush1.bf16.msra.mxu0 0
      %2616 = vmatprep.subr.bf16.mxu0 0
      %2617 = vmatpush1.bf16.msra.mxu0 0
      %2618 = vmatprep.mubr.bf16.mxu0 0
      %2619 = vmatmul.mubr.bf16.gmra.mrb[0].mxu0 %v2478
      %v2620 = vpop.f32.mrb[0].mxu0
      %v2621 = vadd.f32 0.0, %v2620
      %v2622 = vpop.f32.mrb[0].mxu0
      %v2623 = vadd.f32 0.0, %v2622
      %v2624 = vpop.f32.mrb[0].mxu0
      %v2625 = vpop.f32.mrb[0].mxu0
      %2626 = vdwg.mxu0
      %2627 = vmatprep.subr.bf16.mxu0 %v2502
      %2628 = vmatpush1.bf16.msra.mxu0 %v2499
      %2629 = vmatprep.subr.bf16.mxu0 0
      %2630 = vmatpush1.bf16.msra.mxu0 0
      %2631 = vmatprep.subr.bf16.mxu0 0
      %2632 = vmatpush1.bf16.msra.mxu0 0
      %2633 = vmatprep.subr.bf16.mxu0 0
      %2634 = vmatpush1.bf16.msra.mxu0 0
      %2635 = vmatprep.subr.bf16.mxu0 0
      %2636 = vmatpush1.bf16.msra.mxu0 0
      %2637 = vmatprep.subr.bf16.mxu0 0
      %2638 = vmatpush1.bf16.msra.mxu0 0
      %2639 = vmatprep.subr.bf16.mxu0 0
      %2640 = vmatpush1.bf16.msra.mxu0 0
      %2641 = vmatprep.subr.bf16.mxu0 0
      %2642 = vmatpush1.bf16.msra.mxu0 0
      %2643 = vmatprep.subr.bf16.mxu0 0
      %2644 = vmatpush1.bf16.msra.mxu0 0
      %2645 = vmatprep.subr.bf16.mxu0 0
      %2646 = vmatpush1.bf16.msra.mxu0 0
      %2647 = vmatprep.subr.bf16.mxu0 0
      %2648 = vmatpush1.bf16.msra.mxu0 0
      %2649 = vmatprep.subr.bf16.mxu0 0
      %2650 = vmatpush1.bf16.msra.mxu0 0
      %2651 = vmatprep.subr.bf16.mxu0 0
      %2652 = vmatpush1.bf16.msra.mxu0 0
      %2653 = vmatprep.subr.bf16.mxu0 0
      %2654 = vmatpush1.bf16.msra.mxu0 0
      %2655 = vmatprep.subr.bf16.mxu0 0
      %2656 = vmatpush1.bf16.msra.mxu0 0
      %2657 = vmatprep.subr.bf16.mxu0 0
      %2658 = vmatpush1.bf16.msra.mxu0 0
      %2659 = vmatprep.mubr.bf16.mxu0 0
      %2660 = vmatmul.mubr.bf16.gmra.mrb[0].mxu0 %v2478
      %v2661 = vpop.f32.mrb[0].mxu0
      %v2662 = vadd.f32 0.0, %v2661
      %v2663 = vpop.f32.mrb[0].mxu0
      %v2664 = vadd.f32 0.0, %v2663
      %v2665 = vpop.f32.mrb[0].mxu0
      %v2666 = vpop.f32.mrb[0].mxu0
      %2667 = vdwg.mxu0
      %v2668 = vadd.f32 %v2440, %v2539
      %v2669 = vadd.f32 %v2441, %v2541
      %v2670 = vadd.f32 %v2442, %v2580
      %v2671 = vadd.f32 %v2443, %v2582
      %v2672 = vadd.f32 %v2444, %v2621
      %v2673 = vadd.f32 %v2445, %v2623
      %v2674 = vadd.f32 %v2446, %v2662
      %v2675 = vadd.f32 %v2447, %v2664
      %s2676 = scalar_lea.vmem %s1, 40
      %v2677 = vld [vmem:[%s2676] sm:$0xf]
      %2678 = vrot.lane.b32.xlu0 %v432, 64
      %v2679 = vpop.permute.xlu0 %2678
      %2680 = vrot.lane.b32.xlu0 %v433, 64
      %v2681 = vpop.permute.xlu0 %2680
      %2682 = vrot.lane.b32.xlu0 %v434, 64
      %v2683 = vpop.permute.xlu0 %2682
      %2684 = vrot.lane.b32.xlu0 %v435, 64
      %v2685 = vpop.permute.xlu0 %2684
      %2686 = vrot.lane.b32.xlu0 %v436, 64
      %v2687 = vpop.permute.xlu0 %2686
      %2688 = vrot.lane.b32.xlu0 %v437, 64
      %v2689 = vpop.permute.xlu0 %2688
      %2690 = vrot.lane.b32.xlu0 %v438, 64
      %v2691 = vpop.permute.xlu0 %2690
      %2692 = vrot.lane.b32.xlu0 %v439, 64
      %v2693 = vpop.permute.xlu0 %2692
      %2694 = vrot.lane.b32.xlu0 %v440, 64
      %v2695 = vpop.permute.xlu0 %2694
      %vm2696 = vcmask 523264
      %v2697 = vsel %vm2696, %v2679, %v2681
      %v2698 = vsel %vm2696, %v2681, %v2683
      %v2699 = vsel %vm2696, %v2683, %v2685
      %v2700 = vsel %vm2696, %v2685, %v2687
      %v2701 = vsel %vm2696, %v2687, %v2689
      %v2702 = vsel %vm2696, %v2689, %v2691
      %v2703 = vsel %vm2696, %v2691, %v2693
      %v2704 = vsel %vm2696, %v2693, %v2695
      %v2706 = vsel %vm468, %v2677, 0
      %v2709 = vsel %vm472, %v2697, 0
      %v2712 = vsel %vm472, %v2698, 0
      %v2715 = vsel %vm472, %v2699, 0
      %v2718 = vsel %vm472, %v2700, 0
      %v2721 = vsel %vm472, %v2701, 0
      %v2724 = vsel %vm472, %v2702, 0
      %v2727 = vsel %vm472, %v2703, 0
      %v2730 = vsel %vm472, %v2704, 0
      %2732 = vmatprep.subr.bf16.mxu0 %v2712
      %2733 = vmatpush1.bf16.msra.mxu0 %v2709
      %2734 = vmatprep.subr.bf16.mxu0 0
      %2735 = vmatpush1.bf16.msra.mxu0 0
      %2736 = vmatprep.subr.bf16.mxu0 0
      %2737 = vmatpush1.bf16.msra.mxu0 0
      %2738 = vmatprep.subr.bf16.mxu0 0
      %2739 = vmatpush1.bf16.msra.mxu0 0
      %2740 = vmatprep.subr.bf16.mxu0 0
      %2741 = vmatpush1.bf16.msra.mxu0 0
      %2742 = vmatprep.subr.bf16.mxu0 0
      %2743 = vmatpush1.bf16.msra.mxu0 0
      %2744 = vmatprep.subr.bf16.mxu0 0
      %2745 = vmatpush1.bf16.msra.mxu0 0
      %2746 = vmatprep.subr.bf16.mxu0 0
      %2747 = vmatpush1.bf16.msra.mxu0 0
      %2748 = vmatprep.subr.bf16.mxu0 0
      %2749 = vmatpush1.bf16.msra.mxu0 0
      %2750 = vmatprep.subr.bf16.mxu0 0
      %2751 = vmatpush1.bf16.msra.mxu0 0
      %2752 = vmatprep.subr.bf16.mxu0 0
      %2753 = vmatpush1.bf16.msra.mxu0 0
      %2754 = vmatprep.subr.bf16.mxu0 0
      %2755 = vmatpush1.bf16.msra.mxu0 0
      %2756 = vmatprep.subr.bf16.mxu0 0
      %2757 = vmatpush1.bf16.msra.mxu0 0
      %2758 = vmatprep.subr.bf16.mxu0 0
      %2759 = vmatpush1.bf16.msra.mxu0 0
      %2760 = vmatprep.subr.bf16.mxu0 0
      %2761 = vmatpush1.bf16.msra.mxu0 0
      %2762 = vmatprep.subr.bf16.mxu0 0
      %2763 = vmatpush1.bf16.msra.mxu0 0
      %2764 = vmatprep.mubr.bf16.mxu0 0
      %2765 = vmatmul.mubr.bf16.gmra.mrb[0].mxu0 %v2706
      %v2766 = vpop.f32.mrb[0].mxu0
      %v2767 = vadd.f32 0.0, %v2766
      %v2768 = vpop.f32.mrb[0].mxu0
      %v2769 = vadd.f32 0.0, %v2768
      %v2770 = vpop.f32.mrb[0].mxu0
      %v2771 = vpop.f32.mrb[0].mxu0
      %2772 = vdwg.mxu0
      %2773 = vmatprep.subr.bf16.mxu0 %v2718
      %2774 = vmatpush1.bf16.msra.mxu0 %v2715
      %2775 = vmatprep.subr.bf16.mxu0 0
      %2776 = vmatpush1.bf16.msra.mxu0 0
      %2777 = vmatprep.subr.bf16.mxu0 0
      %2778 = vmatpush1.bf16.msra.mxu0 0
      %2779 = vmatprep.subr.bf16.mxu0 0
      %2780 = vmatpush1.bf16.msra.mxu0 0
      %2781 = vmatprep.subr.bf16.mxu0 0
      %2782 = vmatpush1.bf16.msra.mxu0 0
      %2783 = vmatprep.subr.bf16.mxu0 0
      %2784 = vmatpush1.bf16.msra.mxu0 0
      %2785 = vmatprep.subr.bf16.mxu0 0
      %2786 = vmatpush1.bf16.msra.mxu0 0
      %2787 = vmatprep.subr.bf16.mxu0 0
      %2788 = vmatpush1.bf16.msra.mxu0 0
      %2789 = vmatprep.subr.bf16.mxu0 0
      %2790 = vmatpush1.bf16.msra.mxu0 0
      %2791 = vmatprep.subr.bf16.mxu0 0
      %2792 = vmatpush1.bf16.msra.mxu0 0
      %2793 = vmatprep.subr.bf16.mxu0 0
      %2794 = vmatpush1.bf16.msra.mxu0 0
      %2795 = vmatprep.subr.bf16.mxu0 0
      %2796 = vmatpush1.bf16.msra.mxu0 0
      %2797 = vmatprep.subr.bf16.mxu0 0
      %2798 = vmatpush1.bf16.msra.mxu0 0
      %2799 = vmatprep.subr.bf16.mxu0 0
      %2800 = vmatpush1.bf16.msra.mxu0 0
      %2801 = vmatprep.subr.bf16.mxu0 0
      %2802 = vmatpush1.bf16.msra.mxu0 0
      %2803 = vmatprep.subr.bf16.mxu0 0
      %2804 = vmatpush1.bf16.msra.mxu0 0
      %2805 = vmatprep.mubr.bf16.mxu0 0
      %2806 = vmatmul.mubr.bf16.gmra.mrb[0].mxu0 %v2706
      %v2807 = vpop.f32.mrb[0].mxu0
      %v2808 = vadd.f32 0.0, %v2807
      %v2809 = vpop.f32.mrb[0].mxu0
      %v2810 = vadd.f32 0.0, %v2809
      %v2811 = vpop.f32.mrb[0].mxu0
      %v2812 = vpop.f32.mrb[0].mxu0
      %2813 = vdwg.mxu0
      %2814 = vmatprep.subr.bf16.mxu0 %v2724
      %2815 = vmatpush1.bf16.msra.mxu0 %v2721
      %2816 = vmatprep.subr.bf16.mxu0 0
      %2817 = vmatpush1.bf16.msra.mxu0 0
      %2818 = vmatprep.subr.bf16.mxu0 0
      %2819 = vmatpush1.bf16.msra.mxu0 0
      %2820 = vmatprep.subr.bf16.mxu0 0
      %2821 = vmatpush1.bf16.msra.mxu0 0
      %2822 = vmatprep.subr.bf16.mxu0 0
      %2823 = vmatpush1.bf16.msra.mxu0 0
      %2824 = vmatprep.subr.bf16.mxu0 0
      %2825 = vmatpush1.bf16.msra.mxu0 0
      %2826 = vmatprep.subr.bf16.mxu0 0
      %2827 = vmatpush1.bf16.msra.mxu0 0
      %2828 = vmatprep.subr.bf16.mxu0 0
      %2829 = vmatpush1.bf16.msra.mxu0 0
      %2830 = vmatprep.subr.bf16.mxu0 0
      %2831 = vmatpush1.bf16.msra.mxu0 0
      %2832 = vmatprep.subr.bf16.mxu0 0
      %2833 = vmatpush1.bf16.msra.mxu0 0
      %2834 = vmatprep.subr.bf16.mxu0 0
      %2835 = vmatpush1.bf16.msra.mxu0 0
      %2836 = vmatprep.subr.bf16.mxu0 0
      %2837 = vmatpush1.bf16.msra.mxu0 0
      %2838 = vmatprep.subr.bf16.mxu0 0
      %2839 = vmatpush1.bf16.msra.mxu0 0
      %2840 = vmatprep.subr.bf16.mxu0 0
      %2841 = vmatpush1.bf16.msra.mxu0 0
      %2842 = vmatprep.subr.bf16.mxu0 0
      %2843 = vmatpush1.bf16.msra.mxu0 0
      %2844 = vmatprep.subr.bf16.mxu0 0
      %2845 = vmatpush1.bf16.msra.mxu0 0
      %2846 = vmatprep.mubr.bf16.mxu0 0
      %2847 = vmatmul.mubr.bf16.gmra.mrb[0].mxu0 %v2706
      %v2848 = vpop.f32.mrb[0].mxu0
      %v2849 = vadd.f32 0.0, %v2848
      %v2850 = vpop.f32.mrb[0].mxu0
      %v2851 = vadd.f32 0.0, %v2850
      %v2852 = vpop.f32.mrb[0].mxu0
      %v2853 = vpop.f32.mrb[0].mxu0
      %2854 = vdwg.mxu0
      %2855 = vmatprep.subr.bf16.mxu0 %v2730
      %2856 = vmatpush1.bf16.msra.mxu0 %v2727
      %2857 = vmatprep.subr.bf16.mxu0 0
      %2858 = vmatpush1.bf16.msra.mxu0 0
      %2859 = vmatprep.subr.bf16.mxu0 0
      %2860 = vmatpush1.bf16.msra.mxu0 0
      %2861 = vmatprep.subr.bf16.mxu0 0
      %2862 = vmatpush1.bf16.msra.mxu0 0
      %2863 = vmatprep.subr.bf16.mxu0 0
      %2864 = vmatpush1.bf16.msra.mxu0 0
      %2865 = vmatprep.subr.bf16.mxu0 0
      %2866 = vmatpush1.bf16.msra.mxu0 0
      %2867 = vmatprep.subr.bf16.mxu0 0
      %2868 = vmatpush1.bf16.msra.mxu0 0
      %2869 = vmatprep.subr.bf16.mxu0 0
      %2870 = vmatpush1.bf16.msra.mxu0 0
      %2871 = vmatprep.subr.bf16.mxu0 0
      %2872 = vmatpush1.bf16.msra.mxu0 0
      %2873 = vmatprep.subr.bf16.mxu0 0
      %2874 = vmatpush1.bf16.msra.mxu0 0
      %2875 = vmatprep.subr.bf16.mxu0 0
      %2876 = vmatpush1.bf16.msra.mxu0 0
      %2877 = vmatprep.subr.bf16.mxu0 0
      %2878 = vmatpush1.bf16.msra.mxu0 0
      %2879 = vmatprep.subr.bf16.mxu0 0
      %2880 = vmatpush1.bf16.msra.mxu0 0
      %2881 = vmatprep.subr.bf16.mxu0 0
      %2882 = vmatpush1.bf16.msra.mxu0 0
      %2883 = vmatprep.subr.bf16.mxu0 0
      %2884 = vmatpush1.bf16.msra.mxu0 0
      %2885 = vmatprep.subr.bf16.mxu0 0
      %2886 = vmatpush1.bf16.msra.mxu0 0
      %2887 = vmatprep.mubr.bf16.mxu0 0
      %2888 = vmatmul.mubr.bf16.gmra.mrb[0].mxu0 %v2706
      %v2889 = vpop.f32.mrb[0].mxu0
      %v2890 = vadd.f32 0.0, %v2889
      %v2891 = vpop.f32.mrb[0].mxu0
      %v2892 = vadd.f32 0.0, %v2891
      %v2893 = vpop.f32.mrb[0].mxu0
      %v2894 = vpop.f32.mrb[0].mxu0
      %2895 = vdwg.mxu0
      %v2896 = vadd.f32 %v2668, %v2767
      %v2897 = vadd.f32 %v2669, %v2769
      %v2898 = vadd.f32 %v2670, %v2808
      %v2899 = vadd.f32 %v2671, %v2810
      %v2900 = vadd.f32 %v2672, %v2849
      %v2901 = vadd.f32 %v2673, %v2851
      %v2902 = vadd.f32 %v2674, %v2890
      %v2903 = vadd.f32 %v2675, %v2892
      %s2904 = scalar_lea.vmem %s1, 44
      %v2905 = vld [vmem:[%s2904] sm:$0xf]
      %2906 = vrot.lane.b32.xlu0 %v432, 63
      %v2907 = vpop.permute.xlu0 %2906
      %2908 = vrot.lane.b32.xlu0 %v433, 63
      %v2909 = vpop.permute.xlu0 %2908
      %2910 = vrot.lane.b32.xlu0 %v434, 63
      %v2911 = vpop.permute.xlu0 %2910
      %2912 = vrot.lane.b32.xlu0 %v435, 63
      %v2913 = vpop.permute.xlu0 %2912
      %2914 = vrot.lane.b32.xlu0 %v436, 63
      %v2915 = vpop.permute.xlu0 %2914
      %2916 = vrot.lane.b32.xlu0 %v437, 63
      %v2917 = vpop.permute.xlu0 %2916
      %2918 = vrot.lane.b32.xlu0 %v438, 63
      %v2919 = vpop.permute.xlu0 %2918
      %2920 = vrot.lane.b32.xlu0 %v439, 63
      %v2921 = vpop.permute.xlu0 %2920
      %2922 = vrot.lane.b32.xlu0 %v440, 63
      %v2923 = vpop.permute.xlu0 %2922
      %vm2924 = vcmask 515072
      %v2925 = vsel %vm2924, %v2907, %v2909
      %v2926 = vsel %vm2924, %v2909, %v2911
      %v2927 = vsel %vm2924, %v2911, %v2913
      %v2928 = vsel %vm2924, %v2913, %v2915
      %v2929 = vsel %vm2924, %v2915, %v2917
      %v2930 = vsel %vm2924, %v2917, %v2919
      %v2931 = vsel %vm2924, %v2919, %v2921
      %v2932 = vsel %vm2924, %v2921, %v2923
      %v2934 = vsel %vm468, %v2905, 0
      %v2937 = vsel %vm472, %v2925, 0
      %v2940 = vsel %vm472, %v2926, 0
      %v2943 = vsel %vm472, %v2927, 0
      %v2946 = vsel %vm472, %v2928, 0
      %v2949 = vsel %vm472, %v2929, 0
      %v2952 = vsel %vm472, %v2930, 0
      %v2955 = vsel %vm472, %v2931, 0
      %v2958 = vsel %vm472, %v2932, 0
      %2960 = vmatprep.subr.bf16.mxu0 %v2940
      %2961 = vmatpush1.bf16.msra.mxu0 %v2937
      %2962 = vmatprep.subr.bf16.mxu0 0
      %2963 = vmatpush1.bf16.msra.mxu0 0
      %2964 = vmatprep.subr.bf16.mxu0 0
      %2965 = vmatpush1.bf16.msra.mxu0 0
      %2966 = vmatprep.subr.bf16.mxu0 0
      %2967 = vmatpush1.bf16.msra.mxu0 0
      %2968 = vmatprep.subr.bf16.mxu0 0
      %2969 = vmatpush1.bf16.msra.mxu0 0
      %2970 = vmatprep.subr.bf16.mxu0 0
      %2971 = vmatpush1.bf16.msra.mxu0 0
      %2972 = vmatprep.subr.bf16.mxu0 0
      %2973 = vmatpush1.bf16.msra.mxu0 0
      %2974 = vmatprep.subr.bf16.mxu0 0
      %2975 = vmatpush1.bf16.msra.mxu0 0
      %2976 = vmatprep.subr.bf16.mxu0 0
      %2977 = vmatpush1.bf16.msra.mxu0 0
      %2978 = vmatprep.subr.bf16.mxu0 0
      %2979 = vmatpush1.bf16.msra.mxu0 0
      %2980 = vmatprep.subr.bf16.mxu0 0
      %2981 = vmatpush1.bf16.msra.mxu0 0
      %2982 = vmatprep.subr.bf16.mxu0 0
      %2983 = vmatpush1.bf16.msra.mxu0 0
      %2984 = vmatprep.subr.bf16.mxu0 0
      %2985 = vmatpush1.bf16.msra.mxu0 0
      %2986 = vmatprep.subr.bf16.mxu0 0
      %2987 = vmatpush1.bf16.msra.mxu0 0
      %2988 = vmatprep.subr.bf16.mxu0 0
      %2989 = vmatpush1.bf16.msra.mxu0 0
      %2990 = vmatprep.subr.bf16.mxu0 0
      %2991 = vmatpush1.bf16.msra.mxu0 0
      %2992 = vmatprep.mubr.bf16.mxu0 0
      %2993 = vmatmul.mubr.bf16.gmra.mrb[0].mxu0 %v2934
      %v2994 = vpop.f32.mrb[0].mxu0
      %v2995 = vadd.f32 0.0, %v2994
      %v2996 = vpop.f32.mrb[0].mxu0
      %v2997 = vadd.f32 0.0, %v2996
      %v2998 = vpop.f32.mrb[0].mxu0
      %v2999 = vpop.f32.mrb[0].mxu0
      %3000 = vdwg.mxu0
      %3001 = vmatprep.subr.bf16.mxu0 %v2946
      %3002 = vmatpush1.bf16.msra.mxu0 %v2943
      %3003 = vmatprep.subr.bf16.mxu0 0
      %3004 = vmatpush1.bf16.msra.mxu0 0
      %3005 = vmatprep.subr.bf16.mxu0 0
      %3006 = vmatpush1.bf16.msra.mxu0 0
      %3007 = vmatprep.subr.bf16.mxu0 0
      %3008 = vmatpush1.bf16.msra.mxu0 0
      %3009 = vmatprep.subr.bf16.mxu0 0
      %3010 = vmatpush1.bf16.msra.mxu0 0
      %3011 = vmatprep.subr.bf16.mxu0 0
      %3012 = vmatpush1.bf16.msra.mxu0 0
      %3013 = vmatprep.subr.bf16.mxu0 0
      %3014 = vmatpush1.bf16.msra.mxu0 0
      %3015 = vmatprep.subr.bf16.mxu0 0
      %3016 = vmatpush1.bf16.msra.mxu0 0
      %3017 = vmatprep.subr.bf16.mxu0 0
      %3018 = vmatpush1.bf16.msra.mxu0 0
      %3019 = vmatprep.subr.bf16.mxu0 0
      %3020 = vmatpush1.bf16.msra.mxu0 0
      %3021 = vmatprep.subr.bf16.mxu0 0
      %3022 = vmatpush1.bf16.msra.mxu0 0
      %3023 = vmatprep.subr.bf16.mxu0 0
      %3024 = vmatpush1.bf16.msra.mxu0 0
      %3025 = vmatprep.subr.bf16.mxu0 0
      %3026 = vmatpush1.bf16.msra.mxu0 0
      %3027 = vmatprep.subr.bf16.mxu0 0
      %3028 = vmatpush1.bf16.msra.mxu0 0
      %3029 = vmatprep.subr.bf16.mxu0 0
      %3030 = vmatpush1.bf16.msra.mxu0 0
      %3031 = vmatprep.subr.bf16.mxu0 0
      %3032 = vmatpush1.bf16.msra.mxu0 0
      %3033 = vmatprep.mubr.bf16.mxu0 0
      %3034 = vmatmul.mubr.bf16.gmra.mrb[0].mxu0 %v2934
      %v3035 = vpop.f32.mrb[0].mxu0
      %v3036 = vadd.f32 0.0, %v3035
      %v3037 = vpop.f32.mrb[0].mxu0
      %v3038 = vadd.f32 0.0, %v3037
      %v3039 = vpop.f32.mrb[0].mxu0
      %v3040 = vpop.f32.mrb[0].mxu0
      %3041 = vdwg.mxu0
      %3042 = vmatprep.subr.bf16.mxu0 %v2952
      %3043 = vmatpush1.bf16.msra.mxu0 %v2949
      %3044 = vmatprep.subr.bf16.mxu0 0
      %3045 = vmatpush1.bf16.msra.mxu0 0
      %3046 = vmatprep.subr.bf16.mxu0 0
      %3047 = vmatpush1.bf16.msra.mxu0 0
      %3048 = vmatprep.subr.bf16.mxu0 0
      %3049 = vmatpush1.bf16.msra.mxu0 0
      %3050 = vmatprep.subr.bf16.mxu0 0
      %3051 = vmatpush1.bf16.msra.mxu0 0
      %3052 = vmatprep.subr.bf16.mxu0 0
      %3053 = vmatpush1.bf16.msra.mxu0 0
      %3054 = vmatprep.subr.bf16.mxu0 0
      %3055 = vmatpush1.bf16.msra.mxu0 0
      %3056 = vmatprep.subr.bf16.mxu0 0
      %3057 = vmatpush1.bf16.msra.mxu0 0
      %3058 = vmatprep.subr.bf16.mxu0 0
      %3059 = vmatpush1.bf16.msra.mxu0 0
      %3060 = vmatprep.subr.bf16.mxu0 0
      %3061 = vmatpush1.bf16.msra.mxu0 0
      %3062 = vmatprep.subr.bf16.mxu0 0
      %3063 = vmatpush1.bf16.msra.mxu0 0
      %3064 = vmatprep.subr.bf16.mxu0 0
      %3065 = vmatpush1.bf16.msra.mxu0 0
      %3066 = vmatprep.subr.bf16.mxu0 0
      %3067 = vmatpush1.bf16.msra.mxu0 0
      %3068 = vmatprep.subr.bf16.mxu0 0
      %3069 = vmatpush1.bf16.msra.mxu0 0
      %3070 = vmatprep.subr.bf16.mxu0 0
      %3071 = vmatpush1.bf16.msra.mxu0 0
      %3072 = vmatprep.subr.bf16.mxu0 0
      %3073 = vmatpush1.bf16.msra.mxu0 0
      %3074 = vmatprep.mubr.bf16.mxu0 0
      %3075 = vmatmul.mubr.bf16.gmra.mrb[0].mxu0 %v2934
      %v3076 = vpop.f32.mrb[0].mxu0
      %v3077 = vadd.f32 0.0, %v3076
      %v3078 = vpop.f32.mrb[0].mxu0
      %v3079 = vadd.f32 0.0, %v3078
      %v3080 = vpop.f32.mrb[0].mxu0
      %v3081 = vpop.f32.mrb[0].mxu0
      %3082 = vdwg.mxu0
      %3083 = vmatprep.subr.bf16.mxu0 %v2958
      %3084 = vmatpush1.bf16.msra.mxu0 %v2955
      %3085 = vmatprep.subr.bf16.mxu0 0
      %3086 = vmatpush1.bf16.msra.mxu0 0
      %3087 = vmatprep.subr.bf16.mxu0 0
      %3088 = vmatpush1.bf16.msra.mxu0 0
      %3089 = vmatprep.subr.bf16.mxu0 0
      %3090 = vmatpush1.bf16.msra.mxu0 0
      %3091 = vmatprep.subr.bf16.mxu0 0
      %3092 = vmatpush1.bf16.msra.mxu0 0
      %3093 = vmatprep.subr.bf16.mxu0 0
      %3094 = vmatpush1.bf16.msra.mxu0 0
      %3095 = vmatprep.subr.bf16.mxu0 0
      %3096 = vmatpush1.bf16.msra.mxu0 0
      %3097 = vmatprep.subr.bf16.mxu0 0
      %3098 = vmatpush1.bf16.msra.mxu0 0
      %3099 = vmatprep.subr.bf16.mxu0 0
      %3100 = vmatpush1.bf16.msra.mxu0 0
      %3101 = vmatprep.subr.bf16.mxu0 0
      %3102 = vmatpush1.bf16.msra.mxu0 0
      %3103 = vmatprep.subr.bf16.mxu0 0
      %3104 = vmatpush1.bf16.msra.mxu0 0
      %3105 = vmatprep.subr.bf16.mxu0 0
      %3106 = vmatpush1.bf16.msra.mxu0 0
      %3107 = vmatprep.subr.bf16.mxu0 0
      %3108 = vmatpush1.bf16.msra.mxu0 0
      %3109 = vmatprep.subr.bf16.mxu0 0
      %3110 = vmatpush1.bf16.msra.mxu0 0
      %3111 = vmatprep.subr.bf16.mxu0 0
      %3112 = vmatpush1.bf16.msra.mxu0 0
      %3113 = vmatprep.subr.bf16.mxu0 0
      %3114 = vmatpush1.bf16.msra.mxu0 0
      %3115 = vmatprep.mubr.bf16.mxu0 0
      %3116 = vmatmul.mubr.bf16.gmra.mrb[0].mxu0 %v2934
      %v3117 = vpop.f32.mrb[0].mxu0
      %v3118 = vadd.f32 0.0, %v3117
      %v3119 = vpop.f32.mrb[0].mxu0
      %v3120 = vadd.f32 0.0, %v3119
      %v3121 = vpop.f32.mrb[0].mxu0
      %v3122 = vpop.f32.mrb[0].mxu0
      %3123 = vdwg.mxu0
      %v3124 = vadd.f32 %v2896, %v2995
      %v3125 = vadd.f32 %v2897, %v2997
      %v3126 = vadd.f32 %v2898, %v3036
      %v3127 = vadd.f32 %v2899, %v3038
      %v3128 = vadd.f32 %v2900, %v3077
      %v3129 = vadd.f32 %v2901, %v3079
      %v3130 = vadd.f32 %v2902, %v3118
      %v3131 = vadd.f32 %v2903, %v3120
      %s3132 = scalar_lea.vmem %s1, 48
      %v3133 = vld [vmem:[%s3132] sm:$0xf]
      %3134 = vrot.lane.b32.xlu0 %v432, 62
      %v3135 = vpop.permute.xlu0 %3134
      %3136 = vrot.lane.b32.xlu0 %v433, 62
      %v3137 = vpop.permute.xlu0 %3136
      %3138 = vrot.lane.b32.xlu0 %v434, 62
      %v3139 = vpop.permute.xlu0 %3138
      %3140 = vrot.lane.b32.xlu0 %v435, 62
      %v3141 = vpop.permute.xlu0 %3140
      %3142 = vrot.lane.b32.xlu0 %v436, 62
      %v3143 = vpop.permute.xlu0 %3142
      %3144 = vrot.lane.b32.xlu0 %v437, 62
      %v3145 = vpop.permute.xlu0 %3144
      %3146 = vrot.lane.b32.xlu0 %v438, 62
      %v3147 = vpop.permute.xlu0 %3146
      %3148 = vrot.lane.b32.xlu0 %v439, 62
      %v3149 = vpop.permute.xlu0 %3148
      %3150 = vrot.lane.b32.xlu0 %v440, 62
      %v3151 = vpop.permute.xlu0 %3150
      %vm3152 = vcmask 506880
      %v3153 = vsel %vm3152, %v3135, %v3137
      %v3154 = vsel %vm3152, %v3137, %v3139
      %v3155 = vsel %vm3152, %v3139, %v3141
      %v3156 = vsel %vm3152, %v3141, %v3143
      %v3157 = vsel %vm3152, %v3143, %v3145
      %v3158 = vsel %vm3152, %v3145, %v3147
      %v3159 = vsel %vm3152, %v3147, %v3149
      %v3160 = vsel %vm3152, %v3149, %v3151
      %v3162 = vsel %vm468, %v3133, 0
      %v3165 = vsel %vm472, %v3153, 0
      %v3168 = vsel %vm472, %v3154, 0
      %v3171 = vsel %vm472, %v3155, 0
      %v3174 = vsel %vm472, %v3156, 0
      %v3177 = vsel %vm472, %v3157, 0
      %v3180 = vsel %vm472, %v3158, 0
      %v3183 = vsel %vm472, %v3159, 0
      %v3186 = vsel %vm472, %v3160, 0
      %3188 = vmatprep.subr.bf16.mxu0 %v3168
      %3189 = vmatpush1.bf16.msra.mxu0 %v3165
      %3190 = vmatprep.subr.bf16.mxu0 0
      %3191 = vmatpush1.bf16.msra.mxu0 0
      %3192 = vmatprep.subr.bf16.mxu0 0
      %3193 = vmatpush1.bf16.msra.mxu0 0
      %3194 = vmatprep.subr.bf16.mxu0 0
      %3195 = vmatpush1.bf16.msra.mxu0 0
      %3196 = vmatprep.subr.bf16.mxu0 0
      %3197 = vmatpush1.bf16.msra.mxu0 0
      %3198 = vmatprep.subr.bf16.mxu0 0
      %3199 = vmatpush1.bf16.msra.mxu0 0
      %3200 = vmatprep.subr.bf16.mxu0 0
      %3201 = vmatpush1.bf16.msra.mxu0 0
      %3202 = vmatprep.subr.bf16.mxu0 0
      %3203 = vmatpush1.bf16.msra.mxu0 0
      %3204 = vmatprep.subr.bf16.mxu0 0
      %3205 = vmatpush1.bf16.msra.mxu0 0
      %3206 = vmatprep.subr.bf16.mxu0 0
      %3207 = vmatpush1.bf16.msra.mxu0 0
      %3208 = vmatprep.subr.bf16.mxu0 0
      %3209 = vmatpush1.bf16.msra.mxu0 0
      %3210 = vmatprep.subr.bf16.mxu0 0
      %3211 = vmatpush1.bf16.msra.mxu0 0
      %3212 = vmatprep.subr.bf16.mxu0 0
      %3213 = vmatpush1.bf16.msra.mxu0 0
      %3214 = vmatprep.subr.bf16.mxu0 0
      %3215 = vmatpush1.bf16.msra.mxu0 0
      %3216 = vmatprep.subr.bf16.mxu0 0
      %3217 = vmatpush1.bf16.msra.mxu0 0
      %3218 = vmatprep.subr.bf16.mxu0 0
      %3219 = vmatpush1.bf16.msra.mxu0 0
      %3220 = vmatprep.mubr.bf16.mxu0 0
      %3221 = vmatmul.mubr.bf16.gmra.mrb[0].mxu0 %v3162
      %v3222 = vpop.f32.mrb[0].mxu0
      %v3223 = vadd.f32 0.0, %v3222
      %v3224 = vpop.f32.mrb[0].mxu0
      %v3225 = vadd.f32 0.0, %v3224
      %v3226 = vpop.f32.mrb[0].mxu0
      %v3227 = vpop.f32.mrb[0].mxu0
      %3228 = vdwg.mxu0
      %3229 = vmatprep.subr.bf16.mxu0 %v3174
      %3230 = vmatpush1.bf16.msra.mxu0 %v3171
      %3231 = vmatprep.subr.bf16.mxu0 0
      %3232 = vmatpush1.bf16.msra.mxu0 0
      %3233 = vmatprep.subr.bf16.mxu0 0
      %3234 = vmatpush1.bf16.msra.mxu0 0
      %3235 = vmatprep.subr.bf16.mxu0 0
      %3236 = vmatpush1.bf16.msra.mxu0 0
      %3237 = vmatprep.subr.bf16.mxu0 0
      %3238 = vmatpush1.bf16.msra.mxu0 0
      %3239 = vmatprep.subr.bf16.mxu0 0
      %3240 = vmatpush1.bf16.msra.mxu0 0
      %3241 = vmatprep.subr.bf16.mxu0 0
      %3242 = vmatpush1.bf16.msra.mxu0 0
      %3243 = vmatprep.subr.bf16.mxu0 0
      %3244 = vmatpush1.bf16.msra.mxu0 0
      %3245 = vmatprep.subr.bf16.mxu0 0
      %3246 = vmatpush1.bf16.msra.mxu0 0
      %3247 = vmatprep.subr.bf16.mxu0 0
      %3248 = vmatpush1.bf16.msra.mxu0 0
      %3249 = vmatprep.subr.bf16.mxu0 0
      %3250 = vmatpush1.bf16.msra.mxu0 0
      %3251 = vmatprep.subr.bf16.mxu0 0
      %3252 = vmatpush1.bf16.msra.mxu0 0
      %3253 = vmatprep.subr.bf16.mxu0 0
      %3254 = vmatpush1.bf16.msra.mxu0 0
      %3255 = vmatprep.subr.bf16.mxu0 0
      %3256 = vmatpush1.bf16.msra.mxu0 0
      %3257 = vmatprep.subr.bf16.mxu0 0
      %3258 = vmatpush1.bf16.msra.mxu0 0
      %3259 = vmatprep.subr.bf16.mxu0 0
      %3260 = vmatpush1.bf16.msra.mxu0 0
      %3261 = vmatprep.mubr.bf16.mxu0 0
      %3262 = vmatmul.mubr.bf16.gmra.mrb[0].mxu0 %v3162
      %v3263 = vpop.f32.mrb[0].mxu0
      %v3264 = vadd.f32 0.0, %v3263
      %v3265 = vpop.f32.mrb[0].mxu0
      %v3266 = vadd.f32 0.0, %v3265
      %v3267 = vpop.f32.mrb[0].mxu0
      %v3268 = vpop.f32.mrb[0].mxu0
      %3269 = vdwg.mxu0
      %3270 = vmatprep.subr.bf16.mxu0 %v3180
      %3271 = vmatpush1.bf16.msra.mxu0 %v3177
      %3272 = vmatprep.subr.bf16.mxu0 0
      %3273 = vmatpush1.bf16.msra.mxu0 0
      %3274 = vmatprep.subr.bf16.mxu0 0
      %3275 = vmatpush1.bf16.msra.mxu0 0
      %3276 = vmatprep.subr.bf16.mxu0 0
      %3277 = vmatpush1.bf16.msra.mxu0 0
      %3278 = vmatprep.subr.bf16.mxu0 0
      %3279 = vmatpush1.bf16.msra.mxu0 0
      %3280 = vmatprep.subr.bf16.mxu0 0
      %3281 = vmatpush1.bf16.msra.mxu0 0
      %3282 = vmatprep.subr.bf16.mxu0 0
      %3283 = vmatpush1.bf16.msra.mxu0 0
      %3284 = vmatprep.subr.bf16.mxu0 0
      %3285 = vmatpush1.bf16.msra.mxu0 0
      %3286 = vmatprep.subr.bf16.mxu0 0
      %3287 = vmatpush1.bf16.msra.mxu0 0
      %3288 = vmatprep.subr.bf16.mxu0 0
      %3289 = vmatpush1.bf16.msra.mxu0 0
      %3290 = vmatprep.subr.bf16.mxu0 0
      %3291 = vmatpush1.bf16.msra.mxu0 0
      %3292 = vmatprep.subr.bf16.mxu0 0
      %3293 = vmatpush1.bf16.msra.mxu0 0
      %3294 = vmatprep.subr.bf16.mxu0 0
      %3295 = vmatpush1.bf16.msra.mxu0 0
      %3296 = vmatprep.subr.bf16.mxu0 0
      %3297 = vmatpush1.bf16.msra.mxu0 0
      %3298 = vmatprep.subr.bf16.mxu0 0
      %3299 = vmatpush1.bf16.msra.mxu0 0
      %3300 = vmatprep.subr.bf16.mxu0 0
      %3301 = vmatpush1.bf16.msra.mxu0 0
      %3302 = vmatprep.mubr.bf16.mxu0 0
      %3303 = vmatmul.mubr.bf16.gmra.mrb[0].mxu0 %v3162
      %v3304 = vpop.f32.mrb[0].mxu0
      %v3305 = vadd.f32 0.0, %v3304
      %v3306 = vpop.f32.mrb[0].mxu0
      %v3307 = vadd.f32 0.0, %v3306
      %v3308 = vpop.f32.mrb[0].mxu0
      %v3309 = vpop.f32.mrb[0].mxu0
      %3310 = vdwg.mxu0
      %3311 = vmatprep.subr.bf16.mxu0 %v3186
      %3312 = vmatpush1.bf16.msra.mxu0 %v3183
      %3313 = vmatprep.subr.bf16.mxu0 0
      %3314 = vmatpush1.bf16.msra.mxu0 0
      %3315 = vmatprep.subr.bf16.mxu0 0
      %3316 = vmatpush1.bf16.msra.mxu0 0
      %3317 = vmatprep.subr.bf16.mxu0 0
      %3318 = vmatpush1.bf16.msra.mxu0 0
      %3319 = vmatprep.subr.bf16.mxu0 0
      %3320 = vmatpush1.bf16.msra.mxu0 0
      %3321 = vmatprep.subr.bf16.mxu0 0
      %3322 = vmatpush1.bf16.msra.mxu0 0
      %3323 = vmatprep.subr.bf16.mxu0 0
      %3324 = vmatpush1.bf16.msra.mxu0 0
      %3325 = vmatprep.subr.bf16.mxu0 0
      %3326 = vmatpush1.bf16.msra.mxu0 0
      %3327 = vmatprep.subr.bf16.mxu0 0
      %3328 = vmatpush1.bf16.msra.mxu0 0
      %3329 = vmatprep.subr.bf16.mxu0 0
      %3330 = vmatpush1.bf16.msra.mxu0 0
      %3331 = vmatprep.subr.bf16.mxu0 0
      %3332 = vmatpush1.bf16.msra.mxu0 0
      %3333 = vmatprep.subr.bf16.mxu0 0
      %3334 = vmatpush1.bf16.msra.mxu0 0
      %3335 = vmatprep.subr.bf16.mxu0 0
      %3336 = vmatpush1.bf16.msra.mxu0 0
      %3337 = vmatprep.subr.bf16.mxu0 0
      %3338 = vmatpush1.bf16.msra.mxu0 0
      %3339 = vmatprep.subr.bf16.mxu0 0
      %3340 = vmatpush1.bf16.msra.mxu0 0
      %3341 = vmatprep.subr.bf16.mxu0 0
      %3342 = vmatpush1.bf16.msra.mxu0 0
      %3343 = vmatprep.mubr.bf16.mxu0 0
      %3344 = vmatmul.mubr.bf16.gmra.mrb[0].mxu0 %v3162
      %v3345 = vpop.f32.mrb[0].mxu0
      %v3346 = vadd.f32 0.0, %v3345
      %v3347 = vpop.f32.mrb[0].mxu0
      %v3348 = vadd.f32 0.0, %v3347
      %v3349 = vpop.f32.mrb[0].mxu0
      %v3350 = vpop.f32.mrb[0].mxu0
      %3351 = vdwg.mxu0
      %v3352 = vadd.f32 %v3124, %v3223
      %v3353 = vadd.f32 %v3125, %v3225
      %v3354 = vadd.f32 %v3126, %v3264
      %v3355 = vadd.f32 %v3127, %v3266
      %v3356 = vadd.f32 %v3128, %v3305
      %v3357 = vadd.f32 %v3129, %v3307
      %v3358 = vadd.f32 %v3130, %v3346
      %v3359 = vadd.f32 %v3131, %v3348
      %s3360 = scalar_lea.vmem %s1, 52
      %v3361 = vld [vmem:[%s3360] sm:$0xf]
      %3362 = vrot.lane.b32.xlu0 %v432, 61
      %v3363 = vpop.permute.xlu0 %3362
      %3364 = vrot.lane.b32.xlu0 %v433, 61
      %v3365 = vpop.permute.xlu0 %3364
      %3366 = vrot.lane.b32.xlu0 %v434, 61
      %v3367 = vpop.permute.xlu0 %3366
      %3368 = vrot.lane.b32.xlu0 %v435, 61
      %v3369 = vpop.permute.xlu0 %3368
      %3370 = vrot.lane.b32.xlu0 %v436, 61
      %v3371 = vpop.permute.xlu0 %3370
      %3372 = vrot.lane.b32.xlu0 %v437, 61
      %v3373 = vpop.permute.xlu0 %3372
      %3374 = vrot.lane.b32.xlu0 %v438, 61
      %v3375 = vpop.permute.xlu0 %3374
      %3376 = vrot.lane.b32.xlu0 %v439, 61
      %v3377 = vpop.permute.xlu0 %3376
      %3378 = vrot.lane.b32.xlu0 %v440, 61
      %v3379 = vpop.permute.xlu0 %3378
      %vm3380 = vcmask 498688
      %v3381 = vsel %vm3380, %v3363, %v3365
      %v3382 = vsel %vm3380, %v3365, %v3367
      %v3383 = vsel %vm3380, %v3367, %v3369
      %v3384 = vsel %vm3380, %v3369, %v3371
      %v3385 = vsel %vm3380, %v3371, %v3373
      %v3386 = vsel %vm3380, %v3373, %v3375
      %v3387 = vsel %vm3380, %v3375, %v3377
      %v3388 = vsel %vm3380, %v3377, %v3379
      %v3390 = vsel %vm468, %v3361, 0
      %v3393 = vsel %vm472, %v3381, 0
      %v3396 = vsel %vm472, %v3382, 0
      %v3399 = vsel %vm472, %v3383, 0
      %v3402 = vsel %vm472, %v3384, 0
      %v3405 = vsel %vm472, %v3385, 0
      %v3408 = vsel %vm472, %v3386, 0
      %v3411 = vsel %vm472, %v3387, 0
      %v3414 = vsel %vm472, %v3388, 0
      %3416 = vmatprep.subr.bf16.mxu0 %v3396
      %3417 = vmatpush1.bf16.msra.mxu0 %v3393
      %3418 = vmatprep.subr.bf16.mxu0 0
      %3419 = vmatpush1.bf16.msra.mxu0 0
      %3420 = vmatprep.subr.bf16.mxu0 0
      %3421 = vmatpush1.bf16.msra.mxu0 0
      %3422 = vmatprep.subr.bf16.mxu0 0
      %3423 = vmatpush1.bf16.msra.mxu0 0
      %3424 = vmatprep.subr.bf16.mxu0 0
      %3425 = vmatpush1.bf16.msra.mxu0 0
      %3426 = vmatprep.subr.bf16.mxu0 0
      %3427 = vmatpush1.bf16.msra.mxu0 0
      %3428 = vmatprep.subr.bf16.mxu0 0
      %3429 = vmatpush1.bf16.msra.mxu0 0
      %3430 = vmatprep.subr.bf16.mxu0 0
      %3431 = vmatpush1.bf16.msra.mxu0 0
      %3432 = vmatprep.subr.bf16.mxu0 0
      %3433 = vmatpush1.bf16.msra.mxu0 0
      %3434 = vmatprep.subr.bf16.mxu0 0
      %3435 = vmatpush1.bf16.msra.mxu0 0
      %3436 = vmatprep.subr.bf16.mxu0 0
      %3437 = vmatpush1.bf16.msra.mxu0 0
      %3438 = vmatprep.subr.bf16.mxu0 0
      %3439 = vmatpush1.bf16.msra.mxu0 0
      %3440 = vmatprep.subr.bf16.mxu0 0
      %3441 = vmatpush1.bf16.msra.mxu0 0
      %3442 = vmatprep.subr.bf16.mxu0 0
      %3443 = vmatpush1.bf16.msra.mxu0 0
      %3444 = vmatprep.subr.bf16.mxu0 0
      %3445 = vmatpush1.bf16.msra.mxu0 0
      %3446 = vmatprep.subr.bf16.mxu0 0
      %3447 = vmatpush1.bf16.msra.mxu0 0
      %3448 = vmatprep.mubr.bf16.mxu0 0
      %3449 = vmatmul.mubr.bf16.gmra.mrb[0].mxu0 %v3390
      %v3450 = vpop.f32.mrb[0].mxu0
      %v3451 = vadd.f32 0.0, %v3450
      %v3452 = vpop.f32.mrb[0].mxu0
      %v3453 = vadd.f32 0.0, %v3452
      %v3454 = vpop.f32.mrb[0].mxu0
      %v3455 = vpop.f32.mrb[0].mxu0
      %3456 = vdwg.mxu0
      %3457 = vmatprep.subr.bf16.mxu0 %v3402
      %3458 = vmatpush1.bf16.msra.mxu0 %v3399
      %3459 = vmatprep.subr.bf16.mxu0 0
      %3460 = vmatpush1.bf16.msra.mxu0 0
      %3461 = vmatprep.subr.bf16.mxu0 0
      %3462 = vmatpush1.bf16.msra.mxu0 0
      %3463 = vmatprep.subr.bf16.mxu0 0
      %3464 = vmatpush1.bf16.msra.mxu0 0
      %3465 = vmatprep.subr.bf16.mxu0 0
      %3466 = vmatpush1.bf16.msra.mxu0 0
      %3467 = vmatprep.subr.bf16.mxu0 0
      %3468 = vmatpush1.bf16.msra.mxu0 0
      %3469 = vmatprep.subr.bf16.mxu0 0
      %3470 = vmatpush1.bf16.msra.mxu0 0
      %3471 = vmatprep.subr.bf16.mxu0 0
      %3472 = vmatpush1.bf16.msra.mxu0 0
      %3473 = vmatprep.subr.bf16.mxu0 0
      %3474 = vmatpush1.bf16.msra.mxu0 0
      %3475 = vmatprep.subr.bf16.mxu0 0
      %3476 = vmatpush1.bf16.msra.mxu0 0
      %3477 = vmatprep.subr.bf16.mxu0 0
      %3478 = vmatpush1.bf16.msra.mxu0 0
      %3479 = vmatprep.subr.bf16.mxu0 0
      %3480 = vmatpush1.bf16.msra.mxu0 0
      %3481 = vmatprep.subr.bf16.mxu0 0
      %3482 = vmatpush1.bf16.msra.mxu0 0
      %3483 = vmatprep.subr.bf16.mxu0 0
      %3484 = vmatpush1.bf16.msra.mxu0 0
      %3485 = vmatprep.subr.bf16.mxu0 0
      %3486 = vmatpush1.bf16.msra.mxu0 0
      %3487 = vmatprep.subr.bf16.mxu0 0
      %3488 = vmatpush1.bf16.msra.mxu0 0
      %3489 = vmatprep.mubr.bf16.mxu0 0
      %3490 = vmatmul.mubr.bf16.gmra.mrb[0].mxu0 %v3390
      %v3491 = vpop.f32.mrb[0].mxu0
      %v3492 = vadd.f32 0.0, %v3491
      %v3493 = vpop.f32.mrb[0].mxu0
      %v3494 = vadd.f32 0.0, %v3493
      %v3495 = vpop.f32.mrb[0].mxu0
      %v3496 = vpop.f32.mrb[0].mxu0
      %3497 = vdwg.mxu0
      %3498 = vmatprep.subr.bf16.mxu0 %v3408
      %3499 = vmatpush1.bf16.msra.mxu0 %v3405
      %3500 = vmatprep.subr.bf16.mxu0 0
      %3501 = vmatpush1.bf16.msra.mxu0 0
      %3502 = vmatprep.subr.bf16.mxu0 0
      %3503 = vmatpush1.bf16.msra.mxu0 0
      %3504 = vmatprep.subr.bf16.mxu0 0
      %3505 = vmatpush1.bf16.msra.mxu0 0
      %3506 = vmatprep.subr.bf16.mxu0 0
      %3507 = vmatpush1.bf16.msra.mxu0 0
      %3508 = vmatprep.subr.bf16.mxu0 0
      %3509 = vmatpush1.bf16.msra.mxu0 0
      %3510 = vmatprep.subr.bf16.mxu0 0
      %3511 = vmatpush1.bf16.msra.mxu0 0
      %3512 = vmatprep.subr.bf16.mxu0 0
      %3513 = vmatpush1.bf16.msra.mxu0 0
      %3514 = vmatprep.subr.bf16.mxu0 0
      %3515 = vmatpush1.bf16.msra.mxu0 0
      %3516 = vmatprep.subr.bf16.mxu0 0
      %3517 = vmatpush1.bf16.msra.mxu0 0
      %3518 = vmatprep.subr.bf16.mxu0 0
      %3519 = vmatpush1.bf16.msra.mxu0 0
      %3520 = vmatprep.subr.bf16.mxu0 0
      %3521 = vmatpush1.bf16.msra.mxu0 0
      %3522 = vmatprep.subr.bf16.mxu0 0
      %3523 = vmatpush1.bf16.msra.mxu0 0
      %3524 = vmatprep.subr.bf16.mxu0 0
      %3525 = vmatpush1.bf16.msra.mxu0 0
      %3526 = vmatprep.subr.bf16.mxu0 0
      %3527 = vmatpush1.bf16.msra.mxu0 0
      %3528 = vmatprep.subr.bf16.mxu0 0
      %3529 = vmatpush1.bf16.msra.mxu0 0
      %3530 = vmatprep.mubr.bf16.mxu0 0
      %3531 = vmatmul.mubr.bf16.gmra.mrb[0].mxu0 %v3390
      %v3532 = vpop.f32.mrb[0].mxu0
      %v3533 = vadd.f32 0.0, %v3532
      %v3534 = vpop.f32.mrb[0].mxu0
      %v3535 = vadd.f32 0.0, %v3534
      %v3536 = vpop.f32.mrb[0].mxu0
      %v3537 = vpop.f32.mrb[0].mxu0
      %3538 = vdwg.mxu0
      %3539 = vmatprep.subr.bf16.mxu0 %v3414
      %3540 = vmatpush1.bf16.msra.mxu0 %v3411
      %3541 = vmatprep.subr.bf16.mxu0 0
      %3542 = vmatpush1.bf16.msra.mxu0 0
      %3543 = vmatprep.subr.bf16.mxu0 0
      %3544 = vmatpush1.bf16.msra.mxu0 0
      %3545 = vmatprep.subr.bf16.mxu0 0
      %3546 = vmatpush1.bf16.msra.mxu0 0
      %3547 = vmatprep.subr.bf16.mxu0 0
      %3548 = vmatpush1.bf16.msra.mxu0 0
      %3549 = vmatprep.subr.bf16.mxu0 0
      %3550 = vmatpush1.bf16.msra.mxu0 0
      %3551 = vmatprep.subr.bf16.mxu0 0
      %3552 = vmatpush1.bf16.msra.mxu0 0
      %3553 = vmatprep.subr.bf16.mxu0 0
      %3554 = vmatpush1.bf16.msra.mxu0 0
      %3555 = vmatprep.subr.bf16.mxu0 0
      %3556 = vmatpush1.bf16.msra.mxu0 0
      %3557 = vmatprep.subr.bf16.mxu0 0
      %3558 = vmatpush1.bf16.msra.mxu0 0
      %3559 = vmatprep.subr.bf16.mxu0 0
      %3560 = vmatpush1.bf16.msra.mxu0 0
      %3561 = vmatprep.subr.bf16.mxu0 0
      %3562 = vmatpush1.bf16.msra.mxu0 0
      %3563 = vmatprep.subr.bf16.mxu0 0
      %3564 = vmatpush1.bf16.msra.mxu0 0
      %3565 = vmatprep.subr.bf16.mxu0 0
      %3566 = vmatpush1.bf16.msra.mxu0 0
      %3567 = vmatprep.subr.bf16.mxu0 0
      %3568 = vmatpush1.bf16.msra.mxu0 0
      %3569 = vmatprep.subr.bf16.mxu0 0
      %3570 = vmatpush1.bf16.msra.mxu0 0
      %3571 = vmatprep.mubr.bf16.mxu0 0
      %3572 = vmatmul.mubr.bf16.gmra.mrb[0].mxu0 %v3390
      %v3573 = vpop.f32.mrb[0].mxu0
      %v3574 = vadd.f32 0.0, %v3573
      %v3575 = vpop.f32.mrb[0].mxu0
      %v3576 = vadd.f32 0.0, %v3575
      %v3577 = vpop.f32.mrb[0].mxu0
      %v3578 = vpop.f32.mrb[0].mxu0
      %3579 = vdwg.mxu0
      %v3580 = vadd.f32 %v3352, %v3451
      %v3581 = vadd.f32 %v3353, %v3453
      %v3582 = vadd.f32 %v3354, %v3492
      %v3583 = vadd.f32 %v3355, %v3494
      %v3584 = vadd.f32 %v3356, %v3533
      %v3585 = vadd.f32 %v3357, %v3535
      %v3586 = vadd.f32 %v3358, %v3574
      %v3587 = vadd.f32 %v3359, %v3576
      %s3588 = scalar_lea.vmem %s1, 56
      %v3589 = vld [vmem:[%s3588] sm:$0xf]
      %3590 = vrot.lane.b32.xlu0 %v432, 60
      %v3591 = vpop.permute.xlu0 %3590
      %3592 = vrot.lane.b32.xlu0 %v433, 60
      %v3593 = vpop.permute.xlu0 %3592
      %3594 = vrot.lane.b32.xlu0 %v434, 60
      %v3595 = vpop.permute.xlu0 %3594
      %3596 = vrot.lane.b32.xlu0 %v435, 60
      %v3597 = vpop.permute.xlu0 %3596
      %3598 = vrot.lane.b32.xlu0 %v436, 60
      %v3599 = vpop.permute.xlu0 %3598
      %3600 = vrot.lane.b32.xlu0 %v437, 60
      %v3601 = vpop.permute.xlu0 %3600
      %3602 = vrot.lane.b32.xlu0 %v438, 60
      %v3603 = vpop.permute.xlu0 %3602
      %3604 = vrot.lane.b32.xlu0 %v439, 60
      %v3605 = vpop.permute.xlu0 %3604
      %3606 = vrot.lane.b32.xlu0 %v440, 60
      %v3607 = vpop.permute.xlu0 %3606
      %vm3608 = vcmask 490496
      %v3609 = vsel %vm3608, %v3591, %v3593
      %v3610 = vsel %vm3608, %v3593, %v3595
      %v3611 = vsel %vm3608, %v3595, %v3597
      %v3612 = vsel %vm3608, %v3597, %v3599
      %v3613 = vsel %vm3608, %v3599, %v3601
      %v3614 = vsel %vm3608, %v3601, %v3603
      %v3615 = vsel %vm3608, %v3603, %v3605
      %v3616 = vsel %vm3608, %v3605, %v3607
      %v3618 = vsel %vm468, %v3589, 0
      %v3621 = vsel %vm472, %v3609, 0
      %v3624 = vsel %vm472, %v3610, 0
      %v3627 = vsel %vm472, %v3611, 0
      %v3630 = vsel %vm472, %v3612, 0
      %v3633 = vsel %vm472, %v3613, 0
      %v3636 = vsel %vm472, %v3614, 0
      %v3639 = vsel %vm472, %v3615, 0
      %v3642 = vsel %vm472, %v3616, 0
      %3644 = vmatprep.subr.bf16.mxu0 %v3624
      %3645 = vmatpush1.bf16.msra.mxu0 %v3621
      %3646 = vmatprep.subr.bf16.mxu0 0
      %3647 = vmatpush1.bf16.msra.mxu0 0
      %3648 = vmatprep.subr.bf16.mxu0 0
      %3649 = vmatpush1.bf16.msra.mxu0 0
      %3650 = vmatprep.subr.bf16.mxu0 0
      %3651 = vmatpush1.bf16.msra.mxu0 0
      %3652 = vmatprep.subr.bf16.mxu0 0
      %3653 = vmatpush1.bf16.msra.mxu0 0
      %3654 = vmatprep.subr.bf16.mxu0 0
      %3655 = vmatpush1.bf16.msra.mxu0 0
      %3656 = vmatprep.subr.bf16.mxu0 0
      %3657 = vmatpush1.bf16.msra.mxu0 0
      %3658 = vmatprep.subr.bf16.mxu0 0
      %3659 = vmatpush1.bf16.msra.mxu0 0
      %3660 = vmatprep.subr.bf16.mxu0 0
      %3661 = vmatpush1.bf16.msra.mxu0 0
      %3662 = vmatprep.subr.bf16.mxu0 0
      %3663 = vmatpush1.bf16.msra.mxu0 0
      %3664 = vmatprep.subr.bf16.mxu0 0
      %3665 = vmatpush1.bf16.msra.mxu0 0
      %3666 = vmatprep.subr.bf16.mxu0 0
      %3667 = vmatpush1.bf16.msra.mxu0 0
      %3668 = vmatprep.subr.bf16.mxu0 0
      %3669 = vmatpush1.bf16.msra.mxu0 0
      %3670 = vmatprep.subr.bf16.mxu0 0
      %3671 = vmatpush1.bf16.msra.mxu0 0
      %3672 = vmatprep.subr.bf16.mxu0 0
      %3673 = vmatpush1.bf16.msra.mxu0 0
      %3674 = vmatprep.subr.bf16.mxu0 0
      %3675 = vmatpush1.bf16.msra.mxu0 0
      %3676 = vmatprep.mubr.bf16.mxu0 0
      %3677 = vmatmul.mubr.bf16.gmra.mrb[0].mxu0 %v3618
      %v3678 = vpop.f32.mrb[0].mxu0
      %v3679 = vadd.f32 0.0, %v3678
      %v3680 = vpop.f32.mrb[0].mxu0
      %v3681 = vadd.f32 0.0, %v3680
      %v3682 = vpop.f32.mrb[0].mxu0
      %v3683 = vpop.f32.mrb[0].mxu0
      %3684 = vdwg.mxu0
      %3685 = vmatprep.subr.bf16.mxu0 %v3630
      %3686 = vmatpush1.bf16.msra.mxu0 %v3627
      %3687 = vmatprep.subr.bf16.mxu0 0
      %3688 = vmatpush1.bf16.msra.mxu0 0
      %3689 = vmatprep.subr.bf16.mxu0 0
      %3690 = vmatpush1.bf16.msra.mxu0 0
      %3691 = vmatprep.subr.bf16.mxu0 0
      %3692 = vmatpush1.bf16.msra.mxu0 0
      %3693 = vmatprep.subr.bf16.mxu0 0
      %3694 = vmatpush1.bf16.msra.mxu0 0
      %3695 = vmatprep.subr.bf16.mxu0 0
      %3696 = vmatpush1.bf16.msra.mxu0 0
      %3697 = vmatprep.subr.bf16.mxu0 0
      %3698 = vmatpush1.bf16.msra.mxu0 0
      %3699 = vmatprep.subr.bf16.mxu0 0
      %3700 = vmatpush1.bf16.msra.mxu0 0
      %3701 = vmatprep.subr.bf16.mxu0 0
      %3702 = vmatpush1.bf16.msra.mxu0 0
      %3703 = vmatprep.subr.bf16.mxu0 0
      %3704 = vmatpush1.bf16.msra.mxu0 0
      %3705 = vmatprep.subr.bf16.mxu0 0
      %3706 = vmatpush1.bf16.msra.mxu0 0
      %3707 = vmatprep.subr.bf16.mxu0 0
      %3708 = vmatpush1.bf16.msra.mxu0 0
      %3709 = vmatprep.subr.bf16.mxu0 0
      %3710 = vmatpush1.bf16.msra.mxu0 0
      %3711 = vmatprep.subr.bf16.mxu0 0
      %3712 = vmatpush1.bf16.msra.mxu0 0
      %3713 = vmatprep.subr.bf16.mxu0 0
      %3714 = vmatpush1.bf16.msra.mxu0 0
      %3715 = vmatprep.subr.bf16.mxu0 0
      %3716 = vmatpush1.bf16.msra.mxu0 0
      %3717 = vmatprep.mubr.bf16.mxu0 0
      %3718 = vmatmul.mubr.bf16.gmra.mrb[0].mxu0 %v3618
      %v3719 = vpop.f32.mrb[0].mxu0
      %v3720 = vadd.f32 0.0, %v3719
      %v3721 = vpop.f32.mrb[0].mxu0
      %v3722 = vadd.f32 0.0, %v3721
      %v3723 = vpop.f32.mrb[0].mxu0
      %v3724 = vpop.f32.mrb[0].mxu0
      %3725 = vdwg.mxu0
      %3726 = vmatprep.subr.bf16.mxu0 %v3636
      %3727 = vmatpush1.bf16.msra.mxu0 %v3633
      %3728 = vmatprep.subr.bf16.mxu0 0
      %3729 = vmatpush1.bf16.msra.mxu0 0
      %3730 = vmatprep.subr.bf16.mxu0 0
      %3731 = vmatpush1.bf16.msra.mxu0 0
      %3732 = vmatprep.subr.bf16.mxu0 0
      %3733 = vmatpush1.bf16.msra.mxu0 0
      %3734 = vmatprep.subr.bf16.mxu0 0
      %3735 = vmatpush1.bf16.msra.mxu0 0
      %3736 = vmatprep.subr.bf16.mxu0 0
      %3737 = vmatpush1.bf16.msra.mxu0 0
      %3738 = vmatprep.subr.bf16.mxu0 0
      %3739 = vmatpush1.bf16.msra.mxu0 0
      %3740 = vmatprep.subr.bf16.mxu0 0
      %3741 = vmatpush1.bf16.msra.mxu0 0
      %3742 = vmatprep.subr.bf16.mxu0 0
      %3743 = vmatpush1.bf16.msra.mxu0 0
      %3744 = vmatprep.subr.bf16.mxu0 0
      %3745 = vmatpush1.bf16.msra.mxu0 0
      %3746 = vmatprep.subr.bf16.mxu0 0
      %3747 = vmatpush1.bf16.msra.mxu0 0
      %3748 = vmatprep.subr.bf16.mxu0 0
      %3749 = vmatpush1.bf16.msra.mxu0 0
      %3750 = vmatprep.subr.bf16.mxu0 0
      %3751 = vmatpush1.bf16.msra.mxu0 0
      %3752 = vmatprep.subr.bf16.mxu0 0
      %3753 = vmatpush1.bf16.msra.mxu0 0
      %3754 = vmatprep.subr.bf16.mxu0 0
      %3755 = vmatpush1.bf16.msra.mxu0 0
      %3756 = vmatprep.subr.bf16.mxu0 0
      %3757 = vmatpush1.bf16.msra.mxu0 0
      %3758 = vmatprep.mubr.bf16.mxu0 0
      %3759 = vmatmul.mubr.bf16.gmra.mrb[0].mxu0 %v3618
      %v3760 = vpop.f32.mrb[0].mxu0
      %v3761 = vadd.f32 0.0, %v3760
      %v3762 = vpop.f32.mrb[0].mxu0
      %v3763 = vadd.f32 0.0, %v3762
      %v3764 = vpop.f32.mrb[0].mxu0
      %v3765 = vpop.f32.mrb[0].mxu0
      %3766 = vdwg.mxu0
      %3767 = vmatprep.subr.bf16.mxu0 %v3642
      %3768 = vmatpush1.bf16.msra.mxu0 %v3639
      %3769 = vmatprep.subr.bf16.mxu0 0
      %3770 = vmatpush1.bf16.msra.mxu0 0
      %3771 = vmatprep.subr.bf16.mxu0 0
      %3772 = vmatpush1.bf16.msra.mxu0 0
      %3773 = vmatprep.subr.bf16.mxu0 0
      %3774 = vmatpush1.bf16.msra.mxu0 0
      %3775 = vmatprep.subr.bf16.mxu0 0
      %3776 = vmatpush1.bf16.msra.mxu0 0
      %3777 = vmatprep.subr.bf16.mxu0 0
      %3778 = vmatpush1.bf16.msra.mxu0 0
      %3779 = vmatprep.subr.bf16.mxu0 0
      %3780 = vmatpush1.bf16.msra.mxu0 0
      %3781 = vmatprep.subr.bf16.mxu0 0
      %3782 = vmatpush1.bf16.msra.mxu0 0
      %3783 = vmatprep.subr.bf16.mxu0 0
      %3784 = vmatpush1.bf16.msra.mxu0 0
      %3785 = vmatprep.subr.bf16.mxu0 0
      %3786 = vmatpush1.bf16.msra.mxu0 0
      %3787 = vmatprep.subr.bf16.mxu0 0
      %3788 = vmatpush1.bf16.msra.mxu0 0
      %3789 = vmatprep.subr.bf16.mxu0 0
      %3790 = vmatpush1.bf16.msra.mxu0 0
      %3791 = vmatprep.subr.bf16.mxu0 0
      %3792 = vmatpush1.bf16.msra.mxu0 0
      %3793 = vmatprep.subr.bf16.mxu0 0
      %3794 = vmatpush1.bf16.msra.mxu0 0
      %3795 = vmatprep.subr.bf16.mxu0 0
      %3796 = vmatpush1.bf16.msra.mxu0 0
      %3797 = vmatprep.subr.bf16.mxu0 0
      %3798 = vmatpush1.bf16.msra.mxu0 0
      %3799 = vmatprep.mubr.bf16.mxu0 0
      %3800 = vmatmul.mubr.bf16.gmra.mrb[0].mxu0 %v3618
      %v3801 = vpop.f32.mrb[0].mxu0
      %v3802 = vadd.f32 0.0, %v3801
      %v3803 = vpop.f32.mrb[0].mxu0
      %v3804 = vadd.f32 0.0, %v3803
      %v3805 = vpop.f32.mrb[0].mxu0
      %v3806 = vpop.f32.mrb[0].mxu0
      %3807 = vdwg.mxu0
      %v3808 = vadd.f32 %v3580, %v3679
      %v3809 = vadd.f32 %v3581, %v3681
      %v3810 = vadd.f32 %v3582, %v3720
      %v3811 = vadd.f32 %v3583, %v3722
      %v3812 = vadd.f32 %v3584, %v3761
      %v3813 = vadd.f32 %v3585, %v3763
      %v3814 = vadd.f32 %v3586, %v3802
      %v3815 = vadd.f32 %v3587, %v3804
      %s3816 = scalar_lea.vmem %s1, 60
      %v3817 = vld [vmem:[%s3816] sm:$0xf]
      %3818 = vrot.lane.b32.xlu0 %v432, 32
      %v3819 = vpop.permute.xlu0 %3818
      %3820 = vrot.lane.b32.xlu0 %v433, 32
      %v3821 = vpop.permute.xlu0 %3820
      %3822 = vrot.lane.b32.xlu0 %v434, 32
      %v3823 = vpop.permute.xlu0 %3822
      %3824 = vrot.lane.b32.xlu0 %v435, 32
      %v3825 = vpop.permute.xlu0 %3824
      %3826 = vrot.lane.b32.xlu0 %v436, 32
      %v3827 = vpop.permute.xlu0 %3826
      %3828 = vrot.lane.b32.xlu0 %v437, 32
      %v3829 = vpop.permute.xlu0 %3828
      %3830 = vrot.lane.b32.xlu0 %v438, 32
      %v3831 = vpop.permute.xlu0 %3830
      %3832 = vrot.lane.b32.xlu0 %v439, 32
      %v3833 = vpop.permute.xlu0 %3832
      %3834 = vrot.lane.b32.xlu0 %v440, 32
      %v3835 = vpop.permute.xlu0 %3834
      %vm3836 = vcmask 261120
      %v3837 = vsel %vm3836, %v3819, %v3821
      %v3838 = vsel %vm3836, %v3821, %v3823
      %v3839 = vsel %vm3836, %v3823, %v3825
      %v3840 = vsel %vm3836, %v3825, %v3827
      %v3841 = vsel %vm3836, %v3827, %v3829
      %v3842 = vsel %vm3836, %v3829, %v3831
      %v3843 = vsel %vm3836, %v3831, %v3833
      %v3844 = vsel %vm3836, %v3833, %v3835
      %v3846 = vsel %vm468, %v3817, 0
      %v3849 = vsel %vm472, %v3837, 0
      %v3852 = vsel %vm472, %v3838, 0
      %v3855 = vsel %vm472, %v3839, 0
      %v3858 = vsel %vm472, %v3840, 0
      %v3861 = vsel %vm472, %v3841, 0
      %v3864 = vsel %vm472, %v3842, 0
      %v3867 = vsel %vm472, %v3843, 0
      %v3870 = vsel %vm472, %v3844, 0
      %3872 = vmatprep.subr.bf16.mxu0 %v3852
      %3873 = vmatpush1.bf16.msra.mxu0 %v3849
      %3874 = vmatprep.subr.bf16.mxu0 0
      %3875 = vmatpush1.bf16.msra.mxu0 0
      %3876 = vmatprep.subr.bf16.mxu0 0
      %3877 = vmatpush1.bf16.msra.mxu0 0
      %3878 = vmatprep.subr.bf16.mxu0 0
      %3879 = vmatpush1.bf16.msra.mxu0 0
      %3880 = vmatprep.subr.bf16.mxu0 0
      %3881 = vmatpush1.bf16.msra.mxu0 0
      %3882 = vmatprep.subr.bf16.mxu0 0
      %3883 = vmatpush1.bf16.msra.mxu0 0
      %3884 = vmatprep.subr.bf16.mxu0 0
      %3885 = vmatpush1.bf16.msra.mxu0 0
      %3886 = vmatprep.subr.bf16.mxu0 0
      %3887 = vmatpush1.bf16.msra.mxu0 0
      %3888 = vmatprep.subr.bf16.mxu0 0
      %3889 = vmatpush1.bf16.msra.mxu0 0
      %3890 = vmatprep.subr.bf16.mxu0 0
      %3891 = vmatpush1.bf16.msra.mxu0 0
      %3892 = vmatprep.subr.bf16.mxu0 0
      %3893 = vmatpush1.bf16.msra.mxu0 0
      %3894 = vmatprep.subr.bf16.mxu0 0
      %3895 = vmatpush1.bf16.msra.mxu0 0
      %3896 = vmatprep.subr.bf16.mxu0 0
      %3897 = vmatpush1.bf16.msra.mxu0 0
      %3898 = vmatprep.subr.bf16.mxu0 0
      %3899 = vmatpush1.bf16.msra.mxu0 0
      %3900 = vmatprep.subr.bf16.mxu0 0
      %3901 = vmatpush1.bf16.msra.mxu0 0
      %3902 = vmatprep.subr.bf16.mxu0 0
      %3903 = vmatpush1.bf16.msra.mxu0 0
      %3904 = vmatprep.mubr.bf16.mxu0 0
      %3905 = vmatmul.mubr.bf16.gmra.mrb[0].mxu0 %v3846
      %v3906 = vpop.f32.mrb[0].mxu0
      %v3907 = vadd.f32 0.0, %v3906
      %v3908 = vpop.f32.mrb[0].mxu0
      %v3909 = vadd.f32 0.0, %v3908
      %v3910 = vpop.f32.mrb[0].mxu0
      %v3911 = vpop.f32.mrb[0].mxu0
      %3912 = vdwg.mxu0
      %3913 = vmatprep.subr.bf16.mxu0 %v3858
      %3914 = vmatpush1.bf16.msra.mxu0 %v3855
      %3915 = vmatprep.subr.bf16.mxu0 0
      %3916 = vmatpush1.bf16.msra.mxu0 0
      %3917 = vmatprep.subr.bf16.mxu0 0
      %3918 = vmatpush1.bf16.msra.mxu0 0
      %3919 = vmatprep.subr.bf16.mxu0 0
      %3920 = vmatpush1.bf16.msra.mxu0 0
      %3921 = vmatprep.subr.bf16.mxu0 0
      %3922 = vmatpush1.bf16.msra.mxu0 0
      %3923 = vmatprep.subr.bf16.mxu0 0
      %3924 = vmatpush1.bf16.msra.mxu0 0
      %3925 = vmatprep.subr.bf16.mxu0 0
      %3926 = vmatpush1.bf16.msra.mxu0 0
      %3927 = vmatprep.subr.bf16.mxu0 0
      %3928 = vmatpush1.bf16.msra.mxu0 0
      %3929 = vmatprep.subr.bf16.mxu0 0
      %3930 = vmatpush1.bf16.msra.mxu0 0
      %3931 = vmatprep.subr.bf16.mxu0 0
      %3932 = vmatpush1.bf16.msra.mxu0 0
      %3933 = vmatprep.subr.bf16.mxu0 0
      %3934 = vmatpush1.bf16.msra.mxu0 0
      %3935 = vmatprep.subr.bf16.mxu0 0
      %3936 = vmatpush1.bf16.msra.mxu0 0
      %3937 = vmatprep.subr.bf16.mxu0 0
      %3938 = vmatpush1.bf16.msra.mxu0 0
      %3939 = vmatprep.subr.bf16.mxu0 0
      %3940 = vmatpush1.bf16.msra.mxu0 0
      %3941 = vmatprep.subr.bf16.mxu0 0
      %3942 = vmatpush1.bf16.msra.mxu0 0
      %3943 = vmatprep.subr.bf16.mxu0 0
      %3944 = vmatpush1.bf16.msra.mxu0 0
      %3945 = vmatprep.mubr.bf16.mxu0 0
      %3946 = vmatmul.mubr.bf16.gmra.mrb[0].mxu0 %v3846
      %v3947 = vpop.f32.mrb[0].mxu0
      %v3948 = vadd.f32 0.0, %v3947
      %v3949 = vpop.f32.mrb[0].mxu0
      %v3950 = vadd.f32 0.0, %v3949
      %v3951 = vpop.f32.mrb[0].mxu0
      %v3952 = vpop.f32.mrb[0].mxu0
      %3953 = vdwg.mxu0
      %3954 = vmatprep.subr.bf16.mxu0 %v3864
      %3955 = vmatpush1.bf16.msra.mxu0 %v3861
      %3956 = vmatprep.subr.bf16.mxu0 0
      %3957 = vmatpush1.bf16.msra.mxu0 0
      %3958 = vmatprep.subr.bf16.mxu0 0
      %3959 = vmatpush1.bf16.msra.mxu0 0
      %3960 = vmatprep.subr.bf16.mxu0 0
      %3961 = vmatpush1.bf16.msra.mxu0 0
      %3962 = vmatprep.subr.bf16.mxu0 0
      %3963 = vmatpush1.bf16.msra.mxu0 0
      %3964 = vmatprep.subr.bf16.mxu0 0
      %3965 = vmatpush1.bf16.msra.mxu0 0
      %3966 = vmatprep.subr.bf16.mxu0 0
      %3967 = vmatpush1.bf16.msra.mxu0 0
      %3968 = vmatprep.subr.bf16.mxu0 0
      %3969 = vmatpush1.bf16.msra.mxu0 0
      %3970 = vmatprep.subr.bf16.mxu0 0
      %3971 = vmatpush1.bf16.msra.mxu0 0
      %3972 = vmatprep.subr.bf16.mxu0 0
      %3973 = vmatpush1.bf16.msra.mxu0 0
      %3974 = vmatprep.subr.bf16.mxu0 0
      %3975 = vmatpush1.bf16.msra.mxu0 0
      %3976 = vmatprep.subr.bf16.mxu0 0
      %3977 = vmatpush1.bf16.msra.mxu0 0
      %3978 = vmatprep.subr.bf16.mxu0 0
      %3979 = vmatpush1.bf16.msra.mxu0 0
      %3980 = vmatprep.subr.bf16.mxu0 0
      %3981 = vmatpush1.bf16.msra.mxu0 0
      %3982 = vmatprep.subr.bf16.mxu0 0
      %3983 = vmatpush1.bf16.msra.mxu0 0
      %3984 = vmatprep.subr.bf16.mxu0 0
      %3985 = vmatpush1.bf16.msra.mxu0 0
      %3986 = vmatprep.mubr.bf16.mxu0 0
      %3987 = vmatmul.mubr.bf16.gmra.mrb[0].mxu0 %v3846
      %v3988 = vpop.f32.mrb[0].mxu0
      %v3989 = vadd.f32 0.0, %v3988
      %v3990 = vpop.f32.mrb[0].mxu0
      %v3991 = vadd.f32 0.0, %v3990
      %v3992 = vpop.f32.mrb[0].mxu0
      %v3993 = vpop.f32.mrb[0].mxu0
      %3994 = vdwg.mxu0
      %3995 = vmatprep.subr.bf16.mxu0 %v3870
      %3996 = vmatpush1.bf16.msra.mxu0 %v3867
      %3997 = vmatprep.subr.bf16.mxu0 0
      %3998 = vmatpush1.bf16.msra.mxu0 0
      %3999 = vmatprep.subr.bf16.mxu0 0
      %4000 = vmatpush1.bf16.msra.mxu0 0
      %4001 = vmatprep.subr.bf16.mxu0 0
      %4002 = vmatpush1.bf16.msra.mxu0 0
      %4003 = vmatprep.subr.bf16.mxu0 0
      %4004 = vmatpush1.bf16.msra.mxu0 0
      %4005 = vmatprep.subr.bf16.mxu0 0
      %4006 = vmatpush1.bf16.msra.mxu0 0
      %4007 = vmatprep.subr.bf16.mxu0 0
      %4008 = vmatpush1.bf16.msra.mxu0 0
      %4009 = vmatprep.subr.bf16.mxu0 0
      %4010 = vmatpush1.bf16.msra.mxu0 0
      %4011 = vmatprep.subr.bf16.mxu0 0
      %4012 = vmatpush1.bf16.msra.mxu0 0
      %4013 = vmatprep.subr.bf16.mxu0 0
      %4014 = vmatpush1.bf16.msra.mxu0 0
      %4015 = vmatprep.subr.bf16.mxu0 0
      %4016 = vmatpush1.bf16.msra.mxu0 0
      %4017 = vmatprep.subr.bf16.mxu0 0
      %4018 = vmatpush1.bf16.msra.mxu0 0
      %4019 = vmatprep.subr.bf16.mxu0 0
      %4020 = vmatpush1.bf16.msra.mxu0 0
      %4021 = vmatprep.subr.bf16.mxu0 0
      %4022 = vmatpush1.bf16.msra.mxu0 0
      %4023 = vmatprep.subr.bf16.mxu0 0
      %4024 = vmatpush1.bf16.msra.mxu0 0
      %4025 = vmatprep.subr.bf16.mxu0 0
      %4026 = vmatpush1.bf16.msra.mxu0 0
      %4027 = vmatprep.mubr.bf16.mxu0 0
      %4028 = vmatmul.mubr.bf16.gmra.mrb[0].mxu0 %v3846
      %v4029 = vpop.f32.mrb[0].mxu0
      %v4030 = vadd.f32 0.0, %v4029
      %v4031 = vpop.f32.mrb[0].mxu0
      %v4032 = vadd.f32 0.0, %v4031
      %v4033 = vpop.f32.mrb[0].mxu0
      %v4034 = vpop.f32.mrb[0].mxu0
      %4035 = vdwg.mxu0
      %v4036 = vadd.f32 %v3808, %v3907
      %v4037 = vadd.f32 %v3809, %v3909
      %v4038 = vadd.f32 %v3810, %v3948
      %v4039 = vadd.f32 %v3811, %v3950
      %v4040 = vadd.f32 %v3812, %v3989
      %v4041 = vadd.f32 %v3813, %v3991
      %v4042 = vadd.f32 %v3814, %v4030
      %v4043 = vadd.f32 %v3815, %v4032
      %s4044 = scalar_lea.vmem %s1, 64
      %v4045 = vld [vmem:[%s4044] sm:$0xf]
      %4046 = vrot.lane.b32.xlu0 %v432, 31
      %v4047 = vpop.permute.xlu0 %4046
      %4048 = vrot.lane.b32.xlu0 %v433, 31
      %v4049 = vpop.permute.xlu0 %4048
      %4050 = vrot.lane.b32.xlu0 %v434, 31
      %v4051 = vpop.permute.xlu0 %4050
      %4052 = vrot.lane.b32.xlu0 %v435, 31
      %v4053 = vpop.permute.xlu0 %4052
      %4054 = vrot.lane.b32.xlu0 %v436, 31
      %v4055 = vpop.permute.xlu0 %4054
      %4056 = vrot.lane.b32.xlu0 %v437, 31
      %v4057 = vpop.permute.xlu0 %4056
      %4058 = vrot.lane.b32.xlu0 %v438, 31
      %v4059 = vpop.permute.xlu0 %4058
      %4060 = vrot.lane.b32.xlu0 %v439, 31
      %v4061 = vpop.permute.xlu0 %4060
      %4062 = vrot.lane.b32.xlu0 %v440, 31
      %v4063 = vpop.permute.xlu0 %4062
      %vm4064 = vcmask 252928
      %v4065 = vsel %vm4064, %v4047, %v4049
      %v4066 = vsel %vm4064, %v4049, %v4051
      %v4067 = vsel %vm4064, %v4051, %v4053
      %v4068 = vsel %vm4064, %v4053, %v4055
      %v4069 = vsel %vm4064, %v4055, %v4057
      %v4070 = vsel %vm4064, %v4057, %v4059
      %v4071 = vsel %vm4064, %v4059, %v4061
      %v4072 = vsel %vm4064, %v4061, %v4063
      %v4074 = vsel %vm468, %v4045, 0
      %v4077 = vsel %vm472, %v4065, 0
      %v4080 = vsel %vm472, %v4066, 0
      %v4083 = vsel %vm472, %v4067, 0
      %v4086 = vsel %vm472, %v4068, 0
      %v4089 = vsel %vm472, %v4069, 0
      %v4092 = vsel %vm472, %v4070, 0
      %v4095 = vsel %vm472, %v4071, 0
      %v4098 = vsel %vm472, %v4072, 0
      %4100 = vmatprep.subr.bf16.mxu0 %v4080
      %4101 = vmatpush1.bf16.msra.mxu0 %v4077
      %4102 = vmatprep.subr.bf16.mxu0 0
      %4103 = vmatpush1.bf16.msra.mxu0 0
      %4104 = vmatprep.subr.bf16.mxu0 0
      %4105 = vmatpush1.bf16.msra.mxu0 0
      %4106 = vmatprep.subr.bf16.mxu0 0
      %4107 = vmatpush1.bf16.msra.mxu0 0
      %4108 = vmatprep.subr.bf16.mxu0 0
      %4109 = vmatpush1.bf16.msra.mxu0 0
      %4110 = vmatprep.subr.bf16.mxu0 0
      %4111 = vmatpush1.bf16.msra.mxu0 0
      %4112 = vmatprep.subr.bf16.mxu0 0
      %4113 = vmatpush1.bf16.msra.mxu0 0
      %4114 = vmatprep.subr.bf16.mxu0 0
      %4115 = vmatpush1.bf16.msra.mxu0 0
      %4116 = vmatprep.subr.bf16.mxu0 0
      %4117 = vmatpush1.bf16.msra.mxu0 0
      %4118 = vmatprep.subr.bf16.mxu0 0
      %4119 = vmatpush1.bf16.msra.mxu0 0
      %4120 = vmatprep.subr.bf16.mxu0 0
      %4121 = vmatpush1.bf16.msra.mxu0 0
      %4122 = vmatprep.subr.bf16.mxu0 0
      %4123 = vmatpush1.bf16.msra.mxu0 0
      %4124 = vmatprep.subr.bf16.mxu0 0
      %4125 = vmatpush1.bf16.msra.mxu0 0
      %4126 = vmatprep.subr.bf16.mxu0 0
      %4127 = vmatpush1.bf16.msra.mxu0 0
      %4128 = vmatprep.subr.bf16.mxu0 0
      %4129 = vmatpush1.bf16.msra.mxu0 0
      %4130 = vmatprep.subr.bf16.mxu0 0
      %4131 = vmatpush1.bf16.msra.mxu0 0
      %4132 = vmatprep.mubr.bf16.mxu0 0
      %4133 = vmatmul.mubr.bf16.gmra.mrb[0].mxu0 %v4074
      %v4134 = vpop.f32.mrb[0].mxu0
      %v4135 = vadd.f32 0.0, %v4134
      %v4136 = vpop.f32.mrb[0].mxu0
      %v4137 = vadd.f32 0.0, %v4136
      %v4138 = vpop.f32.mrb[0].mxu0
      %v4139 = vpop.f32.mrb[0].mxu0
      %4140 = vdwg.mxu0
      %4141 = vmatprep.subr.bf16.mxu0 %v4086
      %4142 = vmatpush1.bf16.msra.mxu0 %v4083
      %4143 = vmatprep.subr.bf16.mxu0 0
      %4144 = vmatpush1.bf16.msra.mxu0 0
      %4145 = vmatprep.subr.bf16.mxu0 0
      %4146 = vmatpush1.bf16.msra.mxu0 0
      %4147 = vmatprep.subr.bf16.mxu0 0
      %4148 = vmatpush1.bf16.msra.mxu0 0
      %4149 = vmatprep.subr.bf16.mxu0 0
      %4150 = vmatpush1.bf16.msra.mxu0 0
      %4151 = vmatprep.subr.bf16.mxu0 0
      %4152 = vmatpush1.bf16.msra.mxu0 0
      %4153 = vmatprep.subr.bf16.mxu0 0
      %4154 = vmatpush1.bf16.msra.mxu0 0
      %4155 = vmatprep.subr.bf16.mxu0 0
      %4156 = vmatpush1.bf16.msra.mxu0 0
      %4157 = vmatprep.subr.bf16.mxu0 0
      %4158 = vmatpush1.bf16.msra.mxu0 0
      %4159 = vmatprep.subr.bf16.mxu0 0
      %4160 = vmatpush1.bf16.msra.mxu0 0
      %4161 = vmatprep.subr.bf16.mxu0 0
      %4162 = vmatpush1.bf16.msra.mxu0 0
      %4163 = vmatprep.subr.bf16.mxu0 0
      %4164 = vmatpush1.bf16.msra.mxu0 0
      %4165 = vmatprep.subr.bf16.mxu0 0
      %4166 = vmatpush1.bf16.msra.mxu0 0
      %4167 = vmatprep.subr.bf16.mxu0 0
      %4168 = vmatpush1.bf16.msra.mxu0 0
      %4169 = vmatprep.subr.bf16.mxu0 0
      %4170 = vmatpush1.bf16.msra.mxu0 0
      %4171 = vmatprep.subr.bf16.mxu0 0
      %4172 = vmatpush1.bf16.msra.mxu0 0
      %4173 = vmatprep.mubr.bf16.mxu0 0
      %4174 = vmatmul.mubr.bf16.gmra.mrb[0].mxu0 %v4074
      %v4175 = vpop.f32.mrb[0].mxu0
      %v4176 = vadd.f32 0.0, %v4175
      %v4177 = vpop.f32.mrb[0].mxu0
      %v4178 = vadd.f32 0.0, %v4177
      %v4179 = vpop.f32.mrb[0].mxu0
      %v4180 = vpop.f32.mrb[0].mxu0
      %4181 = vdwg.mxu0
      %4182 = vmatprep.subr.bf16.mxu0 %v4092
      %4183 = vmatpush1.bf16.msra.mxu0 %v4089
      %4184 = vmatprep.subr.bf16.mxu0 0
      %4185 = vmatpush1.bf16.msra.mxu0 0
      %4186 = vmatprep.subr.bf16.mxu0 0
      %4187 = vmatpush1.bf16.msra.mxu0 0
      %4188 = vmatprep.subr.bf16.mxu0 0
      %4189 = vmatpush1.bf16.msra.mxu0 0
      %4190 = vmatprep.subr.bf16.mxu0 0
      %4191 = vmatpush1.bf16.msra.mxu0 0
      %4192 = vmatprep.subr.bf16.mxu0 0
      %4193 = vmatpush1.bf16.msra.mxu0 0
      %4194 = vmatprep.subr.bf16.mxu0 0
      %4195 = vmatpush1.bf16.msra.mxu0 0
      %4196 = vmatprep.subr.bf16.mxu0 0
      %4197 = vmatpush1.bf16.msra.mxu0 0
      %4198 = vmatprep.subr.bf16.mxu0 0
      %4199 = vmatpush1.bf16.msra.mxu0 0
      %4200 = vmatprep.subr.bf16.mxu0 0
      %4201 = vmatpush1.bf16.msra.mxu0 0
      %4202 = vmatprep.subr.bf16.mxu0 0
      %4203 = vmatpush1.bf16.msra.mxu0 0
      %4204 = vmatprep.subr.bf16.mxu0 0
      %4205 = vmatpush1.bf16.msra.mxu0 0
      %4206 = vmatprep.subr.bf16.mxu0 0
      %4207 = vmatpush1.bf16.msra.mxu0 0
      %4208 = vmatprep.subr.bf16.mxu0 0
      %4209 = vmatpush1.bf16.msra.mxu0 0
      %4210 = vmatprep.subr.bf16.mxu0 0
      %4211 = vmatpush1.bf16.msra.mxu0 0
      %4212 = vmatprep.subr.bf16.mxu0 0
      %4213 = vmatpush1.bf16.msra.mxu0 0
      %4214 = vmatprep.mubr.bf16.mxu0 0
      %4215 = vmatmul.mubr.bf16.gmra.mrb[0].mxu0 %v4074
      %v4216 = vpop.f32.mrb[0].mxu0
      %v4217 = vadd.f32 0.0, %v4216
      %v4218 = vpop.f32.mrb[0].mxu0
      %v4219 = vadd.f32 0.0, %v4218
      %v4220 = vpop.f32.mrb[0].mxu0
      %v4221 = vpop.f32.mrb[0].mxu0
      %4222 = vdwg.mxu0
      %4223 = vmatprep.subr.bf16.mxu0 %v4098
      %4224 = vmatpush1.bf16.msra.mxu0 %v4095
      %4225 = vmatprep.subr.bf16.mxu0 0
      %4226 = vmatpush1.bf16.msra.mxu0 0
      %4227 = vmatprep.subr.bf16.mxu0 0
      %4228 = vmatpush1.bf16.msra.mxu0 0
      %4229 = vmatprep.subr.bf16.mxu0 0
      %4230 = vmatpush1.bf16.msra.mxu0 0
      %4231 = vmatprep.subr.bf16.mxu0 0
      %4232 = vmatpush1.bf16.msra.mxu0 0
      %4233 = vmatprep.subr.bf16.mxu0 0
      %4234 = vmatpush1.bf16.msra.mxu0 0
      %4235 = vmatprep.subr.bf16.mxu0 0
      %4236 = vmatpush1.bf16.msra.mxu0 0
      %4237 = vmatprep.subr.bf16.mxu0 0
      %4238 = vmatpush1.bf16.msra.mxu0 0
      %4239 = vmatprep.subr.bf16.mxu0 0
      %4240 = vmatpush1.bf16.msra.mxu0 0
      %4241 = vmatprep.subr.bf16.mxu0 0
      %4242 = vmatpush1.bf16.msra.mxu0 0
      %4243 = vmatprep.subr.bf16.mxu0 0
      %4244 = vmatpush1.bf16.msra.mxu0 0
      %4245 = vmatprep.subr.bf16.mxu0 0
      %4246 = vmatpush1.bf16.msra.mxu0 0
      %4247 = vmatprep.subr.bf16.mxu0 0
      %4248 = vmatpush1.bf16.msra.mxu0 0
      %4249 = vmatprep.subr.bf16.mxu0 0
      %4250 = vmatpush1.bf16.msra.mxu0 0
      %4251 = vmatprep.subr.bf16.mxu0 0
      %4252 = vmatpush1.bf16.msra.mxu0 0
      %4253 = vmatprep.subr.bf16.mxu0 0
      %4254 = vmatpush1.bf16.msra.mxu0 0
      %4255 = vmatprep.mubr.bf16.mxu0 0
      %4256 = vmatmul.mubr.bf16.gmra.mrb[0].mxu0 %v4074
      %v4257 = vpop.f32.mrb[0].mxu0
      %v4258 = vadd.f32 0.0, %v4257
      %v4259 = vpop.f32.mrb[0].mxu0
      %v4260 = vadd.f32 0.0, %v4259
      %v4261 = vpop.f32.mrb[0].mxu0
      %v4262 = vpop.f32.mrb[0].mxu0
      %4263 = vdwg.mxu0
      %v4264 = vadd.f32 %v4036, %v4135
      %v4265 = vadd.f32 %v4037, %v4137
      %v4266 = vadd.f32 %v4038, %v4176
      %v4267 = vadd.f32 %v4039, %v4178
      %v4268 = vadd.f32 %v4040, %v4217
      %v4269 = vadd.f32 %v4041, %v4219
      %v4270 = vadd.f32 %v4042, %v4258
      %v4271 = vadd.f32 %v4043, %v4260
      %s4272 = scalar_lea.vmem %s1, 68
      %v4273 = vld [vmem:[%s4272] sm:$0xf]
      %4274 = vrot.lane.b32.xlu0 %v432, 30
      %v4275 = vpop.permute.xlu0 %4274
      %4276 = vrot.lane.b32.xlu0 %v433, 30
      %v4277 = vpop.permute.xlu0 %4276
      %4278 = vrot.lane.b32.xlu0 %v434, 30
      %v4279 = vpop.permute.xlu0 %4278
      %4280 = vrot.lane.b32.xlu0 %v435, 30
      %v4281 = vpop.permute.xlu0 %4280
      %4282 = vrot.lane.b32.xlu0 %v436, 30
      %v4283 = vpop.permute.xlu0 %4282
      %4284 = vrot.lane.b32.xlu0 %v437, 30
      %v4285 = vpop.permute.xlu0 %4284
      %4286 = vrot.lane.b32.xlu0 %v438, 30
      %v4287 = vpop.permute.xlu0 %4286
      %4288 = vrot.lane.b32.xlu0 %v439, 30
      %v4289 = vpop.permute.xlu0 %4288
      %4290 = vrot.lane.b32.xlu0 %v440, 30
      %v4291 = vpop.permute.xlu0 %4290
      %vm4292 = vcmask 244736
      %v4293 = vsel %vm4292, %v4275, %v4277
      %v4294 = vsel %vm4292, %v4277, %v4279
      %v4295 = vsel %vm4292, %v4279, %v4281
      %v4296 = vsel %vm4292, %v4281, %v4283
      %v4297 = vsel %vm4292, %v4283, %v4285
      %v4298 = vsel %vm4292, %v4285, %v4287
      %v4299 = vsel %vm4292, %v4287, %v4289
      %v4300 = vsel %vm4292, %v4289, %v4291
      %v4302 = vsel %vm468, %v4273, 0
      %v4305 = vsel %vm472, %v4293, 0
      %v4308 = vsel %vm472, %v4294, 0
      %v4311 = vsel %vm472, %v4295, 0
      %v4314 = vsel %vm472, %v4296, 0
      %v4317 = vsel %vm472, %v4297, 0
      %v4320 = vsel %vm472, %v4298, 0
      %v4323 = vsel %vm472, %v4299, 0
      %v4326 = vsel %vm472, %v4300, 0
      %4328 = vmatprep.subr.bf16.mxu0 %v4308
      %4329 = vmatpush1.bf16.msra.mxu0 %v4305
      %4330 = vmatprep.subr.bf16.mxu0 0
      %4331 = vmatpush1.bf16.msra.mxu0 0
      %4332 = vmatprep.subr.bf16.mxu0 0
      %4333 = vmatpush1.bf16.msra.mxu0 0
      %4334 = vmatprep.subr.bf16.mxu0 0
      %4335 = vmatpush1.bf16.msra.mxu0 0
      %4336 = vmatprep.subr.bf16.mxu0 0
      %4337 = vmatpush1.bf16.msra.mxu0 0
      %4338 = vmatprep.subr.bf16.mxu0 0
      %4339 = vmatpush1.bf16.msra.mxu0 0
      %4340 = vmatprep.subr.bf16.mxu0 0
      %4341 = vmatpush1.bf16.msra.mxu0 0
      %4342 = vmatprep.subr.bf16.mxu0 0
      %4343 = vmatpush1.bf16.msra.mxu0 0
      %4344 = vmatprep.subr.bf16.mxu0 0
      %4345 = vmatpush1.bf16.msra.mxu0 0
      %4346 = vmatprep.subr.bf16.mxu0 0
      %4347 = vmatpush1.bf16.msra.mxu0 0
      %4348 = vmatprep.subr.bf16.mxu0 0
      %4349 = vmatpush1.bf16.msra.mxu0 0
      %4350 = vmatprep.subr.bf16.mxu0 0
      %4351 = vmatpush1.bf16.msra.mxu0 0
      %4352 = vmatprep.subr.bf16.mxu0 0
      %4353 = vmatpush1.bf16.msra.mxu0 0
      %4354 = vmatprep.subr.bf16.mxu0 0
      %4355 = vmatpush1.bf16.msra.mxu0 0
      %4356 = vmatprep.subr.bf16.mxu0 0
      %4357 = vmatpush1.bf16.msra.mxu0 0
      %4358 = vmatprep.subr.bf16.mxu0 0
      %4359 = vmatpush1.bf16.msra.mxu0 0
      %4360 = vmatprep.mubr.bf16.mxu0 0
      %4361 = vmatmul.mubr.bf16.gmra.mrb[0].mxu0 %v4302
      %v4362 = vpop.f32.mrb[0].mxu0
      %v4363 = vadd.f32 0.0, %v4362
      %v4364 = vpop.f32.mrb[0].mxu0
      %v4365 = vadd.f32 0.0, %v4364
      %v4366 = vpop.f32.mrb[0].mxu0
      %v4367 = vpop.f32.mrb[0].mxu0
      %4368 = vdwg.mxu0
      %4369 = vmatprep.subr.bf16.mxu0 %v4314
      %4370 = vmatpush1.bf16.msra.mxu0 %v4311
      %4371 = vmatprep.subr.bf16.mxu0 0
      %4372 = vmatpush1.bf16.msra.mxu0 0
      %4373 = vmatprep.subr.bf16.mxu0 0
      %4374 = vmatpush1.bf16.msra.mxu0 0
      %4375 = vmatprep.subr.bf16.mxu0 0
      %4376 = vmatpush1.bf16.msra.mxu0 0
      %4377 = vmatprep.subr.bf16.mxu0 0
      %4378 = vmatpush1.bf16.msra.mxu0 0
      %4379 = vmatprep.subr.bf16.mxu0 0
      %4380 = vmatpush1.bf16.msra.mxu0 0
      %4381 = vmatprep.subr.bf16.mxu0 0
      %4382 = vmatpush1.bf16.msra.mxu0 0
      %4383 = vmatprep.subr.bf16.mxu0 0
      %4384 = vmatpush1.bf16.msra.mxu0 0
      %4385 = vmatprep.subr.bf16.mxu0 0
      %4386 = vmatpush1.bf16.msra.mxu0 0
      %4387 = vmatprep.subr.bf16.mxu0 0
      %4388 = vmatpush1.bf16.msra.mxu0 0
      %4389 = vmatprep.subr.bf16.mxu0 0
      %4390 = vmatpush1.bf16.msra.mxu0 0
      %4391 = vmatprep.subr.bf16.mxu0 0
      %4392 = vmatpush1.bf16.msra.mxu0 0
      %4393 = vmatprep.subr.bf16.mxu0 0
      %4394 = vmatpush1.bf16.msra.mxu0 0
      %4395 = vmatprep.subr.bf16.mxu0 0
      %4396 = vmatpush1.bf16.msra.mxu0 0
      %4397 = vmatprep.subr.bf16.mxu0 0
      %4398 = vmatpush1.bf16.msra.mxu0 0
      %4399 = vmatprep.subr.bf16.mxu0 0
      %4400 = vmatpush1.bf16.msra.mxu0 0
      %4401 = vmatprep.mubr.bf16.mxu0 0
      %4402 = vmatmul.mubr.bf16.gmra.mrb[0].mxu0 %v4302
      %v4403 = vpop.f32.mrb[0].mxu0
      %v4404 = vadd.f32 0.0, %v4403
      %v4405 = vpop.f32.mrb[0].mxu0
      %v4406 = vadd.f32 0.0, %v4405
      %v4407 = vpop.f32.mrb[0].mxu0
      %v4408 = vpop.f32.mrb[0].mxu0
      %4409 = vdwg.mxu0
      %4410 = vmatprep.subr.bf16.mxu0 %v4320
      %4411 = vmatpush1.bf16.msra.mxu0 %v4317
      %4412 = vmatprep.subr.bf16.mxu0 0
      %4413 = vmatpush1.bf16.msra.mxu0 0
      %4414 = vmatprep.subr.bf16.mxu0 0
      %4415 = vmatpush1.bf16.msra.mxu0 0
      %4416 = vmatprep.subr.bf16.mxu0 0
      %4417 = vmatpush1.bf16.msra.mxu0 0
      %4418 = vmatprep.subr.bf16.mxu0 0
      %4419 = vmatpush1.bf16.msra.mxu0 0
      %4420 = vmatprep.subr.bf16.mxu0 0
      %4421 = vmatpush1.bf16.msra.mxu0 0
      %4422 = vmatprep.subr.bf16.mxu0 0
      %4423 = vmatpush1.bf16.msra.mxu0 0
      %4424 = vmatprep.subr.bf16.mxu0 0
      %4425 = vmatpush1.bf16.msra.mxu0 0
      %4426 = vmatprep.subr.bf16.mxu0 0
      %4427 = vmatpush1.bf16.msra.mxu0 0
      %4428 = vmatprep.subr.bf16.mxu0 0
      %4429 = vmatpush1.bf16.msra.mxu0 0
      %4430 = vmatprep.subr.bf16.mxu0 0
      %4431 = vmatpush1.bf16.msra.mxu0 0
      %4432 = vmatprep.subr.bf16.mxu0 0
      %4433 = vmatpush1.bf16.msra.mxu0 0
      %4434 = vmatprep.subr.bf16.mxu0 0
      %4435 = vmatpush1.bf16.msra.mxu0 0
      %4436 = vmatprep.subr.bf16.mxu0 0
      %4437 = vmatpush1.bf16.msra.mxu0 0
      %4438 = vmatprep.subr.bf16.mxu0 0
      %4439 = vmatpush1.bf16.msra.mxu0 0
      %4440 = vmatprep.subr.bf16.mxu0 0
      %4441 = vmatpush1.bf16.msra.mxu0 0
      %4442 = vmatprep.mubr.bf16.mxu0 0
      %4443 = vmatmul.mubr.bf16.gmra.mrb[0].mxu0 %v4302
      %v4444 = vpop.f32.mrb[0].mxu0
      %v4445 = vadd.f32 0.0, %v4444
      %v4446 = vpop.f32.mrb[0].mxu0
      %v4447 = vadd.f32 0.0, %v4446
      %v4448 = vpop.f32.mrb[0].mxu0
      %v4449 = vpop.f32.mrb[0].mxu0
      %4450 = vdwg.mxu0
      %4451 = vmatprep.subr.bf16.mxu0 %v4326
      %4452 = vmatpush1.bf16.msra.mxu0 %v4323
      %4453 = vmatprep.subr.bf16.mxu0 0
      %4454 = vmatpush1.bf16.msra.mxu0 0
      %4455 = vmatprep.subr.bf16.mxu0 0
      %4456 = vmatpush1.bf16.msra.mxu0 0
      %4457 = vmatprep.subr.bf16.mxu0 0
      %4458 = vmatpush1.bf16.msra.mxu0 0
      %4459 = vmatprep.subr.bf16.mxu0 0
      %4460 = vmatpush1.bf16.msra.mxu0 0
      %4461 = vmatprep.subr.bf16.mxu0 0
      %4462 = vmatpush1.bf16.msra.mxu0 0
      %4463 = vmatprep.subr.bf16.mxu0 0
      %4464 = vmatpush1.bf16.msra.mxu0 0
      %4465 = vmatprep.subr.bf16.mxu0 0
      %4466 = vmatpush1.bf16.msra.mxu0 0
      %4467 = vmatprep.subr.bf16.mxu0 0
      %4468 = vmatpush1.bf16.msra.mxu0 0
      %4469 = vmatprep.subr.bf16.mxu0 0
      %4470 = vmatpush1.bf16.msra.mxu0 0
      %4471 = vmatprep.subr.bf16.mxu0 0
      %4472 = vmatpush1.bf16.msra.mxu0 0
      %4473 = vmatprep.subr.bf16.mxu0 0
      %4474 = vmatpush1.bf16.msra.mxu0 0
      %4475 = vmatprep.subr.bf16.mxu0 0
      %4476 = vmatpush1.bf16.msra.mxu0 0
      %4477 = vmatprep.subr.bf16.mxu0 0
      %4478 = vmatpush1.bf16.msra.mxu0 0
      %4479 = vmatprep.subr.bf16.mxu0 0
      %4480 = vmatpush1.bf16.msra.mxu0 0
      %4481 = vmatprep.subr.bf16.mxu0 0
      %4482 = vmatpush1.bf16.msra.mxu0 0
      %4483 = vmatprep.mubr.bf16.mxu0 0
      %4484 = vmatmul.mubr.bf16.gmra.mrb[0].mxu0 %v4302
      %v4485 = vpop.f32.mrb[0].mxu0
      %v4486 = vadd.f32 0.0, %v4485
      %v4487 = vpop.f32.mrb[0].mxu0
      %v4488 = vadd.f32 0.0, %v4487
      %v4489 = vpop.f32.mrb[0].mxu0
      %v4490 = vpop.f32.mrb[0].mxu0
      %4491 = vdwg.mxu0
      %v4492 = vadd.f32 %v4264, %v4363
      %v4493 = vadd.f32 %v4265, %v4365
      %v4494 = vadd.f32 %v4266, %v4404
      %v4495 = vadd.f32 %v4267, %v4406
      %v4496 = vadd.f32 %v4268, %v4445
      %v4497 = vadd.f32 %v4269, %v4447
      %v4498 = vadd.f32 %v4270, %v4486
      %v4499 = vadd.f32 %v4271, %v4488
      %s4500 = scalar_lea.vmem %s1, 72
      %v4501 = vld [vmem:[%s4500] sm:$0xf]
      %4502 = vrot.lane.b32.xlu0 %v432, 29
      %v4503 = vpop.permute.xlu0 %4502
      %4504 = vrot.lane.b32.xlu0 %v433, 29
      %v4505 = vpop.permute.xlu0 %4504
      %4506 = vrot.lane.b32.xlu0 %v434, 29
      %v4507 = vpop.permute.xlu0 %4506
      %4508 = vrot.lane.b32.xlu0 %v435, 29
      %v4509 = vpop.permute.xlu0 %4508
      %4510 = vrot.lane.b32.xlu0 %v436, 29
      %v4511 = vpop.permute.xlu0 %4510
      %4512 = vrot.lane.b32.xlu0 %v437, 29
      %v4513 = vpop.permute.xlu0 %4512
      %4514 = vrot.lane.b32.xlu0 %v438, 29
      %v4515 = vpop.permute.xlu0 %4514
      %4516 = vrot.lane.b32.xlu0 %v439, 29
      %v4517 = vpop.permute.xlu0 %4516
      %4518 = vrot.lane.b32.xlu0 %v440, 29
      %v4519 = vpop.permute.xlu0 %4518
      %vm4520 = vcmask 236544
      %v4521 = vsel %vm4520, %v4503, %v4505
      %v4522 = vsel %vm4520, %v4505, %v4507
      %v4523 = vsel %vm4520, %v4507, %v4509
      %v4524 = vsel %vm4520, %v4509, %v4511
      %v4525 = vsel %vm4520, %v4511, %v4513
      %v4526 = vsel %vm4520, %v4513, %v4515
      %v4527 = vsel %vm4520, %v4515, %v4517
      %v4528 = vsel %vm4520, %v4517, %v4519
      %v4530 = vsel %vm468, %v4501, 0
      %v4533 = vsel %vm472, %v4521, 0
      %v4536 = vsel %vm472, %v4522, 0
      %v4539 = vsel %vm472, %v4523, 0
      %v4542 = vsel %vm472, %v4524, 0
      %v4545 = vsel %vm472, %v4525, 0
      %v4548 = vsel %vm472, %v4526, 0
      %v4551 = vsel %vm472, %v4527, 0
      %v4554 = vsel %vm472, %v4528, 0
      %4556 = vmatprep.subr.bf16.mxu0 %v4536
      %4557 = vmatpush1.bf16.msra.mxu0 %v4533
      %4558 = vmatprep.subr.bf16.mxu0 0
      %4559 = vmatpush1.bf16.msra.mxu0 0
      %4560 = vmatprep.subr.bf16.mxu0 0
      %4561 = vmatpush1.bf16.msra.mxu0 0
      %4562 = vmatprep.subr.bf16.mxu0 0
      %4563 = vmatpush1.bf16.msra.mxu0 0
      %4564 = vmatprep.subr.bf16.mxu0 0
      %4565 = vmatpush1.bf16.msra.mxu0 0
      %4566 = vmatprep.subr.bf16.mxu0 0
      %4567 = vmatpush1.bf16.msra.mxu0 0
      %4568 = vmatprep.subr.bf16.mxu0 0
      %4569 = vmatpush1.bf16.msra.mxu0 0
      %4570 = vmatprep.subr.bf16.mxu0 0
      %4571 = vmatpush1.bf16.msra.mxu0 0
      %4572 = vmatprep.subr.bf16.mxu0 0
      %4573 = vmatpush1.bf16.msra.mxu0 0
      %4574 = vmatprep.subr.bf16.mxu0 0
      %4575 = vmatpush1.bf16.msra.mxu0 0
      %4576 = vmatprep.subr.bf16.mxu0 0
      %4577 = vmatpush1.bf16.msra.mxu0 0
      %4578 = vmatprep.subr.bf16.mxu0 0
      %4579 = vmatpush1.bf16.msra.mxu0 0
      %4580 = vmatprep.subr.bf16.mxu0 0
      %4581 = vmatpush1.bf16.msra.mxu0 0
      %4582 = vmatprep.subr.bf16.mxu0 0
      %4583 = vmatpush1.bf16.msra.mxu0 0
      %4584 = vmatprep.subr.bf16.mxu0 0
      %4585 = vmatpush1.bf16.msra.mxu0 0
      %4586 = vmatprep.subr.bf16.mxu0 0
      %4587 = vmatpush1.bf16.msra.mxu0 0
      %4588 = vmatprep.mubr.bf16.mxu0 0
      %4589 = vmatmul.mubr.bf16.gmra.mrb[0].mxu0 %v4530
      %v4590 = vpop.f32.mrb[0].mxu0
      %v4591 = vadd.f32 0.0, %v4590
      %v4592 = vpop.f32.mrb[0].mxu0
      %v4593 = vadd.f32 0.0, %v4592
      %v4594 = vpop.f32.mrb[0].mxu0
      %v4595 = vpop.f32.mrb[0].mxu0
      %4596 = vdwg.mxu0
      %4597 = vmatprep.subr.bf16.mxu0 %v4542
      %4598 = vmatpush1.bf16.msra.mxu0 %v4539
      %4599 = vmatprep.subr.bf16.mxu0 0
      %4600 = vmatpush1.bf16.msra.mxu0 0
      %4601 = vmatprep.subr.bf16.mxu0 0
      %4602 = vmatpush1.bf16.msra.mxu0 0
      %4603 = vmatprep.subr.bf16.mxu0 0
      %4604 = vmatpush1.bf16.msra.mxu0 0
      %4605 = vmatprep.subr.bf16.mxu0 0
      %4606 = vmatpush1.bf16.msra.mxu0 0
      %4607 = vmatprep.subr.bf16.mxu0 0
      %4608 = vmatpush1.bf16.msra.mxu0 0
      %4609 = vmatprep.subr.bf16.mxu0 0
      %4610 = vmatpush1.bf16.msra.mxu0 0
      %4611 = vmatprep.subr.bf16.mxu0 0
      %4612 = vmatpush1.bf16.msra.mxu0 0
      %4613 = vmatprep.subr.bf16.mxu0 0
      %4614 = vmatpush1.bf16.msra.mxu0 0
      %4615 = vmatprep.subr.bf16.mxu0 0
      %4616 = vmatpush1.bf16.msra.mxu0 0
      %4617 = vmatprep.subr.bf16.mxu0 0
      %4618 = vmatpush1.bf16.msra.mxu0 0
      %4619 = vmatprep.subr.bf16.mxu0 0
      %4620 = vmatpush1.bf16.msra.mxu0 0
      %4621 = vmatprep.subr.bf16.mxu0 0
      %4622 = vmatpush1.bf16.msra.mxu0 0
      %4623 = vmatprep.subr.bf16.mxu0 0
      %4624 = vmatpush1.bf16.msra.mxu0 0
      %4625 = vmatprep.subr.bf16.mxu0 0
      %4626 = vmatpush1.bf16.msra.mxu0 0
      %4627 = vmatprep.subr.bf16.mxu0 0
      %4628 = vmatpush1.bf16.msra.mxu0 0
      %4629 = vmatprep.mubr.bf16.mxu0 0
      %4630 = vmatmul.mubr.bf16.gmra.mrb[0].mxu0 %v4530
      %v4631 = vpop.f32.mrb[0].mxu0
      %v4632 = vadd.f32 0.0, %v4631
      %v4633 = vpop.f32.mrb[0].mxu0
      %v4634 = vadd.f32 0.0, %v4633
      %v4635 = vpop.f32.mrb[0].mxu0
      %v4636 = vpop.f32.mrb[0].mxu0
      %4637 = vdwg.mxu0
      %4638 = vmatprep.subr.bf16.mxu0 %v4548
      %4639 = vmatpush1.bf16.msra.mxu0 %v4545
      %4640 = vmatprep.subr.bf16.mxu0 0
      %4641 = vmatpush1.bf16.msra.mxu0 0
      %4642 = vmatprep.subr.bf16.mxu0 0
      %4643 = vmatpush1.bf16.msra.mxu0 0
      %4644 = vmatprep.subr.bf16.mxu0 0
      %4645 = vmatpush1.bf16.msra.mxu0 0
      %4646 = vmatprep.subr.bf16.mxu0 0
      %4647 = vmatpush1.bf16.msra.mxu0 0
      %4648 = vmatprep.subr.bf16.mxu0 0
      %4649 = vmatpush1.bf16.msra.mxu0 0
      %4650 = vmatprep.subr.bf16.mxu0 0
      %4651 = vmatpush1.bf16.msra.mxu0 0
      %4652 = vmatprep.subr.bf16.mxu0 0
      %4653 = vmatpush1.bf16.msra.mxu0 0
      %4654 = vmatprep.subr.bf16.mxu0 0
      %4655 = vmatpush1.bf16.msra.mxu0 0
      %4656 = vmatprep.subr.bf16.mxu0 0
      %4657 = vmatpush1.bf16.msra.mxu0 0
      %4658 = vmatprep.subr.bf16.mxu0 0
      %4659 = vmatpush1.bf16.msra.mxu0 0
      %4660 = vmatprep.subr.bf16.mxu0 0
      %4661 = vmatpush1.bf16.msra.mxu0 0
      %4662 = vmatprep.subr.bf16.mxu0 0
      %4663 = vmatpush1.bf16.msra.mxu0 0
      %4664 = vmatprep.subr.bf16.mxu0 0
      %4665 = vmatpush1.bf16.msra.mxu0 0
      %4666 = vmatprep.subr.bf16.mxu0 0
      %4667 = vmatpush1.bf16.msra.mxu0 0
      %4668 = vmatprep.subr.bf16.mxu0 0
      %4669 = vmatpush1.bf16.msra.mxu0 0
      %4670 = vmatprep.mubr.bf16.mxu0 0
      %4671 = vmatmul.mubr.bf16.gmra.mrb[0].mxu0 %v4530
      %v4672 = vpop.f32.mrb[0].mxu0
      %v4673 = vadd.f32 0.0, %v4672
      %v4674 = vpop.f32.mrb[0].mxu0
      %v4675 = vadd.f32 0.0, %v4674
      %v4676 = vpop.f32.mrb[0].mxu0
      %v4677 = vpop.f32.mrb[0].mxu0
      %4678 = vdwg.mxu0
      %4679 = vmatprep.subr.bf16.mxu0 %v4554
      %4680 = vmatpush1.bf16.msra.mxu0 %v4551
      %4681 = vmatprep.subr.bf16.mxu0 0
      %4682 = vmatpush1.bf16.msra.mxu0 0
      %4683 = vmatprep.subr.bf16.mxu0 0
      %4684 = vmatpush1.bf16.msra.mxu0 0
      %4685 = vmatprep.subr.bf16.mxu0 0
      %4686 = vmatpush1.bf16.msra.mxu0 0
      %4687 = vmatprep.subr.bf16.mxu0 0
      %4688 = vmatpush1.bf16.msra.mxu0 0
      %4689 = vmatprep.subr.bf16.mxu0 0
      %4690 = vmatpush1.bf16.msra.mxu0 0
      %4691 = vmatprep.subr.bf16.mxu0 0
      %4692 = vmatpush1.bf16.msra.mxu0 0
      %4693 = vmatprep.subr.bf16.mxu0 0
      %4694 = vmatpush1.bf16.msra.mxu0 0
      %4695 = vmatprep.subr.bf16.mxu0 0
      %4696 = vmatpush1.bf16.msra.mxu0 0
      %4697 = vmatprep.subr.bf16.mxu0 0
      %4698 = vmatpush1.bf16.msra.mxu0 0
      %4699 = vmatprep.subr.bf16.mxu0 0
      %4700 = vmatpush1.bf16.msra.mxu0 0
      %4701 = vmatprep.subr.bf16.mxu0 0
      %4702 = vmatpush1.bf16.msra.mxu0 0
      %4703 = vmatprep.subr.bf16.mxu0 0
      %4704 = vmatpush1.bf16.msra.mxu0 0
      %4705 = vmatprep.subr.bf16.mxu0 0
      %4706 = vmatpush1.bf16.msra.mxu0 0
      %4707 = vmatprep.subr.bf16.mxu0 0
      %4708 = vmatpush1.bf16.msra.mxu0 0
      %4709 = vmatprep.subr.bf16.mxu0 0
      %4710 = vmatpush1.bf16.msra.mxu0 0
      %4711 = vmatprep.mubr.bf16.mxu0 0
      %4712 = vmatmul.mubr.bf16.gmra.mrb[0].mxu0 %v4530
      %v4713 = vpop.f32.mrb[0].mxu0
      %v4714 = vadd.f32 0.0, %v4713
      %v4715 = vpop.f32.mrb[0].mxu0
      %v4716 = vadd.f32 0.0, %v4715
      %v4717 = vpop.f32.mrb[0].mxu0
      %v4718 = vpop.f32.mrb[0].mxu0
      %4719 = vdwg.mxu0
      %v4720 = vadd.f32 %v4492, %v4591
      %v4721 = vadd.f32 %v4493, %v4593
      %v4722 = vadd.f32 %v4494, %v4632
      %v4723 = vadd.f32 %v4495, %v4634
      %v4724 = vadd.f32 %v4496, %v4673
      %v4725 = vadd.f32 %v4497, %v4675
      %v4726 = vadd.f32 %v4498, %v4714
      %v4727 = vadd.f32 %v4499, %v4716
      %s4728 = scalar_lea.vmem %s1, 76
      %v4729 = vld [vmem:[%s4728] sm:$0xf]
      %4730 = vrot.lane.b32.xlu0 %v432, 28
      %v4731 = vpop.permute.xlu0 %4730
      %4732 = vrot.lane.b32.xlu0 %v433, 28
      %v4733 = vpop.permute.xlu0 %4732
      %4734 = vrot.lane.b32.xlu0 %v434, 28
      %v4735 = vpop.permute.xlu0 %4734
      %4736 = vrot.lane.b32.xlu0 %v435, 28
      %v4737 = vpop.permute.xlu0 %4736
      %4738 = vrot.lane.b32.xlu0 %v436, 28
      %v4739 = vpop.permute.xlu0 %4738
      %4740 = vrot.lane.b32.xlu0 %v437, 28
      %v4741 = vpop.permute.xlu0 %4740
      %4742 = vrot.lane.b32.xlu0 %v438, 28
      %v4743 = vpop.permute.xlu0 %4742
      %4744 = vrot.lane.b32.xlu0 %v439, 28
      %v4745 = vpop.permute.xlu0 %4744
      %4746 = vrot.lane.b32.xlu0 %v440, 28
      %v4747 = vpop.permute.xlu0 %4746
      %vm4748 = vcmask 228352
      %v4749 = vsel %vm4748, %v4731, %v4733
      %v4750 = vsel %vm4748, %v4733, %v4735
      %v4751 = vsel %vm4748, %v4735, %v4737
      %v4752 = vsel %vm4748, %v4737, %v4739
      %v4753 = vsel %vm4748, %v4739, %v4741
      %v4754 = vsel %vm4748, %v4741, %v4743
      %v4755 = vsel %vm4748, %v4743, %v4745
      %v4756 = vsel %vm4748, %v4745, %v4747
      %v4758 = vsel %vm468, %v4729, 0
      %v4761 = vsel %vm472, %v4749, 0
      %v4764 = vsel %vm472, %v4750, 0
      %v4767 = vsel %vm472, %v4751, 0
      %v4770 = vsel %vm472, %v4752, 0
      %v4773 = vsel %vm472, %v4753, 0
      %v4776 = vsel %vm472, %v4754, 0
      %v4779 = vsel %vm472, %v4755, 0
      %v4782 = vsel %vm472, %v4756, 0
      %4784 = vmatprep.subr.bf16.mxu0 %v4764
      %4785 = vmatpush1.bf16.msra.mxu0 %v4761
      %4786 = vmatprep.subr.bf16.mxu0 0
      %4787 = vmatpush1.bf16.msra.mxu0 0
      %4788 = vmatprep.subr.bf16.mxu0 0
      %4789 = vmatpush1.bf16.msra.mxu0 0
      %4790 = vmatprep.subr.bf16.mxu0 0
      %4791 = vmatpush1.bf16.msra.mxu0 0
      %4792 = vmatprep.subr.bf16.mxu0 0
      %4793 = vmatpush1.bf16.msra.mxu0 0
      %4794 = vmatprep.subr.bf16.mxu0 0
      %4795 = vmatpush1.bf16.msra.mxu0 0
      %4796 = vmatprep.subr.bf16.mxu0 0
      %4797 = vmatpush1.bf16.msra.mxu0 0
      %4798 = vmatprep.subr.bf16.mxu0 0
      %4799 = vmatpush1.bf16.msra.mxu0 0
      %4800 = vmatprep.subr.bf16.mxu0 0
      %4801 = vmatpush1.bf16.msra.mxu0 0
      %4802 = vmatprep.subr.bf16.mxu0 0
      %4803 = vmatpush1.bf16.msra.mxu0 0
      %4804 = vmatprep.subr.bf16.mxu0 0
      %4805 = vmatpush1.bf16.msra.mxu0 0
      %4806 = vmatprep.subr.bf16.mxu0 0
      %4807 = vmatpush1.bf16.msra.mxu0 0
      %4808 = vmatprep.subr.bf16.mxu0 0
      %4809 = vmatpush1.bf16.msra.mxu0 0
      %4810 = vmatprep.subr.bf16.mxu0 0
      %4811 = vmatpush1.bf16.msra.mxu0 0
      %4812 = vmatprep.subr.bf16.mxu0 0
      %4813 = vmatpush1.bf16.msra.mxu0 0
      %4814 = vmatprep.subr.bf16.mxu0 0
      %4815 = vmatpush1.bf16.msra.mxu0 0
      %4816 = vmatprep.mubr.bf16.mxu0 0
      %4817 = vmatmul.mubr.bf16.gmra.mrb[0].mxu0 %v4758
      %v4818 = vpop.f32.mrb[0].mxu0
      %v4819 = vadd.f32 0.0, %v4818
      %v4820 = vpop.f32.mrb[0].mxu0
      %v4821 = vadd.f32 0.0, %v4820
      %v4822 = vpop.f32.mrb[0].mxu0
      %v4823 = vpop.f32.mrb[0].mxu0
      %4824 = vdwg.mxu0
      %4825 = vmatprep.subr.bf16.mxu0 %v4770
      %4826 = vmatpush1.bf16.msra.mxu0 %v4767
      %4827 = vmatprep.subr.bf16.mxu0 0
      %4828 = vmatpush1.bf16.msra.mxu0 0
      %4829 = vmatprep.subr.bf16.mxu0 0
      %4830 = vmatpush1.bf16.msra.mxu0 0
      %4831 = vmatprep.subr.bf16.mxu0 0
      %4832 = vmatpush1.bf16.msra.mxu0 0
      %4833 = vmatprep.subr.bf16.mxu0 0
      %4834 = vmatpush1.bf16.msra.mxu0 0
      %4835 = vmatprep.subr.bf16.mxu0 0
      %4836 = vmatpush1.bf16.msra.mxu0 0
      %4837 = vmatprep.subr.bf16.mxu0 0
      %4838 = vmatpush1.bf16.msra.mxu0 0
      %4839 = vmatprep.subr.bf16.mxu0 0
      %4840 = vmatpush1.bf16.msra.mxu0 0
      %4841 = vmatprep.subr.bf16.mxu0 0
      %4842 = vmatpush1.bf16.msra.mxu0 0
      %4843 = vmatprep.subr.bf16.mxu0 0
      %4844 = vmatpush1.bf16.msra.mxu0 0
      %4845 = vmatprep.subr.bf16.mxu0 0
      %4846 = vmatpush1.bf16.msra.mxu0 0
      %4847 = vmatprep.subr.bf16.mxu0 0
      %4848 = vmatpush1.bf16.msra.mxu0 0
      %4849 = vmatprep.subr.bf16.mxu0 0
      %4850 = vmatpush1.bf16.msra.mxu0 0
      %4851 = vmatprep.subr.bf16.mxu0 0
      %4852 = vmatpush1.bf16.msra.mxu0 0
      %4853 = vmatprep.subr.bf16.mxu0 0
      %4854 = vmatpush1.bf16.msra.mxu0 0
      %4855 = vmatprep.subr.bf16.mxu0 0
      %4856 = vmatpush1.bf16.msra.mxu0 0
      %4857 = vmatprep.mubr.bf16.mxu0 0
      %4858 = vmatmul.mubr.bf16.gmra.mrb[0].mxu0 %v4758
      %v4859 = vpop.f32.mrb[0].mxu0
      %v4860 = vadd.f32 0.0, %v4859
      %v4861 = vpop.f32.mrb[0].mxu0
      %v4862 = vadd.f32 0.0, %v4861
      %v4863 = vpop.f32.mrb[0].mxu0
      %v4864 = vpop.f32.mrb[0].mxu0
      %4865 = vdwg.mxu0
      %4866 = vmatprep.subr.bf16.mxu0 %v4776
      %4867 = vmatpush1.bf16.msra.mxu0 %v4773
      %4868 = vmatprep.subr.bf16.mxu0 0
      %4869 = vmatpush1.bf16.msra.mxu0 0
      %4870 = vmatprep.subr.bf16.mxu0 0
      %4871 = vmatpush1.bf16.msra.mxu0 0
      %4872 = vmatprep.subr.bf16.mxu0 0
      %4873 = vmatpush1.bf16.msra.mxu0 0
      %4874 = vmatprep.subr.bf16.mxu0 0
      %4875 = vmatpush1.bf16.msra.mxu0 0
      %4876 = vmatprep.subr.bf16.mxu0 0
      %4877 = vmatpush1.bf16.msra.mxu0 0
      %4878 = vmatprep.subr.bf16.mxu0 0
      %4879 = vmatpush1.bf16.msra.mxu0 0
      %4880 = vmatprep.subr.bf16.mxu0 0
      %4881 = vmatpush1.bf16.msra.mxu0 0
      %4882 = vmatprep.subr.bf16.mxu0 0
      %4883 = vmatpush1.bf16.msra.mxu0 0
      %4884 = vmatprep.subr.bf16.mxu0 0
      %4885 = vmatpush1.bf16.msra.mxu0 0
      %4886 = vmatprep.subr.bf16.mxu0 0
      %4887 = vmatpush1.bf16.msra.mxu0 0
      %4888 = vmatprep.subr.bf16.mxu0 0
      %4889 = vmatpush1.bf16.msra.mxu0 0
      %4890 = vmatprep.subr.bf16.mxu0 0
      %4891 = vmatpush1.bf16.msra.mxu0 0
      %4892 = vmatprep.subr.bf16.mxu0 0
      %4893 = vmatpush1.bf16.msra.mxu0 0
      %4894 = vmatprep.subr.bf16.mxu0 0
      %4895 = vmatpush1.bf16.msra.mxu0 0
      %4896 = vmatprep.subr.bf16.mxu0 0
      %4897 = vmatpush1.bf16.msra.mxu0 0
      %4898 = vmatprep.mubr.bf16.mxu0 0
      %4899 = vmatmul.mubr.bf16.gmra.mrb[0].mxu0 %v4758
      %v4900 = vpop.f32.mrb[0].mxu0
      %v4901 = vadd.f32 0.0, %v4900
      %v4902 = vpop.f32.mrb[0].mxu0
      %v4903 = vadd.f32 0.0, %v4902
      %v4904 = vpop.f32.mrb[0].mxu0
      %v4905 = vpop.f32.mrb[0].mxu0
      %4906 = vdwg.mxu0
      %4907 = vmatprep.subr.bf16.mxu0 %v4782
      %4908 = vmatpush1.bf16.msra.mxu0 %v4779
      %4909 = vmatprep.subr.bf16.mxu0 0
      %4910 = vmatpush1.bf16.msra.mxu0 0
      %4911 = vmatprep.subr.bf16.mxu0 0
      %4912 = vmatpush1.bf16.msra.mxu0 0
      %4913 = vmatprep.subr.bf16.mxu0 0
      %4914 = vmatpush1.bf16.msra.mxu0 0
      %4915 = vmatprep.subr.bf16.mxu0 0
      %4916 = vmatpush1.bf16.msra.mxu0 0
      %4917 = vmatprep.subr.bf16.mxu0 0
      %4918 = vmatpush1.bf16.msra.mxu0 0
      %4919 = vmatprep.subr.bf16.mxu0 0
      %4920 = vmatpush1.bf16.msra.mxu0 0
      %4921 = vmatprep.subr.bf16.mxu0 0
      %4922 = vmatpush1.bf16.msra.mxu0 0
      %4923 = vmatprep.subr.bf16.mxu0 0
      %4924 = vmatpush1.bf16.msra.mxu0 0
      %4925 = vmatprep.subr.bf16.mxu0 0
      %4926 = vmatpush1.bf16.msra.mxu0 0
      %4927 = vmatprep.subr.bf16.mxu0 0
      %4928 = vmatpush1.bf16.msra.mxu0 0
      %4929 = vmatprep.subr.bf16.mxu0 0
      %4930 = vmatpush1.bf16.msra.mxu0 0
      %4931 = vmatprep.subr.bf16.mxu0 0
      %4932 = vmatpush1.bf16.msra.mxu0 0
      %4933 = vmatprep.subr.bf16.mxu0 0
      %4934 = vmatpush1.bf16.msra.mxu0 0
      %4935 = vmatprep.subr.bf16.mxu0 0
      %4936 = vmatpush1.bf16.msra.mxu0 0
      %4937 = vmatprep.subr.bf16.mxu0 0
      %4938 = vmatpush1.bf16.msra.mxu0 0
      %4939 = vmatprep.mubr.bf16.mxu0 0
      %4940 = vmatmul.mubr.bf16.gmra.mrb[0].mxu0 %v4758
      %v4941 = vpop.f32.mrb[0].mxu0
      %v4942 = vadd.f32 0.0, %v4941
      %v4943 = vpop.f32.mrb[0].mxu0
      %v4944 = vadd.f32 0.0, %v4943
      %v4945 = vpop.f32.mrb[0].mxu0
      %v4946 = vpop.f32.mrb[0].mxu0
      %4947 = vdwg.mxu0
      %v4948 = vadd.f32 %v4720, %v4819
      %v4949 = vadd.f32 %v4721, %v4821
      %v4950 = vadd.f32 %v4722, %v4860
      %v4951 = vadd.f32 %v4723, %v4862
      %v4952 = vadd.f32 %v4724, %v4901
      %v4953 = vadd.f32 %v4725, %v4903
      %v4954 = vadd.f32 %v4726, %v4942
      %v4955 = vadd.f32 %v4727, %v4944
      %s4956 = scalar_lea.vmem %s1, 80
      %v4957 = vld [vmem:[%s4956] sm:$0xf]
      %v4958 = vld [vmem:[#allocation2 + $0x4] sm:$0xff]
      %v4959 = vld [vmem:[#allocation2 + $0xc] sm:$0xff]
      %v4960 = vld [vmem:[#allocation2 + $0x14] sm:$0xff]
      %v4961 = vld [vmem:[#allocation2 + $0x1c] sm:$0xff]
      %v4966 = vunpack.c.l.b16 %v4958
      %v4967 = vunpack.c.h.b16 %v4958
      %v4968 = vunpack.c.l.b16 %v4959
      %v4969 = vunpack.c.h.b16 %v4959
      %v4970 = vunpack.c.l.b16 %v4960
      %v4971 = vunpack.c.h.b16 %v4960
      %v4972 = vunpack.c.l.b16 %v4961
      %v4973 = vunpack.c.h.b16 %v4961
      %v4974 = vpack.c.b16 %v4966, %v4966
      %v4975 = vpack.c.b16 %v4967, %v4967
      %v4976 = vpack.c.b16 %v4968, %v4968
      %v4977 = vpack.c.b16 %v4969, %v4969
      %v4978 = vpack.c.b16 %v4970, %v4970
      %v4979 = vpack.c.b16 %v4971, %v4971
      %v4980 = vpack.c.b16 %v4972, %v4972
      %v4981 = vpack.c.b16 %v4973, %v4973
      %v4983 = vsel %vm468, %v4957, 0
      %v4986 = vsel %vm472, %v4974, 0
      %v4989 = vsel %vm472, %v4975, 0
      %v4992 = vsel %vm472, %v4976, 0
      %v4995 = vsel %vm472, %v4977, 0
      %v4998 = vsel %vm472, %v4978, 0
      %v5001 = vsel %vm472, %v4979, 0
      %v5004 = vsel %vm472, %v4980, 0
      %v5007 = vsel %vm472, %v4981, 0
      %5009 = vmatprep.subr.bf16.mxu0 %v4989
      %5010 = vmatpush1.bf16.msra.mxu0 %v4986
      %5011 = vmatprep.subr.bf16.mxu0 0
      %5012 = vmatpush1.bf16.msra.mxu0 0
      %5013 = vmatprep.subr.bf16.mxu0 0
      %5014 = vmatpush1.bf16.msra.mxu0 0
      %5015 = vmatprep.subr.bf16.mxu0 0
      %5016 = vmatpush1.bf16.msra.mxu0 0
      %5017 = vmatprep.subr.bf16.mxu0 0
      %5018 = vmatpush1.bf16.msra.mxu0 0
      %5019 = vmatprep.subr.bf16.mxu0 0
      %5020 = vmatpush1.bf16.msra.mxu0 0
      %5021 = vmatprep.subr.bf16.mxu0 0
      %5022 = vmatpush1.bf16.msra.mxu0 0
      %5023 = vmatprep.subr.bf16.mxu0 0
      %5024 = vmatpush1.bf16.msra.mxu0 0
      %5025 = vmatprep.subr.bf16.mxu0 0
      %5026 = vmatpush1.bf16.msra.mxu0 0
      %5027 = vmatprep.subr.bf16.mxu0 0
      %5028 = vmatpush1.bf16.msra.mxu0 0
      %5029 = vmatprep.subr.bf16.mxu0 0
      %5030 = vmatpush1.bf16.msra.mxu0 0
      %5031 = vmatprep.subr.bf16.mxu0 0
      %5032 = vmatpush1.bf16.msra.mxu0 0
      %5033 = vmatprep.subr.bf16.mxu0 0
      %5034 = vmatpush1.bf16.msra.mxu0 0
      %5035 = vmatprep.subr.bf16.mxu0 0
      %5036 = vmatpush1.bf16.msra.mxu0 0
      %5037 = vmatprep.subr.bf16.mxu0 0
      %5038 = vmatpush1.bf16.msra.mxu0 0
      %5039 = vmatprep.subr.bf16.mxu0 0
      %5040 = vmatpush1.bf16.msra.mxu0 0
      %5041 = vmatprep.mubr.bf16.mxu0 0
      %5042 = vmatmul.mubr.bf16.gmra.mrb[0].mxu0 %v4983
      %v5043 = vpop.f32.mrb[0].mxu0
      %v5044 = vadd.f32 0.0, %v5043
      %v5045 = vpop.f32.mrb[0].mxu0
      %v5046 = vadd.f32 0.0, %v5045
      %v5047 = vpop.f32.mrb[0].mxu0
      %v5048 = vpop.f32.mrb[0].mxu0
      %5049 = vdwg.mxu0
      %5050 = vmatprep.subr.bf16.mxu0 %v4995
      %5051 = vmatpush1.bf16.msra.mxu0 %v4992
      %5052 = vmatprep.subr.bf16.mxu0 0
      %5053 = vmatpush1.bf16.msra.mxu0 0
      %5054 = vmatprep.subr.bf16.mxu0 0
      %5055 = vmatpush1.bf16.msra.mxu0 0
      %5056 = vmatprep.subr.bf16.mxu0 0
      %5057 = vmatpush1.bf16.msra.mxu0 0
      %5058 = vmatprep.subr.bf16.mxu0 0
      %5059 = vmatpush1.bf16.msra.mxu0 0
      %5060 = vmatprep.subr.bf16.mxu0 0
      %5061 = vmatpush1.bf16.msra.mxu0 0
      %5062 = vmatprep.subr.bf16.mxu0 0
      %5063 = vmatpush1.bf16.msra.mxu0 0
      %5064 = vmatprep.subr.bf16.mxu0 0
      %5065 = vmatpush1.bf16.msra.mxu0 0
      %5066 = vmatprep.subr.bf16.mxu0 0
      %5067 = vmatpush1.bf16.msra.mxu0 0
      %5068 = vmatprep.subr.bf16.mxu0 0
      %5069 = vmatpush1.bf16.msra.mxu0 0
      %5070 = vmatprep.subr.bf16.mxu0 0
      %5071 = vmatpush1.bf16.msra.mxu0 0
      %5072 = vmatprep.subr.bf16.mxu0 0
      %5073 = vmatpush1.bf16.msra.mxu0 0
      %5074 = vmatprep.subr.bf16.mxu0 0
      %5075 = vmatpush1.bf16.msra.mxu0 0
      %5076 = vmatprep.subr.bf16.mxu0 0
      %5077 = vmatpush1.bf16.msra.mxu0 0
      %5078 = vmatprep.subr.bf16.mxu0 0
      %5079 = vmatpush1.bf16.msra.mxu0 0
      %5080 = vmatprep.subr.bf16.mxu0 0
      %5081 = vmatpush1.bf16.msra.mxu0 0
      %5082 = vmatprep.mubr.bf16.mxu0 0
      %5083 = vmatmul.mubr.bf16.gmra.mrb[0].mxu0 %v4983
      %v5084 = vpop.f32.mrb[0].mxu0
      %v5085 = vadd.f32 0.0, %v5084
      %v5086 = vpop.f32.mrb[0].mxu0
      %v5087 = vadd.f32 0.0, %v5086
      %v5088 = vpop.f32.mrb[0].mxu0
      %v5089 = vpop.f32.mrb[0].mxu0
      %5090 = vdwg.mxu0
      %5091 = vmatprep.subr.bf16.mxu0 %v5001
      %5092 = vmatpush1.bf16.msra.mxu0 %v4998
      %5093 = vmatprep.subr.bf16.mxu0 0
      %5094 = vmatpush1.bf16.msra.mxu0 0
      %5095 = vmatprep.subr.bf16.mxu0 0
      %5096 = vmatpush1.bf16.msra.mxu0 0
      %5097 = vmatprep.subr.bf16.mxu0 0
      %5098 = vmatpush1.bf16.msra.mxu0 0
      %5099 = vmatprep.subr.bf16.mxu0 0
      %5100 = vmatpush1.bf16.msra.mxu0 0
      %5101 = vmatprep.subr.bf16.mxu0 0
      %5102 = vmatpush1.bf16.msra.mxu0 0
      %5103 = vmatprep.subr.bf16.mxu0 0
      %5104 = vmatpush1.bf16.msra.mxu0 0
      %5105 = vmatprep.subr.bf16.mxu0 0
      %5106 = vmatpush1.bf16.msra.mxu0 0
      %5107 = vmatprep.subr.bf16.mxu0 0
      %5108 = vmatpush1.bf16.msra.mxu0 0
      %5109 = vmatprep.subr.bf16.mxu0 0
      %5110 = vmatpush1.bf16.msra.mxu0 0
      %5111 = vmatprep.subr.bf16.mxu0 0
      %5112 = vmatpush1.bf16.msra.mxu0 0
      %5113 = vmatprep.subr.bf16.mxu0 0
      %5114 = vmatpush1.bf16.msra.mxu0 0
      %5115 = vmatprep.subr.bf16.mxu0 0
      %5116 = vmatpush1.bf16.msra.mxu0 0
      %5117 = vmatprep.subr.bf16.mxu0 0
      %5118 = vmatpush1.bf16.msra.mxu0 0
      %5119 = vmatprep.subr.bf16.mxu0 0
      %5120 = vmatpush1.bf16.msra.mxu0 0
      %5121 = vmatprep.subr.bf16.mxu0 0
      %5122 = vmatpush1.bf16.msra.mxu0 0
      %5123 = vmatprep.mubr.bf16.mxu0 0
      %5124 = vmatmul.mubr.bf16.gmra.mrb[0].mxu0 %v4983
      %v5125 = vpop.f32.mrb[0].mxu0
      %v5126 = vadd.f32 0.0, %v5125
      %v5127 = vpop.f32.mrb[0].mxu0
      %v5128 = vadd.f32 0.0, %v5127
      %v5129 = vpop.f32.mrb[0].mxu0
      %v5130 = vpop.f32.mrb[0].mxu0
      %5131 = vdwg.mxu0
      %5132 = vmatprep.subr.bf16.mxu0 %v5007
      %5133 = vmatpush1.bf16.msra.mxu0 %v5004
      %5134 = vmatprep.subr.bf16.mxu0 0
      %5135 = vmatpush1.bf16.msra.mxu0 0
      %5136 = vmatprep.subr.bf16.mxu0 0
      %5137 = vmatpush1.bf16.msra.mxu0 0
      %5138 = vmatprep.subr.bf16.mxu0 0
      %5139 = vmatpush1.bf16.msra.mxu0 0
      %5140 = vmatprep.subr.bf16.mxu0 0
      %5141 = vmatpush1.bf16.msra.mxu0 0
      %5142 = vmatprep.subr.bf16.mxu0 0
      %5143 = vmatpush1.bf16.msra.mxu0 0
      %5144 = vmatprep.subr.bf16.mxu0 0
      %5145 = vmatpush1.bf16.msra.mxu0 0
      %5146 = vmatprep.subr.bf16.mxu0 0
      %5147 = vmatpush1.bf16.msra.mxu0 0
      %5148 = vmatprep.subr.bf16.mxu0 0
      %5149 = vmatpush1.bf16.msra.mxu0 0
      %5150 = vmatprep.subr.bf16.mxu0 0
      %5151 = vmatpush1.bf16.msra.mxu0 0
      %5152 = vmatprep.subr.bf16.mxu0 0
      %5153 = vmatpush1.bf16.msra.mxu0 0
      %5154 = vmatprep.subr.bf16.mxu0 0
      %5155 = vmatpush1.bf16.msra.mxu0 0
      %5156 = vmatprep.subr.bf16.mxu0 0
      %5157 = vmatpush1.bf16.msra.mxu0 0
      %5158 = vmatprep.subr.bf16.mxu0 0
      %5159 = vmatpush1.bf16.msra.mxu0 0
      %5160 = vmatprep.subr.bf16.mxu0 0
      %5161 = vmatpush1.bf16.msra.mxu0 0
      %5162 = vmatprep.subr.bf16.mxu0 0
      %5163 = vmatpush1.bf16.msra.mxu0 0
      %5164 = vmatprep.mubr.bf16.mxu0 0
      %5165 = vmatmul.mubr.bf16.gmra.mrb[0].mxu0 %v4983
      %v5166 = vpop.f32.mrb[0].mxu0
      %v5167 = vadd.f32 0.0, %v5166
      %v5168 = vpop.f32.mrb[0].mxu0
      %v5169 = vadd.f32 0.0, %v5168
      %v5170 = vpop.f32.mrb[0].mxu0
      %v5171 = vpop.f32.mrb[0].mxu0
      %5172 = vdwg.mxu0
      %v5173 = vadd.f32 %v4948, %v5044
      %v5174 = vadd.f32 %v4949, %v5046
      %v5175 = vadd.f32 %v4950, %v5085
      %v5176 = vadd.f32 %v4951, %v5087
      %v5177 = vadd.f32 %v4952, %v5126
      %v5178 = vadd.f32 %v4953, %v5128
      %v5179 = vadd.f32 %v4954, %v5167
      %v5180 = vadd.f32 %v4955, %v5169
      %s5181 = scalar_lea.vmem %s1, 84
      %v5182 = vld [vmem:[%s5181] sm:$0xf]
      %v5183 = vld [vmem:[#allocation2 + $0x4] sm:$0xff]
      %v5184 = vld [vmem:[#allocation2 + $0xc] sm:$0xff]
      %v5185 = vld [vmem:[#allocation2 + $0x14] sm:$0xff]
      %v5186 = vld [vmem:[#allocation2 + $0x1c] sm:$0xff]
      %v5187 = vld [vmem:[#allocation2 + $0x24] sm:$0xf]
      %v5193 = vunpack.c.l.b16 %v5183
      %v5194 = vunpack.c.h.b16 %v5183
      %v5195 = vunpack.c.l.b16 %v5184
      %v5196 = vunpack.c.h.b16 %v5184
      %v5197 = vunpack.c.l.b16 %v5185
      %v5198 = vunpack.c.h.b16 %v5185
      %v5199 = vunpack.c.l.b16 %v5186
      %v5200 = vunpack.c.h.b16 %v5186
      %v5201 = vunpack.c.l.b16 %v5187
      %v5202 = vpack.c.b16 %v5193, %v5193
      %v5203 = vpack.c.b16 %v5194, %v5194
      %v5204 = vpack.c.b16 %v5195, %v5195
      %v5205 = vpack.c.b16 %v5196, %v5196
      %v5206 = vpack.c.b16 %v5197, %v5197
      %v5207 = vpack.c.b16 %v5198, %v5198
      %v5208 = vpack.c.b16 %v5199, %v5199
      %v5209 = vpack.c.b16 %v5200, %v5200
      %v5210 = vpack.c.b16 %v5201, %v5201
      %5211 = vrot.lane.b32.xlu0 %v5202, 127
      %v5212 = vpop.permute.xlu0 %5211
      %5213 = vrot.lane.b32.xlu0 %v5203, 127
      %v5214 = vpop.permute.xlu0 %5213
      %5215 = vrot.lane.b32.xlu0 %v5204, 127
      %v5216 = vpop.permute.xlu0 %5215
      %5217 = vrot.lane.b32.xlu0 %v5205, 127
      %v5218 = vpop.permute.xlu0 %5217
      %5219 = vrot.lane.b32.xlu0 %v5206, 127
      %v5220 = vpop.permute.xlu0 %5219
      %5221 = vrot.lane.b32.xlu0 %v5207, 127
      %v5222 = vpop.permute.xlu0 %5221
      %5223 = vrot.lane.b32.xlu0 %v5208, 127
      %v5224 = vpop.permute.xlu0 %5223
      %5225 = vrot.lane.b32.xlu0 %v5209, 127
      %v5226 = vpop.permute.xlu0 %5225
      %5227 = vrot.lane.b32.xlu0 %v5210, 127
      %v5228 = vpop.permute.xlu0 %5227
      %v5229 = vsel %vm459, %v5212, %v5214
      %v5230 = vsel %vm459, %v5214, %v5216
      %v5231 = vsel %vm459, %v5216, %v5218
      %v5232 = vsel %vm459, %v5218, %v5220
      %v5233 = vsel %vm459, %v5220, %v5222
      %v5234 = vsel %vm459, %v5222, %v5224
      %v5235 = vsel %vm459, %v5224, %v5226
      %v5236 = vsel %vm459, %v5226, %v5228
      %v5238 = vsel %vm468, %v5182, 0
      %v5241 = vsel %vm472, %v5229, 0
      %v5244 = vsel %vm472, %v5230, 0
      %v5247 = vsel %vm472, %v5231, 0
      %v5250 = vsel %vm472, %v5232, 0
      %v5253 = vsel %vm472, %v5233, 0
      %v5256 = vsel %vm472, %v5234, 0
      %v5259 = vsel %vm472, %v5235, 0
      %v5262 = vsel %vm472, %v5236, 0
      %5264 = vmatprep.subr.bf16.mxu0 %v5244
      %5265 = vmatpush1.bf16.msra.mxu0 %v5241
      %5266 = vmatprep.subr.bf16.mxu0 0
      %5267 = vmatpush1.bf16.msra.mxu0 0
      %5268 = vmatprep.subr.bf16.mxu0 0
      %5269 = vmatpush1.bf16.msra.mxu0 0
      %5270 = vmatprep.subr.bf16.mxu0 0
      %5271 = vmatpush1.bf16.msra.mxu0 0
      %5272 = vmatprep.subr.bf16.mxu0 0
      %5273 = vmatpush1.bf16.msra.mxu0 0
      %5274 = vmatprep.subr.bf16.mxu0 0
      %5275 = vmatpush1.bf16.msra.mxu0 0
      %5276 = vmatprep.subr.bf16.mxu0 0
      %5277 = vmatpush1.bf16.msra.mxu0 0
      %5278 = vmatprep.subr.bf16.mxu0 0
      %5279 = vmatpush1.bf16.msra.mxu0 0
      %5280 = vmatprep.subr.bf16.mxu0 0
      %5281 = vmatpush1.bf16.msra.mxu0 0
      %5282 = vmatprep.subr.bf16.mxu0 0
      %5283 = vmatpush1.bf16.msra.mxu0 0
      %5284 = vmatprep.subr.bf16.mxu0 0
      %5285 = vmatpush1.bf16.msra.mxu0 0
      %5286 = vmatprep.subr.bf16.mxu0 0
      %5287 = vmatpush1.bf16.msra.mxu0 0
      %5288 = vmatprep.subr.bf16.mxu0 0
      %5289 = vmatpush1.bf16.msra.mxu0 0
      %5290 = vmatprep.subr.bf16.mxu0 0
      %5291 = vmatpush1.bf16.msra.mxu0 0
      %5292 = vmatprep.subr.bf16.mxu0 0
      %5293 = vmatpush1.bf16.msra.mxu0 0
      %5294 = vmatprep.subr.bf16.mxu0 0
      %5295 = vmatpush1.bf16.msra.mxu0 0
      %5296 = vmatprep.mubr.bf16.mxu0 0
      %5297 = vmatmul.mubr.bf16.gmra.mrb[0].mxu0 %v5238
      %v5298 = vpop.f32.mrb[0].mxu0
      %v5299 = vadd.f32 0.0, %v5298
      %v5300 = vpop.f32.mrb[0].mxu0
      %v5301 = vadd.f32 0.0, %v5300
      %v5302 = vpop.f32.mrb[0].mxu0
      %v5303 = vpop.f32.mrb[0].mxu0
      %5304 = vdwg.mxu0
      %5305 = vmatprep.subr.bf16.mxu0 %v5250
      %5306 = vmatpush1.bf16.msra.mxu0 %v5247
      %5307 = vmatprep.subr.bf16.mxu0 0
      %5308 = vmatpush1.bf16.msra.mxu0 0
      %5309 = vmatprep.subr.bf16.mxu0 0
      %5310 = vmatpush1.bf16.msra.mxu0 0
      %5311 = vmatprep.subr.bf16.mxu0 0
      %5312 = vmatpush1.bf16.msra.mxu0 0
      %5313 = vmatprep.subr.bf16.mxu0 0
      %5314 = vmatpush1.bf16.msra.mxu0 0
      %5315 = vmatprep.subr.bf16.mxu0 0
      %5316 = vmatpush1.bf16.msra.mxu0 0
      %5317 = vmatprep.subr.bf16.mxu0 0
      %5318 = vmatpush1.bf16.msra.mxu0 0
      %5319 = vmatprep.subr.bf16.mxu0 0
      %5320 = vmatpush1.bf16.msra.mxu0 0
      %5321 = vmatprep.subr.bf16.mxu0 0
      %5322 = vmatpush1.bf16.msra.mxu0 0
      %5323 = vmatprep.subr.bf16.mxu0 0
      %5324 = vmatpush1.bf16.msra.mxu0 0
      %5325 = vmatprep.subr.bf16.mxu0 0
      %5326 = vmatpush1.bf16.msra.mxu0 0
      %5327 = vmatprep.subr.bf16.mxu0 0
      %5328 = vmatpush1.bf16.msra.mxu0 0
      %5329 = vmatprep.subr.bf16.mxu0 0
      %5330 = vmatpush1.bf16.msra.mxu0 0
      %5331 = vmatprep.subr.bf16.mxu0 0
      %5332 = vmatpush1.bf16.msra.mxu0 0
      %5333 = vmatprep.subr.bf16.mxu0 0
      %5334 = vmatpush1.bf16.msra.mxu0 0
      %5335 = vmatprep.subr.bf16.mxu0 0
      %5336 = vmatpush1.bf16.msra.mxu0 0
      %5337 = vmatprep.mubr.bf16.mxu0 0
      %5338 = vmatmul.mubr.bf16.gmra.mrb[0].mxu0 %v5238
      %v5339 = vpop.f32.mrb[0].mxu0
      %v5340 = vadd.f32 0.0, %v5339
      %v5341 = vpop.f32.mrb[0].mxu0
      %v5342 = vadd.f32 0.0, %v5341
      %v5343 = vpop.f32.mrb[0].mxu0
      %v5344 = vpop.f32.mrb[0].mxu0
      %5345 = vdwg.mxu0
      %5346 = vmatprep.subr.bf16.mxu0 %v5256
      %5347 = vmatpush1.bf16.msra.mxu0 %v5253
      %5348 = vmatprep.subr.bf16.mxu0 0
      %5349 = vmatpush1.bf16.msra.mxu0 0
      %5350 = vmatprep.subr.bf16.mxu0 0
      %5351 = vmatpush1.bf16.msra.mxu0 0
      %5352 = vmatprep.subr.bf16.mxu0 0
      %5353 = vmatpush1.bf16.msra.mxu0 0
      %5354 = vmatprep.subr.bf16.mxu0 0
      %5355 = vmatpush1.bf16.msra.mxu0 0
      %5356 = vmatprep.subr.bf16.mxu0 0
      %5357 = vmatpush1.bf16.msra.mxu0 0
      %5358 = vmatprep.subr.bf16.mxu0 0
      %5359 = vmatpush1.bf16.msra.mxu0 0
      %5360 = vmatprep.subr.bf16.mxu0 0
      %5361 = vmatpush1.bf16.msra.mxu0 0
      %5362 = vmatprep.subr.bf16.mxu0 0
      %5363 = vmatpush1.bf16.msra.mxu0 0
      %5364 = vmatprep.subr.bf16.mxu0 0
      %5365 = vmatpush1.bf16.msra.mxu0 0
      %5366 = vmatprep.subr.bf16.mxu0 0
      %5367 = vmatpush1.bf16.msra.mxu0 0
      %5368 = vmatprep.subr.bf16.mxu0 0
      %5369 = vmatpush1.bf16.msra.mxu0 0
      %5370 = vmatprep.subr.bf16.mxu0 0
      %5371 = vmatpush1.bf16.msra.mxu0 0
      %5372 = vmatprep.subr.bf16.mxu0 0
      %5373 = vmatpush1.bf16.msra.mxu0 0
      %5374 = vmatprep.subr.bf16.mxu0 0
      %5375 = vmatpush1.bf16.msra.mxu0 0
      %5376 = vmatprep.subr.bf16.mxu0 0
      %5377 = vmatpush1.bf16.msra.mxu0 0
      %5378 = vmatprep.mubr.bf16.mxu0 0
      %5379 = vmatmul.mubr.bf16.gmra.mrb[0].mxu0 %v5238
      %v5380 = vpop.f32.mrb[0].mxu0
      %v5381 = vadd.f32 0.0, %v5380
      %v5382 = vpop.f32.mrb[0].mxu0
      %v5383 = vadd.f32 0.0, %v5382
      %v5384 = vpop.f32.mrb[0].mxu0
      %v5385 = vpop.f32.mrb[0].mxu0
      %5386 = vdwg.mxu0
      %5387 = vmatprep.subr.bf16.mxu0 %v5262
      %5388 = vmatpush1.bf16.msra.mxu0 %v5259
      %5389 = vmatprep.subr.bf16.mxu0 0
      %5390 = vmatpush1.bf16.msra.mxu0 0
      %5391 = vmatprep.subr.bf16.mxu0 0
      %5392 = vmatpush1.bf16.msra.mxu0 0
      %5393 = vmatprep.subr.bf16.mxu0 0
      %5394 = vmatpush1.bf16.msra.mxu0 0
      %5395 = vmatprep.subr.bf16.mxu0 0
      %5396 = vmatpush1.bf16.msra.mxu0 0
      %5397 = vmatprep.subr.bf16.mxu0 0
      %5398 = vmatpush1.bf16.msra.mxu0 0
      %5399 = vmatprep.subr.bf16.mxu0 0
      %5400 = vmatpush1.bf16.msra.mxu0 0
      %5401 = vmatprep.subr.bf16.mxu0 0
      %5402 = vmatpush1.bf16.msra.mxu0 0
      %5403 = vmatprep.subr.bf16.mxu0 0
      %5404 = vmatpush1.bf16.msra.mxu0 0
      %5405 = vmatprep.subr.bf16.mxu0 0
      %5406 = vmatpush1.bf16.msra.mxu0 0
      %5407 = vmatprep.subr.bf16.mxu0 0
      %5408 = vmatpush1.bf16.msra.mxu0 0
      %5409 = vmatprep.subr.bf16.mxu0 0
      %5410 = vmatpush1.bf16.msra.mxu0 0
      %5411 = vmatprep.subr.bf16.mxu0 0
      %5412 = vmatpush1.bf16.msra.mxu0 0
      %5413 = vmatprep.subr.bf16.mxu0 0
      %5414 = vmatpush1.bf16.msra.mxu0 0
      %5415 = vmatprep.subr.bf16.mxu0 0
      %5416 = vmatpush1.bf16.msra.mxu0 0
      %5417 = vmatprep.subr.bf16.mxu0 0
      %5418 = vmatpush1.bf16.msra.mxu0 0
      %5419 = vmatprep.mubr.bf16.mxu0 0
      %5420 = vmatmul.mubr.bf16.gmra.mrb[0].mxu0 %v5238
      %v5421 = vpop.f32.mrb[0].mxu0
      %v5422 = vadd.f32 0.0, %v5421
      %v5423 = vpop.f32.mrb[0].mxu0
      %v5424 = vadd.f32 0.0, %v5423
      %v5425 = vpop.f32.mrb[0].mxu0
      %v5426 = vpop.f32.mrb[0].mxu0
      %5427 = vdwg.mxu0
      %v5428 = vadd.f32 %v5173, %v5299
      %v5429 = vadd.f32 %v5174, %v5301
      %v5430 = vadd.f32 %v5175, %v5340
      %v5431 = vadd.f32 %v5176, %v5342
      %v5432 = vadd.f32 %v5177, %v5381
      %v5433 = vadd.f32 %v5178, %v5383
      %v5434 = vadd.f32 %v5179, %v5422
      %v5435 = vadd.f32 %v5180, %v5424
      %s5436 = scalar_lea.vmem %s1, 88
      %v5437 = vld [vmem:[%s5436] sm:$0xf]
      %5438 = vrot.lane.b32.xlu0 %v5202, 126
      %v5439 = vpop.permute.xlu0 %5438
      %5440 = vrot.lane.b32.xlu0 %v5203, 126
      %v5441 = vpop.permute.xlu0 %5440
      %5442 = vrot.lane.b32.xlu0 %v5204, 126
      %v5443 = vpop.permute.xlu0 %5442
      %5444 = vrot.lane.b32.xlu0 %v5205, 126
      %v5445 = vpop.permute.xlu0 %5444
      %5446 = vrot.lane.b32.xlu0 %v5206, 126
      %v5447 = vpop.permute.xlu0 %5446
      %5448 = vrot.lane.b32.xlu0 %v5207, 126
      %v5449 = vpop.permute.xlu0 %5448
      %5450 = vrot.lane.b32.xlu0 %v5208, 126
      %v5451 = vpop.permute.xlu0 %5450
      %5452 = vrot.lane.b32.xlu0 %v5209, 126
      %v5453 = vpop.permute.xlu0 %5452
      %5454 = vrot.lane.b32.xlu0 %v5210, 126
      %v5455 = vpop.permute.xlu0 %5454
      %v5456 = vsel %vm872, %v5439, %v5441
      %v5457 = vsel %vm872, %v5441, %v5443
      %v5458 = vsel %vm872, %v5443, %v5445
      %v5459 = vsel %vm872, %v5445, %v5447
      %v5460 = vsel %vm872, %v5447, %v5449
      %v5461 = vsel %vm872, %v5449, %v5451
      %v5462 = vsel %vm872, %v5451, %v5453
      %v5463 = vsel %vm872, %v5453, %v5455
      %v5465 = vsel %vm468, %v5437, 0
      %v5468 = vsel %vm472, %v5456, 0
      %v5471 = vsel %vm472, %v5457, 0
      %v5474 = vsel %vm472, %v5458, 0
      %v5477 = vsel %vm472, %v5459, 0
      %v5480 = vsel %vm472, %v5460, 0
      %v5483 = vsel %vm472, %v5461, 0
      %v5486 = vsel %vm472, %v5462, 0
      %v5489 = vsel %vm472, %v5463, 0
      %5491 = vmatprep.subr.bf16.mxu0 %v5471
      %5492 = vmatpush1.bf16.msra.mxu0 %v5468
      %5493 = vmatprep.subr.bf16.mxu0 0
      %5494 = vmatpush1.bf16.msra.mxu0 0
      %5495 = vmatprep.subr.bf16.mxu0 0
      %5496 = vmatpush1.bf16.msra.mxu0 0
      %5497 = vmatprep.subr.bf16.mxu0 0
      %5498 = vmatpush1.bf16.msra.mxu0 0
      %5499 = vmatprep.subr.bf16.mxu0 0
      %5500 = vmatpush1.bf16.msra.mxu0 0
      %5501 = vmatprep.subr.bf16.mxu0 0
      %5502 = vmatpush1.bf16.msra.mxu0 0
      %5503 = vmatprep.subr.bf16.mxu0 0
      %5504 = vmatpush1.bf16.msra.mxu0 0
      %5505 = vmatprep.subr.bf16.mxu0 0
      %5506 = vmatpush1.bf16.msra.mxu0 0
      %5507 = vmatprep.subr.bf16.mxu0 0
      %5508 = vmatpush1.bf16.msra.mxu0 0
      %5509 = vmatprep.subr.bf16.mxu0 0
      %5510 = vmatpush1.bf16.msra.mxu0 0
      %5511 = vmatprep.subr.bf16.mxu0 0
      %5512 = vmatpush1.bf16.msra.mxu0 0
      %5513 = vmatprep.subr.bf16.mxu0 0
      %5514 = vmatpush1.bf16.msra.mxu0 0
      %5515 = vmatprep.subr.bf16.mxu0 0
      %5516 = vmatpush1.bf16.msra.mxu0 0
      %5517 = vmatprep.subr.bf16.mxu0 0
      %5518 = vmatpush1.bf16.msra.mxu0 0
      %5519 = vmatprep.subr.bf16.mxu0 0
      %5520 = vmatpush1.bf16.msra.mxu0 0
      %5521 = vmatprep.subr.bf16.mxu0 0
      %5522 = vmatpush1.bf16.msra.mxu0 0
      %5523 = vmatprep.mubr.bf16.mxu0 0
      %5524 = vmatmul.mubr.bf16.gmra.mrb[0].mxu0 %v5465
      %v5525 = vpop.f32.mrb[0].mxu0
      %v5526 = vadd.f32 0.0, %v5525
      %v5527 = vpop.f32.mrb[0].mxu0
      %v5528 = vadd.f32 0.0, %v5527
      %v5529 = vpop.f32.mrb[0].mxu0
      %v5530 = vpop.f32.mrb[0].mxu0
      %5531 = vdwg.mxu0
      %5532 = vmatprep.subr.bf16.mxu0 %v5477
      %5533 = vmatpush1.bf16.msra.mxu0 %v5474
      %5534 = vmatprep.subr.bf16.mxu0 0
      %5535 = vmatpush1.bf16.msra.mxu0 0
      %5536 = vmatprep.subr.bf16.mxu0 0
      %5537 = vmatpush1.bf16.msra.mxu0 0
      %5538 = vmatprep.subr.bf16.mxu0 0
      %5539 = vmatpush1.bf16.msra.mxu0 0
      %5540 = vmatprep.subr.bf16.mxu0 0
      %5541 = vmatpush1.bf16.msra.mxu0 0
      %5542 = vmatprep.subr.bf16.mxu0 0
      %5543 = vmatpush1.bf16.msra.mxu0 0
      %5544 = vmatprep.subr.bf16.mxu0 0
      %5545 = vmatpush1.bf16.msra.mxu0 0
      %5546 = vmatprep.subr.bf16.mxu0 0
      %5547 = vmatpush1.bf16.msra.mxu0 0
      %5548 = vmatprep.subr.bf16.mxu0 0
      %5549 = vmatpush1.bf16.msra.mxu0 0
      %5550 = vmatprep.subr.bf16.mxu0 0
      %5551 = vmatpush1.bf16.msra.mxu0 0
      %5552 = vmatprep.subr.bf16.mxu0 0
      %5553 = vmatpush1.bf16.msra.mxu0 0
      %5554 = vmatprep.subr.bf16.mxu0 0
      %5555 = vmatpush1.bf16.msra.mxu0 0
      %5556 = vmatprep.subr.bf16.mxu0 0
      %5557 = vmatpush1.bf16.msra.mxu0 0
      %5558 = vmatprep.subr.bf16.mxu0 0
      %5559 = vmatpush1.bf16.msra.mxu0 0
      %5560 = vmatprep.subr.bf16.mxu0 0
      %5561 = vmatpush1.bf16.msra.mxu0 0
      %5562 = vmatprep.subr.bf16.mxu0 0
      %5563 = vmatpush1.bf16.msra.mxu0 0
      %5564 = vmatprep.mubr.bf16.mxu0 0
      %5565 = vmatmul.mubr.bf16.gmra.mrb[0].mxu0 %v5465
      %v5566 = vpop.f32.mrb[0].mxu0
      %v5567 = vadd.f32 0.0, %v5566
      %v5568 = vpop.f32.mrb[0].mxu0
      %v5569 = vadd.f32 0.0, %v5568
      %v5570 = vpop.f32.mrb[0].mxu0
      %v5571 = vpop.f32.mrb[0].mxu0
      %5572 = vdwg.mxu0
      %5573 = vmatprep.subr.bf16.mxu0 %v5483
      %5574 = vmatpush1.bf16.msra.mxu0 %v5480
      %5575 = vmatprep.subr.bf16.mxu0 0
      %5576 = vmatpush1.bf16.msra.mxu0 0
      %5577 = vmatprep.subr.bf16.mxu0 0
      %5578 = vmatpush1.bf16.msra.mxu0 0
      %5579 = vmatprep.subr.bf16.mxu0 0
      %5580 = vmatpush1.bf16.msra.mxu0 0
      %5581 = vmatprep.subr.bf16.mxu0 0
      %5582 = vmatpush1.bf16.msra.mxu0 0
      %5583 = vmatprep.subr.bf16.mxu0 0
      %5584 = vmatpush1.bf16.msra.mxu0 0
      %5585 = vmatprep.subr.bf16.mxu0 0
      %5586 = vmatpush1.bf16.msra.mxu0 0
      %5587 = vmatprep.subr.bf16.mxu0 0
      %5588 = vmatpush1.bf16.msra.mxu0 0
      %5589 = vmatprep.subr.bf16.mxu0 0
      %5590 = vmatpush1.bf16.msra.mxu0 0
      %5591 = vmatprep.subr.bf16.mxu0 0
      %5592 = vmatpush1.bf16.msra.mxu0 0
      %5593 = vmatprep.subr.bf16.mxu0 0
      %5594 = vmatpush1.bf16.msra.mxu0 0
      %5595 = vmatprep.subr.bf16.mxu0 0
      %5596 = vmatpush1.bf16.msra.mxu0 0
      %5597 = vmatprep.subr.bf16.mxu0 0
      %5598 = vmatpush1.bf16.msra.mxu0 0
      %5599 = vmatprep.subr.bf16.mxu0 0
      %5600 = vmatpush1.bf16.msra.mxu0 0
      %5601 = vmatprep.subr.bf16.mxu0 0
      %5602 = vmatpush1.bf16.msra.mxu0 0
      %5603 = vmatprep.subr.bf16.mxu0 0
      %5604 = vmatpush1.bf16.msra.mxu0 0
      %5605 = vmatprep.mubr.bf16.mxu0 0
      %5606 = vmatmul.mubr.bf16.gmra.mrb[0].mxu0 %v5465
      %v5607 = vpop.f32.mrb[0].mxu0
      %v5608 = vadd.f32 0.0, %v5607
      %v5609 = vpop.f32.mrb[0].mxu0
      %v5610 = vadd.f32 0.0, %v5609
      %v5611 = vpop.f32.mrb[0].mxu0
      %v5612 = vpop.f32.mrb[0].mxu0
      %5613 = vdwg.mxu0
      %5614 = vmatprep.subr.bf16.mxu0 %v5489
      %5615 = vmatpush1.bf16.msra.mxu0 %v5486
      %5616 = vmatprep.subr.bf16.mxu0 0
      %5617 = vmatpush1.bf16.msra.mxu0 0
      %5618 = vmatprep.subr.bf16.mxu0 0
      %5619 = vmatpush1.bf16.msra.mxu0 0
      %5620 = vmatprep.subr.bf16.mxu0 0
      %5621 = vmatpush1.bf16.msra.mxu0 0
      %5622 = vmatprep.subr.bf16.mxu0 0
      %5623 = vmatpush1.bf16.msra.mxu0 0
      %5624 = vmatprep.subr.bf16.mxu0 0
      %5625 = vmatpush1.bf16.msra.mxu0 0
      %5626 = vmatprep.subr.bf16.mxu0 0
      %5627 = vmatpush1.bf16.msra.mxu0 0
      %5628 = vmatprep.subr.bf16.mxu0 0
      %5629 = vmatpush1.bf16.msra.mxu0 0
      %5630 = vmatprep.subr.bf16.mxu0 0
      %5631 = vmatpush1.bf16.msra.mxu0 0
      %5632 = vmatprep.subr.bf16.mxu0 0
      %5633 = vmatpush1.bf16.msra.mxu0 0
      %5634 = vmatprep.subr.bf16.mxu0 0
      %5635 = vmatpush1.bf16.msra.mxu0 0
      %5636 = vmatprep.subr.bf16.mxu0 0
      %5637 = vmatpush1.bf16.msra.mxu0 0
      %5638 = vmatprep.subr.bf16.mxu0 0
      %5639 = vmatpush1.bf16.msra.mxu0 0
      %5640 = vmatprep.subr.bf16.mxu0 0
      %5641 = vmatpush1.bf16.msra.mxu0 0
      %5642 = vmatprep.subr.bf16.mxu0 0
      %5643 = vmatpush1.bf16.msra.mxu0 0
      %5644 = vmatprep.subr.bf16.mxu0 0
      %5645 = vmatpush1.bf16.msra.mxu0 0
      %5646 = vmatprep.mubr.bf16.mxu0 0
      %5647 = vmatmul.mubr.bf16.gmra.mrb[0].mxu0 %v5465
      %v5648 = vpop.f32.mrb[0].mxu0
      %v5649 = vadd.f32 0.0, %v5648
      %v5650 = vpop.f32.mrb[0].mxu0
      %v5651 = vadd.f32 0.0, %v5650
      %v5652 = vpop.f32.mrb[0].mxu0
      %v5653 = vpop.f32.mrb[0].mxu0
      %5654 = vdwg.mxu0
      %v5655 = vadd.f32 %v5428, %v5526
      %v5656 = vadd.f32 %v5429, %v5528
      %v5657 = vadd.f32 %v5430, %v5567
      %v5658 = vadd.f32 %v5431, %v5569
      %v5659 = vadd.f32 %v5432, %v5608
      %v5660 = vadd.f32 %v5433, %v5610
      %v5661 = vadd.f32 %v5434, %v5649
      %v5662 = vadd.f32 %v5435, %v5651
      %s5663 = scalar_lea.vmem %s1, 92
      %v5664 = vld [vmem:[%s5663] sm:$0xf]
      %5665 = vrot.lane.b32.xlu0 %v5202, 125
      %v5666 = vpop.permute.xlu0 %5665
      %5667 = vrot.lane.b32.xlu0 %v5203, 125
      %v5668 = vpop.permute.xlu0 %5667
      %5669 = vrot.lane.b32.xlu0 %v5204, 125
      %v5670 = vpop.permute.xlu0 %5669
      %5671 = vrot.lane.b32.xlu0 %v5205, 125
      %v5672 = vpop.permute.xlu0 %5671
      %5673 = vrot.lane.b32.xlu0 %v5206, 125
      %v5674 = vpop.permute.xlu0 %5673
      %5675 = vrot.lane.b32.xlu0 %v5207, 125
      %v5676 = vpop.permute.xlu0 %5675
      %5677 = vrot.lane.b32.xlu0 %v5208, 125
      %v5678 = vpop.permute.xlu0 %5677
      %5679 = vrot.lane.b32.xlu0 %v5209, 125
      %v5680 = vpop.permute.xlu0 %5679
      %5681 = vrot.lane.b32.xlu0 %v5210, 125
      %v5682 = vpop.permute.xlu0 %5681
      %v5683 = vsel %vm1100, %v5666, %v5668
      %v5684 = vsel %vm1100, %v5668, %v5670
      %v5685 = vsel %vm1100, %v5670, %v5672
      %v5686 = vsel %vm1100, %v5672, %v5674
      %v5687 = vsel %vm1100, %v5674, %v5676
      %v5688 = vsel %vm1100, %v5676, %v5678
      %v5689 = vsel %vm1100, %v5678, %v5680
      %v5690 = vsel %vm1100, %v5680, %v5682
      %v5692 = vsel %vm468, %v5664, 0
      %v5695 = vsel %vm472, %v5683, 0
      %v5698 = vsel %vm472, %v5684, 0
      %v5701 = vsel %vm472, %v5685, 0
      %v5704 = vsel %vm472, %v5686, 0
      %v5707 = vsel %vm472, %v5687, 0
      %v5710 = vsel %vm472, %v5688, 0
      %v5713 = vsel %vm472, %v5689, 0
      %v5716 = vsel %vm472, %v5690, 0
      %5718 = vmatprep.subr.bf16.mxu0 %v5698
      %5719 = vmatpush1.bf16.msra.mxu0 %v5695
      %5720 = vmatprep.subr.bf16.mxu0 0
      %5721 = vmatpush1.bf16.msra.mxu0 0
      %5722 = vmatprep.subr.bf16.mxu0 0
      %5723 = vmatpush1.bf16.msra.mxu0 0
      %5724 = vmatprep.subr.bf16.mxu0 0
      %5725 = vmatpush1.bf16.msra.mxu0 0
      %5726 = vmatprep.subr.bf16.mxu0 0
      %5727 = vmatpush1.bf16.msra.mxu0 0
      %5728 = vmatprep.subr.bf16.mxu0 0
      %5729 = vmatpush1.bf16.msra.mxu0 0
      %5730 = vmatprep.subr.bf16.mxu0 0
      %5731 = vmatpush1.bf16.msra.mxu0 0
      %5732 = vmatprep.subr.bf16.mxu0 0
      %5733 = vmatpush1.bf16.msra.mxu0 0
      %5734 = vmatprep.subr.bf16.mxu0 0
      %5735 = vmatpush1.bf16.msra.mxu0 0
      %5736 = vmatprep.subr.bf16.mxu0 0
      %5737 = vmatpush1.bf16.msra.mxu0 0
      %5738 = vmatprep.subr.bf16.mxu0 0
      %5739 = vmatpush1.bf16.msra.mxu0 0
      %5740 = vmatprep.subr.bf16.mxu0 0
      %5741 = vmatpush1.bf16.msra.mxu0 0
      %5742 = vmatprep.subr.bf16.mxu0 0
      %5743 = vmatpush1.bf16.msra.mxu0 0
      %5744 = vmatprep.subr.bf16.mxu0 0
      %5745 = vmatpush1.bf16.msra.mxu0 0
      %5746 = vmatprep.subr.bf16.mxu0 0
      %5747 = vmatpush1.bf16.msra.mxu0 0
      %5748 = vmatprep.subr.bf16.mxu0 0
      %5749 = vmatpush1.bf16.msra.mxu0 0
      %5750 = vmatprep.mubr.bf16.mxu0 0
      %5751 = vmatmul.mubr.bf16.gmra.mrb[0].mxu0 %v5692
      %v5752 = vpop.f32.mrb[0].mxu0
      %v5753 = vadd.f32 0.0, %v5752
      %v5754 = vpop.f32.mrb[0].mxu0
      %v5755 = vadd.f32 0.0, %v5754
      %v5756 = vpop.f32.mrb[0].mxu0
      %v5757 = vpop.f32.mrb[0].mxu0
      %5758 = vdwg.mxu0
      %5759 = vmatprep.subr.bf16.mxu0 %v5704
      %5760 = vmatpush1.bf16.msra.mxu0 %v5701
      %5761 = vmatprep.subr.bf16.mxu0 0
      %5762 = vmatpush1.bf16.msra.mxu0 0
      %5763 = vmatprep.subr.bf16.mxu0 0
      %5764 = vmatpush1.bf16.msra.mxu0 0
      %5765 = vmatprep.subr.bf16.mxu0 0
      %5766 = vmatpush1.bf16.msra.mxu0 0
      %5767 = vmatprep.subr.bf16.mxu0 0
      %5768 = vmatpush1.bf16.msra.mxu0 0
      %5769 = vmatprep.subr.bf16.mxu0 0
      %5770 = vmatpush1.bf16.msra.mxu0 0
      %5771 = vmatprep.subr.bf16.mxu0 0
      %5772 = vmatpush1.bf16.msra.mxu0 0
      %5773 = vmatprep.subr.bf16.mxu0 0
      %5774 = vmatpush1.bf16.msra.mxu0 0
      %5775 = vmatprep.subr.bf16.mxu0 0
      %5776 = vmatpush1.bf16.msra.mxu0 0
      %5777 = vmatprep.subr.bf16.mxu0 0
      %5778 = vmatpush1.bf16.msra.mxu0 0
      %5779 = vmatprep.subr.bf16.mxu0 0
      %5780 = vmatpush1.bf16.msra.mxu0 0
      %5781 = vmatprep.subr.bf16.mxu0 0
      %5782 = vmatpush1.bf16.msra.mxu0 0
      %5783 = vmatprep.subr.bf16.mxu0 0
      %5784 = vmatpush1.bf16.msra.mxu0 0
      %5785 = vmatprep.subr.bf16.mxu0 0
      %5786 = vmatpush1.bf16.msra.mxu0 0
      %5787 = vmatprep.subr.bf16.mxu0 0
      %5788 = vmatpush1.bf16.msra.mxu0 0
      %5789 = vmatprep.subr.bf16.mxu0 0
      %5790 = vmatpush1.bf16.msra.mxu0 0
      %5791 = vmatprep.mubr.bf16.mxu0 0
      %5792 = vmatmul.mubr.bf16.gmra.mrb[0].mxu0 %v5692
      %v5793 = vpop.f32.mrb[0].mxu0
      %v5794 = vadd.f32 0.0, %v5793
      %v5795 = vpop.f32.mrb[0].mxu0
      %v5796 = vadd.f32 0.0, %v5795
      %v5797 = vpop.f32.mrb[0].mxu0
      %v5798 = vpop.f32.mrb[0].mxu0
      %5799 = vdwg.mxu0
      %5800 = vmatprep.subr.bf16.mxu0 %v5710
      %5801 = vmatpush1.bf16.msra.mxu0 %v5707
      %5802 = vmatprep.subr.bf16.mxu0 0
      %5803 = vmatpush1.bf16.msra.mxu0 0
      %5804 = vmatprep.subr.bf16.mxu0 0
      %5805 = vmatpush1.bf16.msra.mxu0 0
      %5806 = vmatprep.subr.bf16.mxu0 0
      %5807 = vmatpush1.bf16.msra.mxu0 0
      %5808 = vmatprep.subr.bf16.mxu0 0
      %5809 = vmatpush1.bf16.msra.mxu0 0
      %5810 = vmatprep.subr.bf16.mxu0 0
      %5811 = vmatpush1.bf16.msra.mxu0 0
      %5812 = vmatprep.subr.bf16.mxu0 0
      %5813 = vmatpush1.bf16.msra.mxu0 0
      %5814 = vmatprep.subr.bf16.mxu0 0
      %5815 = vmatpush1.bf16.msra.mxu0 0
      %5816 = vmatprep.subr.bf16.mxu0 0
      %5817 = vmatpush1.bf16.msra.mxu0 0
      %5818 = vmatprep.subr.bf16.mxu0 0
      %5819 = vmatpush1.bf16.msra.mxu0 0
      %5820 = vmatprep.subr.bf16.mxu0 0
      %5821 = vmatpush1.bf16.msra.mxu0 0
      %5822 = vmatprep.subr.bf16.mxu0 0
      %5823 = vmatpush1.bf16.msra.mxu0 0
      %5824 = vmatprep.subr.bf16.mxu0 0
      %5825 = vmatpush1.bf16.msra.mxu0 0
      %5826 = vmatprep.subr.bf16.mxu0 0
      %5827 = vmatpush1.bf16.msra.mxu0 0
      %5828 = vmatprep.subr.bf16.mxu0 0
      %5829 = vmatpush1.bf16.msra.mxu0 0
      %5830 = vmatprep.subr.bf16.mxu0 0
      %5831 = vmatpush1.bf16.msra.mxu0 0
      %5832 = vmatprep.mubr.bf16.mxu0 0
      %5833 = vmatmul.mubr.bf16.gmra.mrb[0].mxu0 %v5692
      %v5834 = vpop.f32.mrb[0].mxu0
      %v5835 = vadd.f32 0.0, %v5834
      %v5836 = vpop.f32.mrb[0].mxu0
      %v5837 = vadd.f32 0.0, %v5836
      %v5838 = vpop.f32.mrb[0].mxu0
      %v5839 = vpop.f32.mrb[0].mxu0
      %5840 = vdwg.mxu0
      %5841 = vmatprep.subr.bf16.mxu0 %v5716
      %5842 = vmatpush1.bf16.msra.mxu0 %v5713
      %5843 = vmatprep.subr.bf16.mxu0 0
      %5844 = vmatpush1.bf16.msra.mxu0 0
      %5845 = vmatprep.subr.bf16.mxu0 0
      %5846 = vmatpush1.bf16.msra.mxu0 0
      %5847 = vmatprep.subr.bf16.mxu0 0
      %5848 = vmatpush1.bf16.msra.mxu0 0
      %5849 = vmatprep.subr.bf16.mxu0 0
      %5850 = vmatpush1.bf16.msra.mxu0 0
      %5851 = vmatprep.subr.bf16.mxu0 0
      %5852 = vmatpush1.bf16.msra.mxu0 0
      %5853 = vmatprep.subr.bf16.mxu0 0
      %5854 = vmatpush1.bf16.msra.mxu0 0
      %5855 = vmatprep.subr.bf16.mxu0 0
      %5856 = vmatpush1.bf16.msra.mxu0 0
      %5857 = vmatprep.subr.bf16.mxu0 0
      %5858 = vmatpush1.bf16.msra.mxu0 0
      %5859 = vmatprep.subr.bf16.mxu0 0
      %5860 = vmatpush1.bf16.msra.mxu0 0
      %5861 = vmatprep.subr.bf16.mxu0 0
      %5862 = vmatpush1.bf16.msra.mxu0 0
      %5863 = vmatprep.subr.bf16.mxu0 0
      %5864 = vmatpush1.bf16.msra.mxu0 0
      %5865 = vmatprep.subr.bf16.mxu0 0
      %5866 = vmatpush1.bf16.msra.mxu0 0
      %5867 = vmatprep.subr.bf16.mxu0 0
      %5868 = vmatpush1.bf16.msra.mxu0 0
      %5869 = vmatprep.subr.bf16.mxu0 0
      %5870 = vmatpush1.bf16.msra.mxu0 0
      %5871 = vmatprep.subr.bf16.mxu0 0
      %5872 = vmatpush1.bf16.msra.mxu0 0
      %5873 = vmatprep.mubr.bf16.mxu0 0
      %5874 = vmatmul.mubr.bf16.gmra.mrb[0].mxu0 %v5692
      %v5875 = vpop.f32.mrb[0].mxu0
      %v5876 = vadd.f32 0.0, %v5875
      %v5877 = vpop.f32.mrb[0].mxu0
      %v5878 = vadd.f32 0.0, %v5877
      %v5879 = vpop.f32.mrb[0].mxu0
      %v5880 = vpop.f32.mrb[0].mxu0
      %5881 = vdwg.mxu0
      %v5882 = vadd.f32 %v5655, %v5753
      %v5883 = vadd.f32 %v5656, %v5755
      %v5884 = vadd.f32 %v5657, %v5794
      %v5885 = vadd.f32 %v5658, %v5796
      %v5886 = vadd.f32 %v5659, %v5835
      %v5887 = vadd.f32 %v5660, %v5837
      %v5888 = vadd.f32 %v5661, %v5876
      %v5889 = vadd.f32 %v5662, %v5878
      %s5890 = scalar_lea.vmem %s1, 96
      %v5891 = vld [vmem:[%s5890] sm:$0xf]
      %5892 = vrot.lane.b32.xlu0 %v5202, 124
      %v5893 = vpop.permute.xlu0 %5892
      %5894 = vrot.lane.b32.xlu0 %v5203, 124
      %v5895 = vpop.permute.xlu0 %5894
      %5896 = vrot.lane.b32.xlu0 %v5204, 124
      %v5897 = vpop.permute.xlu0 %5896
      %5898 = vrot.lane.b32.xlu0 %v5205, 124
      %v5899 = vpop.permute.xlu0 %5898
      %5900 = vrot.lane.b32.xlu0 %v5206, 124
      %v5901 = vpop.permute.xlu0 %5900
      %5902 = vrot.lane.b32.xlu0 %v5207, 124
      %v5903 = vpop.permute.xlu0 %5902
      %5904 = vrot.lane.b32.xlu0 %v5208, 124
      %v5905 = vpop.permute.xlu0 %5904
      %5906 = vrot.lane.b32.xlu0 %v5209, 124
      %v5907 = vpop.permute.xlu0 %5906
      %5908 = vrot.lane.b32.xlu0 %v5210, 124
      %v5909 = vpop.permute.xlu0 %5908
      %v5910 = vsel %vm1328, %v5893, %v5895
      %v5911 = vsel %vm1328, %v5895, %v5897
      %v5912 = vsel %vm1328, %v5897, %v5899
      %v5913 = vsel %vm1328, %v5899, %v5901
      %v5914 = vsel %vm1328, %v5901, %v5903
      %v5915 = vsel %vm1328, %v5903, %v5905
      %v5916 = vsel %vm1328, %v5905, %v5907
      %v5917 = vsel %vm1328, %v5907, %v5909
      %v5919 = vsel %vm468, %v5891, 0
      %v5922 = vsel %vm472, %v5910, 0
      %v5925 = vsel %vm472, %v5911, 0
      %v5928 = vsel %vm472, %v5912, 0
      %v5931 = vsel %vm472, %v5913, 0
      %v5934 = vsel %vm472, %v5914, 0
      %v5937 = vsel %vm472, %v5915, 0
      %v5940 = vsel %vm472, %v5916, 0
      %v5943 = vsel %vm472, %v5917, 0
      %5945 = vmatprep.subr.bf16.mxu0 %v5925
      %5946 = vmatpush1.bf16.msra.mxu0 %v5922
      %5947 = vmatprep.subr.bf16.mxu0 0
      %5948 = vmatpush1.bf16.msra.mxu0 0
      %5949 = vmatprep.subr.bf16.mxu0 0
      %5950 = vmatpush1.bf16.msra.mxu0 0
      %5951 = vmatprep.subr.bf16.mxu0 0
      %5952 = vmatpush1.bf16.msra.mxu0 0
      %5953 = vmatprep.subr.bf16.mxu0 0
      %5954 = vmatpush1.bf16.msra.mxu0 0
      %5955 = vmatprep.subr.bf16.mxu0 0
      %5956 = vmatpush1.bf16.msra.mxu0 0
      %5957 = vmatprep.subr.bf16.mxu0 0
      %5958 = vmatpush1.bf16.msra.mxu0 0
      %5959 = vmatprep.subr.bf16.mxu0 0
      %5960 = vmatpush1.bf16.msra.mxu0 0
      %5961 = vmatprep.subr.bf16.mxu0 0
      %5962 = vmatpush1.bf16.msra.mxu0 0
      %5963 = vmatprep.subr.bf16.mxu0 0
      %5964 = vmatpush1.bf16.msra.mxu0 0
      %5965 = vmatprep.subr.bf16.mxu0 0
      %5966 = vmatpush1.bf16.msra.mxu0 0
      %5967 = vmatprep.subr.bf16.mxu0 0
      %5968 = vmatpush1.bf16.msra.mxu0 0
      %5969 = vmatprep.subr.bf16.mxu0 0
      %5970 = vmatpush1.bf16.msra.mxu0 0
      %5971 = vmatprep.subr.bf16.mxu0 0
      %5972 = vmatpush1.bf16.msra.mxu0 0
      %5973 = vmatprep.subr.bf16.mxu0 0
      %5974 = vmatpush1.bf16.msra.mxu0 0
      %5975 = vmatprep.subr.bf16.mxu0 0
      %5976 = vmatpush1.bf16.msra.mxu0 0
      %5977 = vmatprep.mubr.bf16.mxu0 0
      %5978 = vmatmul.mubr.bf16.gmra.mrb[0].mxu0 %v5919
      %v5979 = vpop.f32.mrb[0].mxu0
      %v5980 = vadd.f32 0.0, %v5979
      %v5981 = vpop.f32.mrb[0].mxu0
      %v5982 = vadd.f32 0.0, %v5981
      %v5983 = vpop.f32.mrb[0].mxu0
      %v5984 = vpop.f32.mrb[0].mxu0
      %5985 = vdwg.mxu0
      %5986 = vmatprep.subr.bf16.mxu0 %v5931
      %5987 = vmatpush1.bf16.msra.mxu0 %v5928
      %5988 = vmatprep.subr.bf16.mxu0 0
      %5989 = vmatpush1.bf16.msra.mxu0 0
      %5990 = vmatprep.subr.bf16.mxu0 0
      %5991 = vmatpush1.bf16.msra.mxu0 0
      %5992 = vmatprep.subr.bf16.mxu0 0
      %5993 = vmatpush1.bf16.msra.mxu0 0
      %5994 = vmatprep.subr.bf16.mxu0 0
      %5995 = vmatpush1.bf16.msra.mxu0 0
      %5996 = vmatprep.subr.bf16.mxu0 0
      %5997 = vmatpush1.bf16.msra.mxu0 0
      %5998 = vmatprep.subr.bf16.mxu0 0
      %5999 = vmatpush1.bf16.msra.mxu0 0
      %6000 = vmatprep.subr.bf16.mxu0 0
      %6001 = vmatpush1.bf16.msra.mxu0 0
      %6002 = vmatprep.subr.bf16.mxu0 0
      %6003 = vmatpush1.bf16.msra.mxu0 0
      %6004 = vmatprep.subr.bf16.mxu0 0
      %6005 = vmatpush1.bf16.msra.mxu0 0
      %6006 = vmatprep.subr.bf16.mxu0 0
      %6007 = vmatpush1.bf16.msra.mxu0 0
      %6008 = vmatprep.subr.bf16.mxu0 0
      %6009 = vmatpush1.bf16.msra.mxu0 0
      %6010 = vmatprep.subr.bf16.mxu0 0
      %6011 = vmatpush1.bf16.msra.mxu0 0
      %6012 = vmatprep.subr.bf16.mxu0 0
      %6013 = vmatpush1.bf16.msra.mxu0 0
      %6014 = vmatprep.subr.bf16.mxu0 0
      %6015 = vmatpush1.bf16.msra.mxu0 0
      %6016 = vmatprep.subr.bf16.mxu0 0
      %6017 = vmatpush1.bf16.msra.mxu0 0
      %6018 = vmatprep.mubr.bf16.mxu0 0
      %6019 = vmatmul.mubr.bf16.gmra.mrb[0].mxu0 %v5919
      %v6020 = vpop.f32.mrb[0].mxu0
      %v6021 = vadd.f32 0.0, %v6020
      %v6022 = vpop.f32.mrb[0].mxu0
      %v6023 = vadd.f32 0.0, %v6022
      %v6024 = vpop.f32.mrb[0].mxu0
      %v6025 = vpop.f32.mrb[0].mxu0
      %6026 = vdwg.mxu0
      %6027 = vmatprep.subr.bf16.mxu0 %v5937
      %6028 = vmatpush1.bf16.msra.mxu0 %v5934
      %6029 = vmatprep.subr.bf16.mxu0 0
      %6030 = vmatpush1.bf16.msra.mxu0 0
      %6031 = vmatprep.subr.bf16.mxu0 0
      %6032 = vmatpush1.bf16.msra.mxu0 0
      %6033 = vmatprep.subr.bf16.mxu0 0
      %6034 = vmatpush1.bf16.msra.mxu0 0
      %6035 = vmatprep.subr.bf16.mxu0 0
      %6036 = vmatpush1.bf16.msra.mxu0 0
      %6037 = vmatprep.subr.bf16.mxu0 0
      %6038 = vmatpush1.bf16.msra.mxu0 0
      %6039 = vmatprep.subr.bf16.mxu0 0
      %6040 = vmatpush1.bf16.msra.mxu0 0
      %6041 = vmatprep.subr.bf16.mxu0 0
      %6042 = vmatpush1.bf16.msra.mxu0 0
      %6043 = vmatprep.subr.bf16.mxu0 0
      %6044 = vmatpush1.bf16.msra.mxu0 0
      %6045 = vmatprep.subr.bf16.mxu0 0
      %6046 = vmatpush1.bf16.msra.mxu0 0
      %6047 = vmatprep.subr.bf16.mxu0 0
      %6048 = vmatpush1.bf16.msra.mxu0 0
      %6049 = vmatprep.subr.bf16.mxu0 0
      %6050 = vmatpush1.bf16.msra.mxu0 0
      %6051 = vmatprep.subr.bf16.mxu0 0
      %6052 = vmatpush1.bf16.msra.mxu0 0
      %6053 = vmatprep.subr.bf16.mxu0 0
      %6054 = vmatpush1.bf16.msra.mxu0 0
      %6055 = vmatprep.subr.bf16.mxu0 0
      %6056 = vmatpush1.bf16.msra.mxu0 0
      %6057 = vmatprep.subr.bf16.mxu0 0
      %6058 = vmatpush1.bf16.msra.mxu0 0
      %6059 = vmatprep.mubr.bf16.mxu0 0
      %6060 = vmatmul.mubr.bf16.gmra.mrb[0].mxu0 %v5919
      %v6061 = vpop.f32.mrb[0].mxu0
      %v6062 = vadd.f32 0.0, %v6061
      %v6063 = vpop.f32.mrb[0].mxu0
      %v6064 = vadd.f32 0.0, %v6063
      %v6065 = vpop.f32.mrb[0].mxu0
      %v6066 = vpop.f32.mrb[0].mxu0
      %6067 = vdwg.mxu0
      %6068 = vmatprep.subr.bf16.mxu0 %v5943
      %6069 = vmatpush1.bf16.msra.mxu0 %v5940
      %6070 = vmatprep.subr.bf16.mxu0 0
      %6071 = vmatpush1.bf16.msra.mxu0 0
      %6072 = vmatprep.subr.bf16.mxu0 0
      %6073 = vmatpush1.bf16.msra.mxu0 0
      %6074 = vmatprep.subr.bf16.mxu0 0
      %6075 = vmatpush1.bf16.msra.mxu0 0
      %6076 = vmatprep.subr.bf16.mxu0 0
      %6077 = vmatpush1.bf16.msra.mxu0 0
      %6078 = vmatprep.subr.bf16.mxu0 0
      %6079 = vmatpush1.bf16.msra.mxu0 0
      %6080 = vmatprep.subr.bf16.mxu0 0
      %6081 = vmatpush1.bf16.msra.mxu0 0
      %6082 = vmatprep.subr.bf16.mxu0 0
      %6083 = vmatpush1.bf16.msra.mxu0 0
      %6084 = vmatprep.subr.bf16.mxu0 0
      %6085 = vmatpush1.bf16.msra.mxu0 0
      %6086 = vmatprep.subr.bf16.mxu0 0
      %6087 = vmatpush1.bf16.msra.mxu0 0
      %6088 = vmatprep.subr.bf16.mxu0 0
      %6089 = vmatpush1.bf16.msra.mxu0 0
      %6090 = vmatprep.subr.bf16.mxu0 0
      %6091 = vmatpush1.bf16.msra.mxu0 0
      %6092 = vmatprep.subr.bf16.mxu0 0
      %6093 = vmatpush1.bf16.msra.mxu0 0
      %6094 = vmatprep.subr.bf16.mxu0 0
      %6095 = vmatpush1.bf16.msra.mxu0 0
      %6096 = vmatprep.subr.bf16.mxu0 0
      %6097 = vmatpush1.bf16.msra.mxu0 0
      %6098 = vmatprep.subr.bf16.mxu0 0
      %6099 = vmatpush1.bf16.msra.mxu0 0
      %6100 = vmatprep.mubr.bf16.mxu0 0
      %6101 = vmatmul.mubr.bf16.gmra.mrb[0].mxu0 %v5919
      %v6102 = vpop.f32.mrb[0].mxu0
      %v6103 = vadd.f32 0.0, %v6102
      %v6104 = vpop.f32.mrb[0].mxu0
      %v6105 = vadd.f32 0.0, %v6104
      %v6106 = vpop.f32.mrb[0].mxu0
      %v6107 = vpop.f32.mrb[0].mxu0
      %6108 = vdwg.mxu0
      %v6109 = vadd.f32 %v5882, %v5980
      %v6110 = vadd.f32 %v5883, %v5982
      %v6111 = vadd.f32 %v5884, %v6021
      %v6112 = vadd.f32 %v5885, %v6023
      %v6113 = vadd.f32 %v5886, %v6062
      %v6114 = vadd.f32 %v5887, %v6064
      %v6115 = vadd.f32 %v5888, %v6103
      %v6116 = vadd.f32 %v5889, %v6105
      %v6117 = vld [vmem:[%s2] sm:$0xff]
      %6119 = vset.pattern.permute.xlu0 0
      %6120 = vperm.xlu0 %6119, %v6117
      %v6121 = vpop.permute.xlu0 %6120
      %v6123 = vmul.f32 %v6109, %v6121
      %v6124 = vmul.f32 %v6110, %v6121
      %v6125 = vmul.f32 %v6111, %v6121
      %v6126 = vmul.f32 %v6112, %v6121
      %v6127 = vmul.f32 %v6113, %v6121
      %v6128 = vmul.f32 %v6114, %v6121
      %v6129 = vmul.f32 %v6115, %v6121
      %v6130 = vmul.f32 %v6116, %v6121
      %v6131 = vld [vmem:[%s3] sm:$0xff]
      %6133 = vset.pattern.permute.xlu0 0
      %6134 = vperm.xlu0 %6133, %v6131
      %v6135 = vpop.permute.xlu0 %6134
      %v6137 = vadd.f32 %v6123, %v6135
      %v6138 = vadd.f32 %v6124, %v6135
      %v6139 = vadd.f32 %v6125, %v6135
      %v6140 = vadd.f32 %v6126, %v6135
      %v6141 = vadd.f32 %v6127, %v6135
      %v6142 = vadd.f32 %v6128, %v6135
      %v6143 = vadd.f32 %v6129, %v6135
      %v6144 = vadd.f32 %v6130, %v6135
      %v6145 = vmul.f32 %v6137, 2.0
      %v6146 = vmul.f32 %v6138, 2.0
      %v6147 = vmul.f32 %v6139, 2.0
      %v6148 = vmul.f32 %v6140, 2.0
      %v6149 = vmul.f32 %v6141, 2.0
      %v6150 = vmul.f32 %v6142, 2.0
      %v6151 = vmul.f32 %v6143, 2.0
      %v6152 = vmul.f32 %v6144, 2.0
      %v6153 = vround.ne.pseudo %v6145
      %v6154 = vround.ne.pseudo %v6146
      %v6155 = vround.ne.pseudo %v6147
      %v6156 = vround.ne.pseudo %v6148
      %v6157 = vround.ne.pseudo %v6149
      %v6158 = vround.ne.pseudo %v6150
      %v6159 = vround.ne.pseudo %v6151
      %v6160 = vround.ne.pseudo %v6152
      %v6161 = vmax.f32 %v6153, -2.0
      %v6162 = vmax.f32 %v6154, -2.0
      %v6163 = vmax.f32 %v6155, -2.0
      %v6164 = vmax.f32 %v6156, -2.0
      %v6165 = vmax.f32 %v6157, -2.0
      %v6166 = vmax.f32 %v6158, -2.0
      %v6167 = vmax.f32 %v6159, -2.0
      %v6168 = vmax.f32 %v6160, -2.0
      %v6169 = vmin.f32 %v6161, 1.0
      %v6170 = vmin.f32 %v6162, 1.0
      %v6171 = vmin.f32 %v6163, 1.0
      %v6172 = vmin.f32 %v6164, 1.0
      %v6173 = vmin.f32 %v6165, 1.0
      %v6174 = vmin.f32 %v6166, 1.0
      %v6175 = vmin.f32 %v6167, 1.0
      %v6176 = vmin.f32 %v6168, 1.0
      %v6177 = vmul.f32 %v6169, 0.5
      %v6178 = vmul.f32 %v6170, 0.5
      %v6179 = vmul.f32 %v6171, 0.5
      %v6180 = vmul.f32 %v6172, 0.5
      %v6181 = vmul.f32 %v6173, 0.5
      %v6182 = vmul.f32 %v6174, 0.5
      %v6183 = vmul.f32 %v6175, 0.5
      %v6184 = vmul.f32 %v6176, 0.5
      %6185 = vst [vmem:[#allocation3] sm:$0xff] %v6177
      %6186 = vst [vmem:[#allocation3 + $0x8] sm:$0xff] %v6178
      %6187 = vst [vmem:[#allocation3 + $0x10] sm:$0xff] %v6179
      %6188 = vst [vmem:[#allocation3 + $0x18] sm:$0xff] %v6180
      %6189 = vst [vmem:[#allocation3 + $0x20] sm:$0xff] %v6181
      %6190 = vst [vmem:[#allocation3 + $0x28] sm:$0xff] %v6182
      %6191 = vst [vmem:[#allocation3 + $0x30] sm:$0xff] %v6183
      %6192 = vst [vmem:[#allocation3 + $0x38] sm:$0xff] %v6184
      %v6193 = vld [vmem:[#allocation3] sm:$0xff]
      %v6194 = vld [vmem:[#allocation3 + $0x8] sm:$0xff]
      %v6195 = vld [vmem:[#allocation3 + $0x10] sm:$0xff]
      %v6196 = vld [vmem:[#allocation3 + $0x18] sm:$0xff]
      %v6197 = vld [vmem:[#allocation3 + $0x20] sm:$0xff]
      %v6198 = vld [vmem:[#allocation3 + $0x28] sm:$0xff]
      %v6199 = vld [vmem:[#allocation3 + $0x30] sm:$0xff]
      %v6200 = vld [vmem:[#allocation3 + $0x38] sm:$0xff]
      %v6201 = vld [vmem:[#allocation3 + $0x40] sm:$0xff]
      %6211 = vrot.lane.b32.xlu0 %v6193, 127
      %v6212 = vpop.permute.xlu0 %6211
      %6213 = vrot.lane.b32.xlu0 %v6194, 127
      %v6214 = vpop.permute.xlu0 %6213
      %6215 = vrot.lane.b32.xlu0 %v6195, 127
      %v6216 = vpop.permute.xlu0 %6215
      %6217 = vrot.lane.b32.xlu0 %v6196, 127
      %v6218 = vpop.permute.xlu0 %6217
      %6219 = vrot.lane.b32.xlu0 %v6197, 127
      %v6220 = vpop.permute.xlu0 %6219
      %6221 = vrot.lane.b32.xlu0 %v6198, 127
      %v6222 = vpop.permute.xlu0 %6221
      %6223 = vrot.lane.b32.xlu0 %v6199, 127
      %v6224 = vpop.permute.xlu0 %6223
      %6225 = vrot.lane.b32.xlu0 %v6200, 127
      %v6226 = vpop.permute.xlu0 %6225
      %6227 = vrot.lane.b32.xlu0 %v6201, 127
      %v6228 = vpop.permute.xlu0 %6227
      %vm6229 = vcmask 1039360
      %v6230 = vsel %vm6229, %v6212, %v6214
      %v6231 = vsel %vm6229, %v6214, %v6216
      %v6232 = vsel %vm6229, %v6216, %v6218
      %v6233 = vsel %vm6229, %v6218, %v6220
      %v6234 = vsel %vm6229, %v6220, %v6222
      %v6235 = vsel %vm6229, %v6222, %v6224
      %v6236 = vsel %vm6229, %v6224, %v6226
      %v6237 = vsel %vm6229, %v6226, %v6228
      %v6247 = vmax.f32 %v6193, %v6230
      %v6248 = vmax.f32 %v6194, %v6231
      %v6249 = vmax.f32 %v6195, %v6232
      %v6250 = vmax.f32 %v6196, %v6233
      %v6251 = vmax.f32 %v6197, %v6234
      %v6252 = vmax.f32 %v6198, %v6235
      %v6253 = vmax.f32 %v6199, %v6236
      %v6254 = vmax.f32 %v6200, %v6237
      %v6255 = vmax.f32 %v6201, %v6228
      %6256 = vrot.lane.b32.xlu0 %v6193, 126
      %v6257 = vpop.permute.xlu0 %6256
      %6258 = vrot.lane.b32.xlu0 %v6194, 126
      %v6259 = vpop.permute.xlu0 %6258
      %6260 = vrot.lane.b32.xlu0 %v6195, 126
      %v6261 = vpop.permute.xlu0 %6260
      %6262 = vrot.lane.b32.xlu0 %v6196, 126
      %v6263 = vpop.permute.xlu0 %6262
      %6264 = vrot.lane.b32.xlu0 %v6197, 126
      %v6265 = vpop.permute.xlu0 %6264
      %6266 = vrot.lane.b32.xlu0 %v6198, 126
      %v6267 = vpop.permute.xlu0 %6266
      %6268 = vrot.lane.b32.xlu0 %v6199, 126
      %v6269 = vpop.permute.xlu0 %6268
      %6270 = vrot.lane.b32.xlu0 %v6200, 126
      %v6271 = vpop.permute.xlu0 %6270
      %6272 = vrot.lane.b32.xlu0 %v6201, 126
      %v6273 = vpop.permute.xlu0 %6272
      %vm6274 = vcmask 1031168
      %v6275 = vsel %vm6274, %v6257, %v6259
      %v6276 = vsel %vm6274, %v6259, %v6261
      %v6277 = vsel %vm6274, %v6261, %v6263
      %v6278 = vsel %vm6274, %v6263, %v6265
      %v6279 = vsel %vm6274, %v6265, %v6267
      %v6280 = vsel %vm6274, %v6267, %v6269
      %v6281 = vsel %vm6274, %v6269, %v6271
      %v6282 = vsel %vm6274, %v6271, %v6273
      %v6292 = vmax.f32 %v6247, %v6275
      %v6293 = vmax.f32 %v6248, %v6276
      %v6294 = vmax.f32 %v6249, %v6277
      %v6295 = vmax.f32 %v6250, %v6278
      %v6296 = vmax.f32 %v6251, %v6279
      %v6297 = vmax.f32 %v6252, %v6280
      %v6298 = vmax.f32 %v6253, %v6281
      %v6299 = vmax.f32 %v6254, %v6282
      %v6300 = vmax.f32 %v6255, %v6273
      %6301 = vrot.lane.b32.xlu0 %v6193, 125
      %v6302 = vpop.permute.xlu0 %6301
      %6303 = vrot.lane.b32.xlu0 %v6194, 125
      %v6304 = vpop.permute.xlu0 %6303
      %6305 = vrot.lane.b32.xlu0 %v6195, 125
      %v6306 = vpop.permute.xlu0 %6305
      %6307 = vrot.lane.b32.xlu0 %v6196, 125
      %v6308 = vpop.permute.xlu0 %6307
      %6309 = vrot.lane.b32.xlu0 %v6197, 125
      %v6310 = vpop.permute.xlu0 %6309
      %6311 = vrot.lane.b32.xlu0 %v6198, 125
      %v6312 = vpop.permute.xlu0 %6311
      %6313 = vrot.lane.b32.xlu0 %v6199, 125
      %v6314 = vpop.permute.xlu0 %6313
      %6315 = vrot.lane.b32.xlu0 %v6200, 125
      %v6316 = vpop.permute.xlu0 %6315
      %6317 = vrot.lane.b32.xlu0 %v6201, 125
      %v6318 = vpop.permute.xlu0 %6317
      %vm6319 = vcmask 1022976
      %v6320 = vsel %vm6319, %v6302, %v6304
      %v6321 = vsel %vm6319, %v6304, %v6306
      %v6322 = vsel %vm6319, %v6306, %v6308
      %v6323 = vsel %vm6319, %v6308, %v6310
      %v6324 = vsel %vm6319, %v6310, %v6312
      %v6325 = vsel %vm6319, %v6312, %v6314
      %v6326 = vsel %vm6319, %v6314, %v6316
      %v6327 = vsel %vm6319, %v6316, %v6318
      %v6337 = vmax.f32 %v6292, %v6320
      %v6338 = vmax.f32 %v6293, %v6321
      %v6339 = vmax.f32 %v6294, %v6322
      %v6340 = vmax.f32 %v6295, %v6323
      %v6341 = vmax.f32 %v6296, %v6324
      %v6342 = vmax.f32 %v6297, %v6325
      %v6343 = vmax.f32 %v6298, %v6326
      %v6344 = vmax.f32 %v6299, %v6327
      %v6345 = vmax.f32 %v6300, %v6318
      %6355 = vrot.lane.b32.xlu0 %v6337, 96
      %v6356 = vpop.permute.xlu0 %6355
      %6357 = vrot.lane.b32.xlu0 %v6338, 96
      %v6358 = vpop.permute.xlu0 %6357
      %6359 = vrot.lane.b32.xlu0 %v6339, 96
      %v6360 = vpop.permute.xlu0 %6359
      %6361 = vrot.lane.b32.xlu0 %v6340, 96
      %v6362 = vpop.permute.xlu0 %6361
      %6363 = vrot.lane.b32.xlu0 %v6341, 96
      %v6364 = vpop.permute.xlu0 %6363
      %6365 = vrot.lane.b32.xlu0 %v6342, 96
      %v6366 = vpop.permute.xlu0 %6365
      %6367 = vrot.lane.b32.xlu0 %v6343, 96
      %v6368 = vpop.permute.xlu0 %6367
      %6369 = vrot.lane.b32.xlu0 %v6344, 96
      %v6370 = vpop.permute.xlu0 %6369
      %6371 = vrot.lane.b32.xlu0 %v6345, 96
      %v6372 = vpop.permute.xlu0 %6371
      %vm6373 = vcmask 785408
      %v6374 = vsel %vm6373, %v6356, %v6358
      %v6375 = vsel %vm6373, %v6358, %v6360
      %v6376 = vsel %vm6373, %v6360, %v6362
      %v6377 = vsel %vm6373, %v6362, %v6364
      %v6378 = vsel %vm6373, %v6364, %v6366
      %v6379 = vsel %vm6373, %v6366, %v6368
      %v6380 = vsel %vm6373, %v6368, %v6370
      %v6381 = vsel %vm6373, %v6370, %v6372
      %v6390 = vmax.f32 %v6337, %v6374
      %v6391 = vmax.f32 %v6338, %v6375
      %v6392 = vmax.f32 %v6339, %v6376
      %v6393 = vmax.f32 %v6340, %v6377
      %v6394 = vmax.f32 %v6341, %v6378
      %v6395 = vmax.f32 %v6342, %v6379
      %v6396 = vmax.f32 %v6343, %v6380
      %v6397 = vmax.f32 %v6344, %v6381
      %6398 = vrot.lane.b32.xlu0 %v6337, 64
      %v6399 = vpop.permute.xlu0 %6398
      %6400 = vrot.lane.b32.xlu0 %v6338, 64
      %v6401 = vpop.permute.xlu0 %6400
      %6402 = vrot.lane.b32.xlu0 %v6339, 64
      %v6403 = vpop.permute.xlu0 %6402
      %6404 = vrot.lane.b32.xlu0 %v6340, 64
      %v6405 = vpop.permute.xlu0 %6404
      %6406 = vrot.lane.b32.xlu0 %v6341, 64
      %v6407 = vpop.permute.xlu0 %6406
      %6408 = vrot.lane.b32.xlu0 %v6342, 64
      %v6409 = vpop.permute.xlu0 %6408
      %6410 = vrot.lane.b32.xlu0 %v6343, 64
      %v6411 = vpop.permute.xlu0 %6410
      %6412 = vrot.lane.b32.xlu0 %v6344, 64
      %v6413 = vpop.permute.xlu0 %6412
      %6414 = vrot.lane.b32.xlu0 %v6345, 64
      %v6415 = vpop.permute.xlu0 %6414
      %vm6416 = vcmask 523264
      %v6417 = vsel %vm6416, %v6399, %v6401
      %v6418 = vsel %vm6416, %v6401, %v6403
      %v6419 = vsel %vm6416, %v6403, %v6405
      %v6420 = vsel %vm6416, %v6405, %v6407
      %v6421 = vsel %vm6416, %v6407, %v6409
      %v6422 = vsel %vm6416, %v6409, %v6411
      %v6423 = vsel %vm6416, %v6411, %v6413
      %v6424 = vsel %vm6416, %v6413, %v6415
      %v6433 = vmax.f32 %v6390, %v6417
      %v6434 = vmax.f32 %v6391, %v6418
      %v6435 = vmax.f32 %v6392, %v6419
      %v6436 = vmax.f32 %v6393, %v6420
      %v6437 = vmax.f32 %v6394, %v6421
      %v6438 = vmax.f32 %v6395, %v6422
      %v6439 = vmax.f32 %v6396, %v6423
      %v6440 = vmax.f32 %v6397, %v6424
      %6441 = vrot.lane.b32.xlu0 %v6337, 32
      %v6442 = vpop.permute.xlu0 %6441
      %6443 = vrot.lane.b32.xlu0 %v6338, 32
      %v6444 = vpop.permute.xlu0 %6443
      %6445 = vrot.lane.b32.xlu0 %v6339, 32
      %v6446 = vpop.permute.xlu0 %6445
      %6447 = vrot.lane.b32.xlu0 %v6340, 32
      %v6448 = vpop.permute.xlu0 %6447
      %6449 = vrot.lane.b32.xlu0 %v6341, 32
      %v6450 = vpop.permute.xlu0 %6449
      %6451 = vrot.lane.b32.xlu0 %v6342, 32
      %v6452 = vpop.permute.xlu0 %6451
      %6453 = vrot.lane.b32.xlu0 %v6343, 32
      %v6454 = vpop.permute.xlu0 %6453
      %6455 = vrot.lane.b32.xlu0 %v6344, 32
      %v6456 = vpop.permute.xlu0 %6455
      %6457 = vrot.lane.b32.xlu0 %v6345, 32
      %v6458 = vpop.permute.xlu0 %6457
      %vm6459 = vcmask 261120
      %v6460 = vsel %vm6459, %v6442, %v6444
      %v6461 = vsel %vm6459, %v6444, %v6446
      %v6462 = vsel %vm6459, %v6446, %v6448
      %v6463 = vsel %vm6459, %v6448, %v6450
      %v6464 = vsel %vm6459, %v6450, %v6452
      %v6465 = vsel %vm6459, %v6452, %v6454
      %v6466 = vsel %vm6459, %v6454, %v6456
      %v6467 = vsel %vm6459, %v6456, %v6458
      %v6476 = vmax.f32 %v6433, %v6460
      %v6477 = vmax.f32 %v6434, %v6461
      %v6478 = vmax.f32 %v6435, %v6462
      %v6479 = vmax.f32 %v6436, %v6463
      %v6480 = vmax.f32 %v6437, %v6464
      %v6481 = vmax.f32 %v6438, %v6465
      %v6482 = vmax.f32 %v6439, %v6466
      %v6483 = vmax.f32 %v6440, %v6467
      %v6484 = vpack.c.bf16 %v6476, %v6476
      %v6485 = vpack.c.bf16 %v6477, %v6477
      %v6486 = vpack.c.bf16 %v6478, %v6478
      %v6487 = vpack.c.bf16 %v6479, %v6479
      %v6488 = vpack.c.bf16 %v6480, %v6480
      %v6489 = vpack.c.bf16 %v6481, %v6481
      %v6490 = vpack.c.bf16 %v6482, %v6482
      %v6491 = vpack.c.bf16 %v6483, %v6483
      %v6500 = vunpack.c.l.b16 %v6484
      %v6501 = vunpack.c.l.b16 %v6485
      %v6502 = vunpack.c.l.b16 %v6486
      %v6503 = vunpack.c.l.b16 %v6487
      %v6504 = vunpack.c.l.b16 %v6488
      %v6505 = vunpack.c.l.b16 %v6489
      %v6506 = vunpack.c.l.b16 %v6490
      %v6507 = vunpack.c.l.b16 %v6491
      %v6508 = vpack.c.b16 %v6501, %v6500
      %v6509 = vpack.c.b16 %v6503, %v6502
      %v6510 = vpack.c.b16 %v6505, %v6504
      %v6511 = vpack.c.b16 %v6507, %v6506
      %6516 = vst [vmem:[#allocation4] sm:$0xff] %v6508
      %6517 = vst [vmem:[#allocation4 + $0x8] sm:$0xff] %v6509
      %6518 = vst [vmem:[#allocation4 + $0x10] sm:$0xff] %v6510
      %6519 = vst [vmem:[#allocation4 + $0x18] sm:$0xff] %v6511
      %v6520 = vld [vmem:[%s4] sm:$0xf]
      %v6521 = vld [vmem:[%s4 + $0x4] sm:$0xf]
      %v6522 = vld [vmem:[#allocation4] sm:$0xff]
      %v6523 = vld [vmem:[#allocation4 + $0x8] sm:$0xf]
      %s6524 = scalar_lea.vmem %s4, 8
      %v6525 = vld [vmem:[%s6524] sm:$0xf]
      %v6526 = vld [vmem:[%s6524 + $0x4] sm:$0xf]
      %v6527 = vld [vmem:[#allocation4 + $0x8] sm:$0xff]
      %v6530 = vunpack.c.l.b16 %v6525
      %v6531 = vunpack.c.l.b16 %v6526
      %v6532 = vpack.c.b16 %v6531, %v6530
      %v6535 = vunpack.c.l.b16 %v6522
      %v6536 = vunpack.c.h.b16 %v6522
      %v6537 = vunpack.c.l.b16 %v6527
      %v6538 = vunpack.c.h.b16 %v6527
      %v6539 = vpack.c.b16 %v6535, %v6535
      %v6540 = vpack.c.b16 %v6536, %v6536
      %v6541 = vpack.c.b16 %v6537, %v6537
      %v6542 = vpack.c.b16 %v6538, %v6538
      %6543 = vrot.lane.b32.xlu0 %v6539, 124
      %v6544 = vpop.permute.xlu0 %6543
      %6545 = vrot.lane.b32.xlu0 %v6540, 124
      %v6546 = vpop.permute.xlu0 %6545
      %6547 = vrot.lane.b32.xlu0 %v6541, 124
      %v6548 = vpop.permute.xlu0 %6547
      %6549 = vrot.lane.b32.xlu0 %v6542, 124
      %v6550 = vpop.permute.xlu0 %6549
      %v6551 = vsel %vm1328, %v6544, %v6546
      %v6552 = vsel %vm1328, %v6546, %v6548
      %v6553 = vsel %vm1328, %v6548, %v6550
      %v6555 = vsel %vm468, %v6532, 0
      %v6558 = vsel %vm472, %v6551, 0
      %v6561 = vsel %vm472, %v6552, 0
      %v6564 = vsel %vm472, %v6553, 0
      %6566 = vmatprep.subr.bf16.mxu0 %v6561
      %6567 = vmatpush1.bf16.msra.mxu0 %v6558
      %6568 = vmatprep.subr.bf16.mxu0 0
      %6569 = vmatpush1.bf16.msra.mxu0 0
      %6570 = vmatprep.subr.bf16.mxu0 0
      %6571 = vmatpush1.bf16.msra.mxu0 0
      %6572 = vmatprep.subr.bf16.mxu0 0
      %6573 = vmatpush1.bf16.msra.mxu0 0
      %6574 = vmatprep.subr.bf16.mxu0 0
      %6575 = vmatpush1.bf16.msra.mxu0 0
      %6576 = vmatprep.subr.bf16.mxu0 0
      %6577 = vmatpush1.bf16.msra.mxu0 0
      %6578 = vmatprep.subr.bf16.mxu0 0
      %6579 = vmatpush1.bf16.msra.mxu0 0
      %6580 = vmatprep.subr.bf16.mxu0 0
      %6581 = vmatpush1.bf16.msra.mxu0 0
      %6582 = vmatprep.subr.bf16.mxu0 0
      %6583 = vmatpush1.bf16.msra.mxu0 0
      %6584 = vmatprep.subr.bf16.mxu0 0
      %6585 = vmatpush1.bf16.msra.mxu0 0
      %6586 = vmatprep.subr.bf16.mxu0 0
      %6587 = vmatpush1.bf16.msra.mxu0 0
      %6588 = vmatprep.subr.bf16.mxu0 0
      %6589 = vmatpush1.bf16.msra.mxu0 0
      %6590 = vmatprep.subr.bf16.mxu0 0
      %6591 = vmatpush1.bf16.msra.mxu0 0
      %6592 = vmatprep.subr.bf16.mxu0 0
      %6593 = vmatpush1.bf16.msra.mxu0 0
      %6594 = vmatprep.subr.bf16.mxu0 0
      %6595 = vmatpush1.bf16.msra.mxu0 0
      %6596 = vmatprep.subr.bf16.mxu0 0
      %6597 = vmatpush1.bf16.msra.mxu0 0
      %6598 = vmatprep.mubr.bf16.mxu0 0
      %6599 = vmatmul.mubr.bf16.gmra.mrb[0].mxu0 %v6555
      %v6600 = vpop.f32.mrb[0].mxu0
      %v6601 = vadd.f32 0.0, %v6600
      %v6602 = vpop.f32.mrb[0].mxu0
      %v6603 = vadd.f32 0.0, %v6602
      %v6604 = vpop.f32.mrb[0].mxu0
      %v6605 = vadd.f32 0.0, %v6604
      %v6606 = vpop.f32.mrb[0].mxu0
      %v6607 = vadd.f32 0.0, %v6606
      %6608 = vdwg.mxu0
      %6609 = vmatprep.subr.bf16.mxu0 0
      %6610 = vmatpush1.bf16.msra.mxu0 %v6564
      %6611 = vmatprep.subr.bf16.mxu0 0
      %6612 = vmatpush1.bf16.msra.mxu0 0
      %6613 = vmatprep.subr.bf16.mxu0 0
      %6614 = vmatpush1.bf16.msra.mxu0 0
      %6615 = vmatprep.subr.bf16.mxu0 0
      %6616 = vmatpush1.bf16.msra.mxu0 0
      %6617 = vmatprep.subr.bf16.mxu0 0
      %6618 = vmatpush1.bf16.msra.mxu0 0
      %6619 = vmatprep.subr.bf16.mxu0 0
      %6620 = vmatpush1.bf16.msra.mxu0 0
      %6621 = vmatprep.subr.bf16.mxu0 0
      %6622 = vmatpush1.bf16.msra.mxu0 0
      %6623 = vmatprep.subr.bf16.mxu0 0
      %6624 = vmatpush1.bf16.msra.mxu0 0
      %6625 = vmatprep.subr.bf16.mxu0 0
      %6626 = vmatpush1.bf16.msra.mxu0 0
      %6627 = vmatprep.subr.bf16.mxu0 0
      %6628 = vmatpush1.bf16.msra.mxu0 0
      %6629 = vmatprep.subr.bf16.mxu0 0
      %6630 = vmatpush1.bf16.msra.mxu0 0
      %6631 = vmatprep.subr.bf16.mxu0 0
      %6632 = vmatpush1.bf16.msra.mxu0 0
      %6633 = vmatprep.subr.bf16.mxu0 0
      %6634 = vmatpush1.bf16.msra.mxu0 0
      %6635 = vmatprep.subr.bf16.mxu0 0
      %6636 = vmatpush1.bf16.msra.mxu0 0
      %6637 = vmatprep.subr.bf16.mxu0 0
      %6638 = vmatpush1.bf16.msra.mxu0 0
      %6639 = vmatprep.subr.bf16.mxu0 0
      %6640 = vmatpush1.bf16.msra.mxu0 0
      %6641 = vmatprep.mubr.bf16.mxu0 0
      %6642 = vmatmul.mubr.bf16.gmra.mrb[0].mxu0 %v6555
      %v6643 = vpop.f32.mrb[0].mxu0
      %v6644 = vadd.f32 0.0, %v6643
      %v6645 = vpop.f32.mrb[0].mxu0
      %v6646 = vpop.f32.mrb[0].mxu0
      %v6647 = vadd.f32 0.0, %v6646
      %v6648 = vpop.f32.mrb[0].mxu0
      %6649 = vdwg.mxu0
      %v6652 = vunpack.c.l.b16 %v6520
      %v6653 = vunpack.c.l.b16 %v6521
      %v6654 = vpack.c.b16 %v6653, %v6652
      %v6656 = vunpack.c.l.b16 %v6523
      %v6657 = vpack.c.b16 %v6656, %v6656
      %v6659 = vsel %vm468, %v6654, 0
      %v6662 = vsel %vm472, %v6539, 0
      %v6665 = vsel %vm472, %v6540, 0
      %v6668 = vsel %vm472, %v6657, 0
      %6670 = vmatprep.subr.bf16.mxu0 %v6665
      %6671 = vmatpush1.bf16.msra.mxu0 %v6662
      %6672 = vmatprep.subr.bf16.mxu0 0
      %6673 = vmatpush1.bf16.msra.mxu0 0
      %6674 = vmatprep.subr.bf16.mxu0 0
      %6675 = vmatpush1.bf16.msra.mxu0 0
      %6676 = vmatprep.subr.bf16.mxu0 0
      %6677 = vmatpush1.bf16.msra.mxu0 0
      %6678 = vmatprep.subr.bf16.mxu0 0
      %6679 = vmatpush1.bf16.msra.mxu0 0
      %6680 = vmatprep.subr.bf16.mxu0 0
      %6681 = vmatpush1.bf16.msra.mxu0 0
      %6682 = vmatprep.subr.bf16.mxu0 0
      %6683 = vmatpush1.bf16.msra.mxu0 0
      %6684 = vmatprep.subr.bf16.mxu0 0
      %6685 = vmatpush1.bf16.msra.mxu0 0
      %6686 = vmatprep.subr.bf16.mxu0 0
      %6687 = vmatpush1.bf16.msra.mxu0 0
      %6688 = vmatprep.subr.bf16.mxu0 0
      %6689 = vmatpush1.bf16.msra.mxu0 0
      %6690 = vmatprep.subr.bf16.mxu0 0
      %6691 = vmatpush1.bf16.msra.mxu0 0
      %6692 = vmatprep.subr.bf16.mxu0 0
      %6693 = vmatpush1.bf16.msra.mxu0 0
      %6694 = vmatprep.subr.bf16.mxu0 0
      %6695 = vmatpush1.bf16.msra.mxu0 0
      %6696 = vmatprep.subr.bf16.mxu0 0
      %6697 = vmatpush1.bf16.msra.mxu0 0
      %6698 = vmatprep.subr.bf16.mxu0 0
      %6699 = vmatpush1.bf16.msra.mxu0 0
      %6700 = vmatprep.subr.bf16.mxu0 0
      %6701 = vmatpush1.bf16.msra.mxu0 0
      %6702 = vmatprep.mubr.bf16.mxu0 0
      %6703 = vmatmul.mubr.bf16.gmra.mrb[0].mxu0 %v6659
      %v6704 = vpop.f32.mrb[0].mxu0
      %v6705 = vadd.f32 %v6601, %v6704
      %v6706 = vpop.f32.mrb[0].mxu0
      %v6707 = vadd.f32 %v6603, %v6706
      %v6708 = vpop.f32.mrb[0].mxu0
      %v6709 = vadd.f32 %v6605, %v6708
      %v6710 = vpop.f32.mrb[0].mxu0
      %v6711 = vadd.f32 %v6607, %v6710
      %6712 = vdwg.mxu0
      %6713 = vmatprep.subr.bf16.mxu0 0
      %6714 = vmatpush1.bf16.msra.mxu0 %v6668
      %6715 = vmatprep.subr.bf16.mxu0 0
      %6716 = vmatpush1.bf16.msra.mxu0 0
      %6717 = vmatprep.subr.bf16.mxu0 0
      %6718 = vmatpush1.bf16.msra.mxu0 0
      %6719 = vmatprep.subr.bf16.mxu0 0
      %6720 = vmatpush1.bf16.msra.mxu0 0
      %6721 = vmatprep.subr.bf16.mxu0 0
      %6722 = vmatpush1.bf16.msra.mxu0 0
      %6723 = vmatprep.subr.bf16.mxu0 0
      %6724 = vmatpush1.bf16.msra.mxu0 0
      %6725 = vmatprep.subr.bf16.mxu0 0
      %6726 = vmatpush1.bf16.msra.mxu0 0
      %6727 = vmatprep.subr.bf16.mxu0 0
      %6728 = vmatpush1.bf16.msra.mxu0 0
      %6729 = vmatprep.subr.bf16.mxu0 0
      %6730 = vmatpush1.bf16.msra.mxu0 0
      %6731 = vmatprep.subr.bf16.mxu0 0
      %6732 = vmatpush1.bf16.msra.mxu0 0
      %6733 = vmatprep.subr.bf16.mxu0 0
      %6734 = vmatpush1.bf16.msra.mxu0 0
      %6735 = vmatprep.subr.bf16.mxu0 0
      %6736 = vmatpush1.bf16.msra.mxu0 0
      %6737 = vmatprep.subr.bf16.mxu0 0
      %6738 = vmatpush1.bf16.msra.mxu0 0
      %6739 = vmatprep.subr.bf16.mxu0 0
      %6740 = vmatpush1.bf16.msra.mxu0 0
      %6741 = vmatprep.subr.bf16.mxu0 0
      %6742 = vmatpush1.bf16.msra.mxu0 0
      %6743 = vmatprep.subr.bf16.mxu0 0
      %6744 = vmatpush1.bf16.msra.mxu0 0
      %6745 = vmatprep.mubr.bf16.mxu0 0
      %6746 = vmatmul.mubr.bf16.gmra.mrb[0].mxu0 %v6659
      %v6747 = vpop.f32.mrb[0].mxu0
      %v6748 = vadd.f32 %v6644, %v6747
      %v6749 = vpop.f32.mrb[0].mxu0
      %v6750 = vpop.f32.mrb[0].mxu0
      %v6751 = vadd.f32 %v6647, %v6750
      %v6752 = vpop.f32.mrb[0].mxu0
      %6753 = vdwg.mxu0
      %s6754 = scalar_lea.vmem %s4, 16
      %v6755 = vld [vmem:[%s6754] sm:$0xf]
      %v6756 = vld [vmem:[%s6754 + $0x4] sm:$0xf]
      %v6759 = vunpack.c.l.b16 %v6755
      %v6760 = vunpack.c.l.b16 %v6756
      %v6761 = vpack.c.b16 %v6760, %v6759
      %6762 = vrot.lane.b32.xlu0 %v6539, 120
      %v6763 = vpop.permute.xlu0 %6762
      %6764 = vrot.lane.b32.xlu0 %v6540, 120
      %v6765 = vpop.permute.xlu0 %6764
      %6766 = vrot.lane.b32.xlu0 %v6541, 120
      %v6767 = vpop.permute.xlu0 %6766
      %6768 = vrot.lane.b32.xlu0 %v6542, 120
      %v6769 = vpop.permute.xlu0 %6768
      %vm6770 = vcmask 982016
      %v6771 = vsel %vm6770, %v6763, %v6765
      %v6772 = vsel %vm6770, %v6765, %v6767
      %v6773 = vsel %vm6770, %v6767, %v6769
      %v6775 = vsel %vm468, %v6761, 0
      %v6778 = vsel %vm472, %v6771, 0
      %v6781 = vsel %vm472, %v6772, 0
      %v6784 = vsel %vm472, %v6773, 0
      %6786 = vmatprep.subr.bf16.mxu0 %v6781
      %6787 = vmatpush1.bf16.msra.mxu0 %v6778
      %6788 = vmatprep.subr.bf16.mxu0 0
      %6789 = vmatpush1.bf16.msra.mxu0 0
      %6790 = vmatprep.subr.bf16.mxu0 0
      %6791 = vmatpush1.bf16.msra.mxu0 0
      %6792 = vmatprep.subr.bf16.mxu0 0
      %6793 = vmatpush1.bf16.msra.mxu0 0
      %6794 = vmatprep.subr.bf16.mxu0 0
      %6795 = vmatpush1.bf16.msra.mxu0 0
      %6796 = vmatprep.subr.bf16.mxu0 0
      %6797 = vmatpush1.bf16.msra.mxu0 0
      %6798 = vmatprep.subr.bf16.mxu0 0
      %6799 = vmatpush1.bf16.msra.mxu0 0
      %6800 = vmatprep.subr.bf16.mxu0 0
      %6801 = vmatpush1.bf16.msra.mxu0 0
      %6802 = vmatprep.subr.bf16.mxu0 0
      %6803 = vmatpush1.bf16.msra.mxu0 0
      %6804 = vmatprep.subr.bf16.mxu0 0
      %6805 = vmatpush1.bf16.msra.mxu0 0
      %6806 = vmatprep.subr.bf16.mxu0 0
      %6807 = vmatpush1.bf16.msra.mxu0 0
      %6808 = vmatprep.subr.bf16.mxu0 0
      %6809 = vmatpush1.bf16.msra.mxu0 0
      %6810 = vmatprep.subr.bf16.mxu0 0
      %6811 = vmatpush1.bf16.msra.mxu0 0
      %6812 = vmatprep.subr.bf16.mxu0 0
      %6813 = vmatpush1.bf16.msra.mxu0 0
      %6814 = vmatprep.subr.bf16.mxu0 0
      %6815 = vmatpush1.bf16.msra.mxu0 0
      %6816 = vmatprep.subr.bf16.mxu0 0
      %6817 = vmatpush1.bf16.msra.mxu0 0
      %6818 = vmatprep.mubr.bf16.mxu0 0
      %6819 = vmatmul.mubr.bf16.gmra.mrb[0].mxu0 %v6775
      %v6820 = vpop.f32.mrb[0].mxu0
      %v6821 = vadd.f32 0.0, %v6820
      %v6822 = vpop.f32.mrb[0].mxu0
      %v6823 = vadd.f32 0.0, %v6822
      %v6824 = vpop.f32.mrb[0].mxu0
      %v6825 = vadd.f32 0.0, %v6824
      %v6826 = vpop.f32.mrb[0].mxu0
      %v6827 = vadd.f32 0.0, %v6826
      %6828 = vdwg.mxu0
      %6829 = vmatprep.subr.bf16.mxu0 0
      %6830 = vmatpush1.bf16.msra.mxu0 %v6784
      %6831 = vmatprep.subr.bf16.mxu0 0
      %6832 = vmatpush1.bf16.msra.mxu0 0
      %6833 = vmatprep.subr.bf16.mxu0 0
      %6834 = vmatpush1.bf16.msra.mxu0 0
      %6835 = vmatprep.subr.bf16.mxu0 0
      %6836 = vmatpush1.bf16.msra.mxu0 0
      %6837 = vmatprep.subr.bf16.mxu0 0
      %6838 = vmatpush1.bf16.msra.mxu0 0
      %6839 = vmatprep.subr.bf16.mxu0 0
      %6840 = vmatpush1.bf16.msra.mxu0 0
      %6841 = vmatprep.subr.bf16.mxu0 0
      %6842 = vmatpush1.bf16.msra.mxu0 0
      %6843 = vmatprep.subr.bf16.mxu0 0
      %6844 = vmatpush1.bf16.msra.mxu0 0
      %6845 = vmatprep.subr.bf16.mxu0 0
      %6846 = vmatpush1.bf16.msra.mxu0 0
      %6847 = vmatprep.subr.bf16.mxu0 0
      %6848 = vmatpush1.bf16.msra.mxu0 0
      %6849 = vmatprep.subr.bf16.mxu0 0
      %6850 = vmatpush1.bf16.msra.mxu0 0
      %6851 = vmatprep.subr.bf16.mxu0 0
      %6852 = vmatpush1.bf16.msra.mxu0 0
      %6853 = vmatprep.subr.bf16.mxu0 0
      %6854 = vmatpush1.bf16.msra.mxu0 0
      %6855 = vmatprep.subr.bf16.mxu0 0
      %6856 = vmatpush1.bf16.msra.mxu0 0
      %6857 = vmatprep.subr.bf16.mxu0 0
      %6858 = vmatpush1.bf16.msra.mxu0 0
      %6859 = vmatprep.subr.bf16.mxu0 0
      %6860 = vmatpush1.bf16.msra.mxu0 0
      %6861 = vmatprep.mubr.bf16.mxu0 0
      %6862 = vmatmul.mubr.bf16.gmra.mrb[0].mxu0 %v6775
      %v6863 = vpop.f32.mrb[0].mxu0
      %v6864 = vadd.f32 0.0, %v6863
      %v6865 = vpop.f32.mrb[0].mxu0
      %v6866 = vpop.f32.mrb[0].mxu0
      %v6867 = vadd.f32 0.0, %v6866
      %v6868 = vpop.f32.mrb[0].mxu0
      %6869 = vdwg.mxu0
      %v6870 = vadd.f32 %v6705, %v6821
      %v6871 = vadd.f32 %v6707, %v6823
      %v6872 = vadd.f32 %v6748, %v6864
      %v6873 = vadd.f32 %v6709, %v6825
      %v6874 = vadd.f32 %v6711, %v6827
      %v6875 = vadd.f32 %v6751, %v6867
      %s6876 = scalar_lea.vmem %s4, 24
      %v6877 = vld [vmem:[%s6876] sm:$0xf]
      %v6878 = vld [vmem:[%s6876 + $0x4] sm:$0xf]
      %v6881 = vunpack.c.l.b16 %v6877
      %v6882 = vunpack.c.l.b16 %v6878
      %v6883 = vpack.c.b16 %v6882, %v6881
      %6884 = vrot.lane.b32.xlu0 %v6539, 116
      %v6885 = vpop.permute.xlu0 %6884
      %6886 = vrot.lane.b32.xlu0 %v6540, 116
      %v6887 = vpop.permute.xlu0 %6886
      %6888 = vrot.lane.b32.xlu0 %v6541, 116
      %v6889 = vpop.permute.xlu0 %6888
      %6890 = vrot.lane.b32.xlu0 %v6542, 116
      %v6891 = vpop.permute.xlu0 %6890
      %vm6892 = vcmask 949248
      %v6893 = vsel %vm6892, %v6885, %v6887
      %v6894 = vsel %vm6892, %v6887, %v6889
      %v6895 = vsel %vm6892, %v6889, %v6891
      %v6897 = vsel %vm468, %v6883, 0
      %v6900 = vsel %vm472, %v6893, 0
      %v6903 = vsel %vm472, %v6894, 0
      %v6906 = vsel %vm472, %v6895, 0
      %6908 = vmatprep.subr.bf16.mxu0 %v6903
      %6909 = vmatpush1.bf16.msra.mxu0 %v6900
      %6910 = vmatprep.subr.bf16.mxu0 0
      %6911 = vmatpush1.bf16.msra.mxu0 0
      %6912 = vmatprep.subr.bf16.mxu0 0
      %6913 = vmatpush1.bf16.msra.mxu0 0
      %6914 = vmatprep.subr.bf16.mxu0 0
      %6915 = vmatpush1.bf16.msra.mxu0 0
      %6916 = vmatprep.subr.bf16.mxu0 0
      %6917 = vmatpush1.bf16.msra.mxu0 0
      %6918 = vmatprep.subr.bf16.mxu0 0
      %6919 = vmatpush1.bf16.msra.mxu0 0
      %6920 = vmatprep.subr.bf16.mxu0 0
      %6921 = vmatpush1.bf16.msra.mxu0 0
      %6922 = vmatprep.subr.bf16.mxu0 0
      %6923 = vmatpush1.bf16.msra.mxu0 0
      %6924 = vmatprep.subr.bf16.mxu0 0
      %6925 = vmatpush1.bf16.msra.mxu0 0
      %6926 = vmatprep.subr.bf16.mxu0 0
      %6927 = vmatpush1.bf16.msra.mxu0 0
      %6928 = vmatprep.subr.bf16.mxu0 0
      %6929 = vmatpush1.bf16.msra.mxu0 0
      %6930 = vmatprep.subr.bf16.mxu0 0
      %6931 = vmatpush1.bf16.msra.mxu0 0
      %6932 = vmatprep.subr.bf16.mxu0 0
      %6933 = vmatpush1.bf16.msra.mxu0 0
      %6934 = vmatprep.subr.bf16.mxu0 0
      %6935 = vmatpush1.bf16.msra.mxu0 0
      %6936 = vmatprep.subr.bf16.mxu0 0
      %6937 = vmatpush1.bf16.msra.mxu0 0
      %6938 = vmatprep.subr.bf16.mxu0 0
      %6939 = vmatpush1.bf16.msra.mxu0 0
      %6940 = vmatprep.mubr.bf16.mxu0 0
      %6941 = vmatmul.mubr.bf16.gmra.mrb[0].mxu0 %v6897
      %v6942 = vpop.f32.mrb[0].mxu0
      %v6943 = vadd.f32 0.0, %v6942
      %v6944 = vpop.f32.mrb[0].mxu0
      %v6945 = vadd.f32 0.0, %v6944
      %v6946 = vpop.f32.mrb[0].mxu0
      %v6947 = vadd.f32 0.0, %v6946
      %v6948 = vpop.f32.mrb[0].mxu0
      %v6949 = vadd.f32 0.0, %v6948
      %6950 = vdwg.mxu0
      %6951 = vmatprep.subr.bf16.mxu0 0
      %6952 = vmatpush1.bf16.msra.mxu0 %v6906
      %6953 = vmatprep.subr.bf16.mxu0 0
      %6954 = vmatpush1.bf16.msra.mxu0 0
      %6955 = vmatprep.subr.bf16.mxu0 0
      %6956 = vmatpush1.bf16.msra.mxu0 0
      %6957 = vmatprep.subr.bf16.mxu0 0
      %6958 = vmatpush1.bf16.msra.mxu0 0
      %6959 = vmatprep.subr.bf16.mxu0 0
      %6960 = vmatpush1.bf16.msra.mxu0 0
      %6961 = vmatprep.subr.bf16.mxu0 0
      %6962 = vmatpush1.bf16.msra.mxu0 0
      %6963 = vmatprep.subr.bf16.mxu0 0
      %6964 = vmatpush1.bf16.msra.mxu0 0
      %6965 = vmatprep.subr.bf16.mxu0 0
      %6966 = vmatpush1.bf16.msra.mxu0 0
      %6967 = vmatprep.subr.bf16.mxu0 0
      %6968 = vmatpush1.bf16.msra.mxu0 0
      %6969 = vmatprep.subr.bf16.mxu0 0
      %6970 = vmatpush1.bf16.msra.mxu0 0
      %6971 = vmatprep.subr.bf16.mxu0 0
      %6972 = vmatpush1.bf16.msra.mxu0 0
      %6973 = vmatprep.subr.bf16.mxu0 0
      %6974 = vmatpush1.bf16.msra.mxu0 0
      %6975 = vmatprep.subr.bf16.mxu0 0
      %6976 = vmatpush1.bf16.msra.mxu0 0
      %6977 = vmatprep.subr.bf16.mxu0 0
      %6978 = vmatpush1.bf16.msra.mxu0 0
      %6979 = vmatprep.subr.bf16.mxu0 0
      %6980 = vmatpush1.bf16.msra.mxu0 0
      %6981 = vmatprep.subr.bf16.mxu0 0
      %6982 = vmatpush1.bf16.msra.mxu0 0
      %6983 = vmatprep.mubr.bf16.mxu0 0
      %6984 = vmatmul.mubr.bf16.gmra.mrb[0].mxu0 %v6897
      %v6985 = vpop.f32.mrb[0].mxu0
      %v6986 = vadd.f32 0.0, %v6985
      %v6987 = vpop.f32.mrb[0].mxu0
      %v6988 = vpop.f32.mrb[0].mxu0
      %v6989 = vadd.f32 0.0, %v6988
      %v6990 = vpop.f32.mrb[0].mxu0
      %6991 = vdwg.mxu0
      %v6992 = vadd.f32 %v6870, %v6943
      %v6993 = vadd.f32 %v6871, %v6945
      %v6994 = vadd.f32 %v6872, %v6986
      %v6995 = vadd.f32 %v6873, %v6947
      %v6996 = vadd.f32 %v6874, %v6949
      %v6997 = vadd.f32 %v6875, %v6989
      %s6998 = scalar_lea.vmem %s4, 32
      %v6999 = vld [vmem:[%s6998] sm:$0xf]
      %v7000 = vld [vmem:[%s6998 + $0x4] sm:$0xf]
      %v7003 = vunpack.c.l.b16 %v6999
      %v7004 = vunpack.c.l.b16 %v7000
      %v7005 = vpack.c.b16 %v7004, %v7003
      %7006 = vrot.lane.b32.xlu0 %v6539, 112
      %v7007 = vpop.permute.xlu0 %7006
      %7008 = vrot.lane.b32.xlu0 %v6540, 112
      %v7009 = vpop.permute.xlu0 %7008
      %7010 = vrot.lane.b32.xlu0 %v6541, 112
      %v7011 = vpop.permute.xlu0 %7010
      %7012 = vrot.lane.b32.xlu0 %v6542, 112
      %v7013 = vpop.permute.xlu0 %7012
      %vm7014 = vcmask 916480
      %v7015 = vsel %vm7014, %v7007, %v7009
      %v7016 = vsel %vm7014, %v7009, %v7011
      %v7017 = vsel %vm7014, %v7011, %v7013
      %v7019 = vsel %vm468, %v7005, 0
      %v7022 = vsel %vm472, %v7015, 0
      %v7025 = vsel %vm472, %v7016, 0
      %v7028 = vsel %vm472, %v7017, 0
      %7030 = vmatprep.subr.bf16.mxu0 %v7025
      %7031 = vmatpush1.bf16.msra.mxu0 %v7022
      %7032 = vmatprep.subr.bf16.mxu0 0
      %7033 = vmatpush1.bf16.msra.mxu0 0
      %7034 = vmatprep.subr.bf16.mxu0 0
      %7035 = vmatpush1.bf16.msra.mxu0 0
      %7036 = vmatprep.subr.bf16.mxu0 0
      %7037 = vmatpush1.bf16.msra.mxu0 0
      %7038 = vmatprep.subr.bf16.mxu0 0
      %7039 = vmatpush1.bf16.msra.mxu0 0
      %7040 = vmatprep.subr.bf16.mxu0 0
      %7041 = vmatpush1.bf16.msra.mxu0 0
      %7042 = vmatprep.subr.bf16.mxu0 0
      %7043 = vmatpush1.bf16.msra.mxu0 0
      %7044 = vmatprep.subr.bf16.mxu0 0
      %7045 = vmatpush1.bf16.msra.mxu0 0
      %7046 = vmatprep.subr.bf16.mxu0 0
      %7047 = vmatpush1.bf16.msra.mxu0 0
      %7048 = vmatprep.subr.bf16.mxu0 0
      %7049 = vmatpush1.bf16.msra.mxu0 0
      %7050 = vmatprep.subr.bf16.mxu0 0
      %7051 = vmatpush1.bf16.msra.mxu0 0
      %7052 = vmatprep.subr.bf16.mxu0 0
      %7053 = vmatpush1.bf16.msra.mxu0 0
      %7054 = vmatprep.subr.bf16.mxu0 0
      %7055 = vmatpush1.bf16.msra.mxu0 0
      %7056 = vmatprep.subr.bf16.mxu0 0
      %7057 = vmatpush1.bf16.msra.mxu0 0
      %7058 = vmatprep.subr.bf16.mxu0 0
      %7059 = vmatpush1.bf16.msra.mxu0 0
      %7060 = vmatprep.subr.bf16.mxu0 0
      %7061 = vmatpush1.bf16.msra.mxu0 0
      %7062 = vmatprep.mubr.bf16.mxu0 0
      %7063 = vmatmul.mubr.bf16.gmra.mrb[0].mxu0 %v7019
      %v7064 = vpop.f32.mrb[0].mxu0
      %v7065 = vadd.f32 0.0, %v7064
      %v7066 = vpop.f32.mrb[0].mxu0
      %v7067 = vadd.f32 0.0, %v7066
      %v7068 = vpop.f32.mrb[0].mxu0
      %v7069 = vadd.f32 0.0, %v7068
      %v7070 = vpop.f32.mrb[0].mxu0
      %v7071 = vadd.f32 0.0, %v7070
      %7072 = vdwg.mxu0
      %7073 = vmatprep.subr.bf16.mxu0 0
      %7074 = vmatpush1.bf16.msra.mxu0 %v7028
      %7075 = vmatprep.subr.bf16.mxu0 0
      %7076 = vmatpush1.bf16.msra.mxu0 0
      %7077 = vmatprep.subr.bf16.mxu0 0
      %7078 = vmatpush1.bf16.msra.mxu0 0
      %7079 = vmatprep.subr.bf16.mxu0 0
      %7080 = vmatpush1.bf16.msra.mxu0 0
      %7081 = vmatprep.subr.bf16.mxu0 0
      %7082 = vmatpush1.bf16.msra.mxu0 0
      %7083 = vmatprep.subr.bf16.mxu0 0
      %7084 = vmatpush1.bf16.msra.mxu0 0
      %7085 = vmatprep.subr.bf16.mxu0 0
      %7086 = vmatpush1.bf16.msra.mxu0 0
      %7087 = vmatprep.subr.bf16.mxu0 0
      %7088 = vmatpush1.bf16.msra.mxu0 0
      %7089 = vmatprep.subr.bf16.mxu0 0
      %7090 = vmatpush1.bf16.msra.mxu0 0
      %7091 = vmatprep.subr.bf16.mxu0 0
      %7092 = vmatpush1.bf16.msra.mxu0 0
      %7093 = vmatprep.subr.bf16.mxu0 0
      %7094 = vmatpush1.bf16.msra.mxu0 0
      %7095 = vmatprep.subr.bf16.mxu0 0
      %7096 = vmatpush1.bf16.msra.mxu0 0
      %7097 = vmatprep.subr.bf16.mxu0 0
      %7098 = vmatpush1.bf16.msra.mxu0 0
      %7099 = vmatprep.subr.bf16.mxu0 0
      %7100 = vmatpush1.bf16.msra.mxu0 0
      %7101 = vmatprep.subr.bf16.mxu0 0
      %7102 = vmatpush1.bf16.msra.mxu0 0
      %7103 = vmatprep.subr.bf16.mxu0 0
      %7104 = vmatpush1.bf16.msra.mxu0 0
      %7105 = vmatprep.mubr.bf16.mxu0 0
      %7106 = vmatmul.mubr.bf16.gmra.mrb[0].mxu0 %v7019
      %v7107 = vpop.f32.mrb[0].mxu0
      %v7108 = vadd.f32 0.0, %v7107
      %v7109 = vpop.f32.mrb[0].mxu0
      %v7110 = vpop.f32.mrb[0].mxu0
      %v7111 = vadd.f32 0.0, %v7110
      %v7112 = vpop.f32.mrb[0].mxu0
      %7113 = vdwg.mxu0
      %v7114 = vadd.f32 %v6992, %v7065
      %v7115 = vadd.f32 %v6993, %v7067
      %v7116 = vadd.f32 %v6994, %v7108
      %v7117 = vadd.f32 %v6995, %v7069
      %v7118 = vadd.f32 %v6996, %v7071
      %v7119 = vadd.f32 %v6997, %v7111
      %s7120 = scalar_lea.vmem %s4, 40
      %v7121 = vld [vmem:[%s7120] sm:$0xf]
      %v7122 = vld [vmem:[%s7120 + $0x4] sm:$0xf]
      %v7123 = vld [vmem:[#allocation4 + $0x4] sm:$0xff]
      %v7124 = vld [vmem:[#allocation4 + $0xc] sm:$0xf]
      %v7127 = vunpack.c.l.b16 %v7121
      %v7128 = vunpack.c.l.b16 %v7122
      %v7129 = vpack.c.b16 %v7128, %v7127
      %v7132 = vunpack.c.l.b16 %v7123
      %v7133 = vunpack.c.h.b16 %v7123
      %v7134 = vunpack.c.l.b16 %v7124
      %v7135 = vpack.c.b16 %v7132, %v7132
      %v7136 = vpack.c.b16 %v7133, %v7133
      %v7137 = vpack.c.b16 %v7134, %v7134
      %v7139 = vsel %vm468, %v7129, 0
      %v7142 = vsel %vm472, %v7135, 0
      %v7145 = vsel %vm472, %v7136, 0
      %v7148 = vsel %vm472, %v7137, 0
      %7150 = vmatprep.subr.bf16.mxu0 %v7145
      %7151 = vmatpush1.bf16.msra.mxu0 %v7142
      %7152 = vmatprep.subr.bf16.mxu0 0
      %7153 = vmatpush1.bf16.msra.mxu0 0
      %7154 = vmatprep.subr.bf16.mxu0 0
      %7155 = vmatpush1.bf16.msra.mxu0 0
      %7156 = vmatprep.subr.bf16.mxu0 0
      %7157 = vmatpush1.bf16.msra.mxu0 0
      %7158 = vmatprep.subr.bf16.mxu0 0
      %7159 = vmatpush1.bf16.msra.mxu0 0
      %7160 = vmatprep.subr.bf16.mxu0 0
      %7161 = vmatpush1.bf16.msra.mxu0 0
      %7162 = vmatprep.subr.bf16.mxu0 0
      %7163 = vmatpush1.bf16.msra.mxu0 0
      %7164 = vmatprep.subr.bf16.mxu0 0
      %7165 = vmatpush1.bf16.msra.mxu0 0
      %7166 = vmatprep.subr.bf16.mxu0 0
      %7167 = vmatpush1.bf16.msra.mxu0 0
      %7168 = vmatprep.subr.bf16.mxu0 0
      %7169 = vmatpush1.bf16.msra.mxu0 0
      %7170 = vmatprep.subr.bf16.mxu0 0
      %7171 = vmatpush1.bf16.msra.mxu0 0
      %7172 = vmatprep.subr.bf16.mxu0 0
      %7173 = vmatpush1.bf16.msra.mxu0 0
      %7174 = vmatprep.subr.bf16.mxu0 0
      %7175 = vmatpush1.bf16.msra.mxu0 0
      %7176 = vmatprep.subr.bf16.mxu0 0
      %7177 = vmatpush1.bf16.msra.mxu0 0
      %7178 = vmatprep.subr.bf16.mxu0 0
      %7179 = vmatpush1.bf16.msra.mxu0 0
      %7180 = vmatprep.subr.bf16.mxu0 0
      %7181 = vmatpush1.bf16.msra.mxu0 0
      %7182 = vmatprep.mubr.bf16.mxu0 0
      %7183 = vmatmul.mubr.bf16.gmra.mrb[0].mxu0 %v7139
      %v7184 = vpop.f32.mrb[0].mxu0
      %v7185 = vadd.f32 0.0, %v7184
      %v7186 = vpop.f32.mrb[0].mxu0
      %v7187 = vadd.f32 0.0, %v7186
      %v7188 = vpop.f32.mrb[0].mxu0
      %v7189 = vadd.f32 0.0, %v7188
      %v7190 = vpop.f32.mrb[0].mxu0
      %v7191 = vadd.f32 0.0, %v7190
      %7192 = vdwg.mxu0
      %7193 = vmatprep.subr.bf16.mxu0 0
      %7194 = vmatpush1.bf16.msra.mxu0 %v7148
      %7195 = vmatprep.subr.bf16.mxu0 0
      %7196 = vmatpush1.bf16.msra.mxu0 0
      %7197 = vmatprep.subr.bf16.mxu0 0
      %7198 = vmatpush1.bf16.msra.mxu0 0
      %7199 = vmatprep.subr.bf16.mxu0 0
      %7200 = vmatpush1.bf16.msra.mxu0 0
      %7201 = vmatprep.subr.bf16.mxu0 0
      %7202 = vmatpush1.bf16.msra.mxu0 0
      %7203 = vmatprep.subr.bf16.mxu0 0
      %7204 = vmatpush1.bf16.msra.mxu0 0
      %7205 = vmatprep.subr.bf16.mxu0 0
      %7206 = vmatpush1.bf16.msra.mxu0 0
      %7207 = vmatprep.subr.bf16.mxu0 0
      %7208 = vmatpush1.bf16.msra.mxu0 0
      %7209 = vmatprep.subr.bf16.mxu0 0
      %7210 = vmatpush1.bf16.msra.mxu0 0
      %7211 = vmatprep.subr.bf16.mxu0 0
      %7212 = vmatpush1.bf16.msra.mxu0 0
      %7213 = vmatprep.subr.bf16.mxu0 0
      %7214 = vmatpush1.bf16.msra.mxu0 0
      %7215 = vmatprep.subr.bf16.mxu0 0
      %7216 = vmatpush1.bf16.msra.mxu0 0
      %7217 = vmatprep.subr.bf16.mxu0 0
      %7218 = vmatpush1.bf16.msra.mxu0 0
      %7219 = vmatprep.subr.bf16.mxu0 0
      %7220 = vmatpush1.bf16.msra.mxu0 0
      %7221 = vmatprep.subr.bf16.mxu0 0
      %7222 = vmatpush1.bf16.msra.mxu0 0
      %7223 = vmatprep.subr.bf16.mxu0 0
      %7224 = vmatpush1.bf16.msra.mxu0 0
      %7225 = vmatprep.mubr.bf16.mxu0 0
      %7226 = vmatmul.mubr.bf16.gmra.mrb[0].mxu0 %v7139
      %v7227 = vpop.f32.mrb[0].mxu0
      %v7228 = vadd.f32 0.0, %v7227
      %v7229 = vpop.f32.mrb[0].mxu0
      %v7230 = vpop.f32.mrb[0].mxu0
      %v7231 = vadd.f32 0.0, %v7230
      %v7232 = vpop.f32.mrb[0].mxu0
      %7233 = vdwg.mxu0
      %v7234 = vadd.f32 %v7114, %v7185
      %v7235 = vadd.f32 %v7115, %v7187
      %v7236 = vadd.f32 %v7116, %v7228
      %v7237 = vadd.f32 %v7117, %v7189
      %v7238 = vadd.f32 %v7118, %v7191
      %v7239 = vadd.f32 %v7119, %v7231
      %s7240 = scalar_lea.vmem %s4, 48
      %v7241 = vld [vmem:[%s7240] sm:$0xf]
      %v7242 = vld [vmem:[%s7240 + $0x4] sm:$0xf]
      %v7243 = vld [vmem:[#allocation4 + $0x4] sm:$0xff]
      %v7244 = vld [vmem:[#allocation4 + $0xc] sm:$0xff]
      %v7247 = vunpack.c.l.b16 %v7241
      %v7248 = vunpack.c.l.b16 %v7242
      %v7249 = vpack.c.b16 %v7248, %v7247
      %v7252 = vunpack.c.l.b16 %v7243
      %v7253 = vunpack.c.h.b16 %v7243
      %v7254 = vunpack.c.l.b16 %v7244
      %v7255 = vunpack.c.h.b16 %v7244
      %v7256 = vpack.c.b16 %v7252, %v7252
      %v7257 = vpack.c.b16 %v7253, %v7253
      %v7258 = vpack.c.b16 %v7254, %v7254
      %v7259 = vpack.c.b16 %v7255, %v7255
      %7260 = vrot.lane.b32.xlu0 %v7256, 124
      %v7261 = vpop.permute.xlu0 %7260
      %7262 = vrot.lane.b32.xlu0 %v7257, 124
      %v7263 = vpop.permute.xlu0 %7262
      %7264 = vrot.lane.b32.xlu0 %v7258, 124
      %v7265 = vpop.permute.xlu0 %7264
      %7266 = vrot.lane.b32.xlu0 %v7259, 124
      %v7267 = vpop.permute.xlu0 %7266
      %v7268 = vsel %vm1328, %v7261, %v7263
      %v7269 = vsel %vm1328, %v7263, %v7265
      %v7270 = vsel %vm1328, %v7265, %v7267
      %v7272 = vsel %vm468, %v7249, 0
      %v7275 = vsel %vm472, %v7268, 0
      %v7278 = vsel %vm472, %v7269, 0
      %v7281 = vsel %vm472, %v7270, 0
      %7283 = vmatprep.subr.bf16.mxu0 %v7278
      %7284 = vmatpush1.bf16.msra.mxu0 %v7275
      %7285 = vmatprep.subr.bf16.mxu0 0
      %7286 = vmatpush1.bf16.msra.mxu0 0
      %7287 = vmatprep.subr.bf16.mxu0 0
      %7288 = vmatpush1.bf16.msra.mxu0 0
      %7289 = vmatprep.subr.bf16.mxu0 0
      %7290 = vmatpush1.bf16.msra.mxu0 0
      %7291 = vmatprep.subr.bf16.mxu0 0
      %7292 = vmatpush1.bf16.msra.mxu0 0
      %7293 = vmatprep.subr.bf16.mxu0 0
      %7294 = vmatpush1.bf16.msra.mxu0 0
      %7295 = vmatprep.subr.bf16.mxu0 0
      %7296 = vmatpush1.bf16.msra.mxu0 0
      %7297 = vmatprep.subr.bf16.mxu0 0
      %7298 = vmatpush1.bf16.msra.mxu0 0
      %7299 = vmatprep.subr.bf16.mxu0 0
      %7300 = vmatpush1.bf16.msra.mxu0 0
      %7301 = vmatprep.subr.bf16.mxu0 0
      %7302 = vmatpush1.bf16.msra.mxu0 0
      %7303 = vmatprep.subr.bf16.mxu0 0
      %7304 = vmatpush1.bf16.msra.mxu0 0
      %7305 = vmatprep.subr.bf16.mxu0 0
      %7306 = vmatpush1.bf16.msra.mxu0 0
      %7307 = vmatprep.subr.bf16.mxu0 0
      %7308 = vmatpush1.bf16.msra.mxu0 0
      %7309 = vmatprep.subr.bf16.mxu0 0
      %7310 = vmatpush1.bf16.msra.mxu0 0
      %7311 = vmatprep.subr.bf16.mxu0 0
      %7312 = vmatpush1.bf16.msra.mxu0 0
      %7313 = vmatprep.subr.bf16.mxu0 0
      %7314 = vmatpush1.bf16.msra.mxu0 0
      %7315 = vmatprep.mubr.bf16.mxu0 0
      %7316 = vmatmul.mubr.bf16.gmra.mrb[0].mxu0 %v7272
      %v7317 = vpop.f32.mrb[0].mxu0
      %v7318 = vadd.f32 0.0, %v7317
      %v7319 = vpop.f32.mrb[0].mxu0
      %v7320 = vadd.f32 0.0, %v7319
      %v7321 = vpop.f32.mrb[0].mxu0
      %v7322 = vadd.f32 0.0, %v7321
      %v7323 = vpop.f32.mrb[0].mxu0
      %v7324 = vadd.f32 0.0, %v7323
      %7325 = vdwg.mxu0
      %7326 = vmatprep.subr.bf16.mxu0 0
      %7327 = vmatpush1.bf16.msra.mxu0 %v7281
      %7328 = vmatprep.subr.bf16.mxu0 0
      %7329 = vmatpush1.bf16.msra.mxu0 0
      %7330 = vmatprep.subr.bf16.mxu0 0
      %7331 = vmatpush1.bf16.msra.mxu0 0
      %7332 = vmatprep.subr.bf16.mxu0 0
      %7333 = vmatpush1.bf16.msra.mxu0 0
      %7334 = vmatprep.subr.bf16.mxu0 0
      %7335 = vmatpush1.bf16.msra.mxu0 0
      %7336 = vmatprep.subr.bf16.mxu0 0
      %7337 = vmatpush1.bf16.msra.mxu0 0
      %7338 = vmatprep.subr.bf16.mxu0 0
      %7339 = vmatpush1.bf16.msra.mxu0 0
      %7340 = vmatprep.subr.bf16.mxu0 0
      %7341 = vmatpush1.bf16.msra.mxu0 0
      %7342 = vmatprep.subr.bf16.mxu0 0
      %7343 = vmatpush1.bf16.msra.mxu0 0
      %7344 = vmatprep.subr.bf16.mxu0 0
      %7345 = vmatpush1.bf16.msra.mxu0 0
      %7346 = vmatprep.subr.bf16.mxu0 0
      %7347 = vmatpush1.bf16.msra.mxu0 0
      %7348 = vmatprep.subr.bf16.mxu0 0
      %7349 = vmatpush1.bf16.msra.mxu0 0
      %7350 = vmatprep.subr.bf16.mxu0 0
      %7351 = vmatpush1.bf16.msra.mxu0 0
      %7352 = vmatprep.subr.bf16.mxu0 0
      %7353 = vmatpush1.bf16.msra.mxu0 0
      %7354 = vmatprep.subr.bf16.mxu0 0
      %7355 = vmatpush1.bf16.msra.mxu0 0
      %7356 = vmatprep.subr.bf16.mxu0 0
      %7357 = vmatpush1.bf16.msra.mxu0 0
      %7358 = vmatprep.mubr.bf16.mxu0 0
      %7359 = vmatmul.mubr.bf16.gmra.mrb[0].mxu0 %v7272
      %v7360 = vpop.f32.mrb[0].mxu0
      %v7361 = vadd.f32 0.0, %v7360
      %v7362 = vpop.f32.mrb[0].mxu0
      %v7363 = vpop.f32.mrb[0].mxu0
      %v7364 = vadd.f32 0.0, %v7363
      %v7365 = vpop.f32.mrb[0].mxu0
      %7366 = vdwg.mxu0
      %v7367 = vadd.f32 %v7234, %v7318
      %v7368 = vadd.f32 %v7235, %v7320
      %v7369 = vadd.f32 %v7236, %v7361
      %v7370 = vadd.f32 %v7237, %v7322
      %v7371 = vadd.f32 %v7238, %v7324
      %v7372 = vadd.f32 %v7239, %v7364
      %s7373 = scalar_lea.vmem %s4, 56
      %v7374 = vld [vmem:[%s7373] sm:$0xf]
      %v7375 = vld [vmem:[%s7373 + $0x4] sm:$0xf]
      %v7378 = vunpack.c.l.b16 %v7374
      %v7379 = vunpack.c.l.b16 %v7375
      %v7380 = vpack.c.b16 %v7379, %v7378
      %7381 = vrot.lane.b32.xlu0 %v7256, 120
      %v7382 = vpop.permute.xlu0 %7381
      %7383 = vrot.lane.b32.xlu0 %v7257, 120
      %v7384 = vpop.permute.xlu0 %7383
      %7385 = vrot.lane.b32.xlu0 %v7258, 120
      %v7386 = vpop.permute.xlu0 %7385
      %7387 = vrot.lane.b32.xlu0 %v7259, 120
      %v7388 = vpop.permute.xlu0 %7387
      %v7389 = vsel %vm6770, %v7382, %v7384
      %v7390 = vsel %vm6770, %v7384, %v7386
      %v7391 = vsel %vm6770, %v7386, %v7388
      %v7393 = vsel %vm468, %v7380, 0
      %v7396 = vsel %vm472, %v7389, 0
      %v7399 = vsel %vm472, %v7390, 0
      %v7402 = vsel %vm472, %v7391, 0
      %7404 = vmatprep.subr.bf16.mxu0 %v7399
      %7405 = vmatpush1.bf16.msra.mxu0 %v7396
      %7406 = vmatprep.subr.bf16.mxu0 0
      %7407 = vmatpush1.bf16.msra.mxu0 0
      %7408 = vmatprep.subr.bf16.mxu0 0
      %7409 = vmatpush1.bf16.msra.mxu0 0
      %7410 = vmatprep.subr.bf16.mxu0 0
      %7411 = vmatpush1.bf16.msra.mxu0 0
      %7412 = vmatprep.subr.bf16.mxu0 0
      %7413 = vmatpush1.bf16.msra.mxu0 0
      %7414 = vmatprep.subr.bf16.mxu0 0
      %7415 = vmatpush1.bf16.msra.mxu0 0
      %7416 = vmatprep.subr.bf16.mxu0 0
      %7417 = vmatpush1.bf16.msra.mxu0 0
      %7418 = vmatprep.subr.bf16.mxu0 0
      %7419 = vmatpush1.bf16.msra.mxu0 0
      %7420 = vmatprep.subr.bf16.mxu0 0
      %7421 = vmatpush1.bf16.msra.mxu0 0
      %7422 = vmatprep.subr.bf16.mxu0 0
      %7423 = vmatpush1.bf16.msra.mxu0 0
      %7424 = vmatprep.subr.bf16.mxu0 0
      %7425 = vmatpush1.bf16.msra.mxu0 0
      %7426 = vmatprep.subr.bf16.mxu0 0
      %7427 = vmatpush1.bf16.msra.mxu0 0
      %7428 = vmatprep.subr.bf16.mxu0 0
      %7429 = vmatpush1.bf16.msra.mxu0 0
      %7430 = vmatprep.subr.bf16.mxu0 0
      %7431 = vmatpush1.bf16.msra.mxu0 0
      %7432 = vmatprep.subr.bf16.mxu0 0
      %7433 = vmatpush1.bf16.msra.mxu0 0
      %7434 = vmatprep.subr.bf16.mxu0 0
      %7435 = vmatpush1.bf16.msra.mxu0 0
      %7436 = vmatprep.mubr.bf16.mxu0 0
      %7437 = vmatmul.mubr.bf16.gmra.mrb[0].mxu0 %v7393
      %v7438 = vpop.f32.mrb[0].mxu0
      %v7439 = vadd.f32 0.0, %v7438
      %v7440 = vpop.f32.mrb[0].mxu0
      %v7441 = vadd.f32 0.0, %v7440
      %v7442 = vpop.f32.mrb[0].mxu0
      %v7443 = vadd.f32 0.0, %v7442
      %v7444 = vpop.f32.mrb[0].mxu0
      %v7445 = vadd.f32 0.0, %v7444
      %7446 = vdwg.mxu0
      %7447 = vmatprep.subr.bf16.mxu0 0
      %7448 = vmatpush1.bf16.msra.mxu0 %v7402
      %7449 = vmatprep.subr.bf16.mxu0 0
      %7450 = vmatpush1.bf16.msra.mxu0 0
      %7451 = vmatprep.subr.bf16.mxu0 0
      %7452 = vmatpush1.bf16.msra.mxu0 0
      %7453 = vmatprep.subr.bf16.mxu0 0
      %7454 = vmatpush1.bf16.msra.mxu0 0
      %7455 = vmatprep.subr.bf16.mxu0 0
      %7456 = vmatpush1.bf16.msra.mxu0 0
      %7457 = vmatprep.subr.bf16.mxu0 0
      %7458 = vmatpush1.bf16.msra.mxu0 0
      %7459 = vmatprep.subr.bf16.mxu0 0
      %7460 = vmatpush1.bf16.msra.mxu0 0
      %7461 = vmatprep.subr.bf16.mxu0 0
      %7462 = vmatpush1.bf16.msra.mxu0 0
      %7463 = vmatprep.subr.bf16.mxu0 0
      %7464 = vmatpush1.bf16.msra.mxu0 0
      %7465 = vmatprep.subr.bf16.mxu0 0
      %7466 = vmatpush1.bf16.msra.mxu0 0
      %7467 = vmatprep.subr.bf16.mxu0 0
      %7468 = vmatpush1.bf16.msra.mxu0 0
      %7469 = vmatprep.subr.bf16.mxu0 0
      %7470 = vmatpush1.bf16.msra.mxu0 0
      %7471 = vmatprep.subr.bf16.mxu0 0
      %7472 = vmatpush1.bf16.msra.mxu0 0
      %7473 = vmatprep.subr.bf16.mxu0 0
      %7474 = vmatpush1.bf16.msra.mxu0 0
      %7475 = vmatprep.subr.bf16.mxu0 0
      %7476 = vmatpush1.bf16.msra.mxu0 0
      %7477 = vmatprep.subr.bf16.mxu0 0
      %7478 = vmatpush1.bf16.msra.mxu0 0
      %7479 = vmatprep.mubr.bf16.mxu0 0
      %7480 = vmatmul.mubr.bf16.gmra.mrb[0].mxu0 %v7393
      %v7481 = vpop.f32.mrb[0].mxu0
      %v7482 = vadd.f32 0.0, %v7481
      %v7483 = vpop.f32.mrb[0].mxu0
      %v7484 = vpop.f32.mrb[0].mxu0
      %v7485 = vadd.f32 0.0, %v7484
      %v7486 = vpop.f32.mrb[0].mxu0
      %7487 = vdwg.mxu0
      %v7488 = vadd.f32 %v7367, %v7439
      %v7489 = vadd.f32 %v7368, %v7441
      %v7490 = vadd.f32 %v7369, %v7482
      %v7491 = vadd.f32 %v7370, %v7443
      %v7492 = vadd.f32 %v7371, %v7445
      %v7493 = vadd.f32 %v7372, %v7485
      %s7494 = scalar_lea.vmem %s4, 64
      %v7495 = vld [vmem:[%s7494] sm:$0xf]
      %v7496 = vld [vmem:[%s7494 + $0x4] sm:$0xf]
      %v7499 = vunpack.c.l.b16 %v7495
      %v7500 = vunpack.c.l.b16 %v7496
      %v7501 = vpack.c.b16 %v7500, %v7499
      %7502 = vrot.lane.b32.xlu0 %v7256, 116
      %v7503 = vpop.permute.xlu0 %7502
      %7504 = vrot.lane.b32.xlu0 %v7257, 116
      %v7505 = vpop.permute.xlu0 %7504
      %7506 = vrot.lane.b32.xlu0 %v7258, 116
      %v7507 = vpop.permute.xlu0 %7506
      %7508 = vrot.lane.b32.xlu0 %v7259, 116
      %v7509 = vpop.permute.xlu0 %7508
      %v7510 = vsel %vm6892, %v7503, %v7505
      %v7511 = vsel %vm6892, %v7505, %v7507
      %v7512 = vsel %vm6892, %v7507, %v7509
      %v7514 = vsel %vm468, %v7501, 0
      %v7517 = vsel %vm472, %v7510, 0
      %v7520 = vsel %vm472, %v7511, 0
      %v7523 = vsel %vm472, %v7512, 0
      %7525 = vmatprep.subr.bf16.mxu0 %v7520
      %7526 = vmatpush1.bf16.msra.mxu0 %v7517
      %7527 = vmatprep.subr.bf16.mxu0 0
      %7528 = vmatpush1.bf16.msra.mxu0 0
      %7529 = vmatprep.subr.bf16.mxu0 0
      %7530 = vmatpush1.bf16.msra.mxu0 0
      %7531 = vmatprep.subr.bf16.mxu0 0
      %7532 = vmatpush1.bf16.msra.mxu0 0
      %7533 = vmatprep.subr.bf16.mxu0 0
      %7534 = vmatpush1.bf16.msra.mxu0 0
      %7535 = vmatprep.subr.bf16.mxu0 0
      %7536 = vmatpush1.bf16.msra.mxu0 0
      %7537 = vmatprep.subr.bf16.mxu0 0
      %7538 = vmatpush1.bf16.msra.mxu0 0
      %7539 = vmatprep.subr.bf16.mxu0 0
      %7540 = vmatpush1.bf16.msra.mxu0 0
      %7541 = vmatprep.subr.bf16.mxu0 0
      %7542 = vmatpush1.bf16.msra.mxu0 0
      %7543 = vmatprep.subr.bf16.mxu0 0
      %7544 = vmatpush1.bf16.msra.mxu0 0
      %7545 = vmatprep.subr.bf16.mxu0 0
      %7546 = vmatpush1.bf16.msra.mxu0 0
      %7547 = vmatprep.subr.bf16.mxu0 0
      %7548 = vmatpush1.bf16.msra.mxu0 0
      %7549 = vmatprep.subr.bf16.mxu0 0
      %7550 = vmatpush1.bf16.msra.mxu0 0
      %7551 = vmatprep.subr.bf16.mxu0 0
      %7552 = vmatpush1.bf16.msra.mxu0 0
      %7553 = vmatprep.subr.bf16.mxu0 0
      %7554 = vmatpush1.bf16.msra.mxu0 0
      %7555 = vmatprep.subr.bf16.mxu0 0
      %7556 = vmatpush1.bf16.msra.mxu0 0
      %7557 = vmatprep.mubr.bf16.mxu0 0
      %7558 = vmatmul.mubr.bf16.gmra.mrb[0].mxu0 %v7514
      %v7559 = vpop.f32.mrb[0].mxu0
      %v7560 = vadd.f32 0.0, %v7559
      %v7561 = vpop.f32.mrb[0].mxu0
      %v7562 = vadd.f32 0.0, %v7561
      %v7563 = vpop.f32.mrb[0].mxu0
      %v7564 = vadd.f32 0.0, %v7563
      %v7565 = vpop.f32.mrb[0].mxu0
      %v7566 = vadd.f32 0.0, %v7565
      %7567 = vdwg.mxu0
      %7568 = vmatprep.subr.bf16.mxu0 0
      %7569 = vmatpush1.bf16.msra.mxu0 %v7523
      %7570 = vmatprep.subr.bf16.mxu0 0
      %7571 = vmatpush1.bf16.msra.mxu0 0
      %7572 = vmatprep.subr.bf16.mxu0 0
      %7573 = vmatpush1.bf16.msra.mxu0 0
      %7574 = vmatprep.subr.bf16.mxu0 0
      %7575 = vmatpush1.bf16.msra.mxu0 0
      %7576 = vmatprep.subr.bf16.mxu0 0
      %7577 = vmatpush1.bf16.msra.mxu0 0
      %7578 = vmatprep.subr.bf16.mxu0 0
      %7579 = vmatpush1.bf16.msra.mxu0 0
      %7580 = vmatprep.subr.bf16.mxu0 0
      %7581 = vmatpush1.bf16.msra.mxu0 0
      %7582 = vmatprep.subr.bf16.mxu0 0
      %7583 = vmatpush1.bf16.msra.mxu0 0
      %7584 = vmatprep.subr.bf16.mxu0 0
      %7585 = vmatpush1.bf16.msra.mxu0 0
      %7586 = vmatprep.subr.bf16.mxu0 0
      %7587 = vmatpush1.bf16.msra.mxu0 0
      %7588 = vmatprep.subr.bf16.mxu0 0
      %7589 = vmatpush1.bf16.msra.mxu0 0
      %7590 = vmatprep.subr.bf16.mxu0 0
      %7591 = vmatpush1.bf16.msra.mxu0 0
      %7592 = vmatprep.subr.bf16.mxu0 0
      %7593 = vmatpush1.bf16.msra.mxu0 0
      %7594 = vmatprep.subr.bf16.mxu0 0
      %7595 = vmatpush1.bf16.msra.mxu0 0
      %7596 = vmatprep.subr.bf16.mxu0 0
      %7597 = vmatpush1.bf16.msra.mxu0 0
      %7598 = vmatprep.subr.bf16.mxu0 0
      %7599 = vmatpush1.bf16.msra.mxu0 0
      %7600 = vmatprep.mubr.bf16.mxu0 0
      %7601 = vmatmul.mubr.bf16.gmra.mrb[0].mxu0 %v7514
      %v7602 = vpop.f32.mrb[0].mxu0
      %v7603 = vadd.f32 0.0, %v7602
      %v7604 = vpop.f32.mrb[0].mxu0
      %v7605 = vpop.f32.mrb[0].mxu0
      %v7606 = vadd.f32 0.0, %v7605
      %v7607 = vpop.f32.mrb[0].mxu0
      %7608 = vdwg.mxu0
      %v7609 = vadd.f32 %v7488, %v7560
      %v7610 = vadd.f32 %v7489, %v7562
      %v7611 = vadd.f32 %v7490, %v7603
      %v7612 = vadd.f32 %v7491, %v7564
      %v7613 = vadd.f32 %v7492, %v7566
      %v7614 = vadd.f32 %v7493, %v7606
      %s7615 = scalar_lea.vmem %s4, 72
      %v7616 = vld [vmem:[%s7615] sm:$0xf]
      %v7617 = vld [vmem:[%s7615 + $0x4] sm:$0xf]
      %v7620 = vunpack.c.l.b16 %v7616
      %v7621 = vunpack.c.l.b16 %v7617
      %v7622 = vpack.c.b16 %v7621, %v7620
      %7623 = vrot.lane.b32.xlu0 %v7256, 112
      %v7624 = vpop.permute.xlu0 %7623
      %7625 = vrot.lane.b32.xlu0 %v7257, 112
      %v7626 = vpop.permute.xlu0 %7625
      %7627 = vrot.lane.b32.xlu0 %v7258, 112
      %v7628 = vpop.permute.xlu0 %7627
      %7629 = vrot.lane.b32.xlu0 %v7259, 112
      %v7630 = vpop.permute.xlu0 %7629
      %v7631 = vsel %vm7014, %v7624, %v7626
      %v7632 = vsel %vm7014, %v7626, %v7628
      %v7633 = vsel %vm7014, %v7628, %v7630
      %v7635 = vsel %vm468, %v7622, 0
      %v7638 = vsel %vm472, %v7631, 0
      %v7641 = vsel %vm472, %v7632, 0
      %v7644 = vsel %vm472, %v7633, 0
      %7646 = vmatprep.subr.bf16.mxu0 %v7641
      %7647 = vmatpush1.bf16.msra.mxu0 %v7638
      %7648 = vmatprep.subr.bf16.mxu0 0
      %7649 = vmatpush1.bf16.msra.mxu0 0
      %7650 = vmatprep.subr.bf16.mxu0 0
      %7651 = vmatpush1.bf16.msra.mxu0 0
      %7652 = vmatprep.subr.bf16.mxu0 0
      %7653 = vmatpush1.bf16.msra.mxu0 0
      %7654 = vmatprep.subr.bf16.mxu0 0
      %7655 = vmatpush1.bf16.msra.mxu0 0
      %7656 = vmatprep.subr.bf16.mxu0 0
      %7657 = vmatpush1.bf16.msra.mxu0 0
      %7658 = vmatprep.subr.bf16.mxu0 0
      %7659 = vmatpush1.bf16.msra.mxu0 0
      %7660 = vmatprep.subr.bf16.mxu0 0
      %7661 = vmatpush1.bf16.msra.mxu0 0
      %7662 = vmatprep.subr.bf16.mxu0 0
      %7663 = vmatpush1.bf16.msra.mxu0 0
      %7664 = vmatprep.subr.bf16.mxu0 0
      %7665 = vmatpush1.bf16.msra.mxu0 0
      %7666 = vmatprep.subr.bf16.mxu0 0
      %7667 = vmatpush1.bf16.msra.mxu0 0
      %7668 = vmatprep.subr.bf16.mxu0 0
      %7669 = vmatpush1.bf16.msra.mxu0 0
      %7670 = vmatprep.subr.bf16.mxu0 0
      %7671 = vmatpush1.bf16.msra.mxu0 0
      %7672 = vmatprep.subr.bf16.mxu0 0
      %7673 = vmatpush1.bf16.msra.mxu0 0
      %7674 = vmatprep.subr.bf16.mxu0 0
      %7675 = vmatpush1.bf16.msra.mxu0 0
      %7676 = vmatprep.subr.bf16.mxu0 0
      %7677 = vmatpush1.bf16.msra.mxu0 0
      %7678 = vmatprep.mubr.bf16.mxu0 0
      %7679 = vmatmul.mubr.bf16.gmra.mrb[0].mxu0 %v7635
      %v7680 = vpop.f32.mrb[0].mxu0
      %v7681 = vadd.f32 0.0, %v7680
      %v7682 = vpop.f32.mrb[0].mxu0
      %v7683 = vadd.f32 0.0, %v7682
      %v7684 = vpop.f32.mrb[0].mxu0
      %v7685 = vadd.f32 0.0, %v7684
      %v7686 = vpop.f32.mrb[0].mxu0
      %v7687 = vadd.f32 0.0, %v7686
      %7688 = vdwg.mxu0
      %7689 = vmatprep.subr.bf16.mxu0 0
      %7690 = vmatpush1.bf16.msra.mxu0 %v7644
      %7691 = vmatprep.subr.bf16.mxu0 0
      %7692 = vmatpush1.bf16.msra.mxu0 0
      %7693 = vmatprep.subr.bf16.mxu0 0
      %7694 = vmatpush1.bf16.msra.mxu0 0
      %7695 = vmatprep.subr.bf16.mxu0 0
      %7696 = vmatpush1.bf16.msra.mxu0 0
      %7697 = vmatprep.subr.bf16.mxu0 0
      %7698 = vmatpush1.bf16.msra.mxu0 0
      %7699 = vmatprep.subr.bf16.mxu0 0
      %7700 = vmatpush1.bf16.msra.mxu0 0
      %7701 = vmatprep.subr.bf16.mxu0 0
      %7702 = vmatpush1.bf16.msra.mxu0 0
      %7703 = vmatprep.subr.bf16.mxu0 0
      %7704 = vmatpush1.bf16.msra.mxu0 0
      %7705 = vmatprep.subr.bf16.mxu0 0
      %7706 = vmatpush1.bf16.msra.mxu0 0
      %7707 = vmatprep.subr.bf16.mxu0 0
      %7708 = vmatpush1.bf16.msra.mxu0 0
      %7709 = vmatprep.subr.bf16.mxu0 0
      %7710 = vmatpush1.bf16.msra.mxu0 0
      %7711 = vmatprep.subr.bf16.mxu0 0
      %7712 = vmatpush1.bf16.msra.mxu0 0
      %7713 = vmatprep.subr.bf16.mxu0 0
      %7714 = vmatpush1.bf16.msra.mxu0 0
      %7715 = vmatprep.subr.bf16.mxu0 0
      %7716 = vmatpush1.bf16.msra.mxu0 0
      %7717 = vmatprep.subr.bf16.mxu0 0
      %7718 = vmatpush1.bf16.msra.mxu0 0
      %7719 = vmatprep.subr.bf16.mxu0 0
      %7720 = vmatpush1.bf16.msra.mxu0 0
      %7721 = vmatprep.mubr.bf16.mxu0 0
      %7722 = vmatmul.mubr.bf16.gmra.mrb[0].mxu0 %v7635
      %v7723 = vpop.f32.mrb[0].mxu0
      %v7724 = vadd.f32 0.0, %v7723
      %v7725 = vpop.f32.mrb[0].mxu0
      %v7726 = vpop.f32.mrb[0].mxu0
      %v7727 = vadd.f32 0.0, %v7726
      %v7728 = vpop.f32.mrb[0].mxu0
      %7729 = vdwg.mxu0
      %v7730 = vadd.f32 %v7609, %v7681
      %v7731 = vadd.f32 %v7610, %v7683
      %v7732 = vadd.f32 %v7611, %v7724
      %v7733 = vadd.f32 %v7612, %v7685
      %v7734 = vadd.f32 %v7613, %v7687
      %v7735 = vadd.f32 %v7614, %v7727
      %s7736 = scalar_lea.vmem %s4, 80
      %v7737 = vld [vmem:[%s7736] sm:$0xf]
      %v7738 = vld [vmem:[%s7736 + $0x4] sm:$0xf]
      %v7739 = vld [vmem:[#allocation4 + $0x8] sm:$0xff]
      %v7740 = vld [vmem:[#allocation4 + $0x10] sm:$0xf]
      %v7743 = vunpack.c.l.b16 %v7737
      %v7744 = vunpack.c.l.b16 %v7738
      %v7745 = vpack.c.b16 %v7744, %v7743
      %v7748 = vunpack.c.l.b16 %v7739
      %v7749 = vunpack.c.h.b16 %v7739
      %v7750 = vunpack.c.l.b16 %v7740
      %v7751 = vpack.c.b16 %v7748, %v7748
      %v7752 = vpack.c.b16 %v7749, %v7749
      %v7753 = vpack.c.b16 %v7750, %v7750
      %v7755 = vsel %vm468, %v7745, 0
      %v7758 = vsel %vm472, %v7751, 0
      %v7761 = vsel %vm472, %v7752, 0
      %v7764 = vsel %vm472, %v7753, 0
      %7766 = vmatprep.subr.bf16.mxu0 %v7761
      %7767 = vmatpush1.bf16.msra.mxu0 %v7758
      %7768 = vmatprep.subr.bf16.mxu0 0
      %7769 = vmatpush1.bf16.msra.mxu0 0
      %7770 = vmatprep.subr.bf16.mxu0 0
      %7771 = vmatpush1.bf16.msra.mxu0 0
      %7772 = vmatprep.subr.bf16.mxu0 0
      %7773 = vmatpush1.bf16.msra.mxu0 0
      %7774 = vmatprep.subr.bf16.mxu0 0
      %7775 = vmatpush1.bf16.msra.mxu0 0
      %7776 = vmatprep.subr.bf16.mxu0 0
      %7777 = vmatpush1.bf16.msra.mxu0 0
      %7778 = vmatprep.subr.bf16.mxu0 0
      %7779 = vmatpush1.bf16.msra.mxu0 0
      %7780 = vmatprep.subr.bf16.mxu0 0
      %7781 = vmatpush1.bf16.msra.mxu0 0
      %7782 = vmatprep.subr.bf16.mxu0 0
      %7783 = vmatpush1.bf16.msra.mxu0 0
      %7784 = vmatprep.subr.bf16.mxu0 0
      %7785 = vmatpush1.bf16.msra.mxu0 0
      %7786 = vmatprep.subr.bf16.mxu0 0
      %7787 = vmatpush1.bf16.msra.mxu0 0
      %7788 = vmatprep.subr.bf16.mxu0 0
      %7789 = vmatpush1.bf16.msra.mxu0 0
      %7790 = vmatprep.subr.bf16.mxu0 0
      %7791 = vmatpush1.bf16.msra.mxu0 0
      %7792 = vmatprep.subr.bf16.mxu0 0
      %7793 = vmatpush1.bf16.msra.mxu0 0
      %7794 = vmatprep.subr.bf16.mxu0 0
      %7795 = vmatpush1.bf16.msra.mxu0 0
      %7796 = vmatprep.subr.bf16.mxu0 0
      %7797 = vmatpush1.bf16.msra.mxu0 0
      %7798 = vmatprep.mubr.bf16.mxu0 0
      %7799 = vmatmul.mubr.bf16.gmra.mrb[0].mxu0 %v7755
      %v7800 = vpop.f32.mrb[0].mxu0
      %v7801 = vadd.f32 0.0, %v7800
      %v7802 = vpop.f32.mrb[0].mxu0
      %v7803 = vadd.f32 0.0, %v7802
      %v7804 = vpop.f32.mrb[0].mxu0
      %v7805 = vadd.f32 0.0, %v7804
      %v7806 = vpop.f32.mrb[0].mxu0
      %v7807 = vadd.f32 0.0, %v7806
      %7808 = vdwg.mxu0
      %7809 = vmatprep.subr.bf16.mxu0 0
      %7810 = vmatpush1.bf16.msra.mxu0 %v7764
      %7811 = vmatprep.subr.bf16.mxu0 0
      %7812 = vmatpush1.bf16.msra.mxu0 0
      %7813 = vmatprep.subr.bf16.mxu0 0
      %7814 = vmatpush1.bf16.msra.mxu0 0
      %7815 = vmatprep.subr.bf16.mxu0 0
      %7816 = vmatpush1.bf16.msra.mxu0 0
      %7817 = vmatprep.subr.bf16.mxu0 0
      %7818 = vmatpush1.bf16.msra.mxu0 0
      %7819 = vmatprep.subr.bf16.mxu0 0
      %7820 = vmatpush1.bf16.msra.mxu0 0
      %7821 = vmatprep.subr.bf16.mxu0 0
      %7822 = vmatpush1.bf16.msra.mxu0 0
      %7823 = vmatprep.subr.bf16.mxu0 0
      %7824 = vmatpush1.bf16.msra.mxu0 0
      %7825 = vmatprep.subr.bf16.mxu0 0
      %7826 = vmatpush1.bf16.msra.mxu0 0
      %7827 = vmatprep.subr.bf16.mxu0 0
      %7828 = vmatpush1.bf16.msra.mxu0 0
      %7829 = vmatprep.subr.bf16.mxu0 0
      %7830 = vmatpush1.bf16.msra.mxu0 0
      %7831 = vmatprep.subr.bf16.mxu0 0
      %7832 = vmatpush1.bf16.msra.mxu0 0
      %7833 = vmatprep.subr.bf16.mxu0 0
      %7834 = vmatpush1.bf16.msra.mxu0 0
      %7835 = vmatprep.subr.bf16.mxu0 0
      %7836 = vmatpush1.bf16.msra.mxu0 0
      %7837 = vmatprep.subr.bf16.mxu0 0
      %7838 = vmatpush1.bf16.msra.mxu0 0
      %7839 = vmatprep.subr.bf16.mxu0 0
      %7840 = vmatpush1.bf16.msra.mxu0 0
      %7841 = vmatprep.mubr.bf16.mxu0 0
      %7842 = vmatmul.mubr.bf16.gmra.mrb[0].mxu0 %v7755
      %v7843 = vpop.f32.mrb[0].mxu0
      %v7844 = vadd.f32 0.0, %v7843
      %v7845 = vpop.f32.mrb[0].mxu0
      %v7846 = vpop.f32.mrb[0].mxu0
      %v7847 = vadd.f32 0.0, %v7846
      %v7848 = vpop.f32.mrb[0].mxu0
      %7849 = vdwg.mxu0
      %v7850 = vadd.f32 %v7730, %v7801
      %v7851 = vadd.f32 %v7731, %v7803
      %v7852 = vadd.f32 %v7732, %v7844
      %v7853 = vadd.f32 %v7733, %v7805
      %v7854 = vadd.f32 %v7734, %v7807
      %v7855 = vadd.f32 %v7735, %v7847
      %s7856 = scalar_lea.vmem %s4, 88
      %v7857 = vld [vmem:[%s7856] sm:$0xf]
      %v7858 = vld [vmem:[%s7856 + $0x4] sm:$0xf]
      %v7859 = vld [vmem:[#allocation4 + $0x8] sm:$0xff]
      %v7860 = vld [vmem:[#allocation4 + $0x10] sm:$0xff]
      %v7863 = vunpack.c.l.b16 %v7857
      %v7864 = vunpack.c.l.b16 %v7858
      %v7865 = vpack.c.b16 %v7864, %v7863
      %v7868 = vunpack.c.l.b16 %v7859
      %v7869 = vunpack.c.h.b16 %v7859
      %v7870 = vunpack.c.l.b16 %v7860
      %v7871 = vunpack.c.h.b16 %v7860
      %v7872 = vpack.c.b16 %v7868, %v7868
      %v7873 = vpack.c.b16 %v7869, %v7869
      %v7874 = vpack.c.b16 %v7870, %v7870
      %v7875 = vpack.c.b16 %v7871, %v7871
      %7876 = vrot.lane.b32.xlu0 %v7872, 124
      %v7877 = vpop.permute.xlu0 %7876
      %7878 = vrot.lane.b32.xlu0 %v7873, 124
      %v7879 = vpop.permute.xlu0 %7878
      %7880 = vrot.lane.b32.xlu0 %v7874, 124
      %v7881 = vpop.permute.xlu0 %7880
      %7882 = vrot.lane.b32.xlu0 %v7875, 124
      %v7883 = vpop.permute.xlu0 %7882
      %v7884 = vsel %vm1328, %v7877, %v7879
      %v7885 = vsel %vm1328, %v7879, %v7881
      %v7886 = vsel %vm1328, %v7881, %v7883
      %v7888 = vsel %vm468, %v7865, 0
      %v7891 = vsel %vm472, %v7884, 0
      %v7894 = vsel %vm472, %v7885, 0
      %v7897 = vsel %vm472, %v7886, 0
      %7899 = vmatprep.subr.bf16.mxu0 %v7894
      %7900 = vmatpush1.bf16.msra.mxu0 %v7891
      %7901 = vmatprep.subr.bf16.mxu0 0
      %7902 = vmatpush1.bf16.msra.mxu0 0
      %7903 = vmatprep.subr.bf16.mxu0 0
      %7904 = vmatpush1.bf16.msra.mxu0 0
      %7905 = vmatprep.subr.bf16.mxu0 0
      %7906 = vmatpush1.bf16.msra.mxu0 0
      %7907 = vmatprep.subr.bf16.mxu0 0
      %7908 = vmatpush1.bf16.msra.mxu0 0
      %7909 = vmatprep.subr.bf16.mxu0 0
      %7910 = vmatpush1.bf16.msra.mxu0 0
      %7911 = vmatprep.subr.bf16.mxu0 0
      %7912 = vmatpush1.bf16.msra.mxu0 0
      %7913 = vmatprep.subr.bf16.mxu0 0
      %7914 = vmatpush1.bf16.msra.mxu0 0
      %7915 = vmatprep.subr.bf16.mxu0 0
      %7916 = vmatpush1.bf16.msra.mxu0 0
      %7917 = vmatprep.subr.bf16.mxu0 0
      %7918 = vmatpush1.bf16.msra.mxu0 0
      %7919 = vmatprep.subr.bf16.mxu0 0
      %7920 = vmatpush1.bf16.msra.mxu0 0
      %7921 = vmatprep.subr.bf16.mxu0 0
      %7922 = vmatpush1.bf16.msra.mxu0 0
      %7923 = vmatprep.subr.bf16.mxu0 0
      %7924 = vmatpush1.bf16.msra.mxu0 0
      %7925 = vmatprep.subr.bf16.mxu0 0
      %7926 = vmatpush1.bf16.msra.mxu0 0
      %7927 = vmatprep.subr.bf16.mxu0 0
      %7928 = vmatpush1.bf16.msra.mxu0 0
      %7929 = vmatprep.subr.bf16.mxu0 0
      %7930 = vmatpush1.bf16.msra.mxu0 0
      %7931 = vmatprep.mubr.bf16.mxu0 0
      %7932 = vmatmul.mubr.bf16.gmra.mrb[0].mxu0 %v7888
      %v7933 = vpop.f32.mrb[0].mxu0
      %v7934 = vadd.f32 0.0, %v7933
      %v7935 = vpop.f32.mrb[0].mxu0
      %v7936 = vadd.f32 0.0, %v7935
      %v7937 = vpop.f32.mrb[0].mxu0
      %v7938 = vadd.f32 0.0, %v7937
      %v7939 = vpop.f32.mrb[0].mxu0
      %v7940 = vadd.f32 0.0, %v7939
      %7941 = vdwg.mxu0
      %7942 = vmatprep.subr.bf16.mxu0 0
      %7943 = vmatpush1.bf16.msra.mxu0 %v7897
      %7944 = vmatprep.subr.bf16.mxu0 0
      %7945 = vmatpush1.bf16.msra.mxu0 0
      %7946 = vmatprep.subr.bf16.mxu0 0
      %7947 = vmatpush1.bf16.msra.mxu0 0
      %7948 = vmatprep.subr.bf16.mxu0 0
      %7949 = vmatpush1.bf16.msra.mxu0 0
      %7950 = vmatprep.subr.bf16.mxu0 0
      %7951 = vmatpush1.bf16.msra.mxu0 0
      %7952 = vmatprep.subr.bf16.mxu0 0
      %7953 = vmatpush1.bf16.msra.mxu0 0
      %7954 = vmatprep.subr.bf16.mxu0 0
      %7955 = vmatpush1.bf16.msra.mxu0 0
      %7956 = vmatprep.subr.bf16.mxu0 0
      %7957 = vmatpush1.bf16.msra.mxu0 0
      %7958 = vmatprep.subr.bf16.mxu0 0
      %7959 = vmatpush1.bf16.msra.mxu0 0
      %7960 = vmatprep.subr.bf16.mxu0 0
      %7961 = vmatpush1.bf16.msra.mxu0 0
      %7962 = vmatprep.subr.bf16.mxu0 0
      %7963 = vmatpush1.bf16.msra.mxu0 0
      %7964 = vmatprep.subr.bf16.mxu0 0
      %7965 = vmatpush1.bf16.msra.mxu0 0
      %7966 = vmatprep.subr.bf16.mxu0 0
      %7967 = vmatpush1.bf16.msra.mxu0 0
      %7968 = vmatprep.subr.bf16.mxu0 0
      %7969 = vmatpush1.bf16.msra.mxu0 0
      %7970 = vmatprep.subr.bf16.mxu0 0
      %7971 = vmatpush1.bf16.msra.mxu0 0
      %7972 = vmatprep.subr.bf16.mxu0 0
      %7973 = vmatpush1.bf16.msra.mxu0 0
      %7974 = vmatprep.mubr.bf16.mxu0 0
      %7975 = vmatmul.mubr.bf16.gmra.mrb[0].mxu0 %v7888
      %v7976 = vpop.f32.mrb[0].mxu0
      %v7977 = vadd.f32 0.0, %v7976
      %v7978 = vpop.f32.mrb[0].mxu0
      %v7979 = vpop.f32.mrb[0].mxu0
      %v7980 = vadd.f32 0.0, %v7979
      %v7981 = vpop.f32.mrb[0].mxu0
      %7982 = vdwg.mxu0
      %v7983 = vadd.f32 %v7850, %v7934
      %v7984 = vadd.f32 %v7851, %v7936
      %v7985 = vadd.f32 %v7852, %v7977
      %v7986 = vadd.f32 %v7853, %v7938
      %v7987 = vadd.f32 %v7854, %v7940
      %v7988 = vadd.f32 %v7855, %v7980
      %s7989 = scalar_lea.vmem %s4, 96
      %v7990 = vld [vmem:[%s7989] sm:$0xf]
      %v7991 = vld [vmem:[%s7989 + $0x4] sm:$0xf]
      %v7994 = vunpack.c.l.b16 %v7990
      %v7995 = vunpack.c.l.b16 %v7991
      %v7996 = vpack.c.b16 %v7995, %v7994
      %7997 = vrot.lane.b32.xlu0 %v7872, 120
      %v7998 = vpop.permute.xlu0 %7997
      %7999 = vrot.lane.b32.xlu0 %v7873, 120
      %v8000 = vpop.permute.xlu0 %7999
      %8001 = vrot.lane.b32.xlu0 %v7874, 120
      %v8002 = vpop.permute.xlu0 %8001
      %8003 = vrot.lane.b32.xlu0 %v7875, 120
      %v8004 = vpop.permute.xlu0 %8003
      %v8005 = vsel %vm6770, %v7998, %v8000
      %v8006 = vsel %vm6770, %v8000, %v8002
      %v8007 = vsel %vm6770, %v8002, %v8004
      %v8009 = vsel %vm468, %v7996, 0
      %v8012 = vsel %vm472, %v8005, 0
      %v8015 = vsel %vm472, %v8006, 0
      %v8018 = vsel %vm472, %v8007, 0
      %8020 = vmatprep.subr.bf16.mxu0 %v8015
      %8021 = vmatpush1.bf16.msra.mxu0 %v8012
      %8022 = vmatprep.subr.bf16.mxu0 0
      %8023 = vmatpush1.bf16.msra.mxu0 0
      %8024 = vmatprep.subr.bf16.mxu0 0
      %8025 = vmatpush1.bf16.msra.mxu0 0
      %8026 = vmatprep.subr.bf16.mxu0 0
      %8027 = vmatpush1.bf16.msra.mxu0 0
      %8028 = vmatprep.subr.bf16.mxu0 0
      %8029 = vmatpush1.bf16.msra.mxu0 0
      %8030 = vmatprep.subr.bf16.mxu0 0
      %8031 = vmatpush1.bf16.msra.mxu0 0
      %8032 = vmatprep.subr.bf16.mxu0 0
      %8033 = vmatpush1.bf16.msra.mxu0 0
      %8034 = vmatprep.subr.bf16.mxu0 0
      %8035 = vmatpush1.bf16.msra.mxu0 0
      %8036 = vmatprep.subr.bf16.mxu0 0
      %8037 = vmatpush1.bf16.msra.mxu0 0
      %8038 = vmatprep.subr.bf16.mxu0 0
      %8039 = vmatpush1.bf16.msra.mxu0 0
      %8040 = vmatprep.subr.bf16.mxu0 0
      %8041 = vmatpush1.bf16.msra.mxu0 0
      %8042 = vmatprep.subr.bf16.mxu0 0
      %8043 = vmatpush1.bf16.msra.mxu0 0
      %8044 = vmatprep.subr.bf16.mxu0 0
      %8045 = vmatpush1.bf16.msra.mxu0 0
      %8046 = vmatprep.subr.bf16.mxu0 0
      %8047 = vmatpush1.bf16.msra.mxu0 0
      %8048 = vmatprep.subr.bf16.mxu0 0
      %8049 = vmatpush1.bf16.msra.mxu0 0
      %8050 = vmatprep.subr.bf16.mxu0 0
      %8051 = vmatpush1.bf16.msra.mxu0 0
      %8052 = vmatprep.mubr.bf16.mxu0 0
      %8053 = vmatmul.mubr.bf16.gmra.mrb[0].mxu0 %v8009
      %v8054 = vpop.f32.mrb[0].mxu0
      %v8055 = vadd.f32 0.0, %v8054
      %v8056 = vpop.f32.mrb[0].mxu0
      %v8057 = vadd.f32 0.0, %v8056
      %v8058 = vpop.f32.mrb[0].mxu0
      %v8059 = vadd.f32 0.0, %v8058
      %v8060 = vpop.f32.mrb[0].mxu0
      %v8061 = vadd.f32 0.0, %v8060
      %8062 = vdwg.mxu0
      %8063 = vmatprep.subr.bf16.mxu0 0
      %8064 = vmatpush1.bf16.msra.mxu0 %v8018
      %8065 = vmatprep.subr.bf16.mxu0 0
      %8066 = vmatpush1.bf16.msra.mxu0 0
      %8067 = vmatprep.subr.bf16.mxu0 0
      %8068 = vmatpush1.bf16.msra.mxu0 0
      %8069 = vmatprep.subr.bf16.mxu0 0
      %8070 = vmatpush1.bf16.msra.mxu0 0
      %8071 = vmatprep.subr.bf16.mxu0 0
      %8072 = vmatpush1.bf16.msra.mxu0 0
      %8073 = vmatprep.subr.bf16.mxu0 0
      %8074 = vmatpush1.bf16.msra.mxu0 0
      %8075 = vmatprep.subr.bf16.mxu0 0
      %8076 = vmatpush1.bf16.msra.mxu0 0
      %8077 = vmatprep.subr.bf16.mxu0 0
      %8078 = vmatpush1.bf16.msra.mxu0 0
      %8079 = vmatprep.subr.bf16.mxu0 0
      %8080 = vmatpush1.bf16.msra.mxu0 0
      %8081 = vmatprep.subr.bf16.mxu0 0
      %8082 = vmatpush1.bf16.msra.mxu0 0
      %8083 = vmatprep.subr.bf16.mxu0 0
      %8084 = vmatpush1.bf16.msra.mxu0 0
      %8085 = vmatprep.subr.bf16.mxu0 0
      %8086 = vmatpush1.bf16.msra.mxu0 0
      %8087 = vmatprep.subr.bf16.mxu0 0
      %8088 = vmatpush1.bf16.msra.mxu0 0
      %8089 = vmatprep.subr.bf16.mxu0 0
      %8090 = vmatpush1.bf16.msra.mxu0 0
      %8091 = vmatprep.subr.bf16.mxu0 0
      %8092 = vmatpush1.bf16.msra.mxu0 0
      %8093 = vmatprep.subr.bf16.mxu0 0
      %8094 = vmatpush1.bf16.msra.mxu0 0
      %8095 = vmatprep.mubr.bf16.mxu0 0
      %8096 = vmatmul.mubr.bf16.gmra.mrb[0].mxu0 %v8009
      %v8097 = vpop.f32.mrb[0].mxu0
      %v8098 = vadd.f32 0.0, %v8097
      %v8099 = vpop.f32.mrb[0].mxu0
      %v8100 = vpop.f32.mrb[0].mxu0
      %v8101 = vadd.f32 0.0, %v8100
      %v8102 = vpop.f32.mrb[0].mxu0
      %8103 = vdwg.mxu0
      %v8104 = vadd.f32 %v7983, %v8055
      %v8105 = vadd.f32 %v7984, %v8057
      %v8106 = vadd.f32 %v7985, %v8098
      %v8107 = vadd.f32 %v7986, %v8059
      %v8108 = vadd.f32 %v7987, %v8061
      %v8109 = vadd.f32 %v7988, %v8101
      %s8110 = scalar_lea.vmem %s4, 104
      %v8111 = vld [vmem:[%s8110] sm:$0xf]
      %v8112 = vld [vmem:[%s8110 + $0x4] sm:$0xf]
      %v8115 = vunpack.c.l.b16 %v8111
      %v8116 = vunpack.c.l.b16 %v8112
      %v8117 = vpack.c.b16 %v8116, %v8115
      %8118 = vrot.lane.b32.xlu0 %v7872, 116
      %v8119 = vpop.permute.xlu0 %8118
      %8120 = vrot.lane.b32.xlu0 %v7873, 116
      %v8121 = vpop.permute.xlu0 %8120
      %8122 = vrot.lane.b32.xlu0 %v7874, 116
      %v8123 = vpop.permute.xlu0 %8122
      %8124 = vrot.lane.b32.xlu0 %v7875, 116
      %v8125 = vpop.permute.xlu0 %8124
      %v8126 = vsel %vm6892, %v8119, %v8121
      %v8127 = vsel %vm6892, %v8121, %v8123
      %v8128 = vsel %vm6892, %v8123, %v8125
      %v8130 = vsel %vm468, %v8117, 0
      %v8133 = vsel %vm472, %v8126, 0
      %v8136 = vsel %vm472, %v8127, 0
      %v8139 = vsel %vm472, %v8128, 0
      %8141 = vmatprep.subr.bf16.mxu0 %v8136
      %8142 = vmatpush1.bf16.msra.mxu0 %v8133
      %8143 = vmatprep.subr.bf16.mxu0 0
      %8144 = vmatpush1.bf16.msra.mxu0 0
      %8145 = vmatprep.subr.bf16.mxu0 0
      %8146 = vmatpush1.bf16.msra.mxu0 0
      %8147 = vmatprep.subr.bf16.mxu0 0
      %8148 = vmatpush1.bf16.msra.mxu0 0
      %8149 = vmatprep.subr.bf16.mxu0 0
      %8150 = vmatpush1.bf16.msra.mxu0 0
      %8151 = vmatprep.subr.bf16.mxu0 0
      %8152 = vmatpush1.bf16.msra.mxu0 0
      %8153 = vmatprep.subr.bf16.mxu0 0
      %8154 = vmatpush1.bf16.msra.mxu0 0
      %8155 = vmatprep.subr.bf16.mxu0 0
      %8156 = vmatpush1.bf16.msra.mxu0 0
      %8157 = vmatprep.subr.bf16.mxu0 0
      %8158 = vmatpush1.bf16.msra.mxu0 0
      %8159 = vmatprep.subr.bf16.mxu0 0
      %8160 = vmatpush1.bf16.msra.mxu0 0
      %8161 = vmatprep.subr.bf16.mxu0 0
      %8162 = vmatpush1.bf16.msra.mxu0 0
      %8163 = vmatprep.subr.bf16.mxu0 0
      %8164 = vmatpush1.bf16.msra.mxu0 0
      %8165 = vmatprep.subr.bf16.mxu0 0
      %8166 = vmatpush1.bf16.msra.mxu0 0
      %8167 = vmatprep.subr.bf16.mxu0 0
      %8168 = vmatpush1.bf16.msra.mxu0 0
      %8169 = vmatprep.subr.bf16.mxu0 0
      %8170 = vmatpush1.bf16.msra.mxu0 0
      %8171 = vmatprep.subr.bf16.mxu0 0
      %8172 = vmatpush1.bf16.msra.mxu0 0
      %8173 = vmatprep.mubr.bf16.mxu0 0
      %8174 = vmatmul.mubr.bf16.gmra.mrb[0].mxu0 %v8130
      %v8175 = vpop.f32.mrb[0].mxu0
      %v8176 = vadd.f32 0.0, %v8175
      %v8177 = vpop.f32.mrb[0].mxu0
      %v8178 = vadd.f32 0.0, %v8177
      %v8179 = vpop.f32.mrb[0].mxu0
      %v8180 = vadd.f32 0.0, %v8179
      %v8181 = vpop.f32.mrb[0].mxu0
      %v8182 = vadd.f32 0.0, %v8181
      %8183 = vdwg.mxu0
      %8184 = vmatprep.subr.bf16.mxu0 0
      %8185 = vmatpush1.bf16.msra.mxu0 %v8139
      %8186 = vmatprep.subr.bf16.mxu0 0
      %8187 = vmatpush1.bf16.msra.mxu0 0
      %8188 = vmatprep.subr.bf16.mxu0 0
      %8189 = vmatpush1.bf16.msra.mxu0 0
      %8190 = vmatprep.subr.bf16.mxu0 0
      %8191 = vmatpush1.bf16.msra.mxu0 0
      %8192 = vmatprep.subr.bf16.mxu0 0
      %8193 = vmatpush1.bf16.msra.mxu0 0
      %8194 = vmatprep.subr.bf16.mxu0 0
      %8195 = vmatpush1.bf16.msra.mxu0 0
      %8196 = vmatprep.subr.bf16.mxu0 0
      %8197 = vmatpush1.bf16.msra.mxu0 0
      %8198 = vmatprep.subr.bf16.mxu0 0
      %8199 = vmatpush1.bf16.msra.mxu0 0
      %8200 = vmatprep.subr.bf16.mxu0 0
      %8201 = vmatpush1.bf16.msra.mxu0 0
      %8202 = vmatprep.subr.bf16.mxu0 0
      %8203 = vmatpush1.bf16.msra.mxu0 0
      %8204 = vmatprep.subr.bf16.mxu0 0
      %8205 = vmatpush1.bf16.msra.mxu0 0
      %8206 = vmatprep.subr.bf16.mxu0 0
      %8207 = vmatpush1.bf16.msra.mxu0 0
      %8208 = vmatprep.subr.bf16.mxu0 0
      %8209 = vmatpush1.bf16.msra.mxu0 0
      %8210 = vmatprep.subr.bf16.mxu0 0
      %8211 = vmatpush1.bf16.msra.mxu0 0
      %8212 = vmatprep.subr.bf16.mxu0 0
      %8213 = vmatpush1.bf16.msra.mxu0 0
      %8214 = vmatprep.subr.bf16.mxu0 0
      %8215 = vmatpush1.bf16.msra.mxu0 0
      %8216 = vmatprep.mubr.bf16.mxu0 0
      %8217 = vmatmul.mubr.bf16.gmra.mrb[0].mxu0 %v8130
      %v8218 = vpop.f32.mrb[0].mxu0
      %v8219 = vadd.f32 0.0, %v8218
      %v8220 = vpop.f32.mrb[0].mxu0
      %v8221 = vpop.f32.mrb[0].mxu0
      %v8222 = vadd.f32 0.0, %v8221
      %v8223 = vpop.f32.mrb[0].mxu0
      %8224 = vdwg.mxu0
      %v8225 = vadd.f32 %v8104, %v8176
      %v8226 = vadd.f32 %v8105, %v8178
      %v8227 = vadd.f32 %v8106, %v8219
      %v8228 = vadd.f32 %v8107, %v8180
      %v8229 = vadd.f32 %v8108, %v8182
      %v8230 = vadd.f32 %v8109, %v8222
      %s8231 = scalar_lea.vmem %s4, 112
      %v8232 = vld [vmem:[%s8231] sm:$0xf]
      %v8233 = vld [vmem:[%s8231 + $0x4] sm:$0xf]
      %v8236 = vunpack.c.l.b16 %v8232
      %v8237 = vunpack.c.l.b16 %v8233
      %v8238 = vpack.c.b16 %v8237, %v8236
      %8239 = vrot.lane.b32.xlu0 %v7872, 112
      %v8240 = vpop.permute.xlu0 %8239
      %8241 = vrot.lane.b32.xlu0 %v7873, 112
      %v8242 = vpop.permute.xlu0 %8241
      %8243 = vrot.lane.b32.xlu0 %v7874, 112
      %v8244 = vpop.permute.xlu0 %8243
      %8245 = vrot.lane.b32.xlu0 %v7875, 112
      %v8246 = vpop.permute.xlu0 %8245
      %v8247 = vsel %vm7014, %v8240, %v8242
      %v8248 = vsel %vm7014, %v8242, %v8244
      %v8249 = vsel %vm7014, %v8244, %v8246
      %v8251 = vsel %vm468, %v8238, 0
      %v8254 = vsel %vm472, %v8247, 0
      %v8257 = vsel %vm472, %v8248, 0
      %v8260 = vsel %vm472, %v8249, 0
      %8262 = vmatprep.subr.bf16.mxu0 %v8257
      %8263 = vmatpush1.bf16.msra.mxu0 %v8254
      %8264 = vmatprep.subr.bf16.mxu0 0
      %8265 = vmatpush1.bf16.msra.mxu0 0
      %8266 = vmatprep.subr.bf16.mxu0 0
      %8267 = vmatpush1.bf16.msra.mxu0 0
      %8268 = vmatprep.subr.bf16.mxu0 0
      %8269 = vmatpush1.bf16.msra.mxu0 0
      %8270 = vmatprep.subr.bf16.mxu0 0
      %8271 = vmatpush1.bf16.msra.mxu0 0
      %8272 = vmatprep.subr.bf16.mxu0 0
      %8273 = vmatpush1.bf16.msra.mxu0 0
      %8274 = vmatprep.subr.bf16.mxu0 0
      %8275 = vmatpush1.bf16.msra.mxu0 0
      %8276 = vmatprep.subr.bf16.mxu0 0
      %8277 = vmatpush1.bf16.msra.mxu0 0
      %8278 = vmatprep.subr.bf16.mxu0 0
      %8279 = vmatpush1.bf16.msra.mxu0 0
      %8280 = vmatprep.subr.bf16.mxu0 0
      %8281 = vmatpush1.bf16.msra.mxu0 0
      %8282 = vmatprep.subr.bf16.mxu0 0
      %8283 = vmatpush1.bf16.msra.mxu0 0
      %8284 = vmatprep.subr.bf16.mxu0 0
      %8285 = vmatpush1.bf16.msra.mxu0 0
      %8286 = vmatprep.subr.bf16.mxu0 0
      %8287 = vmatpush1.bf16.msra.mxu0 0
      %8288 = vmatprep.subr.bf16.mxu0 0
      %8289 = vmatpush1.bf16.msra.mxu0 0
      %8290 = vmatprep.subr.bf16.mxu0 0
      %8291 = vmatpush1.bf16.msra.mxu0 0
      %8292 = vmatprep.subr.bf16.mxu0 0
      %8293 = vmatpush1.bf16.msra.mxu0 0
      %8294 = vmatprep.mubr.bf16.mxu0 0
      %8295 = vmatmul.mubr.bf16.gmra.mrb[0].mxu0 %v8251
      %v8296 = vpop.f32.mrb[0].mxu0
      %v8297 = vadd.f32 0.0, %v8296
      %v8298 = vpop.f32.mrb[0].mxu0
      %v8299 = vadd.f32 0.0, %v8298
      %v8300 = vpop.f32.mrb[0].mxu0
      %v8301 = vadd.f32 0.0, %v8300
      %v8302 = vpop.f32.mrb[0].mxu0
      %v8303 = vadd.f32 0.0, %v8302
      %8304 = vdwg.mxu0
      %8305 = vmatprep.subr.bf16.mxu0 0
      %8306 = vmatpush1.bf16.msra.mxu0 %v8260
      %8307 = vmatprep.subr.bf16.mxu0 0
      %8308 = vmatpush1.bf16.msra.mxu0 0
      %8309 = vmatprep.subr.bf16.mxu0 0
      %8310 = vmatpush1.bf16.msra.mxu0 0
      %8311 = vmatprep.subr.bf16.mxu0 0
      %8312 = vmatpush1.bf16.msra.mxu0 0
      %8313 = vmatprep.subr.bf16.mxu0 0
      %8314 = vmatpush1.bf16.msra.mxu0 0
      %8315 = vmatprep.subr.bf16.mxu0 0
      %8316 = vmatpush1.bf16.msra.mxu0 0
      %8317 = vmatprep.subr.bf16.mxu0 0
      %8318 = vmatpush1.bf16.msra.mxu0 0
      %8319 = vmatprep.subr.bf16.mxu0 0
      %8320 = vmatpush1.bf16.msra.mxu0 0
      %8321 = vmatprep.subr.bf16.mxu0 0
      %8322 = vmatpush1.bf16.msra.mxu0 0
      %8323 = vmatprep.subr.bf16.mxu0 0
      %8324 = vmatpush1.bf16.msra.mxu0 0
      %8325 = vmatprep.subr.bf16.mxu0 0
      %8326 = vmatpush1.bf16.msra.mxu0 0
      %8327 = vmatprep.subr.bf16.mxu0 0
      %8328 = vmatpush1.bf16.msra.mxu0 0
      %8329 = vmatprep.subr.bf16.mxu0 0
      %8330 = vmatpush1.bf16.msra.mxu0 0
      %8331 = vmatprep.subr.bf16.mxu0 0
      %8332 = vmatpush1.bf16.msra.mxu0 0
      %8333 = vmatprep.subr.bf16.mxu0 0
      %8334 = vmatpush1.bf16.msra.mxu0 0
      %8335 = vmatprep.subr.bf16.mxu0 0
      %8336 = vmatpush1.bf16.msra.mxu0 0
      %8337 = vmatprep.mubr.bf16.mxu0 0
      %8338 = vmatmul.mubr.bf16.gmra.mrb[0].mxu0 %v8251
      %v8339 = vpop.f32.mrb[0].mxu0
      %v8340 = vadd.f32 0.0, %v8339
      %v8341 = vpop.f32.mrb[0].mxu0
      %v8342 = vpop.f32.mrb[0].mxu0
      %v8343 = vadd.f32 0.0, %v8342
      %v8344 = vpop.f32.mrb[0].mxu0
      %8345 = vdwg.mxu0
      %v8346 = vadd.f32 %v8225, %v8297
      %v8347 = vadd.f32 %v8226, %v8299
      %v8348 = vadd.f32 %v8227, %v8340
      %v8349 = vadd.f32 %v8228, %v8301
      %v8350 = vadd.f32 %v8229, %v8303
      %v8351 = vadd.f32 %v8230, %v8343
      %s8352 = scalar_lea.vmem %s4, 120
      %v8353 = vld [vmem:[%s8352] sm:$0xf]
      %v8354 = vld [vmem:[%s8352 + $0x4] sm:$0xf]
      %v8355 = vld [vmem:[#allocation4 + $0xc] sm:$0xff]
      %v8356 = vld [vmem:[#allocation4 + $0x14] sm:$0xf]
      %v8359 = vunpack.c.l.b16 %v8353
      %v8360 = vunpack.c.l.b16 %v8354
      %v8361 = vpack.c.b16 %v8360, %v8359
      %v8364 = vunpack.c.l.b16 %v8355
      %v8365 = vunpack.c.h.b16 %v8355
      %v8366 = vunpack.c.l.b16 %v8356
      %v8367 = vpack.c.b16 %v8364, %v8364
      %v8368 = vpack.c.b16 %v8365, %v8365
      %v8369 = vpack.c.b16 %v8366, %v8366
      %v8371 = vsel %vm468, %v8361, 0
      %v8374 = vsel %vm472, %v8367, 0
      %v8377 = vsel %vm472, %v8368, 0
      %v8380 = vsel %vm472, %v8369, 0
      %8382 = vmatprep.subr.bf16.mxu0 %v8377
      %8383 = vmatpush1.bf16.msra.mxu0 %v8374
      %8384 = vmatprep.subr.bf16.mxu0 0
      %8385 = vmatpush1.bf16.msra.mxu0 0
      %8386 = vmatprep.subr.bf16.mxu0 0
      %8387 = vmatpush1.bf16.msra.mxu0 0
      %8388 = vmatprep.subr.bf16.mxu0 0
      %8389 = vmatpush1.bf16.msra.mxu0 0
      %8390 = vmatprep.subr.bf16.mxu0 0
      %8391 = vmatpush1.bf16.msra.mxu0 0
      %8392 = vmatprep.subr.bf16.mxu0 0
      %8393 = vmatpush1.bf16.msra.mxu0 0
      %8394 = vmatprep.subr.bf16.mxu0 0
      %8395 = vmatpush1.bf16.msra.mxu0 0
      %8396 = vmatprep.subr.bf16.mxu0 0
      %8397 = vmatpush1.bf16.msra.mxu0 0
      %8398 = vmatprep.subr.bf16.mxu0 0
      %8399 = vmatpush1.bf16.msra.mxu0 0
      %8400 = vmatprep.subr.bf16.mxu0 0
      %8401 = vmatpush1.bf16.msra.mxu0 0
      %8402 = vmatprep.subr.bf16.mxu0 0
      %8403 = vmatpush1.bf16.msra.mxu0 0
      %8404 = vmatprep.subr.bf16.mxu0 0
      %8405 = vmatpush1.bf16.msra.mxu0 0
      %8406 = vmatprep.subr.bf16.mxu0 0
      %8407 = vmatpush1.bf16.msra.mxu0 0
      %8408 = vmatprep.subr.bf16.mxu0 0
      %8409 = vmatpush1.bf16.msra.mxu0 0
      %8410 = vmatprep.subr.bf16.mxu0 0
      %8411 = vmatpush1.bf16.msra.mxu0 0
      %8412 = vmatprep.subr.bf16.mxu0 0
      %8413 = vmatpush1.bf16.msra.mxu0 0
      %8414 = vmatprep.mubr.bf16.mxu0 0
      %8415 = vmatmul.mubr.bf16.gmra.mrb[0].mxu0 %v8371
      %v8416 = vpop.f32.mrb[0].mxu0
      %v8417 = vadd.f32 0.0, %v8416
      %v8418 = vpop.f32.mrb[0].mxu0
      %v8419 = vadd.f32 0.0, %v8418
      %v8420 = vpop.f32.mrb[0].mxu0
      %v8421 = vadd.f32 0.0, %v8420
      %v8422 = vpop.f32.mrb[0].mxu0
      %v8423 = vadd.f32 0.0, %v8422
      %8424 = vdwg.mxu0
      %8425 = vmatprep.subr.bf16.mxu0 0
      %8426 = vmatpush1.bf16.msra.mxu0 %v8380
      %8427 = vmatprep.subr.bf16.mxu0 0
      %8428 = vmatpush1.bf16.msra.mxu0 0
      %8429 = vmatprep.subr.bf16.mxu0 0
      %8430 = vmatpush1.bf16.msra.mxu0 0
      %8431 = vmatprep.subr.bf16.mxu0 0
      %8432 = vmatpush1.bf16.msra.mxu0 0
      %8433 = vmatprep.subr.bf16.mxu0 0
      %8434 = vmatpush1.bf16.msra.mxu0 0
      %8435 = vmatprep.subr.bf16.mxu0 0
      %8436 = vmatpush1.bf16.msra.mxu0 0
      %8437 = vmatprep.subr.bf16.mxu0 0
      %8438 = vmatpush1.bf16.msra.mxu0 0
      %8439 = vmatprep.subr.bf16.mxu0 0
      %8440 = vmatpush1.bf16.msra.mxu0 0
      %8441 = vmatprep.subr.bf16.mxu0 0
      %8442 = vmatpush1.bf16.msra.mxu0 0
      %8443 = vmatprep.subr.bf16.mxu0 0
      %8444 = vmatpush1.bf16.msra.mxu0 0
      %8445 = vmatprep.subr.bf16.mxu0 0
      %8446 = vmatpush1.bf16.msra.mxu0 0
      %8447 = vmatprep.subr.bf16.mxu0 0
      %8448 = vmatpush1.bf16.msra.mxu0 0
      %8449 = vmatprep.subr.bf16.mxu0 0
      %8450 = vmatpush1.bf16.msra.mxu0 0
      %8451 = vmatprep.subr.bf16.mxu0 0
      %8452 = vmatpush1.bf16.msra.mxu0 0
      %8453 = vmatprep.subr.bf16.mxu0 0
      %8454 = vmatpush1.bf16.msra.mxu0 0
      %8455 = vmatprep.subr.bf16.mxu0 0
      %8456 = vmatpush1.bf16.msra.mxu0 0
      %8457 = vmatprep.mubr.bf16.mxu0 0
      %8458 = vmatmul.mubr.bf16.gmra.mrb[0].mxu0 %v8371
      %v8459 = vpop.f32.mrb[0].mxu0
      %v8460 = vadd.f32 0.0, %v8459
      %v8461 = vpop.f32.mrb[0].mxu0
      %v8462 = vpop.f32.mrb[0].mxu0
      %v8463 = vadd.f32 0.0, %v8462
      %v8464 = vpop.f32.mrb[0].mxu0
      %8465 = vdwg.mxu0
      %v8466 = vadd.f32 %v8346, %v8417
      %v8467 = vadd.f32 %v8347, %v8419
      %v8468 = vadd.f32 %v8348, %v8460
      %v8469 = vadd.f32 %v8349, %v8421
      %v8470 = vadd.f32 %v8350, %v8423
      %v8471 = vadd.f32 %v8351, %v8463
      %s8472 = scalar_lea.vmem %s4, 128
      %v8473 = vld [vmem:[%s8472] sm:$0xf]
      %v8474 = vld [vmem:[%s8472 + $0x4] sm:$0xf]
      %v8475 = vld [vmem:[#allocation4 + $0xc] sm:$0xff]
      %v8476 = vld [vmem:[#allocation4 + $0x14] sm:$0xff]
      %v8479 = vunpack.c.l.b16 %v8473
      %v8480 = vunpack.c.l.b16 %v8474
      %v8481 = vpack.c.b16 %v8480, %v8479
      %v8484 = vunpack.c.l.b16 %v8475
      %v8485 = vunpack.c.h.b16 %v8475
      %v8486 = vunpack.c.l.b16 %v8476
      %v8487 = vunpack.c.h.b16 %v8476
      %v8488 = vpack.c.b16 %v8484, %v8484
      %v8489 = vpack.c.b16 %v8485, %v8485
      %v8490 = vpack.c.b16 %v8486, %v8486
      %v8491 = vpack.c.b16 %v8487, %v8487
      %8492 = vrot.lane.b32.xlu0 %v8488, 124
      %v8493 = vpop.permute.xlu0 %8492
      %8494 = vrot.lane.b32.xlu0 %v8489, 124
      %v8495 = vpop.permute.xlu0 %8494
      %8496 = vrot.lane.b32.xlu0 %v8490, 124
      %v8497 = vpop.permute.xlu0 %8496
      %8498 = vrot.lane.b32.xlu0 %v8491, 124
      %v8499 = vpop.permute.xlu0 %8498
      %v8500 = vsel %vm1328, %v8493, %v8495
      %v8501 = vsel %vm1328, %v8495, %v8497
      %v8502 = vsel %vm1328, %v8497, %v8499
      %v8504 = vsel %vm468, %v8481, 0
      %v8507 = vsel %vm472, %v8500, 0
      %v8510 = vsel %vm472, %v8501, 0
      %v8513 = vsel %vm472, %v8502, 0
      %8515 = vmatprep.subr.bf16.mxu0 %v8510
      %8516 = vmatpush1.bf16.msra.mxu0 %v8507
      %8517 = vmatprep.subr.bf16.mxu0 0
      %8518 = vmatpush1.bf16.msra.mxu0 0
      %8519 = vmatprep.subr.bf16.mxu0 0
      %8520 = vmatpush1.bf16.msra.mxu0 0
      %8521 = vmatprep.subr.bf16.mxu0 0
      %8522 = vmatpush1.bf16.msra.mxu0 0
      %8523 = vmatprep.subr.bf16.mxu0 0
      %8524 = vmatpush1.bf16.msra.mxu0 0
      %8525 = vmatprep.subr.bf16.mxu0 0
      %8526 = vmatpush1.bf16.msra.mxu0 0
      %8527 = vmatprep.subr.bf16.mxu0 0
      %8528 = vmatpush1.bf16.msra.mxu0 0
      %8529 = vmatprep.subr.bf16.mxu0 0
      %8530 = vmatpush1.bf16.msra.mxu0 0
      %8531 = vmatprep.subr.bf16.mxu0 0
      %8532 = vmatpush1.bf16.msra.mxu0 0
      %8533 = vmatprep.subr.bf16.mxu0 0
      %8534 = vmatpush1.bf16.msra.mxu0 0
      %8535 = vmatprep.subr.bf16.mxu0 0
      %8536 = vmatpush1.bf16.msra.mxu0 0
      %8537 = vmatprep.subr.bf16.mxu0 0
      %8538 = vmatpush1.bf16.msra.mxu0 0
      %8539 = vmatprep.subr.bf16.mxu0 0
      %8540 = vmatpush1.bf16.msra.mxu0 0
      %8541 = vmatprep.subr.bf16.mxu0 0
      %8542 = vmatpush1.bf16.msra.mxu0 0
      %8543 = vmatprep.subr.bf16.mxu0 0
      %8544 = vmatpush1.bf16.msra.mxu0 0
      %8545 = vmatprep.subr.bf16.mxu0 0
      %8546 = vmatpush1.bf16.msra.mxu0 0
      %8547 = vmatprep.mubr.bf16.mxu0 0
      %8548 = vmatmul.mubr.bf16.gmra.mrb[0].mxu0 %v8504
      %v8549 = vpop.f32.mrb[0].mxu0
      %v8550 = vadd.f32 0.0, %v8549
      %v8551 = vpop.f32.mrb[0].mxu0
      %v8552 = vadd.f32 0.0, %v8551
      %v8553 = vpop.f32.mrb[0].mxu0
      %v8554 = vadd.f32 0.0, %v8553
      %v8555 = vpop.f32.mrb[0].mxu0
      %v8556 = vadd.f32 0.0, %v8555
      %8557 = vdwg.mxu0
      %8558 = vmatprep.subr.bf16.mxu0 0
      %8559 = vmatpush1.bf16.msra.mxu0 %v8513
      %8560 = vmatprep.subr.bf16.mxu0 0
      %8561 = vmatpush1.bf16.msra.mxu0 0
      %8562 = vmatprep.subr.bf16.mxu0 0
      %8563 = vmatpush1.bf16.msra.mxu0 0
      %8564 = vmatprep.subr.bf16.mxu0 0
      %8565 = vmatpush1.bf16.msra.mxu0 0
      %8566 = vmatprep.subr.bf16.mxu0 0
      %8567 = vmatpush1.bf16.msra.mxu0 0
      %8568 = vmatprep.subr.bf16.mxu0 0
      %8569 = vmatpush1.bf16.msra.mxu0 0
      %8570 = vmatprep.subr.bf16.mxu0 0
      %8571 = vmatpush1.bf16.msra.mxu0 0
      %8572 = vmatprep.subr.bf16.mxu0 0
      %8573 = vmatpush1.bf16.msra.mxu0 0
      %8574 = vmatprep.subr.bf16.mxu0 0
      %8575 = vmatpush1.bf16.msra.mxu0 0
      %8576 = vmatprep.subr.bf16.mxu0 0
      %8577 = vmatpush1.bf16.msra.mxu0 0
      %8578 = vmatprep.subr.bf16.mxu0 0
      %8579 = vmatpush1.bf16.msra.mxu0 0
      %8580 = vmatprep.subr.bf16.mxu0 0
      %8581 = vmatpush1.bf16.msra.mxu0 0
      %8582 = vmatprep.subr.bf16.mxu0 0
      %8583 = vmatpush1.bf16.msra.mxu0 0
      %8584 = vmatprep.subr.bf16.mxu0 0
      %8585 = vmatpush1.bf16.msra.mxu0 0
      %8586 = vmatprep.subr.bf16.mxu0 0
      %8587 = vmatpush1.bf16.msra.mxu0 0
      %8588 = vmatprep.subr.bf16.mxu0 0
      %8589 = vmatpush1.bf16.msra.mxu0 0
      %8590 = vmatprep.mubr.bf16.mxu0 0
      %8591 = vmatmul.mubr.bf16.gmra.mrb[0].mxu0 %v8504
      %v8592 = vpop.f32.mrb[0].mxu0
      %v8593 = vadd.f32 0.0, %v8592
      %v8594 = vpop.f32.mrb[0].mxu0
      %v8595 = vpop.f32.mrb[0].mxu0
      %v8596 = vadd.f32 0.0, %v8595
      %v8597 = vpop.f32.mrb[0].mxu0
      %8598 = vdwg.mxu0
      %v8599 = vadd.f32 %v8466, %v8550
      %v8600 = vadd.f32 %v8467, %v8552
      %v8601 = vadd.f32 %v8468, %v8593
      %v8602 = vadd.f32 %v8469, %v8554
      %v8603 = vadd.f32 %v8470, %v8556
      %v8604 = vadd.f32 %v8471, %v8596
      %s8605 = scalar_lea.vmem %s4, 136
      %v8606 = vld [vmem:[%s8605] sm:$0xf]
      %v8607 = vld [vmem:[%s8605 + $0x4] sm:$0xf]
      %v8610 = vunpack.c.l.b16 %v8606
      %v8611 = vunpack.c.l.b16 %v8607
      %v8612 = vpack.c.b16 %v8611, %v8610
      %8613 = vrot.lane.b32.xlu0 %v8488, 120
      %v8614 = vpop.permute.xlu0 %8613
      %8615 = vrot.lane.b32.xlu0 %v8489, 120
      %v8616 = vpop.permute.xlu0 %8615
      %8617 = vrot.lane.b32.xlu0 %v8490, 120
      %v8618 = vpop.permute.xlu0 %8617
      %8619 = vrot.lane.b32.xlu0 %v8491, 120
      %v8620 = vpop.permute.xlu0 %8619
      %v8621 = vsel %vm6770, %v8614, %v8616
      %v8622 = vsel %vm6770, %v8616, %v8618
      %v8623 = vsel %vm6770, %v8618, %v8620
      %v8625 = vsel %vm468, %v8612, 0
      %v8628 = vsel %vm472, %v8621, 0
      %v8631 = vsel %vm472, %v8622, 0
      %v8634 = vsel %vm472, %v8623, 0
      %8636 = vmatprep.subr.bf16.mxu0 %v8631
      %8637 = vmatpush1.bf16.msra.mxu0 %v8628
      %8638 = vmatprep.subr.bf16.mxu0 0
      %8639 = vmatpush1.bf16.msra.mxu0 0
      %8640 = vmatprep.subr.bf16.mxu0 0
      %8641 = vmatpush1.bf16.msra.mxu0 0
      %8642 = vmatprep.subr.bf16.mxu0 0
      %8643 = vmatpush1.bf16.msra.mxu0 0
      %8644 = vmatprep.subr.bf16.mxu0 0
      %8645 = vmatpush1.bf16.msra.mxu0 0
      %8646 = vmatprep.subr.bf16.mxu0 0
      %8647 = vmatpush1.bf16.msra.mxu0 0
      %8648 = vmatprep.subr.bf16.mxu0 0
      %8649 = vmatpush1.bf16.msra.mxu0 0
      %8650 = vmatprep.subr.bf16.mxu0 0
      %8651 = vmatpush1.bf16.msra.mxu0 0
      %8652 = vmatprep.subr.bf16.mxu0 0
      %8653 = vmatpush1.bf16.msra.mxu0 0
      %8654 = vmatprep.subr.bf16.mxu0 0
      %8655 = vmatpush1.bf16.msra.mxu0 0
      %8656 = vmatprep.subr.bf16.mxu0 0
      %8657 = vmatpush1.bf16.msra.mxu0 0
      %8658 = vmatprep.subr.bf16.mxu0 0
      %8659 = vmatpush1.bf16.msra.mxu0 0
      %8660 = vmatprep.subr.bf16.mxu0 0
      %8661 = vmatpush1.bf16.msra.mxu0 0
      %8662 = vmatprep.subr.bf16.mxu0 0
      %8663 = vmatpush1.bf16.msra.mxu0 0
      %8664 = vmatprep.subr.bf16.mxu0 0
      %8665 = vmatpush1.bf16.msra.mxu0 0
      %8666 = vmatprep.subr.bf16.mxu0 0
      %8667 = vmatpush1.bf16.msra.mxu0 0
      %8668 = vmatprep.mubr.bf16.mxu0 0
      %8669 = vmatmul.mubr.bf16.gmra.mrb[0].mxu0 %v8625
      %v8670 = vpop.f32.mrb[0].mxu0
      %v8671 = vadd.f32 0.0, %v8670
      %v8672 = vpop.f32.mrb[0].mxu0
      %v8673 = vadd.f32 0.0, %v8672
      %v8674 = vpop.f32.mrb[0].mxu0
      %v8675 = vadd.f32 0.0, %v8674
      %v8676 = vpop.f32.mrb[0].mxu0
      %v8677 = vadd.f32 0.0, %v8676
      %8678 = vdwg.mxu0
      %8679 = vmatprep.subr.bf16.mxu0 0
      %8680 = vmatpush1.bf16.msra.mxu0 %v8634
      %8681 = vmatprep.subr.bf16.mxu0 0
      %8682 = vmatpush1.bf16.msra.mxu0 0
      %8683 = vmatprep.subr.bf16.mxu0 0
      %8684 = vmatpush1.bf16.msra.mxu0 0
      %8685 = vmatprep.subr.bf16.mxu0 0
      %8686 = vmatpush1.bf16.msra.mxu0 0
      %8687 = vmatprep.subr.bf16.mxu0 0
      %8688 = vmatpush1.bf16.msra.mxu0 0
      %8689 = vmatprep.subr.bf16.mxu0 0
      %8690 = vmatpush1.bf16.msra.mxu0 0
      %8691 = vmatprep.subr.bf16.mxu0 0
      %8692 = vmatpush1.bf16.msra.mxu0 0
      %8693 = vmatprep.subr.bf16.mxu0 0
      %8694 = vmatpush1.bf16.msra.mxu0 0
      %8695 = vmatprep.subr.bf16.mxu0 0
      %8696 = vmatpush1.bf16.msra.mxu0 0
      %8697 = vmatprep.subr.bf16.mxu0 0
      %8698 = vmatpush1.bf16.msra.mxu0 0
      %8699 = vmatprep.subr.bf16.mxu0 0
      %8700 = vmatpush1.bf16.msra.mxu0 0
      %8701 = vmatprep.subr.bf16.mxu0 0
      %8702 = vmatpush1.bf16.msra.mxu0 0
      %8703 = vmatprep.subr.bf16.mxu0 0
      %8704 = vmatpush1.bf16.msra.mxu0 0
      %8705 = vmatprep.subr.bf16.mxu0 0
      %8706 = vmatpush1.bf16.msra.mxu0 0
      %8707 = vmatprep.subr.bf16.mxu0 0
      %8708 = vmatpush1.bf16.msra.mxu0 0
      %8709 = vmatprep.subr.bf16.mxu0 0
      %8710 = vmatpush1.bf16.msra.mxu0 0
      %8711 = vmatprep.mubr.bf16.mxu0 0
      %8712 = vmatmul.mubr.bf16.gmra.mrb[0].mxu0 %v8625
      %v8713 = vpop.f32.mrb[0].mxu0
      %v8714 = vadd.f32 0.0, %v8713
      %v8715 = vpop.f32.mrb[0].mxu0
      %v8716 = vpop.f32.mrb[0].mxu0
      %v8717 = vadd.f32 0.0, %v8716
      %v8718 = vpop.f32.mrb[0].mxu0
      %8719 = vdwg.mxu0
      %v8720 = vadd.f32 %v8599, %v8671
      %v8721 = vadd.f32 %v8600, %v8673
      %v8722 = vadd.f32 %v8601, %v8714
      %v8723 = vadd.f32 %v8602, %v8675
      %v8724 = vadd.f32 %v8603, %v8677
      %v8725 = vadd.f32 %v8604, %v8717
      %s8726 = scalar_lea.vmem %s4, 144
      %v8727 = vld [vmem:[%s8726] sm:$0xf]
      %v8728 = vld [vmem:[%s8726 + $0x4] sm:$0xf]
      %v8731 = vunpack.c.l.b16 %v8727
      %v8732 = vunpack.c.l.b16 %v8728
      %v8733 = vpack.c.b16 %v8732, %v8731
      %8734 = vrot.lane.b32.xlu0 %v8488, 116
      %v8735 = vpop.permute.xlu0 %8734
      %8736 = vrot.lane.b32.xlu0 %v8489, 116
      %v8737 = vpop.permute.xlu0 %8736
      %8738 = vrot.lane.b32.xlu0 %v8490, 116
      %v8739 = vpop.permute.xlu0 %8738
      %8740 = vrot.lane.b32.xlu0 %v8491, 116
      %v8741 = vpop.permute.xlu0 %8740
      %v8742 = vsel %vm6892, %v8735, %v8737
      %v8743 = vsel %vm6892, %v8737, %v8739
      %v8744 = vsel %vm6892, %v8739, %v8741
      %v8746 = vsel %vm468, %v8733, 0
      %v8749 = vsel %vm472, %v8742, 0
      %v8752 = vsel %vm472, %v8743, 0
      %v8755 = vsel %vm472, %v8744, 0
      %8757 = vmatprep.subr.bf16.mxu0 %v8752
      %8758 = vmatpush1.bf16.msra.mxu0 %v8749
      %8759 = vmatprep.subr.bf16.mxu0 0
      %8760 = vmatpush1.bf16.msra.mxu0 0
      %8761 = vmatprep.subr.bf16.mxu0 0
      %8762 = vmatpush1.bf16.msra.mxu0 0
      %8763 = vmatprep.subr.bf16.mxu0 0
      %8764 = vmatpush1.bf16.msra.mxu0 0
      %8765 = vmatprep.subr.bf16.mxu0 0
      %8766 = vmatpush1.bf16.msra.mxu0 0
      %8767 = vmatprep.subr.bf16.mxu0 0
      %8768 = vmatpush1.bf16.msra.mxu0 0
      %8769 = vmatprep.subr.bf16.mxu0 0
      %8770 = vmatpush1.bf16.msra.mxu0 0
      %8771 = vmatprep.subr.bf16.mxu0 0
      %8772 = vmatpush1.bf16.msra.mxu0 0
      %8773 = vmatprep.subr.bf16.mxu0 0
      %8774 = vmatpush1.bf16.msra.mxu0 0
      %8775 = vmatprep.subr.bf16.mxu0 0
      %8776 = vmatpush1.bf16.msra.mxu0 0
      %8777 = vmatprep.subr.bf16.mxu0 0
      %8778 = vmatpush1.bf16.msra.mxu0 0
      %8779 = vmatprep.subr.bf16.mxu0 0
      %8780 = vmatpush1.bf16.msra.mxu0 0
      %8781 = vmatprep.subr.bf16.mxu0 0
      %8782 = vmatpush1.bf16.msra.mxu0 0
      %8783 = vmatprep.subr.bf16.mxu0 0
      %8784 = vmatpush1.bf16.msra.mxu0 0
      %8785 = vmatprep.subr.bf16.mxu0 0
      %8786 = vmatpush1.bf16.msra.mxu0 0
      %8787 = vmatprep.subr.bf16.mxu0 0
      %8788 = vmatpush1.bf16.msra.mxu0 0
      %8789 = vmatprep.mubr.bf16.mxu0 0
      %8790 = vmatmul.mubr.bf16.gmra.mrb[0].mxu0 %v8746
      %v8791 = vpop.f32.mrb[0].mxu0
      %v8792 = vadd.f32 0.0, %v8791
      %v8793 = vpop.f32.mrb[0].mxu0
      %v8794 = vadd.f32 0.0, %v8793
      %v8795 = vpop.f32.mrb[0].mxu0
      %v8796 = vadd.f32 0.0, %v8795
      %v8797 = vpop.f32.mrb[0].mxu0
      %v8798 = vadd.f32 0.0, %v8797
      %8799 = vdwg.mxu0
      %8800 = vmatprep.subr.bf16.mxu0 0
      %8801 = vmatpush1.bf16.msra.mxu0 %v8755
      %8802 = vmatprep.subr.bf16.mxu0 0
      %8803 = vmatpush1.bf16.msra.mxu0 0
      %8804 = vmatprep.subr.bf16.mxu0 0
      %8805 = vmatpush1.bf16.msra.mxu0 0
      %8806 = vmatprep.subr.bf16.mxu0 0
      %8807 = vmatpush1.bf16.msra.mxu0 0
      %8808 = vmatprep.subr.bf16.mxu0 0
      %8809 = vmatpush1.bf16.msra.mxu0 0
      %8810 = vmatprep.subr.bf16.mxu0 0
      %8811 = vmatpush1.bf16.msra.mxu0 0
      %8812 = vmatprep.subr.bf16.mxu0 0
      %8813 = vmatpush1.bf16.msra.mxu0 0
      %8814 = vmatprep.subr.bf16.mxu0 0
      %8815 = vmatpush1.bf16.msra.mxu0 0
      %8816 = vmatprep.subr.bf16.mxu0 0
      %8817 = vmatpush1.bf16.msra.mxu0 0
      %8818 = vmatprep.subr.bf16.mxu0 0
      %8819 = vmatpush1.bf16.msra.mxu0 0
      %8820 = vmatprep.subr.bf16.mxu0 0
      %8821 = vmatpush1.bf16.msra.mxu0 0
      %8822 = vmatprep.subr.bf16.mxu0 0
      %8823 = vmatpush1.bf16.msra.mxu0 0
      %8824 = vmatprep.subr.bf16.mxu0 0
      %8825 = vmatpush1.bf16.msra.mxu0 0
      %8826 = vmatprep.subr.bf16.mxu0 0
      %8827 = vmatpush1.bf16.msra.mxu0 0
      %8828 = vmatprep.subr.bf16.mxu0 0
      %8829 = vmatpush1.bf16.msra.mxu0 0
      %8830 = vmatprep.subr.bf16.mxu0 0
      %8831 = vmatpush1.bf16.msra.mxu0 0
      %8832 = vmatprep.mubr.bf16.mxu0 0
      %8833 = vmatmul.mubr.bf16.gmra.mrb[0].mxu0 %v8746
      %v8834 = vpop.f32.mrb[0].mxu0
      %v8835 = vadd.f32 0.0, %v8834
      %v8836 = vpop.f32.mrb[0].mxu0
      %v8837 = vpop.f32.mrb[0].mxu0
      %v8838 = vadd.f32 0.0, %v8837
      %v8839 = vpop.f32.mrb[0].mxu0
      %8840 = vdwg.mxu0
      %v8841 = vadd.f32 %v8720, %v8792
      %v8842 = vadd.f32 %v8721, %v8794
      %v8843 = vadd.f32 %v8722, %v8835
      %v8844 = vadd.f32 %v8723, %v8796
      %v8845 = vadd.f32 %v8724, %v8798
      %v8846 = vadd.f32 %v8725, %v8838
      %s8847 = scalar_lea.vmem %s4, 152
      %v8848 = vld [vmem:[%s8847] sm:$0xf]
      %v8849 = vld [vmem:[%s8847 + $0x4] sm:$0xf]
      %v8852 = vunpack.c.l.b16 %v8848
      %v8853 = vunpack.c.l.b16 %v8849
      %v8854 = vpack.c.b16 %v8853, %v8852
      %8855 = vrot.lane.b32.xlu0 %v8488, 112
      %v8856 = vpop.permute.xlu0 %8855
      %8857 = vrot.lane.b32.xlu0 %v8489, 112
      %v8858 = vpop.permute.xlu0 %8857
      %8859 = vrot.lane.b32.xlu0 %v8490, 112
      %v8860 = vpop.permute.xlu0 %8859
      %8861 = vrot.lane.b32.xlu0 %v8491, 112
      %v8862 = vpop.permute.xlu0 %8861
      %v8863 = vsel %vm7014, %v8856, %v8858
      %v8864 = vsel %vm7014, %v8858, %v8860
      %v8865 = vsel %vm7014, %v8860, %v8862
      %v8867 = vsel %vm468, %v8854, 0
      %v8870 = vsel %vm472, %v8863, 0
      %v8873 = vsel %vm472, %v8864, 0
      %v8876 = vsel %vm472, %v8865, 0
      %8878 = vmatprep.subr.bf16.mxu0 %v8873
      %8879 = vmatpush1.bf16.msra.mxu0 %v8870
      %8880 = vmatprep.subr.bf16.mxu0 0
      %8881 = vmatpush1.bf16.msra.mxu0 0
      %8882 = vmatprep.subr.bf16.mxu0 0
      %8883 = vmatpush1.bf16.msra.mxu0 0
      %8884 = vmatprep.subr.bf16.mxu0 0
      %8885 = vmatpush1.bf16.msra.mxu0 0
      %8886 = vmatprep.subr.bf16.mxu0 0
      %8887 = vmatpush1.bf16.msra.mxu0 0
      %8888 = vmatprep.subr.bf16.mxu0 0
      %8889 = vmatpush1.bf16.msra.mxu0 0
      %8890 = vmatprep.subr.bf16.mxu0 0
      %8891 = vmatpush1.bf16.msra.mxu0 0
      %8892 = vmatprep.subr.bf16.mxu0 0
      %8893 = vmatpush1.bf16.msra.mxu0 0
      %8894 = vmatprep.subr.bf16.mxu0 0
      %8895 = vmatpush1.bf16.msra.mxu0 0
      %8896 = vmatprep.subr.bf16.mxu0 0
      %8897 = vmatpush1.bf16.msra.mxu0 0
      %8898 = vmatprep.subr.bf16.mxu0 0
      %8899 = vmatpush1.bf16.msra.mxu0 0
      %8900 = vmatprep.subr.bf16.mxu0 0
      %8901 = vmatpush1.bf16.msra.mxu0 0
      %8902 = vmatprep.subr.bf16.mxu0 0
      %8903 = vmatpush1.bf16.msra.mxu0 0
      %8904 = vmatprep.subr.bf16.mxu0 0
      %8905 = vmatpush1.bf16.msra.mxu0 0
      %8906 = vmatprep.subr.bf16.mxu0 0
      %8907 = vmatpush1.bf16.msra.mxu0 0
      %8908 = vmatprep.subr.bf16.mxu0 0
      %8909 = vmatpush1.bf16.msra.mxu0 0
      %8910 = vmatprep.mubr.bf16.mxu0 0
      %8911 = vmatmul.mubr.bf16.gmra.mrb[0].mxu0 %v8867
      %v8912 = vpop.f32.mrb[0].mxu0
      %v8913 = vadd.f32 0.0, %v8912
      %v8914 = vpop.f32.mrb[0].mxu0
      %v8915 = vadd.f32 0.0, %v8914
      %v8916 = vpop.f32.mrb[0].mxu0
      %v8917 = vadd.f32 0.0, %v8916
      %v8918 = vpop.f32.mrb[0].mxu0
      %v8919 = vadd.f32 0.0, %v8918
      %8920 = vdwg.mxu0
      %8921 = vmatprep.subr.bf16.mxu0 0
      %8922 = vmatpush1.bf16.msra.mxu0 %v8876
      %8923 = vmatprep.subr.bf16.mxu0 0
      %8924 = vmatpush1.bf16.msra.mxu0 0
      %8925 = vmatprep.subr.bf16.mxu0 0
      %8926 = vmatpush1.bf16.msra.mxu0 0
      %8927 = vmatprep.subr.bf16.mxu0 0
      %8928 = vmatpush1.bf16.msra.mxu0 0
      %8929 = vmatprep.subr.bf16.mxu0 0
      %8930 = vmatpush1.bf16.msra.mxu0 0
      %8931 = vmatprep.subr.bf16.mxu0 0
      %8932 = vmatpush1.bf16.msra.mxu0 0
      %8933 = vmatprep.subr.bf16.mxu0 0
      %8934 = vmatpush1.bf16.msra.mxu0 0
      %8935 = vmatprep.subr.bf16.mxu0 0
      %8936 = vmatpush1.bf16.msra.mxu0 0
      %8937 = vmatprep.subr.bf16.mxu0 0
      %8938 = vmatpush1.bf16.msra.mxu0 0
      %8939 = vmatprep.subr.bf16.mxu0 0
      %8940 = vmatpush1.bf16.msra.mxu0 0
      %8941 = vmatprep.subr.bf16.mxu0 0
      %8942 = vmatpush1.bf16.msra.mxu0 0
      %8943 = vmatprep.subr.bf16.mxu0 0
      %8944 = vmatpush1.bf16.msra.mxu0 0
      %8945 = vmatprep.subr.bf16.mxu0 0
      %8946 = vmatpush1.bf16.msra.mxu0 0
      %8947 = vmatprep.subr.bf16.mxu0 0
      %8948 = vmatpush1.bf16.msra.mxu0 0
      %8949 = vmatprep.subr.bf16.mxu0 0
      %8950 = vmatpush1.bf16.msra.mxu0 0
      %8951 = vmatprep.subr.bf16.mxu0 0
      %8952 = vmatpush1.bf16.msra.mxu0 0
      %8953 = vmatprep.mubr.bf16.mxu0 0
      %8954 = vmatmul.mubr.bf16.gmra.mrb[0].mxu0 %v8867
      %v8955 = vpop.f32.mrb[0].mxu0
      %v8956 = vadd.f32 0.0, %v8955
      %v8957 = vpop.f32.mrb[0].mxu0
      %v8958 = vpop.f32.mrb[0].mxu0
      %v8959 = vadd.f32 0.0, %v8958
      %v8960 = vpop.f32.mrb[0].mxu0
      %8961 = vdwg.mxu0
      %v8962 = vadd.f32 %v8841, %v8913
      %v8963 = vadd.f32 %v8842, %v8915
      %v8964 = vadd.f32 %v8843, %v8956
      %v8965 = vadd.f32 %v8844, %v8917
      %v8966 = vadd.f32 %v8845, %v8919
      %v8967 = vadd.f32 %v8846, %v8959
      %s8968 = scalar_lea.vmem %s4, 160
      %v8969 = vld [vmem:[%s8968] sm:$0xf]
      %v8970 = vld [vmem:[%s8968 + $0x4] sm:$0xf]
      %v8971 = vld [vmem:[#allocation4 + $0x10] sm:$0xff]
      %v8972 = vld [vmem:[#allocation4 + $0x18] sm:$0xf]
      %v8975 = vunpack.c.l.b16 %v8969
      %v8976 = vunpack.c.l.b16 %v8970
      %v8977 = vpack.c.b16 %v8976, %v8975
      %v8980 = vunpack.c.l.b16 %v8971
      %v8981 = vunpack.c.h.b16 %v8971
      %v8982 = vunpack.c.l.b16 %v8972
      %v8983 = vpack.c.b16 %v8980, %v8980
      %v8984 = vpack.c.b16 %v8981, %v8981
      %v8985 = vpack.c.b16 %v8982, %v8982
      %v8987 = vsel %vm468, %v8977, 0
      %v8990 = vsel %vm472, %v8983, 0
      %v8993 = vsel %vm472, %v8984, 0
      %v8996 = vsel %vm472, %v8985, 0
      %8998 = vmatprep.subr.bf16.mxu0 %v8993
      %8999 = vmatpush1.bf16.msra.mxu0 %v8990
      %9000 = vmatprep.subr.bf16.mxu0 0
      %9001 = vmatpush1.bf16.msra.mxu0 0
      %9002 = vmatprep.subr.bf16.mxu0 0
      %9003 = vmatpush1.bf16.msra.mxu0 0
      %9004 = vmatprep.subr.bf16.mxu0 0
      %9005 = vmatpush1.bf16.msra.mxu0 0
      %9006 = vmatprep.subr.bf16.mxu0 0
      %9007 = vmatpush1.bf16.msra.mxu0 0
      %9008 = vmatprep.subr.bf16.mxu0 0
      %9009 = vmatpush1.bf16.msra.mxu0 0
      %9010 = vmatprep.subr.bf16.mxu0 0
      %9011 = vmatpush1.bf16.msra.mxu0 0
      %9012 = vmatprep.subr.bf16.mxu0 0
      %9013 = vmatpush1.bf16.msra.mxu0 0
      %9014 = vmatprep.subr.bf16.mxu0 0
      %9015 = vmatpush1.bf16.msra.mxu0 0
      %9016 = vmatprep.subr.bf16.mxu0 0
      %9017 = vmatpush1.bf16.msra.mxu0 0
      %9018 = vmatprep.subr.bf16.mxu0 0
      %9019 = vmatpush1.bf16.msra.mxu0 0
      %9020 = vmatprep.subr.bf16.mxu0 0
      %9021 = vmatpush1.bf16.msra.mxu0 0
      %9022 = vmatprep.subr.bf16.mxu0 0
      %9023 = vmatpush1.bf16.msra.mxu0 0
      %9024 = vmatprep.subr.bf16.mxu0 0
      %9025 = vmatpush1.bf16.msra.mxu0 0
      %9026 = vmatprep.subr.bf16.mxu0 0
      %9027 = vmatpush1.bf16.msra.mxu0 0
      %9028 = vmatprep.subr.bf16.mxu0 0
      %9029 = vmatpush1.bf16.msra.mxu0 0
      %9030 = vmatprep.mubr.bf16.mxu0 0
      %9031 = vmatmul.mubr.bf16.gmra.mrb[0].mxu0 %v8987
      %v9032 = vpop.f32.mrb[0].mxu0
      %v9033 = vadd.f32 0.0, %v9032
      %v9034 = vpop.f32.mrb[0].mxu0
      %v9035 = vadd.f32 0.0, %v9034
      %v9036 = vpop.f32.mrb[0].mxu0
      %v9037 = vadd.f32 0.0, %v9036
      %v9038 = vpop.f32.mrb[0].mxu0
      %v9039 = vadd.f32 0.0, %v9038
      %9040 = vdwg.mxu0
      %9041 = vmatprep.subr.bf16.mxu0 0
      %9042 = vmatpush1.bf16.msra.mxu0 %v8996
      %9043 = vmatprep.subr.bf16.mxu0 0
      %9044 = vmatpush1.bf16.msra.mxu0 0
      %9045 = vmatprep.subr.bf16.mxu0 0
      %9046 = vmatpush1.bf16.msra.mxu0 0
      %9047 = vmatprep.subr.bf16.mxu0 0
      %9048 = vmatpush1.bf16.msra.mxu0 0
      %9049 = vmatprep.subr.bf16.mxu0 0
      %9050 = vmatpush1.bf16.msra.mxu0 0
      %9051 = vmatprep.subr.bf16.mxu0 0
      %9052 = vmatpush1.bf16.msra.mxu0 0
      %9053 = vmatprep.subr.bf16.mxu0 0
      %9054 = vmatpush1.bf16.msra.mxu0 0
      %9055 = vmatprep.subr.bf16.mxu0 0
      %9056 = vmatpush1.bf16.msra.mxu0 0
      %9057 = vmatprep.subr.bf16.mxu0 0
      %9058 = vmatpush1.bf16.msra.mxu0 0
      %9059 = vmatprep.subr.bf16.mxu0 0
      %9060 = vmatpush1.bf16.msra.mxu0 0
      %9061 = vmatprep.subr.bf16.mxu0 0
      %9062 = vmatpush1.bf16.msra.mxu0 0
      %9063 = vmatprep.subr.bf16.mxu0 0
      %9064 = vmatpush1.bf16.msra.mxu0 0
      %9065 = vmatprep.subr.bf16.mxu0 0
      %9066 = vmatpush1.bf16.msra.mxu0 0
      %9067 = vmatprep.subr.bf16.mxu0 0
      %9068 = vmatpush1.bf16.msra.mxu0 0
      %9069 = vmatprep.subr.bf16.mxu0 0
      %9070 = vmatpush1.bf16.msra.mxu0 0
      %9071 = vmatprep.subr.bf16.mxu0 0
      %9072 = vmatpush1.bf16.msra.mxu0 0
      %9073 = vmatprep.mubr.bf16.mxu0 0
      %9074 = vmatmul.mubr.bf16.gmra.mrb[0].mxu0 %v8987
      %v9075 = vpop.f32.mrb[0].mxu0
      %v9076 = vadd.f32 0.0, %v9075
      %v9077 = vpop.f32.mrb[0].mxu0
      %v9078 = vpop.f32.mrb[0].mxu0
      %v9079 = vadd.f32 0.0, %v9078
      %v9080 = vpop.f32.mrb[0].mxu0
      %9081 = vdwg.mxu0
      %v9082 = vadd.f32 %v8962, %v9033
      %v9083 = vadd.f32 %v8963, %v9035
      %v9084 = vadd.f32 %v8964, %v9076
      %v9085 = vadd.f32 %v8965, %v9037
      %v9086 = vadd.f32 %v8966, %v9039
      %v9087 = vadd.f32 %v8967, %v9079
      %s9088 = scalar_lea.vmem %s4, 168
      %v9089 = vld [vmem:[%s9088] sm:$0xf]
      %v9090 = vld [vmem:[%s9088 + $0x4] sm:$0xf]
      %v9091 = vld [vmem:[#allocation4 + $0x10] sm:$0xff]
      %v9092 = vld [vmem:[#allocation4 + $0x18] sm:$0xff]
      %v9095 = vunpack.c.l.b16 %v9089
      %v9096 = vunpack.c.l.b16 %v9090
      %v9097 = vpack.c.b16 %v9096, %v9095
      %v9100 = vunpack.c.l.b16 %v9091
      %v9101 = vunpack.c.h.b16 %v9091
      %v9102 = vunpack.c.l.b16 %v9092
      %v9103 = vunpack.c.h.b16 %v9092
      %v9104 = vpack.c.b16 %v9100, %v9100
      %v9105 = vpack.c.b16 %v9101, %v9101
      %v9106 = vpack.c.b16 %v9102, %v9102
      %v9107 = vpack.c.b16 %v9103, %v9103
      %9108 = vrot.lane.b32.xlu0 %v9104, 124
      %v9109 = vpop.permute.xlu0 %9108
      %9110 = vrot.lane.b32.xlu0 %v9105, 124
      %v9111 = vpop.permute.xlu0 %9110
      %9112 = vrot.lane.b32.xlu0 %v9106, 124
      %v9113 = vpop.permute.xlu0 %9112
      %9114 = vrot.lane.b32.xlu0 %v9107, 124
      %v9115 = vpop.permute.xlu0 %9114
      %v9116 = vsel %vm1328, %v9109, %v9111
      %v9117 = vsel %vm1328, %v9111, %v9113
      %v9118 = vsel %vm1328, %v9113, %v9115
      %v9120 = vsel %vm468, %v9097, 0
      %v9123 = vsel %vm472, %v9116, 0
      %v9126 = vsel %vm472, %v9117, 0
      %v9129 = vsel %vm472, %v9118, 0
      %9131 = vmatprep.subr.bf16.mxu0 %v9126
      %9132 = vmatpush1.bf16.msra.mxu0 %v9123
      %9133 = vmatprep.subr.bf16.mxu0 0
      %9134 = vmatpush1.bf16.msra.mxu0 0
      %9135 = vmatprep.subr.bf16.mxu0 0
      %9136 = vmatpush1.bf16.msra.mxu0 0
      %9137 = vmatprep.subr.bf16.mxu0 0
      %9138 = vmatpush1.bf16.msra.mxu0 0
      %9139 = vmatprep.subr.bf16.mxu0 0
      %9140 = vmatpush1.bf16.msra.mxu0 0
      %9141 = vmatprep.subr.bf16.mxu0 0
      %9142 = vmatpush1.bf16.msra.mxu0 0
      %9143 = vmatprep.subr.bf16.mxu0 0
      %9144 = vmatpush1.bf16.msra.mxu0 0
      %9145 = vmatprep.subr.bf16.mxu0 0
      %9146 = vmatpush1.bf16.msra.mxu0 0
      %9147 = vmatprep.subr.bf16.mxu0 0
      %9148 = vmatpush1.bf16.msra.mxu0 0
      %9149 = vmatprep.subr.bf16.mxu0 0
      %9150 = vmatpush1.bf16.msra.mxu0 0
      %9151 = vmatprep.subr.bf16.mxu0 0
      %9152 = vmatpush1.bf16.msra.mxu0 0
      %9153 = vmatprep.subr.bf16.mxu0 0
      %9154 = vmatpush1.bf16.msra.mxu0 0
      %9155 = vmatprep.subr.bf16.mxu0 0
      %9156 = vmatpush1.bf16.msra.mxu0 0
      %9157 = vmatprep.subr.bf16.mxu0 0
      %9158 = vmatpush1.bf16.msra.mxu0 0
      %9159 = vmatprep.subr.bf16.mxu0 0
      %9160 = vmatpush1.bf16.msra.mxu0 0
      %9161 = vmatprep.subr.bf16.mxu0 0
      %9162 = vmatpush1.bf16.msra.mxu0 0
      %9163 = vmatprep.mubr.bf16.mxu0 0
      %9164 = vmatmul.mubr.bf16.gmra.mrb[0].mxu0 %v9120
      %v9165 = vpop.f32.mrb[0].mxu0
      %v9166 = vadd.f32 0.0, %v9165
      %v9167 = vpop.f32.mrb[0].mxu0
      %v9168 = vadd.f32 0.0, %v9167
      %v9169 = vpop.f32.mrb[0].mxu0
      %v9170 = vadd.f32 0.0, %v9169
      %v9171 = vpop.f32.mrb[0].mxu0
      %v9172 = vadd.f32 0.0, %v9171
      %9173 = vdwg.mxu0
      %9174 = vmatprep.subr.bf16.mxu0 0
      %9175 = vmatpush1.bf16.msra.mxu0 %v9129
      %9176 = vmatprep.subr.bf16.mxu0 0
      %9177 = vmatpush1.bf16.msra.mxu0 0
      %9178 = vmatprep.subr.bf16.mxu0 0
      %9179 = vmatpush1.bf16.msra.mxu0 0
      %9180 = vmatprep.subr.bf16.mxu0 0
      %9181 = vmatpush1.bf16.msra.mxu0 0
      %9182 = vmatprep.subr.bf16.mxu0 0
      %9183 = vmatpush1.bf16.msra.mxu0 0
      %9184 = vmatprep.subr.bf16.mxu0 0
      %9185 = vmatpush1.bf16.msra.mxu0 0
      %9186 = vmatprep.subr.bf16.mxu0 0
      %9187 = vmatpush1.bf16.msra.mxu0 0
      %9188 = vmatprep.subr.bf16.mxu0 0
      %9189 = vmatpush1.bf16.msra.mxu0 0
      %9190 = vmatprep.subr.bf16.mxu0 0
      %9191 = vmatpush1.bf16.msra.mxu0 0
      %9192 = vmatprep.subr.bf16.mxu0 0
      %9193 = vmatpush1.bf16.msra.mxu0 0
      %9194 = vmatprep.subr.bf16.mxu0 0
      %9195 = vmatpush1.bf16.msra.mxu0 0
      %9196 = vmatprep.subr.bf16.mxu0 0
      %9197 = vmatpush1.bf16.msra.mxu0 0
      %9198 = vmatprep.subr.bf16.mxu0 0
      %9199 = vmatpush1.bf16.msra.mxu0 0
      %9200 = vmatprep.subr.bf16.mxu0 0
      %9201 = vmatpush1.bf16.msra.mxu0 0
      %9202 = vmatprep.subr.bf16.mxu0 0
      %9203 = vmatpush1.bf16.msra.mxu0 0
      %9204 = vmatprep.subr.bf16.mxu0 0
      %9205 = vmatpush1.bf16.msra.mxu0 0
      %9206 = vmatprep.mubr.bf16.mxu0 0
      %9207 = vmatmul.mubr.bf16.gmra.mrb[0].mxu0 %v9120
      %v9208 = vpop.f32.mrb[0].mxu0
      %v9209 = vadd.f32 0.0, %v9208
      %v9210 = vpop.f32.mrb[0].mxu0
      %v9211 = vpop.f32.mrb[0].mxu0
      %v9212 = vadd.f32 0.0, %v9211
      %v9213 = vpop.f32.mrb[0].mxu0
      %9214 = vdwg.mxu0
      %v9215 = vadd.f32 %v9082, %v9166
      %v9216 = vadd.f32 %v9083, %v9168
      %v9217 = vadd.f32 %v9084, %v9209
      %v9218 = vadd.f32 %v9085, %v9170
      %v9219 = vadd.f32 %v9086, %v9172
      %v9220 = vadd.f32 %v9087, %v9212
      %s9221 = scalar_lea.vmem %s4, 176
      %v9222 = vld [vmem:[%s9221] sm:$0xf]
      %v9223 = vld [vmem:[%s9221 + $0x4] sm:$0xf]
      %v9226 = vunpack.c.l.b16 %v9222
      %v9227 = vunpack.c.l.b16 %v9223
      %v9228 = vpack.c.b16 %v9227, %v9226
      %9229 = vrot.lane.b32.xlu0 %v9104, 120
      %v9230 = vpop.permute.xlu0 %9229
      %9231 = vrot.lane.b32.xlu0 %v9105, 120
      %v9232 = vpop.permute.xlu0 %9231
      %9233 = vrot.lane.b32.xlu0 %v9106, 120
      %v9234 = vpop.permute.xlu0 %9233
      %9235 = vrot.lane.b32.xlu0 %v9107, 120
      %v9236 = vpop.permute.xlu0 %9235
      %v9237 = vsel %vm6770, %v9230, %v9232
      %v9238 = vsel %vm6770, %v9232, %v9234
      %v9239 = vsel %vm6770, %v9234, %v9236
      %v9241 = vsel %vm468, %v9228, 0
      %v9244 = vsel %vm472, %v9237, 0
      %v9247 = vsel %vm472, %v9238, 0
      %v9250 = vsel %vm472, %v9239, 0
      %9252 = vmatprep.subr.bf16.mxu0 %v9247
      %9253 = vmatpush1.bf16.msra.mxu0 %v9244
      %9254 = vmatprep.subr.bf16.mxu0 0
      %9255 = vmatpush1.bf16.msra.mxu0 0
      %9256 = vmatprep.subr.bf16.mxu0 0
      %9257 = vmatpush1.bf16.msra.mxu0 0
      %9258 = vmatprep.subr.bf16.mxu0 0
      %9259 = vmatpush1.bf16.msra.mxu0 0
      %9260 = vmatprep.subr.bf16.mxu0 0
      %9261 = vmatpush1.bf16.msra.mxu0 0
      %9262 = vmatprep.subr.bf16.mxu0 0
      %9263 = vmatpush1.bf16.msra.mxu0 0
      %9264 = vmatprep.subr.bf16.mxu0 0
      %9265 = vmatpush1.bf16.msra.mxu0 0
      %9266 = vmatprep.subr.bf16.mxu0 0
      %9267 = vmatpush1.bf16.msra.mxu0 0
      %9268 = vmatprep.subr.bf16.mxu0 0
      %9269 = vmatpush1.bf16.msra.mxu0 0
      %9270 = vmatprep.subr.bf16.mxu0 0
      %9271 = vmatpush1.bf16.msra.mxu0 0
      %9272 = vmatprep.subr.bf16.mxu0 0
      %9273 = vmatpush1.bf16.msra.mxu0 0
      %9274 = vmatprep.subr.bf16.mxu0 0
      %9275 = vmatpush1.bf16.msra.mxu0 0
      %9276 = vmatprep.subr.bf16.mxu0 0
      %9277 = vmatpush1.bf16.msra.mxu0 0
      %9278 = vmatprep.subr.bf16.mxu0 0
      %9279 = vmatpush1.bf16.msra.mxu0 0
      %9280 = vmatprep.subr.bf16.mxu0 0
      %9281 = vmatpush1.bf16.msra.mxu0 0
      %9282 = vmatprep.subr.bf16.mxu0 0
      %9283 = vmatpush1.bf16.msra.mxu0 0
      %9284 = vmatprep.mubr.bf16.mxu0 0
      %9285 = vmatmul.mubr.bf16.gmra.mrb[0].mxu0 %v9241
      %v9286 = vpop.f32.mrb[0].mxu0
      %v9287 = vadd.f32 0.0, %v9286
      %v9288 = vpop.f32.mrb[0].mxu0
      %v9289 = vadd.f32 0.0, %v9288
      %v9290 = vpop.f32.mrb[0].mxu0
      %v9291 = vadd.f32 0.0, %v9290
      %v9292 = vpop.f32.mrb[0].mxu0
      %v9293 = vadd.f32 0.0, %v9292
      %9294 = vdwg.mxu0
      %9295 = vmatprep.subr.bf16.mxu0 0
      %9296 = vmatpush1.bf16.msra.mxu0 %v9250
      %9297 = vmatprep.subr.bf16.mxu0 0
      %9298 = vmatpush1.bf16.msra.mxu0 0
      %9299 = vmatprep.subr.bf16.mxu0 0
      %9300 = vmatpush1.bf16.msra.mxu0 0
      %9301 = vmatprep.subr.bf16.mxu0 0
      %9302 = vmatpush1.bf16.msra.mxu0 0
      %9303 = vmatprep.subr.bf16.mxu0 0
      %9304 = vmatpush1.bf16.msra.mxu0 0
      %9305 = vmatprep.subr.bf16.mxu0 0
      %9306 = vmatpush1.bf16.msra.mxu0 0
      %9307 = vmatprep.subr.bf16.mxu0 0
      %9308 = vmatpush1.bf16.msra.mxu0 0
      %9309 = vmatprep.subr.bf16.mxu0 0
      %9310 = vmatpush1.bf16.msra.mxu0 0
      %9311 = vmatprep.subr.bf16.mxu0 0
      %9312 = vmatpush1.bf16.msra.mxu0 0
      %9313 = vmatprep.subr.bf16.mxu0 0
      %9314 = vmatpush1.bf16.msra.mxu0 0
      %9315 = vmatprep.subr.bf16.mxu0 0
      %9316 = vmatpush1.bf16.msra.mxu0 0
      %9317 = vmatprep.subr.bf16.mxu0 0
      %9318 = vmatpush1.bf16.msra.mxu0 0
      %9319 = vmatprep.subr.bf16.mxu0 0
      %9320 = vmatpush1.bf16.msra.mxu0 0
      %9321 = vmatprep.subr.bf16.mxu0 0
      %9322 = vmatpush1.bf16.msra.mxu0 0
      %9323 = vmatprep.subr.bf16.mxu0 0
      %9324 = vmatpush1.bf16.msra.mxu0 0
      %9325 = vmatprep.subr.bf16.mxu0 0
      %9326 = vmatpush1.bf16.msra.mxu0 0
      %9327 = vmatprep.mubr.bf16.mxu0 0
      %9328 = vmatmul.mubr.bf16.gmra.mrb[0].mxu0 %v9241
      %v9329 = vpop.f32.mrb[0].mxu0
      %v9330 = vadd.f32 0.0, %v9329
      %v9331 = vpop.f32.mrb[0].mxu0
      %v9332 = vpop.f32.mrb[0].mxu0
      %v9333 = vadd.f32 0.0, %v9332
      %v9334 = vpop.f32.mrb[0].mxu0
      %9335 = vdwg.mxu0
      %v9336 = vadd.f32 %v9215, %v9287
      %v9337 = vadd.f32 %v9216, %v9289
      %v9338 = vadd.f32 %v9217, %v9330
      %v9339 = vadd.f32 %v9218, %v9291
      %v9340 = vadd.f32 %v9219, %v9293
      %v9341 = vadd.f32 %v9220, %v9333
      %s9342 = scalar_lea.vmem %s4, 184
      %v9343 = vld [vmem:[%s9342] sm:$0xf]
      %v9344 = vld [vmem:[%s9342 + $0x4] sm:$0xf]
      %v9347 = vunpack.c.l.b16 %v9343
      %v9348 = vunpack.c.l.b16 %v9344
      %v9349 = vpack.c.b16 %v9348, %v9347
      %9350 = vrot.lane.b32.xlu0 %v9104, 116
      %v9351 = vpop.permute.xlu0 %9350
      %9352 = vrot.lane.b32.xlu0 %v9105, 116
      %v9353 = vpop.permute.xlu0 %9352
      %9354 = vrot.lane.b32.xlu0 %v9106, 116
      %v9355 = vpop.permute.xlu0 %9354
      %9356 = vrot.lane.b32.xlu0 %v9107, 116
      %v9357 = vpop.permute.xlu0 %9356
      %v9358 = vsel %vm6892, %v9351, %v9353
      %v9359 = vsel %vm6892, %v9353, %v9355
      %v9360 = vsel %vm6892, %v9355, %v9357
      %v9362 = vsel %vm468, %v9349, 0
      %v9365 = vsel %vm472, %v9358, 0
      %v9368 = vsel %vm472, %v9359, 0
      %v9371 = vsel %vm472, %v9360, 0
      %9373 = vmatprep.subr.bf16.mxu0 %v9368
      %9374 = vmatpush1.bf16.msra.mxu0 %v9365
      %9375 = vmatprep.subr.bf16.mxu0 0
      %9376 = vmatpush1.bf16.msra.mxu0 0
      %9377 = vmatprep.subr.bf16.mxu0 0
      %9378 = vmatpush1.bf16.msra.mxu0 0
      %9379 = vmatprep.subr.bf16.mxu0 0
      %9380 = vmatpush1.bf16.msra.mxu0 0
      %9381 = vmatprep.subr.bf16.mxu0 0
      %9382 = vmatpush1.bf16.msra.mxu0 0
      %9383 = vmatprep.subr.bf16.mxu0 0
      %9384 = vmatpush1.bf16.msra.mxu0 0
      %9385 = vmatprep.subr.bf16.mxu0 0
      %9386 = vmatpush1.bf16.msra.mxu0 0
      %9387 = vmatprep.subr.bf16.mxu0 0
      %9388 = vmatpush1.bf16.msra.mxu0 0
      %9389 = vmatprep.subr.bf16.mxu0 0
      %9390 = vmatpush1.bf16.msra.mxu0 0
      %9391 = vmatprep.subr.bf16.mxu0 0
      %9392 = vmatpush1.bf16.msra.mxu0 0
      %9393 = vmatprep.subr.bf16.mxu0 0
      %9394 = vmatpush1.bf16.msra.mxu0 0
      %9395 = vmatprep.subr.bf16.mxu0 0
      %9396 = vmatpush1.bf16.msra.mxu0 0
      %9397 = vmatprep.subr.bf16.mxu0 0
      %9398 = vmatpush1.bf16.msra.mxu0 0
      %9399 = vmatprep.subr.bf16.mxu0 0
      %9400 = vmatpush1.bf16.msra.mxu0 0
      %9401 = vmatprep.subr.bf16.mxu0 0
      %9402 = vmatpush1.bf16.msra.mxu0 0
      %9403 = vmatprep.subr.bf16.mxu0 0
      %9404 = vmatpush1.bf16.msra.mxu0 0
      %9405 = vmatprep.mubr.bf16.mxu0 0
      %9406 = vmatmul.mubr.bf16.gmra.mrb[0].mxu0 %v9362
      %v9407 = vpop.f32.mrb[0].mxu0
      %v9408 = vadd.f32 0.0, %v9407
      %v9409 = vpop.f32.mrb[0].mxu0
      %v9410 = vadd.f32 0.0, %v9409
      %v9411 = vpop.f32.mrb[0].mxu0
      %v9412 = vadd.f32 0.0, %v9411
      %v9413 = vpop.f32.mrb[0].mxu0
      %v9414 = vadd.f32 0.0, %v9413
      %9415 = vdwg.mxu0
      %9416 = vmatprep.subr.bf16.mxu0 0
      %9417 = vmatpush1.bf16.msra.mxu0 %v9371
      %9418 = vmatprep.subr.bf16.mxu0 0
      %9419 = vmatpush1.bf16.msra.mxu0 0
      %9420 = vmatprep.subr.bf16.mxu0 0
      %9421 = vmatpush1.bf16.msra.mxu0 0
      %9422 = vmatprep.subr.bf16.mxu0 0
      %9423 = vmatpush1.bf16.msra.mxu0 0
      %9424 = vmatprep.subr.bf16.mxu0 0
      %9425 = vmatpush1.bf16.msra.mxu0 0
      %9426 = vmatprep.subr.bf16.mxu0 0
      %9427 = vmatpush1.bf16.msra.mxu0 0
      %9428 = vmatprep.subr.bf16.mxu0 0
      %9429 = vmatpush1.bf16.msra.mxu0 0
      %9430 = vmatprep.subr.bf16.mxu0 0
      %9431 = vmatpush1.bf16.msra.mxu0 0
      %9432 = vmatprep.subr.bf16.mxu0 0
      %9433 = vmatpush1.bf16.msra.mxu0 0
      %9434 = vmatprep.subr.bf16.mxu0 0
      %9435 = vmatpush1.bf16.msra.mxu0 0
      %9436 = vmatprep.subr.bf16.mxu0 0
      %9437 = vmatpush1.bf16.msra.mxu0 0
      %9438 = vmatprep.subr.bf16.mxu0 0
      %9439 = vmatpush1.bf16.msra.mxu0 0
      %9440 = vmatprep.subr.bf16.mxu0 0
      %9441 = vmatpush1.bf16.msra.mxu0 0
      %9442 = vmatprep.subr.bf16.mxu0 0
      %9443 = vmatpush1.bf16.msra.mxu0 0
      %9444 = vmatprep.subr.bf16.mxu0 0
      %9445 = vmatpush1.bf16.msra.mxu0 0
      %9446 = vmatprep.subr.bf16.mxu0 0
      %9447 = vmatpush1.bf16.msra.mxu0 0
      %9448 = vmatprep.mubr.bf16.mxu0 0
      %9449 = vmatmul.mubr.bf16.gmra.mrb[0].mxu0 %v9362
      %v9450 = vpop.f32.mrb[0].mxu0
      %v9451 = vadd.f32 0.0, %v9450
      %v9452 = vpop.f32.mrb[0].mxu0
      %v9453 = vpop.f32.mrb[0].mxu0
      %v9454 = vadd.f32 0.0, %v9453
      %v9455 = vpop.f32.mrb[0].mxu0
      %9456 = vdwg.mxu0
      %v9457 = vadd.f32 %v9336, %v9408
      %v9458 = vadd.f32 %v9337, %v9410
      %v9459 = vadd.f32 %v9338, %v9451
      %v9460 = vadd.f32 %v9339, %v9412
      %v9461 = vadd.f32 %v9340, %v9414
      %v9462 = vadd.f32 %v9341, %v9454
      %s9463 = scalar_lea.vmem %s4, 192
      %v9464 = vld [vmem:[%s9463] sm:$0xf]
      %v9465 = vld [vmem:[%s9463 + $0x4] sm:$0xf]
      %v9468 = vunpack.c.l.b16 %v9464
      %v9469 = vunpack.c.l.b16 %v9465
      %v9470 = vpack.c.b16 %v9469, %v9468
      %9471 = vrot.lane.b32.xlu0 %v9104, 112
      %v9472 = vpop.permute.xlu0 %9471
      %9473 = vrot.lane.b32.xlu0 %v9105, 112
      %v9474 = vpop.permute.xlu0 %9473
      %9475 = vrot.lane.b32.xlu0 %v9106, 112
      %v9476 = vpop.permute.xlu0 %9475
      %9477 = vrot.lane.b32.xlu0 %v9107, 112
      %v9478 = vpop.permute.xlu0 %9477
      %v9479 = vsel %vm7014, %v9472, %v9474
      %v9480 = vsel %vm7014, %v9474, %v9476
      %v9481 = vsel %vm7014, %v9476, %v9478
      %v9483 = vsel %vm468, %v9470, 0
      %v9486 = vsel %vm472, %v9479, 0
      %v9489 = vsel %vm472, %v9480, 0
      %v9492 = vsel %vm472, %v9481, 0
      %9494 = vmatprep.subr.bf16.mxu0 %v9489
      %9495 = vmatpush1.bf16.msra.mxu0 %v9486
      %9496 = vmatprep.subr.bf16.mxu0 0
      %9497 = vmatpush1.bf16.msra.mxu0 0
      %9498 = vmatprep.subr.bf16.mxu0 0
      %9499 = vmatpush1.bf16.msra.mxu0 0
      %9500 = vmatprep.subr.bf16.mxu0 0
      %9501 = vmatpush1.bf16.msra.mxu0 0
      %9502 = vmatprep.subr.bf16.mxu0 0
      %9503 = vmatpush1.bf16.msra.mxu0 0
      %9504 = vmatprep.subr.bf16.mxu0 0
      %9505 = vmatpush1.bf16.msra.mxu0 0
      %9506 = vmatprep.subr.bf16.mxu0 0
      %9507 = vmatpush1.bf16.msra.mxu0 0
      %9508 = vmatprep.subr.bf16.mxu0 0
      %9509 = vmatpush1.bf16.msra.mxu0 0
      %9510 = vmatprep.subr.bf16.mxu0 0
      %9511 = vmatpush1.bf16.msra.mxu0 0
      %9512 = vmatprep.subr.bf16.mxu0 0
      %9513 = vmatpush1.bf16.msra.mxu0 0
      %9514 = vmatprep.subr.bf16.mxu0 0
      %9515 = vmatpush1.bf16.msra.mxu0 0
      %9516 = vmatprep.subr.bf16.mxu0 0
      %9517 = vmatpush1.bf16.msra.mxu0 0
      %9518 = vmatprep.subr.bf16.mxu0 0
      %9519 = vmatpush1.bf16.msra.mxu0 0
      %9520 = vmatprep.subr.bf16.mxu0 0
      %9521 = vmatpush1.bf16.msra.mxu0 0
      %9522 = vmatprep.subr.bf16.mxu0 0
      %9523 = vmatpush1.bf16.msra.mxu0 0
      %9524 = vmatprep.subr.bf16.mxu0 0
      %9525 = vmatpush1.bf16.msra.mxu0 0
      %9526 = vmatprep.mubr.bf16.mxu0 0
      %9527 = vmatmul.mubr.bf16.gmra.mrb[0].mxu0 %v9483
      %v9528 = vpop.f32.mrb[0].mxu0
      %v9529 = vadd.f32 0.0, %v9528
      %v9530 = vpop.f32.mrb[0].mxu0
      %v9531 = vadd.f32 0.0, %v9530
      %v9532 = vpop.f32.mrb[0].mxu0
      %v9533 = vadd.f32 0.0, %v9532
      %v9534 = vpop.f32.mrb[0].mxu0
      %v9535 = vadd.f32 0.0, %v9534
      %9536 = vdwg.mxu0
      %9537 = vmatprep.subr.bf16.mxu0 0
      %9538 = vmatpush1.bf16.msra.mxu0 %v9492
      %9539 = vmatprep.subr.bf16.mxu0 0
      %9540 = vmatpush1.bf16.msra.mxu0 0
      %9541 = vmatprep.subr.bf16.mxu0 0
      %9542 = vmatpush1.bf16.msra.mxu0 0
      %9543 = vmatprep.subr.bf16.mxu0 0
      %9544 = vmatpush1.bf16.msra.mxu0 0
      %9545 = vmatprep.subr.bf16.mxu0 0
      %9546 = vmatpush1.bf16.msra.mxu0 0
      %9547 = vmatprep.subr.bf16.mxu0 0
      %9548 = vmatpush1.bf16.msra.mxu0 0
      %9549 = vmatprep.subr.bf16.mxu0 0
      %9550 = vmatpush1.bf16.msra.mxu0 0
      %9551 = vmatprep.subr.bf16.mxu0 0
      %9552 = vmatpush1.bf16.msra.mxu0 0
      %9553 = vmatprep.subr.bf16.mxu0 0
      %9554 = vmatpush1.bf16.msra.mxu0 0
      %9555 = vmatprep.subr.bf16.mxu0 0
      %9556 = vmatpush1.bf16.msra.mxu0 0
      %9557 = vmatprep.subr.bf16.mxu0 0
      %9558 = vmatpush1.bf16.msra.mxu0 0
      %9559 = vmatprep.subr.bf16.mxu0 0
      %9560 = vmatpush1.bf16.msra.mxu0 0
      %9561 = vmatprep.subr.bf16.mxu0 0
      %9562 = vmatpush1.bf16.msra.mxu0 0
      %9563 = vmatprep.subr.bf16.mxu0 0
      %9564 = vmatpush1.bf16.msra.mxu0 0
      %9565 = vmatprep.subr.bf16.mxu0 0
      %9566 = vmatpush1.bf16.msra.mxu0 0
      %9567 = vmatprep.subr.bf16.mxu0 0
      %9568 = vmatpush1.bf16.msra.mxu0 0
      %9569 = vmatprep.mubr.bf16.mxu0 0
      %9570 = vmatmul.mubr.bf16.gmra.mrb[0].mxu0 %v9483
      %v9571 = vpop.f32.mrb[0].mxu0
      %v9572 = vadd.f32 0.0, %v9571
      %v9573 = vpop.f32.mrb[0].mxu0
      %v9574 = vpop.f32.mrb[0].mxu0
      %v9575 = vadd.f32 0.0, %v9574
      %v9576 = vpop.f32.mrb[0].mxu0
      %9577 = vdwg.mxu0
      %v9578 = vadd.f32 %v9457, %v9529
      %v9579 = vadd.f32 %v9458, %v9531
      %v9580 = vadd.f32 %v9459, %v9572
      %v9581 = vadd.f32 %v9460, %v9533
      %v9582 = vadd.f32 %v9461, %v9535
      %v9583 = vadd.f32 %v9462, %v9575
      %v9584 = vld [vmem:[%s5] sm:$0xff]
      %v9585 = vld [vmem:[%s5 + $0x8] sm:$0xff]
      %9587 = vset.pattern.permute.xlu0 0
      %9588 = vperm.xlu0 %9587, %v9584
      %v9589 = vpop.permute.xlu0 %9588
      %9592 = vset.pattern.permute.xlu0 0
      %9593 = vperm.xlu0 %9592, %v9585
      %v9594 = vpop.permute.xlu0 %9593
      %v9596 = vmul.f32 %v9578, %v9589
      %v9597 = vmul.f32 %v9579, %v9589
      %v9598 = vmul.f32 %v9580, %v9589
      %v9599 = vmul.f32 %v9581, %v9594
      %v9600 = vmul.f32 %v9582, %v9594
      %v9601 = vmul.f32 %v9583, %v9594
      %v9602 = vld [vmem:[%s6] sm:$0xff]
      %v9603 = vld [vmem:[%s6 + $0x8] sm:$0xff]
      %9605 = vset.pattern.permute.xlu0 0
      %9606 = vperm.xlu0 %9605, %v9602
      %v9607 = vpop.permute.xlu0 %9606
      %9610 = vset.pattern.permute.xlu0 0
      %9611 = vperm.xlu0 %9610, %v9603
      %v9612 = vpop.permute.xlu0 %9611
      %v9614 = vadd.f32 %v9596, %v9607
      %v9615 = vadd.f32 %v9597, %v9607
      %v9616 = vadd.f32 %v9598, %v9607
      %v9617 = vadd.f32 %v9599, %v9612
      %v9618 = vadd.f32 %v9600, %v9612
      %v9619 = vadd.f32 %v9601, %v9612
      %v9620 = vmul.f32 %v9614, 2.0
      %v9621 = vmul.f32 %v9615, 2.0
      %v9622 = vmul.f32 %v9616, 2.0
      %v9623 = vmul.f32 %v9617, 2.0
      %v9624 = vmul.f32 %v9618, 2.0
      %v9625 = vmul.f32 %v9619, 2.0
      %v9626 = vround.ne.pseudo %v9620
      %v9627 = vround.ne.pseudo %v9621
      %v9628 = vround.ne.pseudo %v9622
      %v9629 = vround.ne.pseudo %v9623
      %v9630 = vround.ne.pseudo %v9624
      %v9631 = vround.ne.pseudo %v9625
      %v9632 = vmax.f32 %v9626, -2.0
      %v9633 = vmax.f32 %v9627, -2.0
      %v9634 = vmax.f32 %v9628, -2.0
      %v9635 = vmax.f32 %v9629, -2.0
      %v9636 = vmax.f32 %v9630, -2.0
      %v9637 = vmax.f32 %v9631, -2.0
      %v9638 = vmin.f32 %v9632, 1.0
      %v9639 = vmin.f32 %v9633, 1.0
      %v9640 = vmin.f32 %v9634, 1.0
      %v9641 = vmin.f32 %v9635, 1.0
      %v9642 = vmin.f32 %v9636, 1.0
      %v9643 = vmin.f32 %v9637, 1.0
      %v9644 = vmul.f32 %v9638, 0.5
      %v9645 = vmul.f32 %v9639, 0.5
      %v9646 = vmul.f32 %v9640, 0.5
      %v9647 = vmul.f32 %v9641, 0.5
      %v9648 = vmul.f32 %v9642, 0.5
      %v9649 = vmul.f32 %v9643, 0.5
      %v9650 = vpack.c.bf16 %v9647, %v9644
      %v9651 = vpack.c.bf16 %v9648, %v9645
      %v9652 = vpack.c.bf16 %v9649, %v9646
      %v9653 = vld [vmem:[%s7] sm:$0xf]
      %v9654 = vld [vmem:[%s7 + $0x4] sm:$0xf]
      %v9655 = vld [vmem:[%s7 + $0x8] sm:$0xf]
      %v9656 = vld [vmem:[%s7 + $0xc] sm:$0xf]
      %v9657 = vld [vmem:[%s7 + $0x10] sm:$0xf]
      %v9658 = vld [vmem:[%s7 + $0x14] sm:$0xf]
      %v9659 = vld [vmem:[%s7 + $0x18] sm:$0xf]
      %v9660 = vld [vmem:[%s7 + $0x1c] sm:$0xf]
      %v9661 = vld [vmem:[%s7 + $0x20] sm:$0xf]
      %v9662 = vld [vmem:[%s7 + $0x24] sm:$0xf]
      %v9663 = vld [vmem:[%s7 + $0x28] sm:$0xf]
      %v9664 = vld [vmem:[%s7 + $0x2c] sm:$0xf]
      %v9665 = vld [vmem:[%s7 + $0x30] sm:$0xf]
      %v9666 = vld [vmem:[%s7 + $0x34] sm:$0xf]
      %v9667 = vld [vmem:[%s7 + $0x38] sm:$0xf]
      %v9668 = vld [vmem:[%s7 + $0x3c] sm:$0xf]
      %v9669 = vld [vmem:[%s7 + $0x40] sm:$0xf]
      %v9670 = vld [vmem:[%s7 + $0x44] sm:$0xf]
      %v9671 = vld [vmem:[%s7 + $0x48] sm:$0xf]
      %v9672 = vld [vmem:[%s7 + $0x4c] sm:$0xf]
      %v9673 = vld [vmem:[%s7 + $0x50] sm:$0xf]
      %v9674 = vld [vmem:[%s7 + $0x54] sm:$0xf]
      %v9675 = vld [vmem:[%s7 + $0x58] sm:$0xf]
      %v9676 = vld [vmem:[%s7 + $0x5c] sm:$0xf]
      %v9677 = vld [vmem:[%s7 + $0x60] sm:$0xf]
      %v9678 = vld [vmem:[%s7 + $0x64] sm:$0xf]
      %v9679 = vld [vmem:[%s7 + $0x68] sm:$0xf]
      %v9680 = vld [vmem:[%s7 + $0x6c] sm:$0xf]
      %v9681 = vld [vmem:[%s7 + $0x70] sm:$0xf]
      %v9682 = vld [vmem:[%s7 + $0x74] sm:$0xf]
      %v9683 = vld [vmem:[%s7 + $0x78] sm:$0xf]
      %v9684 = vld [vmem:[%s7 + $0x7c] sm:$0xf]
      %v9685 = vld [vmem:[%s7 + $0x80] sm:$0xf]
      %v9686 = vld [vmem:[%s7 + $0x84] sm:$0xf]
      %v9687 = vld [vmem:[%s7 + $0x88] sm:$0xf]
      %v9688 = vld [vmem:[%s7 + $0x8c] sm:$0xf]
      %v9689 = vld [vmem:[%s7 + $0x90] sm:$0xf]
      %v9690 = vld [vmem:[%s7 + $0x94] sm:$0xf]
      %v9691 = vld [vmem:[%s7 + $0x98] sm:$0xf]
      %v9692 = vld [vmem:[%s7 + $0x9c] sm:$0xf]
      %v9693 = vld [vmem:[%s7 + $0xa0] sm:$0xf]
      %v9694 = vld [vmem:[%s7 + $0xa4] sm:$0xf]
      %v9695 = vld [vmem:[%s7 + $0xa8] sm:$0xf]
      %v9696 = vld [vmem:[%s7 + $0xac] sm:$0xf]
      %v9697 = vld [vmem:[%s7 + $0xb0] sm:$0xf]
      %v9698 = vld [vmem:[%s7 + $0xb4] sm:$0xf]
      %v9699 = vld [vmem:[%s7 + $0xb8] sm:$0xf]
      %v9700 = vld [vmem:[%s7 + $0xbc] sm:$0xf]
      %v9749 = vunpack.c.l.b16 %v9653
      %v9750 = vunpack.c.l.b16 %v9654
      %v9751 = vunpack.c.l.b16 %v9655
      %v9752 = vunpack.c.l.b16 %v9656
      %v9753 = vunpack.c.l.b16 %v9657
      %v9754 = vunpack.c.l.b16 %v9658
      %v9755 = vunpack.c.l.b16 %v9659
      %v9756 = vunpack.c.l.b16 %v9660
      %v9757 = vunpack.c.l.b16 %v9661
      %v9758 = vunpack.c.l.b16 %v9662
      %v9759 = vunpack.c.l.b16 %v9663
      %v9760 = vunpack.c.l.b16 %v9664
      %v9761 = vunpack.c.l.b16 %v9665
      %v9762 = vunpack.c.l.b16 %v9666
      %v9763 = vunpack.c.l.b16 %v9667
      %v9764 = vunpack.c.l.b16 %v9668
      %v9765 = vunpack.c.l.b16 %v9669
      %v9766 = vunpack.c.l.b16 %v9670
      %v9767 = vunpack.c.l.b16 %v9671
      %v9768 = vunpack.c.l.b16 %v9672
      %v9769 = vunpack.c.l.b16 %v9673
      %v9770 = vunpack.c.l.b16 %v9674
      %v9771 = vunpack.c.l.b16 %v9675
      %v9772 = vunpack.c.l.b16 %v9676
      %v9773 = vunpack.c.l.b16 %v9677
      %v9774 = vunpack.c.l.b16 %v9678
      %v9775 = vunpack.c.l.b16 %v9679
      %v9776 = vunpack.c.l.b16 %v9680
      %v9777 = vunpack.c.l.b16 %v9681
      %v9778 = vunpack.c.l.b16 %v9682
      %v9779 = vunpack.c.l.b16 %v9683
      %v9780 = vunpack.c.l.b16 %v9684
      %v9781 = vunpack.c.l.b16 %v9685
      %v9782 = vunpack.c.l.b16 %v9686
      %v9783 = vunpack.c.l.b16 %v9687
      %v9784 = vunpack.c.l.b16 %v9688
      %v9785 = vunpack.c.l.b16 %v9689
      %v9786 = vunpack.c.l.b16 %v9690
      %v9787 = vunpack.c.l.b16 %v9691
      %v9788 = vunpack.c.l.b16 %v9692
      %v9789 = vunpack.c.l.b16 %v9693
      %v9790 = vunpack.c.l.b16 %v9694
      %v9791 = vunpack.c.l.b16 %v9695
      %v9792 = vunpack.c.l.b16 %v9696
      %v9793 = vunpack.c.l.b16 %v9697
      %v9794 = vunpack.c.l.b16 %v9698
      %v9795 = vunpack.c.l.b16 %v9699
      %v9796 = vunpack.c.l.b16 %v9700
      %v9797 = vpack.c.b16 %v9750, %v9749
      %v9798 = vpack.c.b16 %v9752, %v9751
      %v9799 = vpack.c.b16 %v9754, %v9753
      %v9800 = vpack.c.b16 %v9756, %v9755
      %v9801 = vpack.c.b16 %v9758, %v9757
      %v9802 = vpack.c.b16 %v9760, %v9759
      %v9803 = vpack.c.b16 %v9762, %v9761
      %v9804 = vpack.c.b16 %v9764, %v9763
      %v9805 = vpack.c.b16 %v9766, %v9765
      %v9806 = vpack.c.b16 %v9768, %v9767
      %v9807 = vpack.c.b16 %v9770, %v9769
      %v9808 = vpack.c.b16 %v9772, %v9771
      %v9809 = vpack.c.b16 %v9774, %v9773
      %v9810 = vpack.c.b16 %v9776, %v9775
      %v9811 = vpack.c.b16 %v9778, %v9777
      %v9812 = vpack.c.b16 %v9780, %v9779
      %v9813 = vpack.c.b16 %v9782, %v9781
      %v9814 = vpack.c.b16 %v9784, %v9783
      %v9815 = vpack.c.b16 %v9786, %v9785
      %v9816 = vpack.c.b16 %v9788, %v9787
      %v9817 = vpack.c.b16 %v9790, %v9789
      %v9818 = vpack.c.b16 %v9792, %v9791
      %v9819 = vpack.c.b16 %v9794, %v9793
      %v9820 = vpack.c.b16 %v9796, %v9795
      %9845 = vmatprep.subr.bf16.mxu0 0
      %9846 = vmatpush1.bf16.msra.mxu0 %v9797
      %9847 = vmatprep.subr.bf16.mxu0 0
      %9848 = vmatpush1.bf16.msra.mxu0 %v9798
      %9849 = vmatprep.subr.bf16.mxu0 0
      %9850 = vmatpush1.bf16.msra.mxu0 %v9799
      %9851 = vmatprep.subr.bf16.mxu0 0
      %9852 = vmatpush1.bf16.msra.mxu0 %v9800
      %9853 = vmatprep.subr.bf16.mxu0 0
      %9854 = vmatpush1.bf16.msra.mxu0 %v9801
      %9855 = vmatprep.subr.bf16.mxu0 0
      %9856 = vmatpush1.bf16.msra.mxu0 %v9802
      %9857 = vmatprep.subr.bf16.mxu0 0
      %9858 = vmatpush1.bf16.msra.mxu0 %v9803
      %9859 = vmatprep.subr.bf16.mxu0 0
      %9860 = vmatpush1.bf16.msra.mxu0 %v9804
      %9861 = vmatprep.subr.bf16.mxu0 0
      %9862 = vmatpush1.bf16.msra.mxu0 %v9805
      %9863 = vmatprep.subr.bf16.mxu0 0
      %9864 = vmatpush1.bf16.msra.mxu0 %v9806
      %9865 = vmatprep.subr.bf16.mxu0 0
      %9866 = vmatpush1.bf16.msra.mxu0 %v9807
      %9867 = vmatprep.subr.bf16.mxu0 0
      %9868 = vmatpush1.bf16.msra.mxu0 %v9808
      %9869 = vmatprep.subr.bf16.mxu0 0
      %9870 = vmatpush1.bf16.msra.mxu0 %v9809
      %9871 = vmatprep.subr.bf16.mxu0 0
      %9872 = vmatpush1.bf16.msra.mxu0 %v9810
      %9873 = vmatprep.subr.bf16.mxu0 0
      %9874 = vmatpush1.bf16.msra.mxu0 %v9811
      %9875 = vmatprep.subr.bf16.mxu0 0
      %9876 = vmatpush1.bf16.msra.mxu0 %v9812
      %9877 = vmatprep.mubr.bf16.mxu0 %v9651
      %9878 = vmatmul.mubr.bf16.gmra.mrb[0].mxu0 %v9650
      %v9879 = vpop.f32.mrb[0].mxu0
      %v9880 = vadd.f32 0.0, %v9879
      %v9881 = vpop.f32.mrb[0].mxu0
      %v9882 = vpop.f32.mrb[0].mxu0
      %v9883 = vadd.f32 0.0, %v9882
      %v9884 = vpop.f32.mrb[0].mxu0
      %9885 = vdwg.mxu0
      %9886 = vmatprep.subr.bf16.mxu0 0
      %9887 = vmatpush1.bf16.msra.mxu0 %v9813
      %9888 = vmatprep.subr.bf16.mxu0 0
      %9889 = vmatpush1.bf16.msra.mxu0 %v9814
      %9890 = vmatprep.subr.bf16.mxu0 0
      %9891 = vmatpush1.bf16.msra.mxu0 %v9815
      %9892 = vmatprep.subr.bf16.mxu0 0
      %9893 = vmatpush1.bf16.msra.mxu0 %v9816
      %9894 = vmatprep.subr.bf16.mxu0 0
      %9895 = vmatpush1.bf16.msra.mxu0 %v9817
      %9896 = vmatprep.subr.bf16.mxu0 0
      %9897 = vmatpush1.bf16.msra.mxu0 %v9818
      %9898 = vmatprep.subr.bf16.mxu0 0
      %9899 = vmatpush1.bf16.msra.mxu0 %v9819
      %9900 = vmatprep.subr.bf16.mxu0 0
      %9901 = vmatpush1.bf16.msra.mxu0 %v9820
      %9902 = vmatprep.subr.bf16.mxu0 0
      %9903 = vmatpush1.bf16.msra.mxu0 0
      %9904 = vmatprep.subr.bf16.mxu0 0
      %9905 = vmatpush1.bf16.msra.mxu0 0
      %9906 = vmatprep.subr.bf16.mxu0 0
      %9907 = vmatpush1.bf16.msra.mxu0 0
      %9908 = vmatprep.subr.bf16.mxu0 0
      %9909 = vmatpush1.bf16.msra.mxu0 0
      %9910 = vmatprep.subr.bf16.mxu0 0
      %9911 = vmatpush1.bf16.msra.mxu0 0
      %9912 = vmatprep.subr.bf16.mxu0 0
      %9913 = vmatpush1.bf16.msra.mxu0 0
      %9914 = vmatprep.subr.bf16.mxu0 0
      %9915 = vmatpush1.bf16.msra.mxu0 0
      %9916 = vmatprep.subr.bf16.mxu0 0
      %9917 = vmatpush1.bf16.msra.mxu0 0
      %9918 = vmatprep.mubr.bf16.mxu0 0
      %9919 = vmatmul.mubr.bf16.gmra.mrb[0].mxu0 %v9652
      %v9920 = vpop.f32.mrb[0].mxu0
      %v9921 = vadd.f32 %v9880, %v9920
      %v9922 = vpop.f32.mrb[0].mxu0
      %v9923 = vpop.f32.mrb[0].mxu0
      %v9924 = vadd.f32 %v9883, %v9923
      %v9925 = vpop.f32.mrb[0].mxu0
      %9926 = vdwg.mxu0
      %v9927 = vpack.c.bf16 %v9924, %v9921
      %v9929 = vunpack.c.l.b16 %v9927
      %v9930 = vunpack.c.h.b16 %v9927
      %v9931 = vpack.c.b16 %v9929, %v9929
      %v9932 = vpack.c.b16 %v9930, %v9930
      %vm9935 = vcmask 68608
      %9936 = vst.msk [vmem:[%s305] sm:$0xf] %vm9935, %v9931
      %9937 = vst.msk [vmem:[%s305 + $0x4] sm:$0xf] %vm9935, %v9932
      %p9938 = scmp.lt.s32.totalorder %s19, 1
      %s9939 = scalar_select %p9938, %s19, 1
      %s9940 = smul.addr %s9939, 2
      %s9941 = smul.addr %s9940, 4
      %s9942 = scalar_lea.vmem %s8, %s9941
      // Predicated region
      $region53: #{forward.2} parent=51 // pred_check
        %p9943 = pneg %p210
      $region54: #{forward.2} parent=51 // pred_check_branch
        %9945 = sbr.rel (%p9943) target = $region56
      $region55: #{forward.2} parent=51 // pred_region
        _
      $region56: #{forward.2} parent=51 // pred_fallthru
        _
    $region52: #{forward.2} parent=5 // pred_fallthru
      _
    %p9946 = scmp.le.s32.totalorder 2, %s14
    // Predicated region
    $region57: #{forward.2} parent=5 // pred_check
      %p9947 = pneg %p9946
    $region58: #{forward.2} parent=5 // pred_check_branch
      %9949 = sbr.rel (%p9947) target = $region60
    $region59: #{forward.2} parent=5 // pred_region
      %s9950 = ssub.s32 %s14, 2
      // Predicated region
      $region61: #{forward.2} parent=59 // pred_check
        %p9951 = pneg %p216
      $region62: #{forward.2} parent=59 // pred_check_branch
        %9953 = sbr.rel (%p9951) target = $region64
      $region63: #{forward.2} parent=59 // pred_region
        %p9954 = scmp.lt.s32.totalorder %s20, 1
        %s9955 = scalar_select %p9954, %s20, 1
        %s9956 = smul.addr %s9955, 2
        %s9957 = smul.addr %s9956, 4
        %s9958 = scalar_lea.vmem %s8, %s9957
      $region64: #{forward.2} parent=59 // pred_fallthru
        _
    $region60: #{forward.2} parent=5 // pred_fallthru
      _
  $region6: #{forward.2} parent=0 // loop_footer
    %s18 = sadd.s32 1, %s14
  $region7: #{forward.2} parent=0 // loop_footer_branch
    %13 = sbr.rel target = $region3
  $region8: #{forward.2} parent=0 // loop_exit
    _

</llo_original>
